<compile_context>
chip_gen: v6e
topology: v6e:2x2x1
jax: 0.10.0
libtpu: 0.0.40
codegen_flags: <defaults>
</compile_context>

<pallas_src>
import functools

import jax
import jax.numpy as jnp
from jax.experimental import pallas as pl
from jax.experimental.pallas import tpu as pltpu


# ---- packed-operand indices -------------------------------------------------
# weight stack (NUM_W, C, C), bf16
(W_CP1_Y, W_CP1_U, W_CP2_Y, W_CP2_U,
 W_KV1_K, W_KV1_V, W_KV2_K, W_KV2_V,
 W_EP1, W_EP2, W_RES_A, W_RES_B, W_PW1_A, W_PW1_B, W_PW2) = range(15)
NUM_W = 15

# per-channel vector stack (NUM_V, C), f32
(V_CP1_BY, V_CP1_BU, V_CP2_BY, V_CP2_BU,
 V_EP1_B, V_EP2_B, V_LN1_G, V_LN1_B, V_LN2_G, V_LN2_B,
 V_PW1_B, V_DW_B, V_PW2_B,
 V_BN1_S, V_BN1_O, V_BN2_S, V_BN2_O) = range(17)
NUM_V = 17


# -----------------------------------------------------------------------------
# Fused kernel: CrossPath + channel_emb (jfe) for one batch element per step
# -----------------------------------------------------------------------------
def _ffm_kernel(x1_ref, x2_ref, w_ref, vec_ref, dww_ref, out_ref, pad_ref,
                *, num_heads, W, pad_rows, eps):
    f32 = jnp.float32
    bf16 = jnp.bfloat16
    C = x1_ref.shape[1]
    N = x1_ref.shape[2]
    dh = C // num_heads
    scale = dh ** -0.5
    P = pad_rows

    def vec(i):                                   # (1, C) f32 broadcast row
        return vec_ref[i:i + 1, :]

    def mm(a, i):                                 # bf16 MXU matmul, f32 acc
        return jnp.dot(a.astype(bf16), w_ref[i].astype(bf16),
                       preferred_element_type=f32)

    def nt(a, b):                                 # A @ B^T (contract last dims)
        return jax.lax.dot_general(a, b, (((1,), (1,)), ((), ())),
                                   preferred_element_type=f32)

    def eye(n):
        r = jax.lax.broadcasted_iota(jnp.int32, (n, n), 0)
        c = jax.lax.broadcasted_iota(jnp.int32, (n, n), 1)
        return (r == c).astype(f32)

    # ---- NCHW-flat (C, N) -> token layout (N, C): exact transpose on MXU ----
    eye_n = eye(N)
    x1 = nt(eye_n, x1_ref[0])                     # (N, C)
    x2 = nt(eye_n, x2_ref[0])

    # ---- CrossPath: 1x1-conv dim -> 2*dim, ReLU, chunk -> (y, u) ------------
    y1 = jnp.maximum(mm(x1, W_CP1_Y) + vec(V_CP1_BY), 0.0)
    u1 = jnp.maximum(mm(x1, W_CP1_U) + vec(V_CP1_BU), 0.0)
    y2 = jnp.maximum(mm(x2, W_CP2_Y) + vec(V_CP2_BY), 0.0)
    u2 = jnp.maximum(mm(x2, W_CP2_U) + vec(V_CP2_BU), 0.0)

    # kv projections (no bias)
    k1 = mm(u1, W_KV1_K); v1 = mm(u1, W_KV1_V)
    k2 = mm(u2, W_KV2_K); v2 = mm(u2, W_KV2_V)

    # ---- spatial multi-head cross attention (block-diagonal channel masks) --
    ch_idx = jax.lax.broadcasted_iota(jnp.int32, (1, C), 1)

    def mha(q, k, v):
        qb = (q * scale).astype(bf16)             # softmax scale folded into q
        out = jnp.zeros((N, C), f32)
        for h in range(num_heads):
            mh = ((ch_idx >= h * dh) & (ch_idx < (h + 1) * dh)).astype(f32)
            kb = (k * mh).astype(bf16)
            s = nt(qb, kb)                        # (N, N) f32 scores
            m = jnp.max(s, axis=-1, keepdims=True)
            e = jnp.exp(s - m)
            r = pl.reciprocal(jnp.sum(e, axis=-1, keepdims=True), approx=True)
            pb = (e * r).astype(bf16)
            vb = (v * mh).astype(bf16)
            # masked V keeps only head-h output channels; summing over heads
            # reassembles the full (N, C) attention output without concat.
            out = out + jnp.dot(pb, vb, preferred_element_type=f32)
        return out

    a1 = mha(u1, k2, v2)                          # path1 queries path2 K/V
    a2 = mha(u2, k1, v1)

    # ---- cat2add + end projection + residual + LayerNorm --------------------
    def add_ln(x, e, g, b):
        z = x + e
        mu = jnp.mean(z, axis=-1, keepdims=True)
        var = jnp.mean(jnp.square(z - mu), axis=-1, keepdims=True)
        return (z - mu) * jax.lax.rsqrt(var + eps) * g + b

    e1 = mm(y1 + a1, W_EP1) + vec(V_EP1_B)
    e2 = mm(y2 + a2, W_EP2) + vec(V_EP2_B)
    o1 = add_ln(x1, e1, vec(V_LN1_G), vec(V_LN1_B))
    o2 = add_ln(x2, e2, vec(V_LN2_G), vec(V_LN2_B))

    # ---- channel_emb (jfe): concat(o1, o2) handled via pre-split 2C weights -
    resid = mm(o1, W_RES_A) + mm(o2, W_RES_B)                     # (N, C)
    t = mm(o1, W_PW1_A) + mm(o2, W_PW1_B) + vec(V_PW1_B)          # (N, C)

    # ---- 3x3+5x5+7x7 depthwise combined into a single 7x7 pass (pad=3) ------
    # Flat-token layout: zero halo rows in a VMEM scratch emulate the vertical
    # zero padding; a per-column validity mask handles the horizontal edge.
    pad_ref[0:P, :] = jnp.zeros((P, C), f32)                 # halo only, every
    pad_ref[P + N:2 * P + N, :] = jnp.zeros((P, C), f32)     # step (megacore-safe)
    pad_ref[P:P + N, :] = t
    tpad = pad_ref[...]                                      # (2P + N, C)

    row = jax.lax.broadcasted_iota(jnp.int32, (N, 1), 0)
    if W & (W - 1) == 0:
        col = (row & (W - 1)).astype(f32)                    # token x-position
    else:
        rf = row.astype(f32)
        col = rf - W * jnp.floor((rf + 0.5) * (1.0 / W))

    acc = jnp.zeros((N, C), f32)
    for kw in range(7):
        base = P + (kw - 3) - 3 * W
        win = tpad[base:base + N + 6 * W, :]                 # 1 offset slice/kw
        inner = jnp.zeros((N, C), f32)
        for kh in range(7):
            idx = kh * 7 + kw
            # inner slices are 8-row aligned (multiples of W)
            inner = inner + win[kh * W:kh * W + N, :] * dww_ref[idx:idx + 1, :]
        cmask = ((col >= (3 - kw)) & (col < (W + 3 - kw))).astype(f32)
        acc = acc + inner * cmask
    dwv = jnp.maximum(acc + vec(V_DW_B), 0.0)

    # ---- 1x1 conv -> BN1 affine, + residual, BN2 affine ---------------------
    t2 = mm(dwv, W_PW2) + vec(V_PW2_B)
    z = resid + (t2 * vec(V_BN1_S) + vec(V_BN1_O))
    out = z * vec(V_BN2_S) + vec(V_BN2_O)

    # token (N, C) -> NCHW-flat (C, N) via exact identity NT matmul
    out_ref[0] = nt(eye(C), out).astype(out_ref.dtype)


# -----------------------------------------------------------------------------
# Parameters (deterministic, synthetic)
# -----------------------------------------------------------------------------
def init_params(key, dim):
    keys = jax.random.split(key, 40)
    it = iter(keys)

    def w(shape, fan_in=None):
        fan_in = fan_in if fan_in is not None else shape[0]
        return jax.random.normal(next(it), shape, jnp.float32) * (fan_in ** -0.5)

    zeros = lambda s: jnp.zeros(s, jnp.float32)
    ones = lambda s: jnp.ones(s, jnp.float32)
    rnd = lambda s: 0.1 * jax.random.normal(next(it), s, jnp.float32)

    return dict(
        # CrossPath
        cp1_w=w((dim, 2 * dim)), cp1_b=zeros((2 * dim,)),
        cp2_w=w((dim, 2 * dim)), cp2_b=zeros((2 * dim,)),
        kv1_w=w((dim, 2 * dim)), kv2_w=w((dim, 2 * dim)),   # qkv_bias=False
        ep1_w=w((dim, dim)), ep1_b=zeros((dim,)),
        ep2_w=w((dim, dim)), ep2_b=zeros((dim,)),
        ln1_g=ones((dim,)), ln1_b=zeros((dim,)),
        ln2_g=ones((dim,)), ln2_b=zeros((dim,)),
        # channel_emb (jfe): in_channels = 2*dim, out_channels = dim
        res_w=w((2 * dim, dim)),
        pw1_w=w((2 * dim, dim)), pw1_b=zeros((dim,)),
        dw3=w((3, 3, dim), fan_in=9), dw3_b=rnd((dim,)),
        dw5=w((5, 5, dim), fan_in=25), dw5_b=rnd((dim,)),
        dw7=w((7, 7, dim), fan_in=49), dw7_b=rnd((dim,)),
        pw2_w=w((dim, dim)), pw2_b=zeros((dim,)),
        bn1_g=ones((dim,)) + rnd((dim,)), bn1_b=rnd((dim,)),
        bn1_m=rnd((dim,)), bn1_v=ones((dim,)),
        bn2_g=ones((dim,)) + rnd((dim,)), bn2_b=rnd((dim,)),
        bn2_m=rnd((dim,)), bn2_v=ones((dim,)),
    )


def _bn_affine(g, b, m, v, eps=1e-5):
    s = g * jax.lax.rsqrt(v + eps)
    return s, b - m * s


# -----------------------------------------------------------------------------
# Forward
# -----------------------------------------------------------------------------
def ffm_forward(x1_nchw, x2_nchw, params, *, num_heads):
    B, C, H, W = x1_nchw.shape
    N = H * W
    if C % num_heads:
        raise ValueError("dim must be divisible by num_heads")
    # The flat-token depthwise pass relies on 8-row-aligned stores/slices.
    assert W % 8 == 0 and N % 8 == 0, "W and H*W must be multiples of 8"

    p = params

    # NCHW -> (B, C, N): free reshape, layout already matches the kernel blocks
    x1 = x1_nchw.reshape(B, C, N)
    x2 = x2_nchw.reshape(B, C, N)

    # ---- one bf16 weight stack (2C-wide projections pre-split in half) ------
    w_all = jnp.stack([
        p["cp1_w"][:, :C], p["cp1_w"][:, C:],
        p["cp2_w"][:, :C], p["cp2_w"][:, C:],
        p["kv1_w"][:, :C], p["kv1_w"][:, C:],
        p["kv2_w"][:, :C], p["kv2_w"][:, C:],
        p["ep1_w"], p["ep2_w"],
        p["res_w"][:C, :], p["res_w"][C:, :],
        p["pw1_w"][:C, :], p["pw1_w"][C:, :],
        p["pw2_w"],
    ]).astype(jnp.bfloat16)                                   # (NUM_W, C, C)

    # ---- one f32 stack for every per-channel bias/affine vector -------------
    bn1s, bn1o = _bn_affine(p["bn1_g"], p["bn1_b"], p["bn1_m"], p["bn1_v"])
    bn2s, bn2o = _bn_affine(p["bn2_g"], p["bn2_b"], p["bn2_m"], p["bn2_v"])
    dwb = p["dw3_b"] + p["dw5_b"] + p["dw7_b"]
    vec_all = jnp.stack([
        p["cp1_b"][:C], p["cp1_b"][C:],
        p["cp2_b"][:C], p["cp2_b"][C:],
        p["ep1_b"], p["ep2_b"],
        p["ln1_g"], p["ln1_b"], p["ln2_g"], p["ln2_b"],
        p["pw1_b"], dwb, p["pw2_b"],
        bn1s, bn1o, bn2s, bn2o,
    ]).astype(jnp.float32)                                    # (NUM_V, C)

    # 3/5/7 depthwise kernels pre-combined into one centered 7x7 tap table
    dww = (jnp.pad(p["dw3"], ((2, 2), (2, 2), (0, 0)))
           + jnp.pad(p["dw5"], ((1, 1), (1, 1), (0, 0)))
           + p["dw7"]).reshape(49, C).astype(jnp.float32)     # (49, C)

    pad_rows = ((3 * W + 3 + 7) // 8) * 8                     # >= 3W+3, 8-aligned
    total_rows = 2 * pad_rows + N

    mxu_macs = (NUM_W * N * C * C            # linear / 1x1-conv matmuls
                + 4 * num_heads * N * N * C  # attention scores + context
                + 2 * N * N * C + N * C * C) # identity relayout matmuls
    cost = pl.CostEstimate(
        flops=2 * B * (mxu_macs + 49 * N * C),
        transcendentals=B * (2 * num_heads * N * N + 2 * num_heads * N),
        bytes_accessed=(3 * B * N * C * 4
                        + w_all.size * 2 + vec_all.size * 4 + dww.size * 4),
    )

    out = pl.pallas_call(
        functools.partial(_ffm_kernel, num_heads=num_heads, W=W,
                          pad_rows=pad_rows, eps=1e-5),
        out_shape=jax.ShapeDtypeStruct((B, C, N), x1.dtype),
        grid_spec=pltpu.PrefetchScalarGridSpec(
            num_scalar_prefetch=0,
            grid=(B,),
            in_specs=[
                pl.BlockSpec((1, C, N), lambda b: (b, 0, 0)),      # x1 (C,N)
                pl.BlockSpec((1, C, N), lambda b: (b, 0, 0)),      # x2 (C,N)
                pl.BlockSpec((NUM_W, C, C), lambda b: (0, 0, 0)),  # weights
                pl.BlockSpec((NUM_V, C), lambda b: (0, 0)),        # vectors
                pl.BlockSpec((49, C), lambda b: (0, 0)),           # dw taps
            ],
            out_specs=pl.BlockSpec((1, C, N), lambda b: (b, 0, 0)),
            scratch_shapes=[pltpu.VMEM((total_rows, C), jnp.float32)],
        ),
        compiler_params=pltpu.CompilerParams(
            dimension_semantics=("parallel",)),
        cost_estimate=cost,
    )(x1, x2, w_all, vec_all, dww)

    # (B, C, N) -> (B, C, H, W): free reshape (already NCHW layout)
    return out.reshape(B, C, H, W)


# -----------------------------------------------------------------------------
# Main
# -----------------------------------------------------------------------------
if __name__ == "__main__":
    B, C, H, W = 2, 32, 8, 8
    num_heads = 4

    key = jax.random.PRNGKey(0)
    kx1, kx2, kp = jax.random.split(key, 3)
    x1 = jax.random.normal(kx1, (B, C, H, W), jnp.float32)
    x2 = jax.random.normal(kx2, (B, C, H, W), jnp.float32)
    params = init_params(kp, C)

    fwd = jax.jit(functools.partial(ffm_forward, num_heads=num_heads))
    out = fwd(x1, x2, params)
    jax.block_until_ready(out)

    assert out.shape == (B, C, H, W)
    assert bool(jnp.all(jnp.isfinite(out)))
    print("KERNEL_OK")
</pallas_src>

<mosaic_0001>
module attributes {stable_mosaic.version = 11 : i64} {
  func.func @_ffm_kernel(%arg0: i32, %arg1: memref<1x32x64xf32, #tpu.memory_space<vmem>>, %arg2: memref<1x32x64xf32, #tpu.memory_space<vmem>>, %arg3: memref<15x32x32xbf16, #tpu.memory_space<vmem>>, %arg4: memref<17x32xf32, #tpu.memory_space<vmem>>, %arg5: memref<49x32xf32, #tpu.memory_space<vmem>>, %arg6: memref<1x32x64xf32, #tpu.memory_space<vmem>>, %arg7: memref<128x32xf32, #tpu.memory_space<vmem>>) attributes {dimension_semantics = [#tpu.dimension_semantics<parallel>], iteration_bounds = array<i64: 2>, scalar_prefetch = 0 : i64, scratch_operands = 1 : i64, tpu.core_type = #tpu.core_type<tc>, window_params = [{transform_indices = @transform_0, window_bounds = array<i64: 1, 32, 64>}, {transform_indices = @transform_1, window_bounds = array<i64: 1, 32, 64>}, {pipeline_mode = #tpu.pipeline_mode<synchronous>, transform_indices = @transform_2, window_bounds = array<i64: 15, 32, 32>}, {pipeline_mode = #tpu.pipeline_mode<synchronous>, transform_indices = @transform_3, window_bounds = array<i64: 17, 32>}, {pipeline_mode = #tpu.pipeline_mode<synchronous>, transform_indices = @transform_4, window_bounds = array<i64: 49, 32>}, {transform_indices = @transform_5, window_bounds = array<i64: 1, 32, 64>}]} {
    %0 = tpu.iota {dimensions = array<i32: 0>} : vector<64x64xi32>
    %1 = tpu.iota {dimensions = array<i32: 1>} : vector<64x64xi32>
    %2 = arith.cmpi eq, %0, %1 : vector<64x64xi32>
    %3 = arith.extui %2 : vector<64x64xi1> to vector<64x64xi32>
    %4 = arith.sitofp %3 : vector<64x64xi32> to vector<64x64xf32>
    %c0 = arith.constant 0 : index
    %c0_0 = arith.constant 0 : index
    %c0_1 = arith.constant 0 : index
    %5 = vector.load %arg1[%c0, %c0_0, %c0_1] : memref<1x32x64xf32, #tpu.memory_space<vmem>>, vector<1x32x64xf32>
    %6 = vector.shape_cast %5 : vector<1x32x64xf32> to vector<32x64xf32>
    %cst = arith.constant dense<0.000000e+00> : vector<64x32xf32>
    %7 = tpu.matmul %4, %6, %cst {dimension_numbers = #tpu.dot_dimension_numbers<[1], [1], [0], [0], [0, 0, 1, 0], [], []>} : vector<64x64xf32>, vector<32x64xf32>, vector<64x32xf32> -> vector<64x32xf32>
    %c0_2 = arith.constant 0 : index
    %c0_3 = arith.constant 0 : index
    %c0_4 = arith.constant 0 : index
    %8 = vector.load %arg2[%c0_2, %c0_3, %c0_4] : memref<1x32x64xf32, #tpu.memory_space<vmem>>, vector<1x32x64xf32>
    %9 = vector.shape_cast %8 : vector<1x32x64xf32> to vector<32x64xf32>
    %cst_5 = arith.constant dense<0.000000e+00> : vector<64x32xf32>
    %10 = tpu.matmul %4, %9, %cst_5 {dimension_numbers = #tpu.dot_dimension_numbers<[1], [1], [0], [0], [0, 0, 1, 0], [], []>} : vector<64x64xf32>, vector<32x64xf32>, vector<64x32xf32> -> vector<64x32xf32>
    %11 = arith.truncf %7 : vector<64x32xf32> to vector<64x32xbf16>
    %c0_6 = arith.constant 0 : index
    %c0_7 = arith.constant 0 : index
    %c0_8 = arith.constant 0 : index
    %12 = vector.load %arg3[%c0_6, %c0_7, %c0_8] : memref<15x32x32xbf16, #tpu.memory_space<vmem>>, vector<1x32x32xbf16>
    %13 = vector.shape_cast %12 : vector<1x32x32xbf16> to vector<32x32xbf16>
    %cst_9 = arith.constant dense<0.000000e+00> : vector<64x32xf32>
    %14 = tpu.matmul %11, %13, %cst_9 {dimension_numbers = #tpu.dot_dimension_numbers<[1], [0], [0], [1], [0, 0, 1, 1], [], []>} : vector<64x32xbf16>, vector<32x32xbf16>, vector<64x32xf32> -> vector<64x32xf32>
    %c0_10 = arith.constant 0 : index
    %c0_11 = arith.constant 0 : index
    %15 = vector.load %arg4[%c0_10, %c0_11] : memref<17x32xf32, #tpu.memory_space<vmem>>, vector<1x32xf32>
    %16 = vector.broadcast %15 : vector<1x32xf32> to vector<64x32xf32>
    %17 = arith.addf %14, %16 : vector<64x32xf32>
    %cst_12 = arith.constant 0.000000e+00 : f32
    %18 = vector.broadcast %cst_12 : f32 to vector<64x32xf32>
    %19 = arith.maximumf %17, %18 : vector<64x32xf32>
    %20 = arith.truncf %7 : vector<64x32xf32> to vector<64x32xbf16>
    %c1 = arith.constant 1 : index
    %c0_13 = arith.constant 0 : index
    %c0_14 = arith.constant 0 : index
    %21 = vector.load %arg3[%c1, %c0_13, %c0_14] : memref<15x32x32xbf16, #tpu.memory_space<vmem>>, vector<1x32x32xbf16>
    %22 = vector.shape_cast %21 : vector<1x32x32xbf16> to vector<32x32xbf16>
    %cst_15 = arith.constant dense<0.000000e+00> : vector<64x32xf32>
    %23 = tpu.matmul %20, %22, %cst_15 {dimension_numbers = #tpu.dot_dimension_numbers<[1], [0], [0], [1], [0, 0, 1, 1], [], []>} : vector<64x32xbf16>, vector<32x32xbf16>, vector<64x32xf32> -> vector<64x32xf32>
    %c1_16 = arith.constant 1 : index
    %c0_17 = arith.constant 0 : index
    %24 = vector.load %arg4[%c1_16, %c0_17] : memref<17x32xf32, #tpu.memory_space<vmem>>, vector<1x32xf32>
    %25 = vector.broadcast %24 : vector<1x32xf32> to vector<64x32xf32>
    %26 = arith.addf %23, %25 : vector<64x32xf32>
    %cst_18 = arith.constant 0.000000e+00 : f32
    %27 = vector.broadcast %cst_18 : f32 to vector<64x32xf32>
    %28 = arith.maximumf %26, %27 : vector<64x32xf32>
    %29 = arith.truncf %10 : vector<64x32xf32> to vector<64x32xbf16>
    %c2 = arith.constant 2 : index
    %c0_19 = arith.constant 0 : index
    %c0_20 = arith.constant 0 : index
    %30 = vector.load %arg3[%c2, %c0_19, %c0_20] : memref<15x32x32xbf16, #tpu.memory_space<vmem>>, vector<1x32x32xbf16>
    %31 = vector.shape_cast %30 : vector<1x32x32xbf16> to vector<32x32xbf16>
    %cst_21 = arith.constant dense<0.000000e+00> : vector<64x32xf32>
    %32 = tpu.matmul %29, %31, %cst_21 {dimension_numbers = #tpu.dot_dimension_numbers<[1], [0], [0], [1], [0, 0, 1, 1], [], []>} : vector<64x32xbf16>, vector<32x32xbf16>, vector<64x32xf32> -> vector<64x32xf32>
    %c2_22 = arith.constant 2 : index
    %c0_23 = arith.constant 0 : index
    %33 = vector.load %arg4[%c2_22, %c0_23] : memref<17x32xf32, #tpu.memory_space<vmem>>, vector<1x32xf32>
    %34 = vector.broadcast %33 : vector<1x32xf32> to vector<64x32xf32>
    %35 = arith.addf %32, %34 : vector<64x32xf32>
    %cst_24 = arith.constant 0.000000e+00 : f32
    %36 = vector.broadcast %cst_24 : f32 to vector<64x32xf32>
    %37 = arith.maximumf %35, %36 : vector<64x32xf32>
    %38 = arith.truncf %10 : vector<64x32xf32> to vector<64x32xbf16>
    %c3 = arith.constant 3 : index
    %c0_25 = arith.constant 0 : index
    %c0_26 = arith.constant 0 : index
    %39 = vector.load %arg3[%c3, %c0_25, %c0_26] : memref<15x32x32xbf16, #tpu.memory_space<vmem>>, vector<1x32x32xbf16>
    %40 = vector.shape_cast %39 : vector<1x32x32xbf16> to vector<32x32xbf16>
    %cst_27 = arith.constant dense<0.000000e+00> : vector<64x32xf32>
    %41 = tpu.matmul %38, %40, %cst_27 {dimension_numbers = #tpu.dot_dimension_numbers<[1], [0], [0], [1], [0, 0, 1, 1], [], []>} : vector<64x32xbf16>, vector<32x32xbf16>, vector<64x32xf32> -> vector<64x32xf32>
    %c3_28 = arith.constant 3 : index
    %c0_29 = arith.constant 0 : index
    %42 = vector.load %arg4[%c3_28, %c0_29] : memref<17x32xf32, #tpu.memory_space<vmem>>, vector<1x32xf32>
    %43 = vector.broadcast %42 : vector<1x32xf32> to vector<64x32xf32>
    %44 = arith.addf %41, %43 : vector<64x32xf32>
    %cst_30 = arith.constant 0.000000e+00 : f32
    %45 = vector.broadcast %cst_30 : f32 to vector<64x32xf32>
    %46 = arith.maximumf %44, %45 : vector<64x32xf32>
    %47 = arith.truncf %28 : vector<64x32xf32> to vector<64x32xbf16>
    %c4 = arith.constant 4 : index
    %c0_31 = arith.constant 0 : index
    %c0_32 = arith.constant 0 : index
    %48 = vector.load %arg3[%c4, %c0_31, %c0_32] : memref<15x32x32xbf16, #tpu.memory_space<vmem>>, vector<1x32x32xbf16>
    %49 = vector.shape_cast %48 : vector<1x32x32xbf16> to vector<32x32xbf16>
    %cst_33 = arith.constant dense<0.000000e+00> : vector<64x32xf32>
    %50 = tpu.matmul %47, %49, %cst_33 {dimension_numbers = #tpu.dot_dimension_numbers<[1], [0], [0], [1], [0, 0, 1, 1], [], []>} : vector<64x32xbf16>, vector<32x32xbf16>, vector<64x32xf32> -> vector<64x32xf32>
    %51 = arith.truncf %28 : vector<64x32xf32> to vector<64x32xbf16>
    %c5 = arith.constant 5 : index
    %c0_34 = arith.constant 0 : index
    %c0_35 = arith.constant 0 : index
    %52 = vector.load %arg3[%c5, %c0_34, %c0_35] : memref<15x32x32xbf16, #tpu.memory_space<vmem>>, vector<1x32x32xbf16>
    %53 = vector.shape_cast %52 : vector<1x32x32xbf16> to vector<32x32xbf16>
    %cst_36 = arith.constant dense<0.000000e+00> : vector<64x32xf32>
    %54 = tpu.matmul %51, %53, %cst_36 {dimension_numbers = #tpu.dot_dimension_numbers<[1], [0], [0], [1], [0, 0, 1, 1], [], []>} : vector<64x32xbf16>, vector<32x32xbf16>, vector<64x32xf32> -> vector<64x32xf32>
    %55 = arith.truncf %46 : vector<64x32xf32> to vector<64x32xbf16>
    %c6 = arith.constant 6 : index
    %c0_37 = arith.constant 0 : index
    %c0_38 = arith.constant 0 : index
    %56 = vector.load %arg3[%c6, %c0_37, %c0_38] : memref<15x32x32xbf16, #tpu.memory_space<vmem>>, vector<1x32x32xbf16>
    %57 = vector.shape_cast %56 : vector<1x32x32xbf16> to vector<32x32xbf16>
    %cst_39 = arith.constant dense<0.000000e+00> : vector<64x32xf32>
    %58 = tpu.matmul %55, %57, %cst_39 {dimension_numbers = #tpu.dot_dimension_numbers<[1], [0], [0], [1], [0, 0, 1, 1], [], []>} : vector<64x32xbf16>, vector<32x32xbf16>, vector<64x32xf32> -> vector<64x32xf32>
    %59 = arith.truncf %46 : vector<64x32xf32> to vector<64x32xbf16>
    %c7 = arith.constant 7 : index
    %c0_40 = arith.constant 0 : index
    %c0_41 = arith.constant 0 : index
    %60 = vector.load %arg3[%c7, %c0_40, %c0_41] : memref<15x32x32xbf16, #tpu.memory_space<vmem>>, vector<1x32x32xbf16>
    %61 = vector.shape_cast %60 : vector<1x32x32xbf16> to vector<32x32xbf16>
    %cst_42 = arith.constant dense<0.000000e+00> : vector<64x32xf32>
    %62 = tpu.matmul %59, %61, %cst_42 {dimension_numbers = #tpu.dot_dimension_numbers<[1], [0], [0], [1], [0, 0, 1, 1], [], []>} : vector<64x32xbf16>, vector<32x32xbf16>, vector<64x32xf32> -> vector<64x32xf32>
    %63 = tpu.iota {dimensions = array<i32: 1>} : vector<1x32xi32>
    %cst_43 = arith.constant 0.353553385 : f32
    %64 = vector.broadcast %cst_43 : f32 to vector<64x32xf32>
    %65 = arith.mulf %28, %64 : vector<64x32xf32>
    %66 = arith.truncf %65 : vector<64x32xf32> to vector<64x32xbf16>
    %cst_44 = arith.constant 0.000000e+00 : f32
    %67 = vector.broadcast %cst_44 : f32 to vector<64x32xf32>
    %c0_i32 = arith.constant 0 : i32
    %68 = vector.broadcast %c0_i32 : i32 to vector<1x32xi32>
    %69 = arith.cmpi sge, %63, %68 : vector<1x32xi32>
    %c8_i32 = arith.constant 8 : i32
    %70 = vector.broadcast %c8_i32 : i32 to vector<1x32xi32>
    %71 = arith.cmpi slt, %63, %70 : vector<1x32xi32>
    %72 = arith.andi %69, %71 : vector<1x32xi1>
    %73 = arith.extui %72 : vector<1x32xi1> to vector<1x32xi32>
    %74 = arith.sitofp %73 : vector<1x32xi32> to vector<1x32xf32>
    %75 = vector.broadcast %74 : vector<1x32xf32> to vector<64x32xf32>
    %76 = arith.mulf %58, %75 : vector<64x32xf32>
    %77 = arith.truncf %76 : vector<64x32xf32> to vector<64x32xbf16>
    %cst_45 = arith.constant dense<0.000000e+00> : vector<64x64xf32>
    %78 = tpu.matmul %66, %77, %cst_45 {dimension_numbers = #tpu.dot_dimension_numbers<[1], [1], [0], [0], [0, 0, 1, 0], [], []>} : vector<64x32xbf16>, vector<64x32xbf16>, vector<64x64xf32> -> vector<64x64xf32>
    %cst_46 = arith.constant dense<0xFF800000> : vector<64xf32>
    %79 = vector.multi_reduction <maximumf>, %78, %cst_46 [1] : vector<64x64xf32> to vector<64xf32>
    %80 = vector.shape_cast %79 : vector<64xf32> to vector<64x1xf32>
    %81 = vector.broadcast %80 : vector<64x1xf32> to vector<64x64xf32>
    %82 = arith.subf %78, %81 : vector<64x64xf32>
    %83 = math.exp %82 : vector<64x64xf32>
    %cst_47 = arith.constant dense<0.000000e+00> : vector<64xf32>
    %84 = vector.multi_reduction <add>, %83, %cst_47 [1] : vector<64x64xf32> to vector<64xf32>
    %85 = vector.shape_cast %84 : vector<64xf32> to vector<64x1xf32>
    %86 = tpu.reciprocal %85 {approx = true} : vector<64x1xf32> -> vector<64x1xf32>
    %87 = vector.broadcast %86 : vector<64x1xf32> to vector<64x64xf32>
    %88 = arith.mulf %83, %87 : vector<64x64xf32>
    %89 = arith.truncf %88 : vector<64x64xf32> to vector<64x64xbf16>
    %90 = vector.broadcast %74 : vector<1x32xf32> to vector<64x32xf32>
    %91 = arith.mulf %62, %90 : vector<64x32xf32>
    %92 = arith.truncf %91 : vector<64x32xf32> to vector<64x32xbf16>
    %cst_48 = arith.constant dense<0.000000e+00> : vector<64x32xf32>
    %93 = tpu.matmul %89, %92, %cst_48 {dimension_numbers = #tpu.dot_dimension_numbers<[1], [0], [0], [1], [0, 0, 1, 1], [], []>} : vector<64x64xbf16>, vector<64x32xbf16>, vector<64x32xf32> -> vector<64x32xf32>
    %94 = arith.addf %67, %93 : vector<64x32xf32>
    %c8_i32_49 = arith.constant 8 : i32
    %95 = vector.broadcast %c8_i32_49 : i32 to vector<1x32xi32>
    %96 = arith.cmpi sge, %63, %95 : vector<1x32xi32>
    %c16_i32 = arith.constant 16 : i32
    %97 = vector.broadcast %c16_i32 : i32 to vector<1x32xi32>
    %98 = arith.cmpi slt, %63, %97 : vector<1x32xi32>
    %99 = arith.andi %96, %98 : vector<1x32xi1>
    %100 = arith.extui %99 : vector<1x32xi1> to vector<1x32xi32>
    %101 = arith.sitofp %100 : vector<1x32xi32> to vector<1x32xf32>
    %102 = vector.broadcast %101 : vector<1x32xf32> to vector<64x32xf32>
    %103 = arith.mulf %58, %102 : vector<64x32xf32>
    %104 = arith.truncf %103 : vector<64x32xf32> to vector<64x32xbf16>
    %cst_50 = arith.constant dense<0.000000e+00> : vector<64x64xf32>
    %105 = tpu.matmul %66, %104, %cst_50 {dimension_numbers = #tpu.dot_dimension_numbers<[1], [1], [0], [0], [0, 0, 1, 0], [], []>} : vector<64x32xbf16>, vector<64x32xbf16>, vector<64x64xf32> -> vector<64x64xf32>
    %cst_51 = arith.constant dense<0xFF800000> : vector<64xf32>
    %106 = vector.multi_reduction <maximumf>, %105, %cst_51 [1] : vector<64x64xf32> to vector<64xf32>
    %107 = vector.shape_cast %106 : vector<64xf32> to vector<64x1xf32>
    %108 = vector.broadcast %107 : vector<64x1xf32> to vector<64x64xf32>
    %109 = arith.subf %105, %108 : vector<64x64xf32>
    %110 = math.exp %109 : vector<64x64xf32>
    %cst_52 = arith.constant dense<0.000000e+00> : vector<64xf32>
    %111 = vector.multi_reduction <add>, %110, %cst_52 [1] : vector<64x64xf32> to vector<64xf32>
    %112 = vector.shape_cast %111 : vector<64xf32> to vector<64x1xf32>
    %113 = tpu.reciprocal %112 {approx = true} : vector<64x1xf32> -> vector<64x1xf32>
    %114 = vector.broadcast %113 : vector<64x1xf32> to vector<64x64xf32>
    %115 = arith.mulf %110, %114 : vector<64x64xf32>
    %116 = arith.truncf %115 : vector<64x64xf32> to vector<64x64xbf16>
    %117 = vector.broadcast %101 : vector<1x32xf32> to vector<64x32xf32>
    %118 = arith.mulf %62, %117 : vector<64x32xf32>
    %119 = arith.truncf %118 : vector<64x32xf32> to vector<64x32xbf16>
    %cst_53 = arith.constant dense<0.000000e+00> : vector<64x32xf32>
    %120 = tpu.matmul %116, %119, %cst_53 {dimension_numbers = #tpu.dot_dimension_numbers<[1], [0], [0], [1], [0, 0, 1, 1], [], []>} : vector<64x64xbf16>, vector<64x32xbf16>, vector<64x32xf32> -> vector<64x32xf32>
    %121 = arith.addf %94, %120 : vector<64x32xf32>
    %c16_i32_54 = arith.constant 16 : i32
    %122 = vector.broadcast %c16_i32_54 : i32 to vector<1x32xi32>
    %123 = arith.cmpi sge, %63, %122 : vector<1x32xi32>
    %c24_i32 = arith.constant 24 : i32
    %124 = vector.broadcast %c24_i32 : i32 to vector<1x32xi32>
    %125 = arith.cmpi slt, %63, %124 : vector<1x32xi32>
    %126 = arith.andi %123, %125 : vector<1x32xi1>
    %127 = arith.extui %126 : vector<1x32xi1> to vector<1x32xi32>
    %128 = arith.sitofp %127 : vector<1x32xi32> to vector<1x32xf32>
    %129 = vector.broadcast %128 : vector<1x32xf32> to vector<64x32xf32>
    %130 = arith.mulf %58, %129 : vector<64x32xf32>
    %131 = arith.truncf %130 : vector<64x32xf32> to vector<64x32xbf16>
    %cst_55 = arith.constant dense<0.000000e+00> : vector<64x64xf32>
    %132 = tpu.matmul %66, %131, %cst_55 {dimension_numbers = #tpu.dot_dimension_numbers<[1], [1], [0], [0], [0, 0, 1, 0], [], []>} : vector<64x32xbf16>, vector<64x32xbf16>, vector<64x64xf32> -> vector<64x64xf32>
    %cst_56 = arith.constant dense<0xFF800000> : vector<64xf32>
    %133 = vector.multi_reduction <maximumf>, %132, %cst_56 [1] : vector<64x64xf32> to vector<64xf32>
    %134 = vector.shape_cast %133 : vector<64xf32> to vector<64x1xf32>
    %135 = vector.broadcast %134 : vector<64x1xf32> to vector<64x64xf32>
    %136 = arith.subf %132, %135 : vector<64x64xf32>
    %137 = math.exp %136 : vector<64x64xf32>
    %cst_57 = arith.constant dense<0.000000e+00> : vector<64xf32>
    %138 = vector.multi_reduction <add>, %137, %cst_57 [1] : vector<64x64xf32> to vector<64xf32>
    %139 = vector.shape_cast %138 : vector<64xf32> to vector<64x1xf32>
    %140 = tpu.reciprocal %139 {approx = true} : vector<64x1xf32> -> vector<64x1xf32>
    %141 = vector.broadcast %140 : vector<64x1xf32> to vector<64x64xf32>
    %142 = arith.mulf %137, %141 : vector<64x64xf32>
    %143 = arith.truncf %142 : vector<64x64xf32> to vector<64x64xbf16>
    %144 = vector.broadcast %128 : vector<1x32xf32> to vector<64x32xf32>
    %145 = arith.mulf %62, %144 : vector<64x32xf32>
    %146 = arith.truncf %145 : vector<64x32xf32> to vector<64x32xbf16>
    %cst_58 = arith.constant dense<0.000000e+00> : vector<64x32xf32>
    %147 = tpu.matmul %143, %146, %cst_58 {dimension_numbers = #tpu.dot_dimension_numbers<[1], [0], [0], [1], [0, 0, 1, 1], [], []>} : vector<64x64xbf16>, vector<64x32xbf16>, vector<64x32xf32> -> vector<64x32xf32>
    %148 = arith.addf %121, %147 : vector<64x32xf32>
    %c24_i32_59 = arith.constant 24 : i32
    %149 = vector.broadcast %c24_i32_59 : i32 to vector<1x32xi32>
    %150 = arith.cmpi sge, %63, %149 : vector<1x32xi32>
    %c32_i32 = arith.constant 32 : i32
    %151 = vector.broadcast %c32_i32 : i32 to vector<1x32xi32>
    %152 = arith.cmpi slt, %63, %151 : vector<1x32xi32>
    %153 = arith.andi %150, %152 : vector<1x32xi1>
    %154 = arith.extui %153 : vector<1x32xi1> to vector<1x32xi32>
    %155 = arith.sitofp %154 : vector<1x32xi32> to vector<1x32xf32>
    %156 = vector.broadcast %155 : vector<1x32xf32> to vector<64x32xf32>
    %157 = arith.mulf %58, %156 : vector<64x32xf32>
    %158 = arith.truncf %157 : vector<64x32xf32> to vector<64x32xbf16>
    %cst_60 = arith.constant dense<0.000000e+00> : vector<64x64xf32>
    %159 = tpu.matmul %66, %158, %cst_60 {dimension_numbers = #tpu.dot_dimension_numbers<[1], [1], [0], [0], [0, 0, 1, 0], [], []>} : vector<64x32xbf16>, vector<64x32xbf16>, vector<64x64xf32> -> vector<64x64xf32>
    %cst_61 = arith.constant dense<0xFF800000> : vector<64xf32>
    %160 = vector.multi_reduction <maximumf>, %159, %cst_61 [1] : vector<64x64xf32> to vector<64xf32>
    %161 = vector.shape_cast %160 : vector<64xf32> to vector<64x1xf32>
    %162 = vector.broadcast %161 : vector<64x1xf32> to vector<64x64xf32>
    %163 = arith.subf %159, %162 : vector<64x64xf32>
    %164 = math.exp %163 : vector<64x64xf32>
    %cst_62 = arith.constant dense<0.000000e+00> : vector<64xf32>
    %165 = vector.multi_reduction <add>, %164, %cst_62 [1] : vector<64x64xf32> to vector<64xf32>
    %166 = vector.shape_cast %165 : vector<64xf32> to vector<64x1xf32>
    %167 = tpu.reciprocal %166 {approx = true} : vector<64x1xf32> -> vector<64x1xf32>
    %168 = vector.broadcast %167 : vector<64x1xf32> to vector<64x64xf32>
    %169 = arith.mulf %164, %168 : vector<64x64xf32>
    %170 = arith.truncf %169 : vector<64x64xf32> to vector<64x64xbf16>
    %171 = vector.broadcast %155 : vector<1x32xf32> to vector<64x32xf32>
    %172 = arith.mulf %62, %171 : vector<64x32xf32>
    %173 = arith.truncf %172 : vector<64x32xf32> to vector<64x32xbf16>
    %cst_63 = arith.constant dense<0.000000e+00> : vector<64x32xf32>
    %174 = tpu.matmul %170, %173, %cst_63 {dimension_numbers = #tpu.dot_dimension_numbers<[1], [0], [0], [1], [0, 0, 1, 1], [], []>} : vector<64x64xbf16>, vector<64x32xbf16>, vector<64x32xf32> -> vector<64x32xf32>
    %175 = arith.addf %148, %174 : vector<64x32xf32>
    %cst_64 = arith.constant 0.353553385 : f32
    %176 = vector.broadcast %cst_64 : f32 to vector<64x32xf32>
    %177 = arith.mulf %46, %176 : vector<64x32xf32>
    %178 = arith.truncf %177 : vector<64x32xf32> to vector<64x32xbf16>
    %cst_65 = arith.constant 0.000000e+00 : f32
    %179 = vector.broadcast %cst_65 : f32 to vector<64x32xf32>
    %c0_i32_66 = arith.constant 0 : i32
    %180 = vector.broadcast %c0_i32_66 : i32 to vector<1x32xi32>
    %181 = arith.cmpi sge, %63, %180 : vector<1x32xi32>
    %c8_i32_67 = arith.constant 8 : i32
    %182 = vector.broadcast %c8_i32_67 : i32 to vector<1x32xi32>
    %183 = arith.cmpi slt, %63, %182 : vector<1x32xi32>
    %184 = arith.andi %181, %183 : vector<1x32xi1>
    %185 = arith.extui %184 : vector<1x32xi1> to vector<1x32xi32>
    %186 = arith.sitofp %185 : vector<1x32xi32> to vector<1x32xf32>
    %187 = vector.broadcast %186 : vector<1x32xf32> to vector<64x32xf32>
    %188 = arith.mulf %50, %187 : vector<64x32xf32>
    %189 = arith.truncf %188 : vector<64x32xf32> to vector<64x32xbf16>
    %cst_68 = arith.constant dense<0.000000e+00> : vector<64x64xf32>
    %190 = tpu.matmul %178, %189, %cst_68 {dimension_numbers = #tpu.dot_dimension_numbers<[1], [1], [0], [0], [0, 0, 1, 0], [], []>} : vector<64x32xbf16>, vector<64x32xbf16>, vector<64x64xf32> -> vector<64x64xf32>
    %cst_69 = arith.constant dense<0xFF800000> : vector<64xf32>
    %191 = vector.multi_reduction <maximumf>, %190, %cst_69 [1] : vector<64x64xf32> to vector<64xf32>
    %192 = vector.shape_cast %191 : vector<64xf32> to vector<64x1xf32>
    %193 = vector.broadcast %192 : vector<64x1xf32> to vector<64x64xf32>
    %194 = arith.subf %190, %193 : vector<64x64xf32>
    %195 = math.exp %194 : vector<64x64xf32>
    %cst_70 = arith.constant dense<0.000000e+00> : vector<64xf32>
    %196 = vector.multi_reduction <add>, %195, %cst_70 [1] : vector<64x64xf32> to vector<64xf32>
    %197 = vector.shape_cast %196 : vector<64xf32> to vector<64x1xf32>
    %198 = tpu.reciprocal %197 {approx = true} : vector<64x1xf32> -> vector<64x1xf32>
    %199 = vector.broadcast %198 : vector<64x1xf32> to vector<64x64xf32>
    %200 = arith.mulf %195, %199 : vector<64x64xf32>
    %201 = arith.truncf %200 : vector<64x64xf32> to vector<64x64xbf16>
    %202 = vector.broadcast %186 : vector<1x32xf32> to vector<64x32xf32>
    %203 = arith.mulf %54, %202 : vector<64x32xf32>
    %204 = arith.truncf %203 : vector<64x32xf32> to vector<64x32xbf16>
    %cst_71 = arith.constant dense<0.000000e+00> : vector<64x32xf32>
    %205 = tpu.matmul %201, %204, %cst_71 {dimension_numbers = #tpu.dot_dimension_numbers<[1], [0], [0], [1], [0, 0, 1, 1], [], []>} : vector<64x64xbf16>, vector<64x32xbf16>, vector<64x32xf32> -> vector<64x32xf32>
    %206 = arith.addf %179, %205 : vector<64x32xf32>
    %c8_i32_72 = arith.constant 8 : i32
    %207 = vector.broadcast %c8_i32_72 : i32 to vector<1x32xi32>
    %208 = arith.cmpi sge, %63, %207 : vector<1x32xi32>
    %c16_i32_73 = arith.constant 16 : i32
    %209 = vector.broadcast %c16_i32_73 : i32 to vector<1x32xi32>
    %210 = arith.cmpi slt, %63, %209 : vector<1x32xi32>
    %211 = arith.andi %208, %210 : vector<1x32xi1>
    %212 = arith.extui %211 : vector<1x32xi1> to vector<1x32xi32>
    %213 = arith.sitofp %212 : vector<1x32xi32> to vector<1x32xf32>
    %214 = vector.broadcast %213 : vector<1x32xf32> to vector<64x32xf32>
    %215 = arith.mulf %50, %214 : vector<64x32xf32>
    %216 = arith.truncf %215 : vector<64x32xf32> to vector<64x32xbf16>
    %cst_74 = arith.constant dense<0.000000e+00> : vector<64x64xf32>
    %217 = tpu.matmul %178, %216, %cst_74 {dimension_numbers = #tpu.dot_dimension_numbers<[1], [1], [0], [0], [0, 0, 1, 0], [], []>} : vector<64x32xbf16>, vector<64x32xbf16>, vector<64x64xf32> -> vector<64x64xf32>
    %cst_75 = arith.constant dense<0xFF800000> : vector<64xf32>
    %218 = vector.multi_reduction <maximumf>, %217, %cst_75 [1] : vector<64x64xf32> to vector<64xf32>
    %219 = vector.shape_cast %218 : vector<64xf32> to vector<64x1xf32>
    %220 = vector.broadcast %219 : vector<64x1xf32> to vector<64x64xf32>
    %221 = arith.subf %217, %220 : vector<64x64xf32>
    %222 = math.exp %221 : vector<64x64xf32>
    %cst_76 = arith.constant dense<0.000000e+00> : vector<64xf32>
    %223 = vector.multi_reduction <add>, %222, %cst_76 [1] : vector<64x64xf32> to vector<64xf32>
    %224 = vector.shape_cast %223 : vector<64xf32> to vector<64x1xf32>
    %225 = tpu.reciprocal %224 {approx = true} : vector<64x1xf32> -> vector<64x1xf32>
    %226 = vector.broadcast %225 : vector<64x1xf32> to vector<64x64xf32>
    %227 = arith.mulf %222, %226 : vector<64x64xf32>
    %228 = arith.truncf %227 : vector<64x64xf32> to vector<64x64xbf16>
    %229 = vector.broadcast %213 : vector<1x32xf32> to vector<64x32xf32>
    %230 = arith.mulf %54, %229 : vector<64x32xf32>
    %231 = arith.truncf %230 : vector<64x32xf32> to vector<64x32xbf16>
    %cst_77 = arith.constant dense<0.000000e+00> : vector<64x32xf32>
    %232 = tpu.matmul %228, %231, %cst_77 {dimension_numbers = #tpu.dot_dimension_numbers<[1], [0], [0], [1], [0, 0, 1, 1], [], []>} : vector<64x64xbf16>, vector<64x32xbf16>, vector<64x32xf32> -> vector<64x32xf32>
    %233 = arith.addf %206, %232 : vector<64x32xf32>
    %c16_i32_78 = arith.constant 16 : i32
    %234 = vector.broadcast %c16_i32_78 : i32 to vector<1x32xi32>
    %235 = arith.cmpi sge, %63, %234 : vector<1x32xi32>
    %c24_i32_79 = arith.constant 24 : i32
    %236 = vector.broadcast %c24_i32_79 : i32 to vector<1x32xi32>
    %237 = arith.cmpi slt, %63, %236 : vector<1x32xi32>
    %238 = arith.andi %235, %237 : vector<1x32xi1>
    %239 = arith.extui %238 : vector<1x32xi1> to vector<1x32xi32>
    %240 = arith.sitofp %239 : vector<1x32xi32> to vector<1x32xf32>
    %241 = vector.broadcast %240 : vector<1x32xf32> to vector<64x32xf32>
    %242 = arith.mulf %50, %241 : vector<64x32xf32>
    %243 = arith.truncf %242 : vector<64x32xf32> to vector<64x32xbf16>
    %cst_80 = arith.constant dense<0.000000e+00> : vector<64x64xf32>
    %244 = tpu.matmul %178, %243, %cst_80 {dimension_numbers = #tpu.dot_dimension_numbers<[1], [1], [0], [0], [0, 0, 1, 0], [], []>} : vector<64x32xbf16>, vector<64x32xbf16>, vector<64x64xf32> -> vector<64x64xf32>
    %cst_81 = arith.constant dense<0xFF800000> : vector<64xf32>
    %245 = vector.multi_reduction <maximumf>, %244, %cst_81 [1] : vector<64x64xf32> to vector<64xf32>
    %246 = vector.shape_cast %245 : vector<64xf32> to vector<64x1xf32>
    %247 = vector.broadcast %246 : vector<64x1xf32> to vector<64x64xf32>
    %248 = arith.subf %244, %247 : vector<64x64xf32>
    %249 = math.exp %248 : vector<64x64xf32>
    %cst_82 = arith.constant dense<0.000000e+00> : vector<64xf32>
    %250 = vector.multi_reduction <add>, %249, %cst_82 [1] : vector<64x64xf32> to vector<64xf32>
    %251 = vector.shape_cast %250 : vector<64xf32> to vector<64x1xf32>
    %252 = tpu.reciprocal %251 {approx = true} : vector<64x1xf32> -> vector<64x1xf32>
    %253 = vector.broadcast %252 : vector<64x1xf32> to vector<64x64xf32>
    %254 = arith.mulf %249, %253 : vector<64x64xf32>
    %255 = arith.truncf %254 : vector<64x64xf32> to vector<64x64xbf16>
    %256 = vector.broadcast %240 : vector<1x32xf32> to vector<64x32xf32>
    %257 = arith.mulf %54, %256 : vector<64x32xf32>
    %258 = arith.truncf %257 : vector<64x32xf32> to vector<64x32xbf16>
    %cst_83 = arith.constant dense<0.000000e+00> : vector<64x32xf32>
    %259 = tpu.matmul %255, %258, %cst_83 {dimension_numbers = #tpu.dot_dimension_numbers<[1], [0], [0], [1], [0, 0, 1, 1], [], []>} : vector<64x64xbf16>, vector<64x32xbf16>, vector<64x32xf32> -> vector<64x32xf32>
    %260 = arith.addf %233, %259 : vector<64x32xf32>
    %c24_i32_84 = arith.constant 24 : i32
    %261 = vector.broadcast %c24_i32_84 : i32 to vector<1x32xi32>
    %262 = arith.cmpi sge, %63, %261 : vector<1x32xi32>
    %c32_i32_85 = arith.constant 32 : i32
    %263 = vector.broadcast %c32_i32_85 : i32 to vector<1x32xi32>
    %264 = arith.cmpi slt, %63, %263 : vector<1x32xi32>
    %265 = arith.andi %262, %264 : vector<1x32xi1>
    %266 = arith.extui %265 : vector<1x32xi1> to vector<1x32xi32>
    %267 = arith.sitofp %266 : vector<1x32xi32> to vector<1x32xf32>
    %268 = vector.broadcast %267 : vector<1x32xf32> to vector<64x32xf32>
    %269 = arith.mulf %50, %268 : vector<64x32xf32>
    %270 = arith.truncf %269 : vector<64x32xf32> to vector<64x32xbf16>
    %cst_86 = arith.constant dense<0.000000e+00> : vector<64x64xf32>
    %271 = tpu.matmul %178, %270, %cst_86 {dimension_numbers = #tpu.dot_dimension_numbers<[1], [1], [0], [0], [0, 0, 1, 0], [], []>} : vector<64x32xbf16>, vector<64x32xbf16>, vector<64x64xf32> -> vector<64x64xf32>
    %cst_87 = arith.constant dense<0xFF800000> : vector<64xf32>
    %272 = vector.multi_reduction <maximumf>, %271, %cst_87 [1] : vector<64x64xf32> to vector<64xf32>
    %273 = vector.shape_cast %272 : vector<64xf32> to vector<64x1xf32>
    %274 = vector.broadcast %273 : vector<64x1xf32> to vector<64x64xf32>
    %275 = arith.subf %271, %274 : vector<64x64xf32>
    %276 = math.exp %275 : vector<64x64xf32>
    %cst_88 = arith.constant dense<0.000000e+00> : vector<64xf32>
    %277 = vector.multi_reduction <add>, %276, %cst_88 [1] : vector<64x64xf32> to vector<64xf32>
    %278 = vector.shape_cast %277 : vector<64xf32> to vector<64x1xf32>
    %279 = tpu.reciprocal %278 {approx = true} : vector<64x1xf32> -> vector<64x1xf32>
    %280 = vector.broadcast %279 : vector<64x1xf32> to vector<64x64xf32>
    %281 = arith.mulf %276, %280 : vector<64x64xf32>
    %282 = arith.truncf %281 : vector<64x64xf32> to vector<64x64xbf16>
    %283 = vector.broadcast %267 : vector<1x32xf32> to vector<64x32xf32>
    %284 = arith.mulf %54, %283 : vector<64x32xf32>
    %285 = arith.truncf %284 : vector<64x32xf32> to vector<64x32xbf16>
    %cst_89 = arith.constant dense<0.000000e+00> : vector<64x32xf32>
    %286 = tpu.matmul %282, %285, %cst_89 {dimension_numbers = #tpu.dot_dimension_numbers<[1], [0], [0], [1], [0, 0, 1, 1], [], []>} : vector<64x64xbf16>, vector<64x32xbf16>, vector<64x32xf32> -> vector<64x32xf32>
    %287 = arith.addf %260, %286 : vector<64x32xf32>
    %288 = arith.addf %19, %175 : vector<64x32xf32>
    %289 = arith.truncf %288 : vector<64x32xf32> to vector<64x32xbf16>
    %c8 = arith.constant 8 : index
    %c0_90 = arith.constant 0 : index
    %c0_91 = arith.constant 0 : index
    %290 = vector.load %arg3[%c8, %c0_90, %c0_91] : memref<15x32x32xbf16, #tpu.memory_space<vmem>>, vector<1x32x32xbf16>
    %291 = vector.shape_cast %290 : vector<1x32x32xbf16> to vector<32x32xbf16>
    %cst_92 = arith.constant dense<0.000000e+00> : vector<64x32xf32>
    %292 = tpu.matmul %289, %291, %cst_92 {dimension_numbers = #tpu.dot_dimension_numbers<[1], [0], [0], [1], [0, 0, 1, 1], [], []>} : vector<64x32xbf16>, vector<32x32xbf16>, vector<64x32xf32> -> vector<64x32xf32>
    %c4_93 = arith.constant 4 : index
    %c0_94 = arith.constant 0 : index
    %293 = vector.load %arg4[%c4_93, %c0_94] : memref<17x32xf32, #tpu.memory_space<vmem>>, vector<1x32xf32>
    %294 = vector.broadcast %293 : vector<1x32xf32> to vector<64x32xf32>
    %295 = arith.addf %292, %294 : vector<64x32xf32>
    %296 = arith.addf %37, %287 : vector<64x32xf32>
    %297 = arith.truncf %296 : vector<64x32xf32> to vector<64x32xbf16>
    %c9 = arith.constant 9 : index
    %c0_95 = arith.constant 0 : index
    %c0_96 = arith.constant 0 : index
    %298 = vector.load %arg3[%c9, %c0_95, %c0_96] : memref<15x32x32xbf16, #tpu.memory_space<vmem>>, vector<1x32x32xbf16>
    %299 = vector.shape_cast %298 : vector<1x32x32xbf16> to vector<32x32xbf16>
    %cst_97 = arith.constant dense<0.000000e+00> : vector<64x32xf32>
    %300 = tpu.matmul %297, %299, %cst_97 {dimension_numbers = #tpu.dot_dimension_numbers<[1], [0], [0], [1], [0, 0, 1, 1], [], []>} : vector<64x32xbf16>, vector<32x32xbf16>, vector<64x32xf32> -> vector<64x32xf32>
    %c5_98 = arith.constant 5 : index
    %c0_99 = arith.constant 0 : index
    %301 = vector.load %arg4[%c5_98, %c0_99] : memref<17x32xf32, #tpu.memory_space<vmem>>, vector<1x32xf32>
    %302 = vector.broadcast %301 : vector<1x32xf32> to vector<64x32xf32>
    %303 = arith.addf %300, %302 : vector<64x32xf32>
    %c6_100 = arith.constant 6 : index
    %c0_101 = arith.constant 0 : index
    %304 = vector.load %arg4[%c6_100, %c0_101] : memref<17x32xf32, #tpu.memory_space<vmem>>, vector<1x32xf32>
    %c7_102 = arith.constant 7 : index
    %c0_103 = arith.constant 0 : index
    %305 = vector.load %arg4[%c7_102, %c0_103] : memref<17x32xf32, #tpu.memory_space<vmem>>, vector<1x32xf32>
    %306 = arith.addf %7, %295 : vector<64x32xf32>
    %cst_104 = arith.constant dense<0.000000e+00> : vector<64xf32>
    %307 = vector.multi_reduction <add>, %306, %cst_104 [1] : vector<64x32xf32> to vector<64xf32>
    %308 = vector.shape_cast %307 : vector<64xf32> to vector<64x1xf32>
    %cst_105 = arith.constant 3.200000e+01 : f32
    %309 = vector.broadcast %cst_105 : f32 to vector<64x1xf32>
    %310 = arith.divf %308, %309 : vector<64x1xf32>
    %311 = vector.broadcast %310 : vector<64x1xf32> to vector<64x32xf32>
    %312 = arith.subf %306, %311 : vector<64x32xf32>
    %313 = arith.mulf %312, %312 : vector<64x32xf32>
    %cst_106 = arith.constant dense<0.000000e+00> : vector<64xf32>
    %314 = vector.multi_reduction <add>, %313, %cst_106 [1] : vector<64x32xf32> to vector<64xf32>
    %315 = vector.shape_cast %314 : vector<64xf32> to vector<64x1xf32>
    %cst_107 = arith.constant 3.200000e+01 : f32
    %316 = vector.broadcast %cst_107 : f32 to vector<64x1xf32>
    %317 = arith.divf %315, %316 : vector<64x1xf32>
    %318 = vector.broadcast %310 : vector<64x1xf32> to vector<64x32xf32>
    %319 = arith.subf %306, %318 : vector<64x32xf32>
    %cst_108 = arith.constant 9.99999974E-6 : f32
    %320 = vector.broadcast %cst_108 : f32 to vector<64x1xf32>
    %321 = arith.addf %317, %320 : vector<64x1xf32>
    %322 = math.rsqrt %321 : vector<64x1xf32>
    %323 = vector.broadcast %322 : vector<64x1xf32> to vector<64x32xf32>
    %324 = arith.mulf %319, %323 : vector<64x32xf32>
    %325 = vector.broadcast %304 : vector<1x32xf32> to vector<64x32xf32>
    %326 = arith.mulf %324, %325 : vector<64x32xf32>
    %327 = vector.broadcast %305 : vector<1x32xf32> to vector<64x32xf32>
    %328 = arith.addf %326, %327 : vector<64x32xf32>
    %c8_109 = arith.constant 8 : index
    %c0_110 = arith.constant 0 : index
    %329 = vector.load %arg4[%c8_109, %c0_110] : memref<17x32xf32, #tpu.memory_space<vmem>>, vector<1x32xf32>
    %c9_111 = arith.constant 9 : index
    %c0_112 = arith.constant 0 : index
    %330 = vector.load %arg4[%c9_111, %c0_112] : memref<17x32xf32, #tpu.memory_space<vmem>>, vector<1x32xf32>
    %331 = arith.addf %10, %303 : vector<64x32xf32>
    %cst_113 = arith.constant dense<0.000000e+00> : vector<64xf32>
    %332 = vector.multi_reduction <add>, %331, %cst_113 [1] : vector<64x32xf32> to vector<64xf32>
    %333 = vector.shape_cast %332 : vector<64xf32> to vector<64x1xf32>
    %cst_114 = arith.constant 3.200000e+01 : f32
    %334 = vector.broadcast %cst_114 : f32 to vector<64x1xf32>
    %335 = arith.divf %333, %334 : vector<64x1xf32>
    %336 = vector.broadcast %335 : vector<64x1xf32> to vector<64x32xf32>
    %337 = arith.subf %331, %336 : vector<64x32xf32>
    %338 = arith.mulf %337, %337 : vector<64x32xf32>
    %cst_115 = arith.constant dense<0.000000e+00> : vector<64xf32>
    %339 = vector.multi_reduction <add>, %338, %cst_115 [1] : vector<64x32xf32> to vector<64xf32>
    %340 = vector.shape_cast %339 : vector<64xf32> to vector<64x1xf32>
    %cst_116 = arith.constant 3.200000e+01 : f32
    %341 = vector.broadcast %cst_116 : f32 to vector<64x1xf32>
    %342 = arith.divf %340, %341 : vector<64x1xf32>
    %343 = vector.broadcast %335 : vector<64x1xf32> to vector<64x32xf32>
    %344 = arith.subf %331, %343 : vector<64x32xf32>
    %cst_117 = arith.constant 9.99999974E-6 : f32
    %345 = vector.broadcast %cst_117 : f32 to vector<64x1xf32>
    %346 = arith.addf %342, %345 : vector<64x1xf32>
    %347 = math.rsqrt %346 : vector<64x1xf32>
    %348 = vector.broadcast %347 : vector<64x1xf32> to vector<64x32xf32>
    %349 = arith.mulf %344, %348 : vector<64x32xf32>
    %350 = vector.broadcast %329 : vector<1x32xf32> to vector<64x32xf32>
    %351 = arith.mulf %349, %350 : vector<64x32xf32>
    %352 = vector.broadcast %330 : vector<1x32xf32> to vector<64x32xf32>
    %353 = arith.addf %351, %352 : vector<64x32xf32>
    %354 = arith.truncf %328 : vector<64x32xf32> to vector<64x32xbf16>
    %c10 = arith.constant 10 : index
    %c0_118 = arith.constant 0 : index
    %c0_119 = arith.constant 0 : index
    %355 = vector.load %arg3[%c10, %c0_118, %c0_119] : memref<15x32x32xbf16, #tpu.memory_space<vmem>>, vector<1x32x32xbf16>
    %356 = vector.shape_cast %355 : vector<1x32x32xbf16> to vector<32x32xbf16>
    %cst_120 = arith.constant dense<0.000000e+00> : vector<64x32xf32>
    %357 = tpu.matmul %354, %356, %cst_120 {dimension_numbers = #tpu.dot_dimension_numbers<[1], [0], [0], [1], [0, 0, 1, 1], [], []>} : vector<64x32xbf16>, vector<32x32xbf16>, vector<64x32xf32> -> vector<64x32xf32>
    %358 = arith.truncf %353 : vector<64x32xf32> to vector<64x32xbf16>
    %c11 = arith.constant 11 : index
    %c0_121 = arith.constant 0 : index
    %c0_122 = arith.constant 0 : index
    %359 = vector.load %arg3[%c11, %c0_121, %c0_122] : memref<15x32x32xbf16, #tpu.memory_space<vmem>>, vector<1x32x32xbf16>
    %360 = vector.shape_cast %359 : vector<1x32x32xbf16> to vector<32x32xbf16>
    %cst_123 = arith.constant dense<0.000000e+00> : vector<64x32xf32>
    %361 = tpu.matmul %358, %360, %cst_123 {dimension_numbers = #tpu.dot_dimension_numbers<[1], [0], [0], [1], [0, 0, 1, 1], [], []>} : vector<64x32xbf16>, vector<32x32xbf16>, vector<64x32xf32> -> vector<64x32xf32>
    %362 = arith.addf %357, %361 : vector<64x32xf32>
    %363 = arith.truncf %328 : vector<64x32xf32> to vector<64x32xbf16>
    %c12 = arith.constant 12 : index
    %c0_124 = arith.constant 0 : index
    %c0_125 = arith.constant 0 : index
    %364 = vector.load %arg3[%c12, %c0_124, %c0_125] : memref<15x32x32xbf16, #tpu.memory_space<vmem>>, vector<1x32x32xbf16>
    %365 = vector.shape_cast %364 : vector<1x32x32xbf16> to vector<32x32xbf16>
    %cst_126 = arith.constant dense<0.000000e+00> : vector<64x32xf32>
    %366 = tpu.matmul %363, %365, %cst_126 {dimension_numbers = #tpu.dot_dimension_numbers<[1], [0], [0], [1], [0, 0, 1, 1], [], []>} : vector<64x32xbf16>, vector<32x32xbf16>, vector<64x32xf32> -> vector<64x32xf32>
    %367 = arith.truncf %353 : vector<64x32xf32> to vector<64x32xbf16>
    %c13 = arith.constant 13 : index
    %c0_127 = arith.constant 0 : index
    %c0_128 = arith.constant 0 : index
    %368 = vector.load %arg3[%c13, %c0_127, %c0_128] : memref<15x32x32xbf16, #tpu.memory_space<vmem>>, vector<1x32x32xbf16>
    %369 = vector.shape_cast %368 : vector<1x32x32xbf16> to vector<32x32xbf16>
    %cst_129 = arith.constant dense<0.000000e+00> : vector<64x32xf32>
    %370 = tpu.matmul %367, %369, %cst_129 {dimension_numbers = #tpu.dot_dimension_numbers<[1], [0], [0], [1], [0, 0, 1, 1], [], []>} : vector<64x32xbf16>, vector<32x32xbf16>, vector<64x32xf32> -> vector<64x32xf32>
    %371 = arith.addf %366, %370 : vector<64x32xf32>
    %c10_130 = arith.constant 10 : index
    %c0_131 = arith.constant 0 : index
    %372 = vector.load %arg4[%c10_130, %c0_131] : memref<17x32xf32, #tpu.memory_space<vmem>>, vector<1x32xf32>
    %373 = vector.broadcast %372 : vector<1x32xf32> to vector<64x32xf32>
    %374 = arith.addf %371, %373 : vector<64x32xf32>
    %cst_132 = arith.constant 0.000000e+00 : f32
    %375 = vector.broadcast %cst_132 : f32 to vector<32x32xf32>
    %c0_133 = arith.constant 0 : index
    %c0_134 = arith.constant 0 : index
    %376 = vector.load %arg7[%c0_133, %c0_134] : memref<128x32xf32, #tpu.memory_space<vmem>>, vector<32x32xf32>
    tpu.vector_store %arg7[%c0_133, %c0_134], %375 {strides = array<i32>} : memref<128x32xf32, #tpu.memory_space<vmem>>, vector<32x32xf32>,
    %cst_135 = arith.constant 0.000000e+00 : f32
    %377 = vector.broadcast %cst_135 : f32 to vector<32x32xf32>
    %c96 = arith.constant 96 : index
    %c0_136 = arith.constant 0 : index
    %378 = vector.load %arg7[%c96, %c0_136] : memref<128x32xf32, #tpu.memory_space<vmem>>, vector<32x32xf32>
    tpu.vector_store %arg7[%c96, %c0_136], %377 {strides = array<i32>} : memref<128x32xf32, #tpu.memory_space<vmem>>, vector<32x32xf32>,
    %c32 = arith.constant 32 : index
    %c0_137 = arith.constant 0 : index
    %379 = vector.load %arg7[%c32, %c0_137] : memref<128x32xf32, #tpu.memory_space<vmem>>, vector<64x32xf32>
    tpu.vector_store %arg7[%c32, %c0_137], %374 {strides = array<i32>} : memref<128x32xf32, #tpu.memory_space<vmem>>, vector<64x32xf32>,
    %c0_138 = arith.constant 0 : index
    %c0_139 = arith.constant 0 : index
    %380 = vector.load %arg7[%c0_138, %c0_139] : memref<128x32xf32, #tpu.memory_space<vmem>>, vector<128x32xf32>
    %381 = tpu.iota {dimensions = array<i32: 0>} : vector<64x1xi32>
    %c7_i32 = arith.constant 7 : i32
    %382 = vector.broadcast %c7_i32 : i32 to vector<64x1xi32>
    %383 = arith.andi %381, %382 : vector<64x1xi32>
    %384 = arith.sitofp %383 : vector<64x1xi32> to vector<64x1xf32>
    %cst_140 = arith.constant 0.000000e+00 : f32
    %385 = vector.broadcast %cst_140 : f32 to vector<64x32xf32>
    %386 = vector.extract_strided_slice %380 {offsets = [5, 0], sizes = [112, 32], strides = [1, 1]} : vector<128x32xf32> to vector<112x32xf32>
    %cst_141 = arith.constant 0.000000e+00 : f32
    %387 = vector.broadcast %cst_141 : f32 to vector<64x32xf32>
    %388 = vector.extract_strided_slice %386 {offsets = [0, 0], sizes = [64, 32], strides = [1, 1]} : vector<112x32xf32> to vector<64x32xf32>
    %c0_142 = arith.constant 0 : index
    %c0_143 = arith.constant 0 : index
    %389 = vector.load %arg5[%c0_142, %c0_143] : memref<49x32xf32, #tpu.memory_space<vmem>>, vector<1x32xf32>
    %390 = vector.broadcast %389 : vector<1x32xf32> to vector<64x32xf32>
    %391 = arith.mulf %388, %390 : vector<64x32xf32>
    %392 = arith.addf %387, %391 : vector<64x32xf32>
    %393 = vector.extract_strided_slice %386 {offsets = [8, 0], sizes = [64, 32], strides = [1, 1]} : vector<112x32xf32> to vector<64x32xf32>
    %c7_144 = arith.constant 7 : index
    %c0_145 = arith.constant 0 : index
    %394 = vector.load %arg5[%c7_144, %c0_145] : memref<49x32xf32, #tpu.memory_space<vmem>>, vector<1x32xf32>
    %395 = vector.broadcast %394 : vector<1x32xf32> to vector<64x32xf32>
    %396 = arith.mulf %393, %395 : vector<64x32xf32>
    %397 = arith.addf %392, %396 : vector<64x32xf32>
    %398 = vector.extract_strided_slice %386 {offsets = [16, 0], sizes = [64, 32], strides = [1, 1]} : vector<112x32xf32> to vector<64x32xf32>
    %c14 = arith.constant 14 : index
    %c0_146 = arith.constant 0 : index
    %399 = vector.load %arg5[%c14, %c0_146] : memref<49x32xf32, #tpu.memory_space<vmem>>, vector<1x32xf32>
    %400 = vector.broadcast %399 : vector<1x32xf32> to vector<64x32xf32>
    %401 = arith.mulf %398, %400 : vector<64x32xf32>
    %402 = arith.addf %397, %401 : vector<64x32xf32>
    %403 = vector.extract_strided_slice %386 {offsets = [24, 0], sizes = [64, 32], strides = [1, 1]} : vector<112x32xf32> to vector<64x32xf32>
    %c21 = arith.constant 21 : index
    %c0_147 = arith.constant 0 : index
    %404 = vector.load %arg5[%c21, %c0_147] : memref<49x32xf32, #tpu.memory_space<vmem>>, vector<1x32xf32>
    %405 = vector.broadcast %404 : vector<1x32xf32> to vector<64x32xf32>
    %406 = arith.mulf %403, %405 : vector<64x32xf32>
    %407 = arith.addf %402, %406 : vector<64x32xf32>
    %408 = vector.extract_strided_slice %386 {offsets = [32, 0], sizes = [64, 32], strides = [1, 1]} : vector<112x32xf32> to vector<64x32xf32>
    %c28 = arith.constant 28 : index
    %c0_148 = arith.constant 0 : index
    %409 = vector.load %arg5[%c28, %c0_148] : memref<49x32xf32, #tpu.memory_space<vmem>>, vector<1x32xf32>
    %410 = vector.broadcast %409 : vector<1x32xf32> to vector<64x32xf32>
    %411 = arith.mulf %408, %410 : vector<64x32xf32>
    %412 = arith.addf %407, %411 : vector<64x32xf32>
    %413 = vector.extract_strided_slice %386 {offsets = [40, 0], sizes = [64, 32], strides = [1, 1]} : vector<112x32xf32> to vector<64x32xf32>
    %c35 = arith.constant 35 : index
    %c0_149 = arith.constant 0 : index
    %414 = vector.load %arg5[%c35, %c0_149] : memref<49x32xf32, #tpu.memory_space<vmem>>, vector<1x32xf32>
    %415 = vector.broadcast %414 : vector<1x32xf32> to vector<64x32xf32>
    %416 = arith.mulf %413, %415 : vector<64x32xf32>
    %417 = arith.addf %412, %416 : vector<64x32xf32>
    %418 = vector.extract_strided_slice %386 {offsets = [48, 0], sizes = [64, 32], strides = [1, 1]} : vector<112x32xf32> to vector<64x32xf32>
    %c42 = arith.constant 42 : index
    %c0_150 = arith.constant 0 : index
    %419 = vector.load %arg5[%c42, %c0_150] : memref<49x32xf32, #tpu.memory_space<vmem>>, vector<1x32xf32>
    %420 = vector.broadcast %419 : vector<1x32xf32> to vector<64x32xf32>
    %421 = arith.mulf %418, %420 : vector<64x32xf32>
    %422 = arith.addf %417, %421 : vector<64x32xf32>
    %cst_151 = arith.constant 3.000000e+00 : f32
    %423 = vector.broadcast %cst_151 : f32 to vector<64x1xf32>
    %424 = arith.cmpf oge, %384, %423 : vector<64x1xf32>
    %cst_152 = arith.constant 1.100000e+01 : f32
    %425 = vector.broadcast %cst_152 : f32 to vector<64x1xf32>
    %426 = arith.cmpf olt, %384, %425 : vector<64x1xf32>
    %427 = arith.andi %424, %426 : vector<64x1xi1>
    %428 = arith.extui %427 : vector<64x1xi1> to vector<64x1xi32>
    %429 = arith.sitofp %428 : vector<64x1xi32> to vector<64x1xf32>
    %430 = vector.broadcast %429 : vector<64x1xf32> to vector<64x32xf32>
    %431 = arith.mulf %422, %430 : vector<64x32xf32>
    %432 = arith.addf %385, %431 : vector<64x32xf32>
    %433 = vector.extract_strided_slice %380 {offsets = [6, 0], sizes = [112, 32], strides = [1, 1]} : vector<128x32xf32> to vector<112x32xf32>
    %cst_153 = arith.constant 0.000000e+00 : f32
    %434 = vector.broadcast %cst_153 : f32 to vector<64x32xf32>
    %435 = vector.extract_strided_slice %433 {offsets = [0, 0], sizes = [64, 32], strides = [1, 1]} : vector<112x32xf32> to vector<64x32xf32>
    %c1_154 = arith.constant 1 : index
    %c0_155 = arith.constant 0 : index
    %436 = vector.load %arg5[%c1_154, %c0_155] : memref<49x32xf32, #tpu.memory_space<vmem>>, vector<1x32xf32>
    %437 = vector.broadcast %436 : vector<1x32xf32> to vector<64x32xf32>
    %438 = arith.mulf %435, %437 : vector<64x32xf32>
    %439 = arith.addf %434, %438 : vector<64x32xf32>
    %440 = vector.extract_strided_slice %433 {offsets = [8, 0], sizes = [64, 32], strides = [1, 1]} : vector<112x32xf32> to vector<64x32xf32>
    %c8_156 = arith.constant 8 : index
    %c0_157 = arith.constant 0 : index
    %441 = vector.load %arg5[%c8_156, %c0_157] : memref<49x32xf32, #tpu.memory_space<vmem>>, vector<1x32xf32>
    %442 = vector.broadcast %441 : vector<1x32xf32> to vector<64x32xf32>
    %443 = arith.mulf %440, %442 : vector<64x32xf32>
    %444 = arith.addf %439, %443 : vector<64x32xf32>
    %445 = vector.extract_strided_slice %433 {offsets = [16, 0], sizes = [64, 32], strides = [1, 1]} : vector<112x32xf32> to vector<64x32xf32>
    %c15 = arith.constant 15 : index
    %c0_158 = arith.constant 0 : index
    %446 = vector.load %arg5[%c15, %c0_158] : memref<49x32xf32, #tpu.memory_space<vmem>>, vector<1x32xf32>
    %447 = vector.broadcast %446 : vector<1x32xf32> to vector<64x32xf32>
    %448 = arith.mulf %445, %447 : vector<64x32xf32>
    %449 = arith.addf %444, %448 : vector<64x32xf32>
    %450 = vector.extract_strided_slice %433 {offsets = [24, 0], sizes = [64, 32], strides = [1, 1]} : vector<112x32xf32> to vector<64x32xf32>
    %c22 = arith.constant 22 : index
    %c0_159 = arith.constant 0 : index
    %451 = vector.load %arg5[%c22, %c0_159] : memref<49x32xf32, #tpu.memory_space<vmem>>, vector<1x32xf32>
    %452 = vector.broadcast %451 : vector<1x32xf32> to vector<64x32xf32>
    %453 = arith.mulf %450, %452 : vector<64x32xf32>
    %454 = arith.addf %449, %453 : vector<64x32xf32>
    %455 = vector.extract_strided_slice %433 {offsets = [32, 0], sizes = [64, 32], strides = [1, 1]} : vector<112x32xf32> to vector<64x32xf32>
    %c29 = arith.constant 29 : index
    %c0_160 = arith.constant 0 : index
    %456 = vector.load %arg5[%c29, %c0_160] : memref<49x32xf32, #tpu.memory_space<vmem>>, vector<1x32xf32>
    %457 = vector.broadcast %456 : vector<1x32xf32> to vector<64x32xf32>
    %458 = arith.mulf %455, %457 : vector<64x32xf32>
    %459 = arith.addf %454, %458 : vector<64x32xf32>
    %460 = vector.extract_strided_slice %433 {offsets = [40, 0], sizes = [64, 32], strides = [1, 1]} : vector<112x32xf32> to vector<64x32xf32>
    %c36 = arith.constant 36 : index
    %c0_161 = arith.constant 0 : index
    %461 = vector.load %arg5[%c36, %c0_161] : memref<49x32xf32, #tpu.memory_space<vmem>>, vector<1x32xf32>
    %462 = vector.broadcast %461 : vector<1x32xf32> to vector<64x32xf32>
    %463 = arith.mulf %460, %462 : vector<64x32xf32>
    %464 = arith.addf %459, %463 : vector<64x32xf32>
    %465 = vector.extract_strided_slice %433 {offsets = [48, 0], sizes = [64, 32], strides = [1, 1]} : vector<112x32xf32> to vector<64x32xf32>
    %c43 = arith.constant 43 : index
    %c0_162 = arith.constant 0 : index
    %466 = vector.load %arg5[%c43, %c0_162] : memref<49x32xf32, #tpu.memory_space<vmem>>, vector<1x32xf32>
    %467 = vector.broadcast %466 : vector<1x32xf32> to vector<64x32xf32>
    %468 = arith.mulf %465, %467 : vector<64x32xf32>
    %469 = arith.addf %464, %468 : vector<64x32xf32>
    %cst_163 = arith.constant 2.000000e+00 : f32
    %470 = vector.broadcast %cst_163 : f32 to vector<64x1xf32>
    %471 = arith.cmpf oge, %384, %470 : vector<64x1xf32>
    %cst_164 = arith.constant 1.000000e+01 : f32
    %472 = vector.broadcast %cst_164 : f32 to vector<64x1xf32>
    %473 = arith.cmpf olt, %384, %472 : vector<64x1xf32>
    %474 = arith.andi %471, %473 : vector<64x1xi1>
    %475 = arith.extui %474 : vector<64x1xi1> to vector<64x1xi32>
    %476 = arith.sitofp %475 : vector<64x1xi32> to vector<64x1xf32>
    %477 = vector.broadcast %476 : vector<64x1xf32> to vector<64x32xf32>
    %478 = arith.mulf %469, %477 : vector<64x32xf32>
    %479 = arith.addf %432, %478 : vector<64x32xf32>
    %480 = vector.extract_strided_slice %380 {offsets = [7, 0], sizes = [112, 32], strides = [1, 1]} : vector<128x32xf32> to vector<112x32xf32>
    %cst_165 = arith.constant 0.000000e+00 : f32
    %481 = vector.broadcast %cst_165 : f32 to vector<64x32xf32>
    %482 = vector.extract_strided_slice %480 {offsets = [0, 0], sizes = [64, 32], strides = [1, 1]} : vector<112x32xf32> to vector<64x32xf32>
    %c2_166 = arith.constant 2 : index
    %c0_167 = arith.constant 0 : index
    %483 = vector.load %arg5[%c2_166, %c0_167] : memref<49x32xf32, #tpu.memory_space<vmem>>, vector<1x32xf32>
    %484 = vector.broadcast %483 : vector<1x32xf32> to vector<64x32xf32>
    %485 = arith.mulf %482, %484 : vector<64x32xf32>
    %486 = arith.addf %481, %485 : vector<64x32xf32>
    %487 = vector.extract_strided_slice %480 {offsets = [8, 0], sizes = [64, 32], strides = [1, 1]} : vector<112x32xf32> to vector<64x32xf32>
    %c9_168 = arith.constant 9 : index
    %c0_169 = arith.constant 0 : index
    %488 = vector.load %arg5[%c9_168, %c0_169] : memref<49x32xf32, #tpu.memory_space<vmem>>, vector<1x32xf32>
    %489 = vector.broadcast %488 : vector<1x32xf32> to vector<64x32xf32>
    %490 = arith.mulf %487, %489 : vector<64x32xf32>
    %491 = arith.addf %486, %490 : vector<64x32xf32>
    %492 = vector.extract_strided_slice %480 {offsets = [16, 0], sizes = [64, 32], strides = [1, 1]} : vector<112x32xf32> to vector<64x32xf32>
    %c16 = arith.constant 16 : index
    %c0_170 = arith.constant 0 : index
    %493 = vector.load %arg5[%c16, %c0_170] : memref<49x32xf32, #tpu.memory_space<vmem>>, vector<1x32xf32>
    %494 = vector.broadcast %493 : vector<1x32xf32> to vector<64x32xf32>
    %495 = arith.mulf %492, %494 : vector<64x32xf32>
    %496 = arith.addf %491, %495 : vector<64x32xf32>
    %497 = vector.extract_strided_slice %480 {offsets = [24, 0], sizes = [64, 32], strides = [1, 1]} : vector<112x32xf32> to vector<64x32xf32>
    %c23 = arith.constant 23 : index
    %c0_171 = arith.constant 0 : index
    %498 = vector.load %arg5[%c23, %c0_171] : memref<49x32xf32, #tpu.memory_space<vmem>>, vector<1x32xf32>
    %499 = vector.broadcast %498 : vector<1x32xf32> to vector<64x32xf32>
    %500 = arith.mulf %497, %499 : vector<64x32xf32>
    %501 = arith.addf %496, %500 : vector<64x32xf32>
    %502 = vector.extract_strided_slice %480 {offsets = [32, 0], sizes = [64, 32], strides = [1, 1]} : vector<112x32xf32> to vector<64x32xf32>
    %c30 = arith.constant 30 : index
    %c0_172 = arith.constant 0 : index
    %503 = vector.load %arg5[%c30, %c0_172] : memref<49x32xf32, #tpu.memory_space<vmem>>, vector<1x32xf32>
    %504 = vector.broadcast %503 : vector<1x32xf32> to vector<64x32xf32>
    %505 = arith.mulf %502, %504 : vector<64x32xf32>
    %506 = arith.addf %501, %505 : vector<64x32xf32>
    %507 = vector.extract_strided_slice %480 {offsets = [40, 0], sizes = [64, 32], strides = [1, 1]} : vector<112x32xf32> to vector<64x32xf32>
    %c37 = arith.constant 37 : index
    %c0_173 = arith.constant 0 : index
    %508 = vector.load %arg5[%c37, %c0_173] : memref<49x32xf32, #tpu.memory_space<vmem>>, vector<1x32xf32>
    %509 = vector.broadcast %508 : vector<1x32xf32> to vector<64x32xf32>
    %510 = arith.mulf %507, %509 : vector<64x32xf32>
    %511 = arith.addf %506, %510 : vector<64x32xf32>
    %512 = vector.extract_strided_slice %480 {offsets = [48, 0], sizes = [64, 32], strides = [1, 1]} : vector<112x32xf32> to vector<64x32xf32>
    %c44 = arith.constant 44 : index
    %c0_174 = arith.constant 0 : index
    %513 = vector.load %arg5[%c44, %c0_174] : memref<49x32xf32, #tpu.memory_space<vmem>>, vector<1x32xf32>
    %514 = vector.broadcast %513 : vector<1x32xf32> to vector<64x32xf32>
    %515 = arith.mulf %512, %514 : vector<64x32xf32>
    %516 = arith.addf %511, %515 : vector<64x32xf32>
    %cst_175 = arith.constant 1.000000e+00 : f32
    %517 = vector.broadcast %cst_175 : f32 to vector<64x1xf32>
    %518 = arith.cmpf oge, %384, %517 : vector<64x1xf32>
    %cst_176 = arith.constant 9.000000e+00 : f32
    %519 = vector.broadcast %cst_176 : f32 to vector<64x1xf32>
    %520 = arith.cmpf olt, %384, %519 : vector<64x1xf32>
    %521 = arith.andi %518, %520 : vector<64x1xi1>
    %522 = arith.extui %521 : vector<64x1xi1> to vector<64x1xi32>
    %523 = arith.sitofp %522 : vector<64x1xi32> to vector<64x1xf32>
    %524 = vector.broadcast %523 : vector<64x1xf32> to vector<64x32xf32>
    %525 = arith.mulf %516, %524 : vector<64x32xf32>
    %526 = arith.addf %479, %525 : vector<64x32xf32>
    %527 = vector.extract_strided_slice %380 {offsets = [8, 0], sizes = [112, 32], strides = [1, 1]} : vector<128x32xf32> to vector<112x32xf32>
    %cst_177 = arith.constant 0.000000e+00 : f32
    %528 = vector.broadcast %cst_177 : f32 to vector<64x32xf32>
    %529 = vector.extract_strided_slice %527 {offsets = [0, 0], sizes = [64, 32], strides = [1, 1]} : vector<112x32xf32> to vector<64x32xf32>
    %c3_178 = arith.constant 3 : index
    %c0_179 = arith.constant 0 : index
    %530 = vector.load %arg5[%c3_178, %c0_179] : memref<49x32xf32, #tpu.memory_space<vmem>>, vector<1x32xf32>
    %531 = vector.broadcast %530 : vector<1x32xf32> to vector<64x32xf32>
    %532 = arith.mulf %529, %531 : vector<64x32xf32>
    %533 = arith.addf %528, %532 : vector<64x32xf32>
    %534 = vector.extract_strided_slice %527 {offsets = [8, 0], sizes = [64, 32], strides = [1, 1]} : vector<112x32xf32> to vector<64x32xf32>
    %c10_180 = arith.constant 10 : index
    %c0_181 = arith.constant 0 : index
    %535 = vector.load %arg5[%c10_180, %c0_181] : memref<49x32xf32, #tpu.memory_space<vmem>>, vector<1x32xf32>
    %536 = vector.broadcast %535 : vector<1x32xf32> to vector<64x32xf32>
    %537 = arith.mulf %534, %536 : vector<64x32xf32>
    %538 = arith.addf %533, %537 : vector<64x32xf32>
    %539 = vector.extract_strided_slice %527 {offsets = [16, 0], sizes = [64, 32], strides = [1, 1]} : vector<112x32xf32> to vector<64x32xf32>
    %c17 = arith.constant 17 : index
    %c0_182 = arith.constant 0 : index
    %540 = vector.load %arg5[%c17, %c0_182] : memref<49x32xf32, #tpu.memory_space<vmem>>, vector<1x32xf32>
    %541 = vector.broadcast %540 : vector<1x32xf32> to vector<64x32xf32>
    %542 = arith.mulf %539, %541 : vector<64x32xf32>
    %543 = arith.addf %538, %542 : vector<64x32xf32>
    %544 = vector.extract_strided_slice %527 {offsets = [24, 0], sizes = [64, 32], strides = [1, 1]} : vector<112x32xf32> to vector<64x32xf32>
    %c24 = arith.constant 24 : index
    %c0_183 = arith.constant 0 : index
    %545 = vector.load %arg5[%c24, %c0_183] : memref<49x32xf32, #tpu.memory_space<vmem>>, vector<1x32xf32>
    %546 = vector.broadcast %545 : vector<1x32xf32> to vector<64x32xf32>
    %547 = arith.mulf %544, %546 : vector<64x32xf32>
    %548 = arith.addf %543, %547 : vector<64x32xf32>
    %549 = vector.extract_strided_slice %527 {offsets = [32, 0], sizes = [64, 32], strides = [1, 1]} : vector<112x32xf32> to vector<64x32xf32>
    %c31 = arith.constant 31 : index
    %c0_184 = arith.constant 0 : index
    %550 = vector.load %arg5[%c31, %c0_184] : memref<49x32xf32, #tpu.memory_space<vmem>>, vector<1x32xf32>
    %551 = vector.broadcast %550 : vector<1x32xf32> to vector<64x32xf32>
    %552 = arith.mulf %549, %551 : vector<64x32xf32>
    %553 = arith.addf %548, %552 : vector<64x32xf32>
    %554 = vector.extract_strided_slice %527 {offsets = [40, 0], sizes = [64, 32], strides = [1, 1]} : vector<112x32xf32> to vector<64x32xf32>
    %c38 = arith.constant 38 : index
    %c0_185 = arith.constant 0 : index
    %555 = vector.load %arg5[%c38, %c0_185] : memref<49x32xf32, #tpu.memory_space<vmem>>, vector<1x32xf32>
    %556 = vector.broadcast %555 : vector<1x32xf32> to vector<64x32xf32>
    %557 = arith.mulf %554, %556 : vector<64x32xf32>
    %558 = arith.addf %553, %557 : vector<64x32xf32>
    %559 = vector.extract_strided_slice %527 {offsets = [48, 0], sizes = [64, 32], strides = [1, 1]} : vector<112x32xf32> to vector<64x32xf32>
    %c45 = arith.constant 45 : index
    %c0_186 = arith.constant 0 : index
    %560 = vector.load %arg5[%c45, %c0_186] : memref<49x32xf32, #tpu.memory_space<vmem>>, vector<1x32xf32>
    %561 = vector.broadcast %560 : vector<1x32xf32> to vector<64x32xf32>
    %562 = arith.mulf %559, %561 : vector<64x32xf32>
    %563 = arith.addf %558, %562 : vector<64x32xf32>
    %cst_187 = arith.constant 0.000000e+00 : f32
    %564 = vector.broadcast %cst_187 : f32 to vector<64x1xf32>
    %565 = arith.cmpf oge, %384, %564 : vector<64x1xf32>
    %cst_188 = arith.constant 8.000000e+00 : f32
    %566 = vector.broadcast %cst_188 : f32 to vector<64x1xf32>
    %567 = arith.cmpf olt, %384, %566 : vector<64x1xf32>
    %568 = arith.andi %565, %567 : vector<64x1xi1>
    %569 = arith.extui %568 : vector<64x1xi1> to vector<64x1xi32>
    %570 = arith.sitofp %569 : vector<64x1xi32> to vector<64x1xf32>
    %571 = vector.broadcast %570 : vector<64x1xf32> to vector<64x32xf32>
    %572 = arith.mulf %563, %571 : vector<64x32xf32>
    %573 = arith.addf %526, %572 : vector<64x32xf32>
    %574 = vector.extract_strided_slice %380 {offsets = [9, 0], sizes = [112, 32], strides = [1, 1]} : vector<128x32xf32> to vector<112x32xf32>
    %cst_189 = arith.constant 0.000000e+00 : f32
    %575 = vector.broadcast %cst_189 : f32 to vector<64x32xf32>
    %576 = vector.extract_strided_slice %574 {offsets = [0, 0], sizes = [64, 32], strides = [1, 1]} : vector<112x32xf32> to vector<64x32xf32>
    %c4_190 = arith.constant 4 : index
    %c0_191 = arith.constant 0 : index
    %577 = vector.load %arg5[%c4_190, %c0_191] : memref<49x32xf32, #tpu.memory_space<vmem>>, vector<1x32xf32>
    %578 = vector.broadcast %577 : vector<1x32xf32> to vector<64x32xf32>
    %579 = arith.mulf %576, %578 : vector<64x32xf32>
    %580 = arith.addf %575, %579 : vector<64x32xf32>
    %581 = vector.extract_strided_slice %574 {offsets = [8, 0], sizes = [64, 32], strides = [1, 1]} : vector<112x32xf32> to vector<64x32xf32>
    %c11_192 = arith.constant 11 : index
    %c0_193 = arith.constant 0 : index
    %582 = vector.load %arg5[%c11_192, %c0_193] : memref<49x32xf32, #tpu.memory_space<vmem>>, vector<1x32xf32>
    %583 = vector.broadcast %582 : vector<1x32xf32> to vector<64x32xf32>
    %584 = arith.mulf %581, %583 : vector<64x32xf32>
    %585 = arith.addf %580, %584 : vector<64x32xf32>
    %586 = vector.extract_strided_slice %574 {offsets = [16, 0], sizes = [64, 32], strides = [1, 1]} : vector<112x32xf32> to vector<64x32xf32>
    %c18 = arith.constant 18 : index
    %c0_194 = arith.constant 0 : index
    %587 = vector.load %arg5[%c18, %c0_194] : memref<49x32xf32, #tpu.memory_space<vmem>>, vector<1x32xf32>
    %588 = vector.broadcast %587 : vector<1x32xf32> to vector<64x32xf32>
    %589 = arith.mulf %586, %588 : vector<64x32xf32>
    %590 = arith.addf %585, %589 : vector<64x32xf32>
    %591 = vector.extract_strided_slice %574 {offsets = [24, 0], sizes = [64, 32], strides = [1, 1]} : vector<112x32xf32> to vector<64x32xf32>
    %c25 = arith.constant 25 : index
    %c0_195 = arith.constant 0 : index
    %592 = vector.load %arg5[%c25, %c0_195] : memref<49x32xf32, #tpu.memory_space<vmem>>, vector<1x32xf32>
    %593 = vector.broadcast %592 : vector<1x32xf32> to vector<64x32xf32>
    %594 = arith.mulf %591, %593 : vector<64x32xf32>
    %595 = arith.addf %590, %594 : vector<64x32xf32>
    %596 = vector.extract_strided_slice %574 {offsets = [32, 0], sizes = [64, 32], strides = [1, 1]} : vector<112x32xf32> to vector<64x32xf32>
    %c32_196 = arith.constant 32 : index
    %c0_197 = arith.constant 0 : index
    %597 = vector.load %arg5[%c32_196, %c0_197] : memref<49x32xf32, #tpu.memory_space<vmem>>, vector<1x32xf32>
    %598 = vector.broadcast %597 : vector<1x32xf32> to vector<64x32xf32>
    %599 = arith.mulf %596, %598 : vector<64x32xf32>
    %600 = arith.addf %595, %599 : vector<64x32xf32>
    %601 = vector.extract_strided_slice %574 {offsets = [40, 0], sizes = [64, 32], strides = [1, 1]} : vector<112x32xf32> to vector<64x32xf32>
    %c39 = arith.constant 39 : index
    %c0_198 = arith.constant 0 : index
    %602 = vector.load %arg5[%c39, %c0_198] : memref<49x32xf32, #tpu.memory_space<vmem>>, vector<1x32xf32>
    %603 = vector.broadcast %602 : vector<1x32xf32> to vector<64x32xf32>
    %604 = arith.mulf %601, %603 : vector<64x32xf32>
    %605 = arith.addf %600, %604 : vector<64x32xf32>
    %606 = vector.extract_strided_slice %574 {offsets = [48, 0], sizes = [64, 32], strides = [1, 1]} : vector<112x32xf32> to vector<64x32xf32>
    %c46 = arith.constant 46 : index
    %c0_199 = arith.constant 0 : index
    %607 = vector.load %arg5[%c46, %c0_199] : memref<49x32xf32, #tpu.memory_space<vmem>>, vector<1x32xf32>
    %608 = vector.broadcast %607 : vector<1x32xf32> to vector<64x32xf32>
    %609 = arith.mulf %606, %608 : vector<64x32xf32>
    %610 = arith.addf %605, %609 : vector<64x32xf32>
    %cst_200 = arith.constant -1.000000e+00 : f32
    %611 = vector.broadcast %cst_200 : f32 to vector<64x1xf32>
    %612 = arith.cmpf oge, %384, %611 : vector<64x1xf32>
    %cst_201 = arith.constant 7.000000e+00 : f32
    %613 = vector.broadcast %cst_201 : f32 to vector<64x1xf32>
    %614 = arith.cmpf olt, %384, %613 : vector<64x1xf32>
    %615 = arith.andi %612, %614 : vector<64x1xi1>
    %616 = arith.extui %615 : vector<64x1xi1> to vector<64x1xi32>
    %617 = arith.sitofp %616 : vector<64x1xi32> to vector<64x1xf32>
    %618 = vector.broadcast %617 : vector<64x1xf32> to vector<64x32xf32>
    %619 = arith.mulf %610, %618 : vector<64x32xf32>
    %620 = arith.addf %573, %619 : vector<64x32xf32>
    %621 = vector.extract_strided_slice %380 {offsets = [10, 0], sizes = [112, 32], strides = [1, 1]} : vector<128x32xf32> to vector<112x32xf32>
    %cst_202 = arith.constant 0.000000e+00 : f32
    %622 = vector.broadcast %cst_202 : f32 to vector<64x32xf32>
    %623 = vector.extract_strided_slice %621 {offsets = [0, 0], sizes = [64, 32], strides = [1, 1]} : vector<112x32xf32> to vector<64x32xf32>
    %c5_203 = arith.constant 5 : index
    %c0_204 = arith.constant 0 : index
    %624 = vector.load %arg5[%c5_203, %c0_204] : memref<49x32xf32, #tpu.memory_space<vmem>>, vector<1x32xf32>
    %625 = vector.broadcast %624 : vector<1x32xf32> to vector<64x32xf32>
    %626 = arith.mulf %623, %625 : vector<64x32xf32>
    %627 = arith.addf %622, %626 : vector<64x32xf32>
    %628 = vector.extract_strided_slice %621 {offsets = [8, 0], sizes = [64, 32], strides = [1, 1]} : vector<112x32xf32> to vector<64x32xf32>
    %c12_205 = arith.constant 12 : index
    %c0_206 = arith.constant 0 : index
    %629 = vector.load %arg5[%c12_205, %c0_206] : memref<49x32xf32, #tpu.memory_space<vmem>>, vector<1x32xf32>
    %630 = vector.broadcast %629 : vector<1x32xf32> to vector<64x32xf32>
    %631 = arith.mulf %628, %630 : vector<64x32xf32>
    %632 = arith.addf %627, %631 : vector<64x32xf32>
    %633 = vector.extract_strided_slice %621 {offsets = [16, 0], sizes = [64, 32], strides = [1, 1]} : vector<112x32xf32> to vector<64x32xf32>
    %c19 = arith.constant 19 : index
    %c0_207 = arith.constant 0 : index
    %634 = vector.load %arg5[%c19, %c0_207] : memref<49x32xf32, #tpu.memory_space<vmem>>, vector<1x32xf32>
    %635 = vector.broadcast %634 : vector<1x32xf32> to vector<64x32xf32>
    %636 = arith.mulf %633, %635 : vector<64x32xf32>
    %637 = arith.addf %632, %636 : vector<64x32xf32>
    %638 = vector.extract_strided_slice %621 {offsets = [24, 0], sizes = [64, 32], strides = [1, 1]} : vector<112x32xf32> to vector<64x32xf32>
    %c26 = arith.constant 26 : index
    %c0_208 = arith.constant 0 : index
    %639 = vector.load %arg5[%c26, %c0_208] : memref<49x32xf32, #tpu.memory_space<vmem>>, vector<1x32xf32>
    %640 = vector.broadcast %639 : vector<1x32xf32> to vector<64x32xf32>
    %641 = arith.mulf %638, %640 : vector<64x32xf32>
    %642 = arith.addf %637, %641 : vector<64x32xf32>
    %643 = vector.extract_strided_slice %621 {offsets = [32, 0], sizes = [64, 32], strides = [1, 1]} : vector<112x32xf32> to vector<64x32xf32>
    %c33 = arith.constant 33 : index
    %c0_209 = arith.constant 0 : index
    %644 = vector.load %arg5[%c33, %c0_209] : memref<49x32xf32, #tpu.memory_space<vmem>>, vector<1x32xf32>
    %645 = vector.broadcast %644 : vector<1x32xf32> to vector<64x32xf32>
    %646 = arith.mulf %643, %645 : vector<64x32xf32>
    %647 = arith.addf %642, %646 : vector<64x32xf32>
    %648 = vector.extract_strided_slice %621 {offsets = [40, 0], sizes = [64, 32], strides = [1, 1]} : vector<112x32xf32> to vector<64x32xf32>
    %c40 = arith.constant 40 : index
    %c0_210 = arith.constant 0 : index
    %649 = vector.load %arg5[%c40, %c0_210] : memref<49x32xf32, #tpu.memory_space<vmem>>, vector<1x32xf32>
    %650 = vector.broadcast %649 : vector<1x32xf32> to vector<64x32xf32>
    %651 = arith.mulf %648, %650 : vector<64x32xf32>
    %652 = arith.addf %647, %651 : vector<64x32xf32>
    %653 = vector.extract_strided_slice %621 {offsets = [48, 0], sizes = [64, 32], strides = [1, 1]} : vector<112x32xf32> to vector<64x32xf32>
    %c47 = arith.constant 47 : index
    %c0_211 = arith.constant 0 : index
    %654 = vector.load %arg5[%c47, %c0_211] : memref<49x32xf32, #tpu.memory_space<vmem>>, vector<1x32xf32>
    %655 = vector.broadcast %654 : vector<1x32xf32> to vector<64x32xf32>
    %656 = arith.mulf %653, %655 : vector<64x32xf32>
    %657 = arith.addf %652, %656 : vector<64x32xf32>
    %cst_212 = arith.constant -2.000000e+00 : f32
    %658 = vector.broadcast %cst_212 : f32 to vector<64x1xf32>
    %659 = arith.cmpf oge, %384, %658 : vector<64x1xf32>
    %cst_213 = arith.constant 6.000000e+00 : f32
    %660 = vector.broadcast %cst_213 : f32 to vector<64x1xf32>
    %661 = arith.cmpf olt, %384, %660 : vector<64x1xf32>
    %662 = arith.andi %659, %661 : vector<64x1xi1>
    %663 = arith.extui %662 : vector<64x1xi1> to vector<64x1xi32>
    %664 = arith.sitofp %663 : vector<64x1xi32> to vector<64x1xf32>
    %665 = vector.broadcast %664 : vector<64x1xf32> to vector<64x32xf32>
    %666 = arith.mulf %657, %665 : vector<64x32xf32>
    %667 = arith.addf %620, %666 : vector<64x32xf32>
    %668 = vector.extract_strided_slice %380 {offsets = [11, 0], sizes = [112, 32], strides = [1, 1]} : vector<128x32xf32> to vector<112x32xf32>
    %cst_214 = arith.constant 0.000000e+00 : f32
    %669 = vector.broadcast %cst_214 : f32 to vector<64x32xf32>
    %670 = vector.extract_strided_slice %668 {offsets = [0, 0], sizes = [64, 32], strides = [1, 1]} : vector<112x32xf32> to vector<64x32xf32>
    %c6_215 = arith.constant 6 : index
    %c0_216 = arith.constant 0 : index
    %671 = vector.load %arg5[%c6_215, %c0_216] : memref<49x32xf32, #tpu.memory_space<vmem>>, vector<1x32xf32>
    %672 = vector.broadcast %671 : vector<1x32xf32> to vector<64x32xf32>
    %673 = arith.mulf %670, %672 : vector<64x32xf32>
    %674 = arith.addf %669, %673 : vector<64x32xf32>
    %675 = vector.extract_strided_slice %668 {offsets = [8, 0], sizes = [64, 32], strides = [1, 1]} : vector<112x32xf32> to vector<64x32xf32>
    %c13_217 = arith.constant 13 : index
    %c0_218 = arith.constant 0 : index
    %676 = vector.load %arg5[%c13_217, %c0_218] : memref<49x32xf32, #tpu.memory_space<vmem>>, vector<1x32xf32>
    %677 = vector.broadcast %676 : vector<1x32xf32> to vector<64x32xf32>
    %678 = arith.mulf %675, %677 : vector<64x32xf32>
    %679 = arith.addf %674, %678 : vector<64x32xf32>
    %680 = vector.extract_strided_slice %668 {offsets = [16, 0], sizes = [64, 32], strides = [1, 1]} : vector<112x32xf32> to vector<64x32xf32>
    %c20 = arith.constant 20 : index
    %c0_219 = arith.constant 0 : index
    %681 = vector.load %arg5[%c20, %c0_219] : memref<49x32xf32, #tpu.memory_space<vmem>>, vector<1x32xf32>
    %682 = vector.broadcast %681 : vector<1x32xf32> to vector<64x32xf32>
    %683 = arith.mulf %680, %682 : vector<64x32xf32>
    %684 = arith.addf %679, %683 : vector<64x32xf32>
    %685 = vector.extract_strided_slice %668 {offsets = [24, 0], sizes = [64, 32], strides = [1, 1]} : vector<112x32xf32> to vector<64x32xf32>
    %c27 = arith.constant 27 : index
    %c0_220 = arith.constant 0 : index
    %686 = vector.load %arg5[%c27, %c0_220] : memref<49x32xf32, #tpu.memory_space<vmem>>, vector<1x32xf32>
    %687 = vector.broadcast %686 : vector<1x32xf32> to vector<64x32xf32>
    %688 = arith.mulf %685, %687 : vector<64x32xf32>
    %689 = arith.addf %684, %688 : vector<64x32xf32>
    %690 = vector.extract_strided_slice %668 {offsets = [32, 0], sizes = [64, 32], strides = [1, 1]} : vector<112x32xf32> to vector<64x32xf32>
    %c34 = arith.constant 34 : index
    %c0_221 = arith.constant 0 : index
    %691 = vector.load %arg5[%c34, %c0_221] : memref<49x32xf32, #tpu.memory_space<vmem>>, vector<1x32xf32>
    %692 = vector.broadcast %691 : vector<1x32xf32> to vector<64x32xf32>
    %693 = arith.mulf %690, %692 : vector<64x32xf32>
    %694 = arith.addf %689, %693 : vector<64x32xf32>
    %695 = vector.extract_strided_slice %668 {offsets = [40, 0], sizes = [64, 32], strides = [1, 1]} : vector<112x32xf32> to vector<64x32xf32>
    %c41 = arith.constant 41 : index
    %c0_222 = arith.constant 0 : index
    %696 = vector.load %arg5[%c41, %c0_222] : memref<49x32xf32, #tpu.memory_space<vmem>>, vector<1x32xf32>
    %697 = vector.broadcast %696 : vector<1x32xf32> to vector<64x32xf32>
    %698 = arith.mulf %695, %697 : vector<64x32xf32>
    %699 = arith.addf %694, %698 : vector<64x32xf32>
    %700 = vector.extract_strided_slice %668 {offsets = [48, 0], sizes = [64, 32], strides = [1, 1]} : vector<112x32xf32> to vector<64x32xf32>
    %c48 = arith.constant 48 : index
    %c0_223 = arith.constant 0 : index
    %701 = vector.load %arg5[%c48, %c0_223] : memref<49x32xf32, #tpu.memory_space<vmem>>, vector<1x32xf32>
    %702 = vector.broadcast %701 : vector<1x32xf32> to vector<64x32xf32>
    %703 = arith.mulf %700, %702 : vector<64x32xf32>
    %704 = arith.addf %699, %703 : vector<64x32xf32>
    %cst_224 = arith.constant -3.000000e+00 : f32
    %705 = vector.broadcast %cst_224 : f32 to vector<64x1xf32>
    %706 = arith.cmpf oge, %384, %705 : vector<64x1xf32>
    %cst_225 = arith.constant 5.000000e+00 : f32
    %707 = vector.broadcast %cst_225 : f32 to vector<64x1xf32>
    %708 = arith.cmpf olt, %384, %707 : vector<64x1xf32>
    %709 = arith.andi %706, %708 : vector<64x1xi1>
    %710 = arith.extui %709 : vector<64x1xi1> to vector<64x1xi32>
    %711 = arith.sitofp %710 : vector<64x1xi32> to vector<64x1xf32>
    %712 = vector.broadcast %711 : vector<64x1xf32> to vector<64x32xf32>
    %713 = arith.mulf %704, %712 : vector<64x32xf32>
    %714 = arith.addf %667, %713 : vector<64x32xf32>
    %c11_226 = arith.constant 11 : index
    %c0_227 = arith.constant 0 : index
    %715 = vector.load %arg4[%c11_226, %c0_227] : memref<17x32xf32, #tpu.memory_space<vmem>>, vector<1x32xf32>
    %716 = vector.broadcast %715 : vector<1x32xf32> to vector<64x32xf32>
    %717 = arith.addf %714, %716 : vector<64x32xf32>
    %cst_228 = arith.constant 0.000000e+00 : f32
    %718 = vector.broadcast %cst_228 : f32 to vector<64x32xf32>
    %719 = arith.maximumf %717, %718 : vector<64x32xf32>
    %720 = arith.truncf %719 : vector<64x32xf32> to vector<64x32xbf16>
    %c14_229 = arith.constant 14 : index
    %c0_230 = arith.constant 0 : index
    %c0_231 = arith.constant 0 : index
    %721 = vector.load %arg3[%c14_229, %c0_230, %c0_231] : memref<15x32x32xbf16, #tpu.memory_space<vmem>>, vector<1x32x32xbf16>
    %722 = vector.shape_cast %721 : vector<1x32x32xbf16> to vector<32x32xbf16>
    %cst_232 = arith.constant dense<0.000000e+00> : vector<64x32xf32>
    %723 = tpu.matmul %720, %722, %cst_232 {dimension_numbers = #tpu.dot_dimension_numbers<[1], [0], [0], [1], [0, 0, 1, 1], [], []>} : vector<64x32xbf16>, vector<32x32xbf16>, vector<64x32xf32> -> vector<64x32xf32>
    %c12_233 = arith.constant 12 : index
    %c0_234 = arith.constant 0 : index
    %724 = vector.load %arg4[%c12_233, %c0_234] : memref<17x32xf32, #tpu.memory_space<vmem>>, vector<1x32xf32>
    %725 = vector.broadcast %724 : vector<1x32xf32> to vector<64x32xf32>
    %726 = arith.addf %723, %725 : vector<64x32xf32>
    %c13_235 = arith.constant 13 : index
    %c0_236 = arith.constant 0 : index
    %727 = vector.load %arg4[%c13_235, %c0_236] : memref<17x32xf32, #tpu.memory_space<vmem>>, vector<1x32xf32>
    %728 = vector.broadcast %727 : vector<1x32xf32> to vector<64x32xf32>
    %729 = arith.mulf %726, %728 : vector<64x32xf32>
    %c14_237 = arith.constant 14 : index
    %c0_238 = arith.constant 0 : index
    %730 = vector.load %arg4[%c14_237, %c0_238] : memref<17x32xf32, #tpu.memory_space<vmem>>, vector<1x32xf32>
    %731 = vector.broadcast %730 : vector<1x32xf32> to vector<64x32xf32>
    %732 = arith.addf %729, %731 : vector<64x32xf32>
    %733 = arith.addf %362, %732 : vector<64x32xf32>
    %c15_239 = arith.constant 15 : index
    %c0_240 = arith.constant 0 : index
    %734 = vector.load %arg4[%c15_239, %c0_240] : memref<17x32xf32, #tpu.memory_space<vmem>>, vector<1x32xf32>
    %735 = vector.broadcast %734 : vector<1x32xf32> to vector<64x32xf32>
    %736 = arith.mulf %733, %735 : vector<64x32xf32>
    %c16_241 = arith.constant 16 : index
    %c0_242 = arith.constant 0 : index
    %737 = vector.load %arg4[%c16_241, %c0_242] : memref<17x32xf32, #tpu.memory_space<vmem>>, vector<1x32xf32>
    %738 = vector.broadcast %737 : vector<1x32xf32> to vector<64x32xf32>
    %739 = arith.addf %736, %738 : vector<64x32xf32>
    %740 = tpu.iota {dimensions = array<i32: 0>} : vector<32x32xi32>
    %741 = tpu.iota {dimensions = array<i32: 1>} : vector<32x32xi32>
    %742 = arith.cmpi eq, %740, %741 : vector<32x32xi32>
    %743 = arith.extui %742 : vector<32x32xi1> to vector<32x32xi32>
    %744 = arith.sitofp %743 : vector<32x32xi32> to vector<32x32xf32>
    %cst_243 = arith.constant dense<0.000000e+00> : vector<32x64xf32>
    %745 = tpu.matmul %744, %739, %cst_243 {dimension_numbers = #tpu.dot_dimension_numbers<[1], [1], [0], [0], [0, 0, 1, 0], [], []>} : vector<32x32xf32>, vector<64x32xf32>, vector<32x64xf32> -> vector<32x64xf32>
    %c0_244 = arith.constant 0 : index
    %c0_245 = arith.constant 0 : index
    %c0_246 = arith.constant 0 : index
    %746 = vector.load %arg6[%c0_244, %c0_245, %c0_246] : memref<1x32x64xf32, #tpu.memory_space<vmem>>, vector<1x32x64xf32>
    %747 = vector.shape_cast %746 : vector<1x32x64xf32> to vector<32x64xf32>
    %748 = vector.shape_cast %745 : vector<32x64xf32> to vector<1x32x64xf32>
    tpu.vector_store %arg6[%c0_244, %c0_245, %c0_246], %748 {strides = array<i32>} : memref<1x32x64xf32, #tpu.memory_space<vmem>>, vector<1x32x64xf32>,
    return
  }
  func.func @transform_0(%arg0: i32) -> (i32, i32, i32) {
    %c0_i32 = arith.constant 0 : i32
    %c0_i32_0 = arith.constant 0 : i32
    %c0_i32_1 = arith.constant 0 : i32
    return %arg0, %c0_i32, %c0_i32_0 : i32, i32, i32
  }
  func.func @transform_1(%arg0: i32) -> (i32, i32, i32) {
    %c0_i32 = arith.constant 0 : i32
    %c0_i32_0 = arith.constant 0 : i32
    %c0_i32_1 = arith.constant 0 : i32
    return %arg0, %c0_i32, %c0_i32_0 : i32, i32, i32
  }
  func.func @transform_2(%arg0: i32) -> (i32, i32, i32) {
    %c0_i32 = arith.constant 0 : i32
    %c0_i32_0 = arith.constant 0 : i32
    %c0_i32_1 = arith.constant 0 : i32
    %c0_i32_2 = arith.constant 0 : i32
    return %c0_i32, %c0_i32_0, %c0_i32_1 : i32, i32, i32
  }
  func.func @transform_3(%arg0: i32) -> (i32, i32) {
    %c0_i32 = arith.constant 0 : i32
    %c0_i32_0 = arith.constant 0 : i32
    %c0_i32_1 = arith.constant 0 : i32
    return %c0_i32, %c0_i32_0 : i32, i32
  }
  func.func @transform_4(%arg0: i32) -> (i32, i32) {
    %c0_i32 = arith.constant 0 : i32
    %c0_i32_0 = arith.constant 0 : i32
    %c0_i32_1 = arith.constant 0 : i32
    return %c0_i32, %c0_i32_0 : i32, i32
  }
  func.func @transform_5(%arg0: i32) -> (i32, i32, i32) {
    %c0_i32 = arith.constant 0 : i32
    %c0_i32_0 = arith.constant 0 : i32
    %c0_i32_1 = arith.constant 0 : i32
    return %arg0, %c0_i32, %c0_i32_0 : i32, i32, i32
  }
}

</mosaic_0001>

<llo_original>
// kernel: ffm_forward.1
$region0: #{ffm_forward.1}
  #allocation0 [shape = 'u32[]', space=smem, size = 0x4, offset = 0x4, fixed_abs, tag = 'smem constant byte address 0x4 - core index']
  #allocation1 [shape = 'u32[144,128]{1,0:T(1,128)}', space=vmem, size = 0x12000, scoped, tag = 'internal scratch']
  #allocation2 [shape = 'f32[128,32]{1,0:T(8,128)}', space=vmem, size = 0x10000, scoped, tag = 'scratch operand']
  %s0 = inlined_call_operand.vmem [shape: f32[2,32,64], index: 0, kind: input, shape index: {}]
  %s1 = inlined_call_operand.vmem [shape: f32[2,32,64], index: 1, kind: input, shape index: {}]
  %s2 = inlined_call_operand.vmem [shape: bf16[15,32,32], index: 2, kind: input, shape index: {}]
  %s3 = inlined_call_operand.vmem [shape: f32[17,32], index: 3, kind: input, shape index: {}]
  %s4 = inlined_call_operand.vmem [shape: f32[49,32], index: 4, kind: input, shape index: {}]
  %s5 = inlined_call_operand.vmem [shape: f32[2,32,64], index: 5, kind: output, shape index: {}]
  %s6 = sld [smem:[#allocation0]]
  $region53: #{ffm_forward.1} parent=0
    _
  %s8 = ssub.s32 1, %s6
  %s9 = scalar_select 0, %s8, %s6
  loop: start=0, step=1, limit=4
  $region2: #{ffm_forward.1} parent=0 // loop_pre_header
    _
  $region3: #{ffm_forward.1} parent=0 // loop_header
    %s11 = sphi 0, %s15
    %p12 = scmp.ge.s32.totalorder %s11, 4
    %s21 = sphi 0, %s23
    %s24 = sphi 0, %s21
    %s25 = sphi 0, %s24
    %s41 = sphi 0, %s25
    %s47 = sphi 0, %s49
    %s50 = sphi 0, %s47
    %s51 = sphi 0, %s50
    %s67 = sphi 0, %s51
    %s71 = sphi 0, %s71
    %s73 = sphi 0, %s71
    %s74 = sphi 0, %s73
    %s88 = sphi 0, %s74
    %s92 = sphi 0, %s92
    %s94 = sphi 0, %s92
    %s95 = sphi 0, %s94
    %s109 = sphi 0, %s95
    %s113 = sphi 0, %s113
    %s115 = sphi 0, %s113
    %s116 = sphi 0, %s115
    %s130 = sphi 0, %s116
    %s136 = sphi 0, %s138
    %s139 = sphi 0, %s136
    %s140 = sphi 0, %s139
    %s156 = sphi 0, %s140
  $region4: #{ffm_forward.1} parent=0 // loop_header_branch
    %14 = sbr.rel (%p12) target = $region8
  $region5: #{ffm_forward.1} parent=0 // loop_body
    %s16 = ssub.s32 %s11, 1
    %s17 = ssub.s32 %s11, 2
    %s18 = sadd.s32 %s11, 1
    %s19 = ssub.s32 %s11, %s18
    %p20 = scmp.eq.s32.totalorder %s19, 0
    %s22 = sadd.s32 %s21, 1
    %s23 = scalar_select %p20, %s21, %s22
    %p26 = pneg %p20
    %p27 = scmp.eq.s32.totalorder %s11, 1
    %p28 = por %p26, %p27
    %p29 = scmp.ne.s32.totalorder %s21, %s24
    %p30 = scmp.eq.s32.totalorder %s11, 0
    %p31 = por %p29, %p30
    %p32 = scmp.ne.s32.totalorder %s21, %s24
    %p33 = scmp.eq.s32.totalorder %s16, 1
    %p34 = por %p32, %p33
    %p35 = scmp.ne.s32.totalorder %s24, %s25
    %p36 = scmp.eq.s32.totalorder %s16, 0
    %p37 = por %p35, %p36
    %p38 = scmp.ne.s32.totalorder %s24, %s25
    %p39 = scmp.eq.s32.totalorder %s17, 1
    %p40 = por %p38, %p39
    %p42 = scmp.ne.s32.totalorder %s25, %s41
    %p43 = scmp.eq.s32.totalorder %s17, 0
    %p44 = por %p42, %p43
    %s45 = ssub.s32 %s11, %s18
    %p46 = scmp.eq.s32.totalorder %s45, 0
    %s48 = sadd.s32 %s47, 1
    %s49 = scalar_select %p46, %s47, %s48
    %p52 = pneg %p46
    %p53 = scmp.eq.s32.totalorder %s11, 1
    %p54 = por %p52, %p53
    %p55 = scmp.ne.s32.totalorder %s47, %s50
    %p56 = scmp.eq.s32.totalorder %s11, 0
    %p57 = por %p55, %p56
    %p58 = scmp.ne.s32.totalorder %s47, %s50
    %p59 = scmp.eq.s32.totalorder %s16, 1
    %p60 = por %p58, %p59
    %p61 = scmp.ne.s32.totalorder %s50, %s51
    %p62 = scmp.eq.s32.totalorder %s16, 0
    %p63 = por %p61, %p62
    %p64 = scmp.ne.s32.totalorder %s50, %s51
    %p65 = scmp.eq.s32.totalorder %s17, 1
    %p66 = por %p64, %p65
    %p68 = scmp.ne.s32.totalorder %s51, %s67
    %p69 = scmp.eq.s32.totalorder %s17, 0
    %p70 = por %p68, %p69
    %s72 = sadd.s32 %s71, 1
    %p75 = scmp.eq.s32.totalorder %s11, 1
    %p76 = scmp.ne.s32.totalorder %s71, %s73
    %p77 = scmp.eq.s32.totalorder %s11, 0
    %p78 = por %p76, %p77
    %p79 = scmp.ne.s32.totalorder %s71, %s73
    %p80 = scmp.eq.s32.totalorder %s16, 1
    %p81 = por %p79, %p80
    %p82 = scmp.ne.s32.totalorder %s73, %s74
    %p83 = scmp.eq.s32.totalorder %s16, 0
    %p84 = por %p82, %p83
    %p85 = scmp.ne.s32.totalorder %s73, %s74
    %p86 = scmp.eq.s32.totalorder %s17, 1
    %p87 = por %p85, %p86
    %p89 = scmp.ne.s32.totalorder %s74, %s88
    %p90 = scmp.eq.s32.totalorder %s17, 0
    %p91 = por %p89, %p90
    %s93 = sadd.s32 %s92, 1
    %p96 = scmp.eq.s32.totalorder %s11, 1
    %p97 = scmp.ne.s32.totalorder %s92, %s94
    %p98 = scmp.eq.s32.totalorder %s11, 0
    %p99 = por %p97, %p98
    %p100 = scmp.ne.s32.totalorder %s92, %s94
    %p101 = scmp.eq.s32.totalorder %s16, 1
    %p102 = por %p100, %p101
    %p103 = scmp.ne.s32.totalorder %s94, %s95
    %p104 = scmp.eq.s32.totalorder %s16, 0
    %p105 = por %p103, %p104
    %p106 = scmp.ne.s32.totalorder %s94, %s95
    %p107 = scmp.eq.s32.totalorder %s17, 1
    %p108 = por %p106, %p107
    %p110 = scmp.ne.s32.totalorder %s95, %s109
    %p111 = scmp.eq.s32.totalorder %s17, 0
    %p112 = por %p110, %p111
    %s114 = sadd.s32 %s113, 1
    %p117 = scmp.eq.s32.totalorder %s11, 1
    %p118 = scmp.ne.s32.totalorder %s113, %s115
    %p119 = scmp.eq.s32.totalorder %s11, 0
    %p120 = por %p118, %p119
    %p121 = scmp.ne.s32.totalorder %s113, %s115
    %p122 = scmp.eq.s32.totalorder %s16, 1
    %p123 = por %p121, %p122
    %p124 = scmp.ne.s32.totalorder %s115, %s116
    %p125 = scmp.eq.s32.totalorder %s16, 0
    %p126 = por %p124, %p125
    %p127 = scmp.ne.s32.totalorder %s115, %s116
    %p128 = scmp.eq.s32.totalorder %s17, 1
    %p129 = por %p127, %p128
    %p131 = scmp.ne.s32.totalorder %s116, %s130
    %p132 = scmp.eq.s32.totalorder %s17, 0
    %p133 = por %p131, %p132
    %s134 = ssub.s32 %s11, %s18
    %p135 = scmp.eq.s32.totalorder %s134, 0
    %s137 = sadd.s32 %s136, 1
    %s138 = scalar_select %p135, %s136, %s137
    %p141 = pneg %p135
    %p142 = scmp.eq.s32.totalorder %s11, 1
    %p143 = por %p141, %p142
    %p144 = scmp.ne.s32.totalorder %s136, %s139
    %p145 = scmp.eq.s32.totalorder %s11, 0
    %p146 = por %p144, %p145
    %p147 = scmp.ne.s32.totalorder %s136, %s139
    %p148 = scmp.eq.s32.totalorder %s16, 1
    %p149 = por %p147, %p148
    %p150 = scmp.ne.s32.totalorder %s139, %s140
    %p151 = scmp.eq.s32.totalorder %s16, 0
    %p152 = por %p150, %p151
    %p153 = scmp.ne.s32.totalorder %s139, %s140
    %p154 = scmp.eq.s32.totalorder %s17, 1
    %p155 = por %p153, %p154
    %p157 = scmp.ne.s32.totalorder %s140, %s156
    %p158 = scmp.eq.s32.totalorder %s17, 0
    %p159 = por %p157, %p158
    %p160 = scmp.le.s32.totalorder 1, %s11
    %p161 = scmp.lt.s32.totalorder %s11, 3
    %p162 = pnand %p160, %p161
    %p163 = pneg %p162
    // Predicated region
    $region9: #{ffm_forward.1} parent=5 // pred_check
      _
    $region10: #{ffm_forward.1} parent=5 // pred_check_branch
      %165 = sbr.rel (%p162) target = $region12
    $region11: #{ffm_forward.1} parent=5 // pred_region
      %s166 = ssub.s32 %s11, 1
      // Predicated region
      $region13: #{ffm_forward.1} parent=11 // pred_check
        %p167 = pneg %p84
      $region14: #{ffm_forward.1} parent=11 // pred_check_branch
        %169 = sbr.rel (%p167) target = $region16
      $region15: #{ffm_forward.1} parent=11 // pred_region
        _
      $region16: #{ffm_forward.1} parent=11 // pred_fallthru
        _
      // Predicated region
      $region17: #{ffm_forward.1} parent=11 // pred_check
        %p170 = pneg %p105
      $region18: #{ffm_forward.1} parent=11 // pred_check_branch
        %172 = sbr.rel (%p170) target = $region20
      $region19: #{ffm_forward.1} parent=11 // pred_region
        _
      $region20: #{ffm_forward.1} parent=11 // pred_fallthru
        _
      // Predicated region
      $region21: #{ffm_forward.1} parent=11 // pred_check
        %p173 = pneg %p126
      $region22: #{ffm_forward.1} parent=11 // pred_check_branch
        %175 = sbr.rel (%p173) target = $region24
      $region23: #{ffm_forward.1} parent=11 // pred_region
        _
      $region24: #{ffm_forward.1} parent=11 // pred_fallthru
        _
    $region12: #{ffm_forward.1} parent=5 // pred_fallthru
      _
    %p176 = scmp.lt.s32.totalorder %s11, 2
    // Predicated region
    $region25: #{ffm_forward.1} parent=5 // pred_check
      %p177 = pneg %p176
    $region26: #{ffm_forward.1} parent=5 // pred_check_branch
      %179 = sbr.rel (%p177) target = $region28
    $region27: #{ffm_forward.1} parent=5 // pred_region
      // Predicated region
      $region29: #{ffm_forward.1} parent=27 // pred_check
        %p180 = pneg %p31
      $region30: #{ffm_forward.1} parent=27 // pred_check_branch
        %182 = sbr.rel (%p180) target = $region32
      $region31: #{ffm_forward.1} parent=27 // pred_region
        %p183 = scmp.lt.s32.totalorder %s11, 1
        %s184 = scalar_select %p183, %s11, 1
        %s185 = smul.addr %s184, 4
        %s186 = smul.addr %s185, 8
        %s187 = scalar_lea.vmem %s0, %s186
      $region32: #{ffm_forward.1} parent=27 // pred_fallthru
        _
      // Predicated region
      $region33: #{ffm_forward.1} parent=27 // pred_check
        %p188 = pneg %p57
      $region34: #{ffm_forward.1} parent=27 // pred_check_branch
        %190 = sbr.rel (%p188) target = $region36
      $region35: #{ffm_forward.1} parent=27 // pred_region
        %p191 = scmp.lt.s32.totalorder %s11, 1
        %s192 = scalar_select %p191, %s11, 1
        %s193 = smul.addr %s192, 4
        %s194 = smul.addr %s193, 8
        %s195 = scalar_lea.vmem %s1, %s194
      $region36: #{ffm_forward.1} parent=27 // pred_fallthru
        _
    $region28: #{ffm_forward.1} parent=5 // pred_fallthru
      _
    %p196 = scmp.le.s32.totalorder 1, %s11
    %p197 = scmp.lt.s32.totalorder %s11, 3
    %p198 = pnand %p196, %p197
    %p199 = pneg %p198
    // Predicated region
    $region37: #{ffm_forward.1} parent=5 // pred_check
      _
    $region38: #{ffm_forward.1} parent=5 // pred_check_branch
      %201 = sbr.rel (%p198) target = $region40
    $region39: #{ffm_forward.1} parent=5 // pred_region
      %s202 = ssub.s32 %s11, 1
      %p203 = scmp.lt.s32.totalorder %s16, 1
      %s204 = scalar_select %p203, %s16, 1
      %s205 = smul.addr %s204, 4
      %s206 = smul.addr %s205, 8
      %s207 = scalar_lea.vmem %s0, %s206
      %p208 = pneg %p37
      %p209 = pneg %p34
      %p210 = scmp.lt.s32.totalorder %s16, 1
      %s211 = scalar_select %p210, %s16, 1
      %s212 = smul.addr %s211, 4
      %s213 = smul.addr %s212, 8
      %s214 = scalar_lea.vmem %s1, %s213
      %p215 = pneg %p63
      %p216 = pneg %p60
      %p217 = pneg %p84
      %p218 = pneg %p81
      %p219 = pneg %p105
      %p220 = pneg %p102
      %p221 = pneg %p126
      %p222 = pneg %p123
      %p223 = pneg %p152
      %p224 = pneg %p149
      %p225 = scmp.lt.s32.totalorder %s16, 1
      %s226 = scalar_select %p225, %s16, 1
      %s227 = smul.addr %s226, 4
      %s228 = smul.addr %s227, 8
      %s229 = scalar_lea.vmem %s5, %s228
      %p230 = scmp.lt.s32.totalorder %s16, 1
      %s231 = scalar_select %p230, %s16, 1
      %s232 = smul.addr %s231, 4
      %s233 = smul.addr %s232, 8
      %s234 = scalar_lea.vmem %s0, %s233
      %p235 = scmp.lt.s32.totalorder %s16, 1
      %s236 = scalar_select %p235, %s16, 1
      %s237 = smul.addr %s236, 4
      %s238 = smul.addr %s237, 8
      %s239 = scalar_lea.vmem %s1, %s238
      %p240 = scmp.lt.s32.totalorder %s16, 1
      %s241 = scalar_select %p240, %s16, 1
      %s242 = smul.addr %s241, 4
      %s243 = smul.addr %s242, 8
      %s244 = scalar_lea.vmem %s5, %s243
      %v246 = vlaneseq
      %v247 = vshrl.u32 %v246, 7
      %v248 = vadd.s32 %v247, 8
      %v249 = vadd.s32 %v247, 16
      %v250 = vadd.s32 %v247, 24
      %v251 = vadd.s32 %v247, 32
      %v252 = vadd.s32 %v247, 40
      %v253 = vadd.s32 %v247, 48
      %v254 = vadd.s32 %v247, 56
      %v255 = vlaneseq
      %v256 = vand.u32 %v255, 127
      %vm257 = vcmp.eq.s32.totalorder %v247, %v256
      %vm258 = vcmp.eq.s32.totalorder %v248, %v256
      %vm259 = vcmp.eq.s32.totalorder %v249, %v256
      %vm260 = vcmp.eq.s32.totalorder %v250, %v256
      %vm261 = vcmp.eq.s32.totalorder %v251, %v256
      %vm262 = vcmp.eq.s32.totalorder %v252, %v256
      %vm263 = vcmp.eq.s32.totalorder %v253, %v256
      %vm264 = vcmp.eq.s32.totalorder %v254, %v256
      %v265 = vsel %vm257, 1, 0
      %v266 = vsel %vm258, 1, 0
      %v267 = vsel %vm259, 1, 0
      %v268 = vsel %vm260, 1, 0
      %v269 = vsel %vm261, 1, 0
      %v270 = vsel %vm262, 1, 0
      %v271 = vsel %vm263, 1, 0
      %v272 = vsel %vm264, 1, 0
      %v273 = vcvt.s32.f32 %v265
      %v274 = vcvt.s32.f32 %v266
      %v275 = vcvt.s32.f32 %v267
      %v276 = vcvt.s32.f32 %v268
      %v277 = vcvt.s32.f32 %v269
      %v278 = vcvt.s32.f32 %v270
      %v279 = vcvt.s32.f32 %v271
      %v280 = vcvt.s32.f32 %v272
      %v281 = vld [vmem:[%s234] sm:$0xff]
      %v282 = vld [vmem:[%s234 + $0x8] sm:$0xff]
      %v283 = vld [vmem:[%s234 + $0x10] sm:$0xff]
      %v284 = vld [vmem:[%s234 + $0x18] sm:$0xff]
      %vm285 = vcmask 523264
      %v287 = vsel %vm285, %v273, 0
      %v290 = vsel %vm285, %v274, 0
      %v293 = vsel %vm285, %v275, 0
      %v296 = vsel %vm285, %v276, 0
      %v299 = vsel %vm285, %v277, 0
      %v302 = vsel %vm285, %v278, 0
      %v305 = vsel %vm285, %v279, 0
      %v308 = vsel %vm285, %v280, 0
      %v311 = vsel %vm285, %v281, 0
      %v314 = vsel %vm285, %v282, 0
      %v317 = vsel %vm285, %v283, 0
      %v320 = vsel %vm285, %v284, 0
      %322 = vmatprep.subr.mxu0 0.0
      %323 = vmatpush1.xpose.msra.mxu0 0.0
      %324 = vmatprep.subr.mxu0 0.0
      %325 = vmatpush1.xpose.msra.mxu0 0.0
      %326 = vmatprep.subr.mxu0 0.0
      %327 = vmatpush1.xpose.msra.mxu0 0.0
      %328 = vmatprep.subr.mxu0 0.0
      %329 = vmatpush1.xpose.msra.mxu0 0.0
      %330 = vmatprep.subr.mxu0 0.0
      %331 = vmatpush1.xpose.msra.mxu0 0.0
      %332 = vmatprep.subr.mxu0 0.0
      %333 = vmatpush1.xpose.msra.mxu0 0.0
      %334 = vmatprep.subr.mxu0 0.0
      %335 = vmatpush1.xpose.msra.mxu0 0.0
      %336 = vmatprep.subr.mxu0 0.0
      %337 = vmatpush1.xpose.msra.mxu0 0.0
      %338 = vmatprep.subr.mxu0 0.0
      %339 = vmatpush1.xpose.msra.mxu0 0.0
      %340 = vmatprep.subr.mxu0 0.0
      %341 = vmatpush1.xpose.msra.mxu0 0.0
      %342 = vmatprep.subr.mxu0 0.0
      %343 = vmatpush1.xpose.msra.mxu0 0.0
      %344 = vmatprep.subr.mxu0 0.0
      %345 = vmatpush1.xpose.msra.mxu0 0.0
      %346 = vmatprep.subr.mxu0 0.0
      %347 = vmatpush1.xpose.msra.mxu0 %v320
      %348 = vmatprep.subr.mxu0 0.0
      %349 = vmatpush1.xpose.msra.mxu0 %v317
      %350 = vmatprep.subr.mxu0 0.0
      %351 = vmatpush1.xpose.msra.mxu0 %v314
      %352 = vmatprep.subr.mxu0 0.0
      %353 = vmatpush1.xpose.msra.mxu0 %v311
      %354 = vmatprep.subr.mxu0 0.0
      %355 = vmatpush2.xpose.msra.mxu0 0.0
      %356 = vmatprep.subr.mxu0 0.0
      %357 = vmatpush2.xpose.msra.mxu0 0.0
      %358 = vmatprep.subr.mxu0 0.0
      %359 = vmatpush2.xpose.msra.mxu0 0.0
      %360 = vmatprep.subr.mxu0 0.0
      %361 = vmatpush2.xpose.msra.mxu0 0.0
      %362 = vmatprep.subr.mxu0 0.0
      %363 = vmatpush2.xpose.msra.mxu0 0.0
      %364 = vmatprep.subr.mxu0 0.0
      %365 = vmatpush2.xpose.msra.mxu0 0.0
      %366 = vmatprep.subr.mxu0 0.0
      %367 = vmatpush2.xpose.msra.mxu0 0.0
      %368 = vmatprep.subr.mxu0 0.0
      %369 = vmatpush2.xpose.msra.mxu0 0.0
      %370 = vmatprep.subr.mxu0 0.0
      %371 = vmatpush2.xpose.msra.mxu0 0.0
      %372 = vmatprep.subr.mxu0 0.0
      %373 = vmatpush2.xpose.msra.mxu0 0.0
      %374 = vmatprep.subr.mxu0 0.0
      %375 = vmatpush2.xpose.msra.mxu0 0.0
      %376 = vmatprep.subr.mxu0 0.0
      %377 = vmatpush2.xpose.msra.mxu0 0.0
      %378 = vmatprep.subr.mxu0 0.0
      %379 = vmatpush2.xpose.msra.mxu0 0.0
      %380 = vmatprep.subr.mxu0 0.0
      %381 = vmatpush2.xpose.msra.mxu0 0.0
      %382 = vmatprep.subr.mxu0 0.0
      %383 = vmatpush2.xpose.msra.mxu0 0.0
      %384 = vmatprep.subr.mxu0 0.0
      %385 = vmatpush2.xpose.msra.mxu0 0.0
      %386 = vmatprep.mubr.f32.mxu0 0.0
      %387 = vmatmul.mubr.f32.gmra.mxu0 %v287
      %v388 = vpop.f32.mrf.mxu0
      %v389 = vadd.f32 0.0, %v388
      %v390 = vpop.f32.mrf.mxu0
      %391 = vmatprep.mubr.f32.mxu0 0.0
      %392 = vmatmul.mubr.f32.gmra.mxu0 %v290
      %v393 = vpop.f32.mrf.mxu0
      %v394 = vadd.f32 0.0, %v393
      %v395 = vpop.f32.mrf.mxu0
      %396 = vmatprep.mubr.f32.mxu0 0.0
      %397 = vmatmul.mubr.f32.gmra.mxu0 %v293
      %v398 = vpop.f32.mrf.mxu0
      %v399 = vadd.f32 0.0, %v398
      %v400 = vpop.f32.mrf.mxu0
      %401 = vmatprep.mubr.f32.mxu0 0.0
      %402 = vmatmul.mubr.f32.gmra.mxu0 %v296
      %v403 = vpop.f32.mrf.mxu0
      %v404 = vadd.f32 0.0, %v403
      %v405 = vpop.f32.mrf.mxu0
      %406 = vmatprep.mubr.f32.mxu0 0.0
      %407 = vmatmul.mubr.f32.gmra.mxu0 %v299
      %v408 = vpop.f32.mrf.mxu0
      %v409 = vadd.f32 0.0, %v408
      %v410 = vpop.f32.mrf.mxu0
      %411 = vmatprep.mubr.f32.mxu0 0.0
      %412 = vmatmul.mubr.f32.gmra.mxu0 %v302
      %v413 = vpop.f32.mrf.mxu0
      %v414 = vadd.f32 0.0, %v413
      %v415 = vpop.f32.mrf.mxu0
      %416 = vmatprep.mubr.f32.mxu0 0.0
      %417 = vmatmul.mubr.f32.gmra.mxu0 %v305
      %v418 = vpop.f32.mrf.mxu0
      %v419 = vadd.f32 0.0, %v418
      %v420 = vpop.f32.mrf.mxu0
      %421 = vmatprep.mubr.f32.mxu0 0.0
      %422 = vmatmul.mubr.f32.gmra.mxu0 %v308
      %v423 = vpop.f32.mrf.mxu0
      %v424 = vadd.f32 0.0, %v423
      %v425 = vpop.f32.mrf.mxu0
      %426 = vdwg.mxu0
      %v427 = vld [vmem:[%s239] sm:$0xff]
      %v428 = vld [vmem:[%s239 + $0x8] sm:$0xff]
      %v429 = vld [vmem:[%s239 + $0x10] sm:$0xff]
      %v430 = vld [vmem:[%s239 + $0x18] sm:$0xff]
      %v432 = vsel %vm285, %v427, 0
      %v435 = vsel %vm285, %v428, 0
      %v438 = vsel %vm285, %v429, 0
      %v441 = vsel %vm285, %v430, 0
      %443 = vmatprep.subr.mxu0 0.0
      %444 = vmatpush1.xpose.msra.mxu0 0.0
      %445 = vmatprep.subr.mxu0 0.0
      %446 = vmatpush1.xpose.msra.mxu0 0.0
      %447 = vmatprep.subr.mxu0 0.0
      %448 = vmatpush1.xpose.msra.mxu0 0.0
      %449 = vmatprep.subr.mxu0 0.0
      %450 = vmatpush1.xpose.msra.mxu0 0.0
      %451 = vmatprep.subr.mxu0 0.0
      %452 = vmatpush1.xpose.msra.mxu0 0.0
      %453 = vmatprep.subr.mxu0 0.0
      %454 = vmatpush1.xpose.msra.mxu0 0.0
      %455 = vmatprep.subr.mxu0 0.0
      %456 = vmatpush1.xpose.msra.mxu0 0.0
      %457 = vmatprep.subr.mxu0 0.0
      %458 = vmatpush1.xpose.msra.mxu0 0.0
      %459 = vmatprep.subr.mxu0 0.0
      %460 = vmatpush1.xpose.msra.mxu0 0.0
      %461 = vmatprep.subr.mxu0 0.0
      %462 = vmatpush1.xpose.msra.mxu0 0.0
      %463 = vmatprep.subr.mxu0 0.0
      %464 = vmatpush1.xpose.msra.mxu0 0.0
      %465 = vmatprep.subr.mxu0 0.0
      %466 = vmatpush1.xpose.msra.mxu0 0.0
      %467 = vmatprep.subr.mxu0 0.0
      %468 = vmatpush1.xpose.msra.mxu0 %v441
      %469 = vmatprep.subr.mxu0 0.0
      %470 = vmatpush1.xpose.msra.mxu0 %v438
      %471 = vmatprep.subr.mxu0 0.0
      %472 = vmatpush1.xpose.msra.mxu0 %v435
      %473 = vmatprep.subr.mxu0 0.0
      %474 = vmatpush1.xpose.msra.mxu0 %v432
      %475 = vmatprep.subr.mxu0 0.0
      %476 = vmatpush2.xpose.msra.mxu0 0.0
      %477 = vmatprep.subr.mxu0 0.0
      %478 = vmatpush2.xpose.msra.mxu0 0.0
      %479 = vmatprep.subr.mxu0 0.0
      %480 = vmatpush2.xpose.msra.mxu0 0.0
      %481 = vmatprep.subr.mxu0 0.0
      %482 = vmatpush2.xpose.msra.mxu0 0.0
      %483 = vmatprep.subr.mxu0 0.0
      %484 = vmatpush2.xpose.msra.mxu0 0.0
      %485 = vmatprep.subr.mxu0 0.0
      %486 = vmatpush2.xpose.msra.mxu0 0.0
      %487 = vmatprep.subr.mxu0 0.0
      %488 = vmatpush2.xpose.msra.mxu0 0.0
      %489 = vmatprep.subr.mxu0 0.0
      %490 = vmatpush2.xpose.msra.mxu0 0.0
      %491 = vmatprep.subr.mxu0 0.0
      %492 = vmatpush2.xpose.msra.mxu0 0.0
      %493 = vmatprep.subr.mxu0 0.0
      %494 = vmatpush2.xpose.msra.mxu0 0.0
      %495 = vmatprep.subr.mxu0 0.0
      %496 = vmatpush2.xpose.msra.mxu0 0.0
      %497 = vmatprep.subr.mxu0 0.0
      %498 = vmatpush2.xpose.msra.mxu0 0.0
      %499 = vmatprep.subr.mxu0 0.0
      %500 = vmatpush2.xpose.msra.mxu0 0.0
      %501 = vmatprep.subr.mxu0 0.0
      %502 = vmatpush2.xpose.msra.mxu0 0.0
      %503 = vmatprep.subr.mxu0 0.0
      %504 = vmatpush2.xpose.msra.mxu0 0.0
      %505 = vmatprep.subr.mxu0 0.0
      %506 = vmatpush2.xpose.msra.mxu0 0.0
      %507 = vmatprep.mubr.f32.mxu0 0.0
      %508 = vmatmul.mubr.f32.gmra.mxu0 %v287
      %v509 = vpop.f32.mrf.mxu0
      %v510 = vadd.f32 0.0, %v509
      %v511 = vpop.f32.mrf.mxu0
      %512 = vmatprep.mubr.f32.mxu0 0.0
      %513 = vmatmul.mubr.f32.gmra.mxu0 %v290
      %v514 = vpop.f32.mrf.mxu0
      %v515 = vadd.f32 0.0, %v514
      %v516 = vpop.f32.mrf.mxu0
      %517 = vmatprep.mubr.f32.mxu0 0.0
      %518 = vmatmul.mubr.f32.gmra.mxu0 %v293
      %v519 = vpop.f32.mrf.mxu0
      %v520 = vadd.f32 0.0, %v519
      %v521 = vpop.f32.mrf.mxu0
      %522 = vmatprep.mubr.f32.mxu0 0.0
      %523 = vmatmul.mubr.f32.gmra.mxu0 %v296
      %v524 = vpop.f32.mrf.mxu0
      %v525 = vadd.f32 0.0, %v524
      %v526 = vpop.f32.mrf.mxu0
      %527 = vmatprep.mubr.f32.mxu0 0.0
      %528 = vmatmul.mubr.f32.gmra.mxu0 %v299
      %v529 = vpop.f32.mrf.mxu0
      %v530 = vadd.f32 0.0, %v529
      %v531 = vpop.f32.mrf.mxu0
      %532 = vmatprep.mubr.f32.mxu0 0.0
      %533 = vmatmul.mubr.f32.gmra.mxu0 %v302
      %v534 = vpop.f32.mrf.mxu0
      %v535 = vadd.f32 0.0, %v534
      %v536 = vpop.f32.mrf.mxu0
      %537 = vmatprep.mubr.f32.mxu0 0.0
      %538 = vmatmul.mubr.f32.gmra.mxu0 %v305
      %v539 = vpop.f32.mrf.mxu0
      %v540 = vadd.f32 0.0, %v539
      %v541 = vpop.f32.mrf.mxu0
      %542 = vmatprep.mubr.f32.mxu0 0.0
      %543 = vmatmul.mubr.f32.gmra.mxu0 %v308
      %v544 = vpop.f32.mrf.mxu0
      %v545 = vadd.f32 0.0, %v544
      %v546 = vpop.f32.mrf.mxu0
      %547 = vdwg.mxu0
      %v548 = vpack.c.bf16 %v394, %v389
      %v549 = vpack.c.bf16 %v404, %v399
      %v550 = vpack.c.bf16 %v414, %v409
      %v551 = vpack.c.bf16 %v424, %v419
      %v552 = vld [vmem:[%s2] sm:$0xf]
      %v553 = vld [vmem:[%s2 + $0x4] sm:$0xf]
      %v554 = vld [vmem:[%s2 + $0x8] sm:$0xf]
      %v555 = vld [vmem:[%s2 + $0xc] sm:$0xf]
      %v556 = vld [vmem:[%s3] sm:$0x1]
      %v557 = vlaneseq
      %v558 = vshrl.u32 %v557, 7
      %v559 = vsub.s32 0, %v558
      %v560 = vrot.slane %v556, %v559
      %v565 = vunpack.c.l.b16 %v552
      %v566 = vunpack.c.l.b16 %v553
      %v567 = vunpack.c.l.b16 %v554
      %v568 = vunpack.c.l.b16 %v555
      %v569 = vpack.c.b16 %v566, %v565
      %v570 = vpack.c.b16 %v568, %v567
      %vm573 = vcmask 261120
      %v575 = vsel %vm573, %v548, 0
      %v578 = vsel %vm573, %v549, 0
      %v581 = vsel %vm573, %v550, 0
      %v584 = vsel %vm573, %v551, 0
      %586 = vmatprep.subr.bf16.mxu0 0
      %587 = vmatpush1.bf16.msra.mxu0 0
      %588 = vmatprep.subr.bf16.mxu0 0
      %589 = vmatpush1.bf16.msra.mxu0 0
      %590 = vmatprep.subr.bf16.mxu0 0
      %591 = vmatpush1.bf16.msra.mxu0 0
      %592 = vmatprep.subr.bf16.mxu0 0
      %593 = vmatpush1.bf16.msra.mxu0 0
      %594 = vmatprep.subr.bf16.mxu0 0
      %595 = vmatpush1.bf16.msra.mxu0 0
      %596 = vmatprep.subr.bf16.mxu0 0
      %597 = vmatpush1.bf16.msra.mxu0 0
      %598 = vmatprep.subr.bf16.mxu0 0
      %599 = vmatpush1.bf16.msra.mxu0 %v570
      %600 = vmatprep.subr.bf16.mxu0 0
      %601 = vmatpush1.bf16.msra.mxu0 %v569
      %602 = vmatprep.subr.bf16.mxu0 0
      %603 = vmatpush2.bf16.msra.mxu0 0
      %604 = vmatprep.subr.bf16.mxu0 0
      %605 = vmatpush2.bf16.msra.mxu0 0
      %606 = vmatprep.subr.bf16.mxu0 0
      %607 = vmatpush2.bf16.msra.mxu0 0
      %608 = vmatprep.subr.bf16.mxu0 0
      %609 = vmatpush2.bf16.msra.mxu0 0
      %610 = vmatprep.subr.bf16.mxu0 0
      %611 = vmatpush2.bf16.msra.mxu0 0
      %612 = vmatprep.subr.bf16.mxu0 0
      %613 = vmatpush2.bf16.msra.mxu0 0
      %614 = vmatprep.subr.bf16.mxu0 0
      %615 = vmatpush2.bf16.msra.mxu0 0
      %616 = vmatprep.subr.bf16.mxu0 0
      %617 = vmatpush2.bf16.msra.mxu0 0
      %618 = vmatprep.mubr.bf16.mxu0 0
      %619 = vmatmul.mubr.bf16.gmra.mxu0 %v575
      %v620 = vpop.f32.mrf.mxu0
      %v621 = vadd.f32 %v560, %v620
      %v622 = vpop.f32.mrf.mxu0
      %v623 = vpop.f32.mrf.mxu0
      %v624 = vadd.f32 %v560, %v623
      %v625 = vpop.f32.mrf.mxu0
      %626 = vmatprep.mubr.bf16.mxu0 0
      %627 = vmatmul.mubr.bf16.gmra.mxu0 %v578
      %v628 = vpop.f32.mrf.mxu0
      %v629 = vadd.f32 %v560, %v628
      %v630 = vpop.f32.mrf.mxu0
      %v631 = vpop.f32.mrf.mxu0
      %v632 = vadd.f32 %v560, %v631
      %v633 = vpop.f32.mrf.mxu0
      %634 = vmatprep.mubr.bf16.mxu0 0
      %635 = vmatmul.mubr.bf16.gmra.mxu0 %v581
      %v636 = vpop.f32.mrf.mxu0
      %v637 = vadd.f32 %v560, %v636
      %v638 = vpop.f32.mrf.mxu0
      %v639 = vpop.f32.mrf.mxu0
      %v640 = vadd.f32 %v560, %v639
      %v641 = vpop.f32.mrf.mxu0
      %642 = vmatprep.mubr.bf16.mxu0 0
      %643 = vmatmul.mubr.bf16.gmra.mxu0 %v584
      %v644 = vpop.f32.mrf.mxu0
      %v645 = vadd.f32 %v560, %v644
      %v646 = vpop.f32.mrf.mxu0
      %v647 = vpop.f32.mrf.mxu0
      %v648 = vadd.f32 %v560, %v647
      %v649 = vpop.f32.mrf.mxu0
      %650 = vdwg.mxu0
      %v651 = vmax.f32 %v621, 0.0
      %v652 = vmax.f32 %v624, 0.0
      %v653 = vmax.f32 %v629, 0.0
      %v654 = vmax.f32 %v632, 0.0
      %v655 = vmax.f32 %v637, 0.0
      %v656 = vmax.f32 %v640, 0.0
      %v657 = vmax.f32 %v645, 0.0
      %v658 = vmax.f32 %v648, 0.0
      %s659 = scalar_lea.vmem %s2, 16
      %v660 = vld [vmem:[%s659] sm:$0xf]
      %v661 = vld [vmem:[%s659 + $0x4] sm:$0xf]
      %v662 = vld [vmem:[%s659 + $0x8] sm:$0xf]
      %v663 = vld [vmem:[%s659 + $0xc] sm:$0xf]
      %v664 = vld [vmem:[%s3 + $0x1] sm:$0x1]
      %v665 = vlaneseq
      %v666 = vshrl.u32 %v665, 7
      %v667 = vsub.s32 0, %v666
      %v668 = vrot.slane %v664, %v667
      %v673 = vunpack.c.l.b16 %v660
      %v674 = vunpack.c.l.b16 %v661
      %v675 = vunpack.c.l.b16 %v662
      %v676 = vunpack.c.l.b16 %v663
      %v677 = vpack.c.b16 %v674, %v673
      %v678 = vpack.c.b16 %v676, %v675
      %681 = vmatprep.subr.bf16.mxu0 0
      %682 = vmatpush1.bf16.msra.mxu0 0
      %683 = vmatprep.subr.bf16.mxu0 0
      %684 = vmatpush1.bf16.msra.mxu0 0
      %685 = vmatprep.subr.bf16.mxu0 0
      %686 = vmatpush1.bf16.msra.mxu0 0
      %687 = vmatprep.subr.bf16.mxu0 0
      %688 = vmatpush1.bf16.msra.mxu0 0
      %689 = vmatprep.subr.bf16.mxu0 0
      %690 = vmatpush1.bf16.msra.mxu0 0
      %691 = vmatprep.subr.bf16.mxu0 0
      %692 = vmatpush1.bf16.msra.mxu0 0
      %693 = vmatprep.subr.bf16.mxu0 0
      %694 = vmatpush1.bf16.msra.mxu0 %v678
      %695 = vmatprep.subr.bf16.mxu0 0
      %696 = vmatpush1.bf16.msra.mxu0 %v677
      %697 = vmatprep.subr.bf16.mxu0 0
      %698 = vmatpush2.bf16.msra.mxu0 0
      %699 = vmatprep.subr.bf16.mxu0 0
      %700 = vmatpush2.bf16.msra.mxu0 0
      %701 = vmatprep.subr.bf16.mxu0 0
      %702 = vmatpush2.bf16.msra.mxu0 0
      %703 = vmatprep.subr.bf16.mxu0 0
      %704 = vmatpush2.bf16.msra.mxu0 0
      %705 = vmatprep.subr.bf16.mxu0 0
      %706 = vmatpush2.bf16.msra.mxu0 0
      %707 = vmatprep.subr.bf16.mxu0 0
      %708 = vmatpush2.bf16.msra.mxu0 0
      %709 = vmatprep.subr.bf16.mxu0 0
      %710 = vmatpush2.bf16.msra.mxu0 0
      %711 = vmatprep.subr.bf16.mxu0 0
      %712 = vmatpush2.bf16.msra.mxu0 0
      %713 = vmatprep.mubr.bf16.mxu0 0
      %714 = vmatmul.mubr.bf16.gmra.mxu0 %v575
      %v715 = vpop.f32.mrf.mxu0
      %v716 = vadd.f32 %v668, %v715
      %v717 = vpop.f32.mrf.mxu0
      %v718 = vpop.f32.mrf.mxu0
      %v719 = vadd.f32 %v668, %v718
      %v720 = vpop.f32.mrf.mxu0
      %721 = vmatprep.mubr.bf16.mxu0 0
      %722 = vmatmul.mubr.bf16.gmra.mxu0 %v578
      %v723 = vpop.f32.mrf.mxu0
      %v724 = vadd.f32 %v668, %v723
      %v725 = vpop.f32.mrf.mxu0
      %v726 = vpop.f32.mrf.mxu0
      %v727 = vadd.f32 %v668, %v726
      %v728 = vpop.f32.mrf.mxu0
      %729 = vmatprep.mubr.bf16.mxu0 0
      %730 = vmatmul.mubr.bf16.gmra.mxu0 %v581
      %v731 = vpop.f32.mrf.mxu0
      %v732 = vadd.f32 %v668, %v731
      %v733 = vpop.f32.mrf.mxu0
      %v734 = vpop.f32.mrf.mxu0
      %v735 = vadd.f32 %v668, %v734
      %v736 = vpop.f32.mrf.mxu0
      %737 = vmatprep.mubr.bf16.mxu0 0
      %738 = vmatmul.mubr.bf16.gmra.mxu0 %v584
      %v739 = vpop.f32.mrf.mxu0
      %v740 = vadd.f32 %v668, %v739
      %v741 = vpop.f32.mrf.mxu0
      %v742 = vpop.f32.mrf.mxu0
      %v743 = vadd.f32 %v668, %v742
      %v744 = vpop.f32.mrf.mxu0
      %745 = vdwg.mxu0
      %v746 = vmax.f32 %v716, 0.0
      %v747 = vmax.f32 %v719, 0.0
      %v748 = vmax.f32 %v724, 0.0
      %v749 = vmax.f32 %v727, 0.0
      %v750 = vmax.f32 %v732, 0.0
      %v751 = vmax.f32 %v735, 0.0
      %v752 = vmax.f32 %v740, 0.0
      %v753 = vmax.f32 %v743, 0.0
      %v754 = vpack.c.bf16 %v515, %v510
      %v755 = vpack.c.bf16 %v525, %v520
      %v756 = vpack.c.bf16 %v535, %v530
      %v757 = vpack.c.bf16 %v545, %v540
      %s758 = scalar_lea.vmem %s2, 32
      %v759 = vld [vmem:[%s758] sm:$0xf]
      %v760 = vld [vmem:[%s758 + $0x4] sm:$0xf]
      %v761 = vld [vmem:[%s758 + $0x8] sm:$0xf]
      %v762 = vld [vmem:[%s758 + $0xc] sm:$0xf]
      %v763 = vld [vmem:[%s3 + $0x2] sm:$0x1]
      %v764 = vlaneseq
      %v765 = vshrl.u32 %v764, 7
      %v766 = vsub.s32 0, %v765
      %v767 = vrot.slane %v763, %v766
      %v772 = vunpack.c.l.b16 %v759
      %v773 = vunpack.c.l.b16 %v760
      %v774 = vunpack.c.l.b16 %v761
      %v775 = vunpack.c.l.b16 %v762
      %v776 = vpack.c.b16 %v773, %v772
      %v777 = vpack.c.b16 %v775, %v774
      %v781 = vsel %vm573, %v754, 0
      %v784 = vsel %vm573, %v755, 0
      %v787 = vsel %vm573, %v756, 0
      %v790 = vsel %vm573, %v757, 0
      %792 = vmatprep.subr.bf16.mxu0 0
      %793 = vmatpush1.bf16.msra.mxu0 0
      %794 = vmatprep.subr.bf16.mxu0 0
      %795 = vmatpush1.bf16.msra.mxu0 0
      %796 = vmatprep.subr.bf16.mxu0 0
      %797 = vmatpush1.bf16.msra.mxu0 0
      %798 = vmatprep.subr.bf16.mxu0 0
      %799 = vmatpush1.bf16.msra.mxu0 0
      %800 = vmatprep.subr.bf16.mxu0 0
      %801 = vmatpush1.bf16.msra.mxu0 0
      %802 = vmatprep.subr.bf16.mxu0 0
      %803 = vmatpush1.bf16.msra.mxu0 0
      %804 = vmatprep.subr.bf16.mxu0 0
      %805 = vmatpush1.bf16.msra.mxu0 %v777
      %806 = vmatprep.subr.bf16.mxu0 0
      %807 = vmatpush1.bf16.msra.mxu0 %v776
      %808 = vmatprep.subr.bf16.mxu0 0
      %809 = vmatpush2.bf16.msra.mxu0 0
      %810 = vmatprep.subr.bf16.mxu0 0
      %811 = vmatpush2.bf16.msra.mxu0 0
      %812 = vmatprep.subr.bf16.mxu0 0
      %813 = vmatpush2.bf16.msra.mxu0 0
      %814 = vmatprep.subr.bf16.mxu0 0
      %815 = vmatpush2.bf16.msra.mxu0 0
      %816 = vmatprep.subr.bf16.mxu0 0
      %817 = vmatpush2.bf16.msra.mxu0 0
      %818 = vmatprep.subr.bf16.mxu0 0
      %819 = vmatpush2.bf16.msra.mxu0 0
      %820 = vmatprep.subr.bf16.mxu0 0
      %821 = vmatpush2.bf16.msra.mxu0 0
      %822 = vmatprep.subr.bf16.mxu0 0
      %823 = vmatpush2.bf16.msra.mxu0 0
      %824 = vmatprep.mubr.bf16.mxu0 0
      %825 = vmatmul.mubr.bf16.gmra.mxu0 %v781
      %v826 = vpop.f32.mrf.mxu0
      %v827 = vadd.f32 %v767, %v826
      %v828 = vpop.f32.mrf.mxu0
      %v829 = vpop.f32.mrf.mxu0
      %v830 = vadd.f32 %v767, %v829
      %v831 = vpop.f32.mrf.mxu0
      %832 = vmatprep.mubr.bf16.mxu0 0
      %833 = vmatmul.mubr.bf16.gmra.mxu0 %v784
      %v834 = vpop.f32.mrf.mxu0
      %v835 = vadd.f32 %v767, %v834
      %v836 = vpop.f32.mrf.mxu0
      %v837 = vpop.f32.mrf.mxu0
      %v838 = vadd.f32 %v767, %v837
      %v839 = vpop.f32.mrf.mxu0
      %840 = vmatprep.mubr.bf16.mxu0 0
      %841 = vmatmul.mubr.bf16.gmra.mxu0 %v787
      %v842 = vpop.f32.mrf.mxu0
      %v843 = vadd.f32 %v767, %v842
      %v844 = vpop.f32.mrf.mxu0
      %v845 = vpop.f32.mrf.mxu0
      %v846 = vadd.f32 %v767, %v845
      %v847 = vpop.f32.mrf.mxu0
      %848 = vmatprep.mubr.bf16.mxu0 0
      %849 = vmatmul.mubr.bf16.gmra.mxu0 %v790
      %v850 = vpop.f32.mrf.mxu0
      %v851 = vadd.f32 %v767, %v850
      %v852 = vpop.f32.mrf.mxu0
      %v853 = vpop.f32.mrf.mxu0
      %v854 = vadd.f32 %v767, %v853
      %v855 = vpop.f32.mrf.mxu0
      %856 = vdwg.mxu0
      %v857 = vmax.f32 %v827, 0.0
      %v858 = vmax.f32 %v830, 0.0
      %v859 = vmax.f32 %v835, 0.0
      %v860 = vmax.f32 %v838, 0.0
      %v861 = vmax.f32 %v843, 0.0
      %v862 = vmax.f32 %v846, 0.0
      %v863 = vmax.f32 %v851, 0.0
      %v864 = vmax.f32 %v854, 0.0
      %s865 = scalar_lea.vmem %s2, 48
      %v866 = vld [vmem:[%s865] sm:$0xf]
      %v867 = vld [vmem:[%s865 + $0x4] sm:$0xf]
      %v868 = vld [vmem:[%s865 + $0x8] sm:$0xf]
      %v869 = vld [vmem:[%s865 + $0xc] sm:$0xf]
      %v870 = vld [vmem:[%s3 + $0x3] sm:$0x1]
      %v871 = vlaneseq
      %v872 = vshrl.u32 %v871, 7
      %v873 = vsub.s32 0, %v872
      %v874 = vrot.slane %v870, %v873
      %v879 = vunpack.c.l.b16 %v866
      %v880 = vunpack.c.l.b16 %v867
      %v881 = vunpack.c.l.b16 %v868
      %v882 = vunpack.c.l.b16 %v869
      %v883 = vpack.c.b16 %v880, %v879
      %v884 = vpack.c.b16 %v882, %v881
      %887 = vmatprep.subr.bf16.mxu0 0
      %888 = vmatpush1.bf16.msra.mxu0 0
      %889 = vmatprep.subr.bf16.mxu0 0
      %890 = vmatpush1.bf16.msra.mxu0 0
      %891 = vmatprep.subr.bf16.mxu0 0
      %892 = vmatpush1.bf16.msra.mxu0 0
      %893 = vmatprep.subr.bf16.mxu0 0
      %894 = vmatpush1.bf16.msra.mxu0 0
      %895 = vmatprep.subr.bf16.mxu0 0
      %896 = vmatpush1.bf16.msra.mxu0 0
      %897 = vmatprep.subr.bf16.mxu0 0
      %898 = vmatpush1.bf16.msra.mxu0 0
      %899 = vmatprep.subr.bf16.mxu0 0
      %900 = vmatpush1.bf16.msra.mxu0 %v884
      %901 = vmatprep.subr.bf16.mxu0 0
      %902 = vmatpush1.bf16.msra.mxu0 %v883
      %903 = vmatprep.subr.bf16.mxu0 0
      %904 = vmatpush2.bf16.msra.mxu0 0
      %905 = vmatprep.subr.bf16.mxu0 0
      %906 = vmatpush2.bf16.msra.mxu0 0
      %907 = vmatprep.subr.bf16.mxu0 0
      %908 = vmatpush2.bf16.msra.mxu0 0
      %909 = vmatprep.subr.bf16.mxu0 0
      %910 = vmatpush2.bf16.msra.mxu0 0
      %911 = vmatprep.subr.bf16.mxu0 0
      %912 = vmatpush2.bf16.msra.mxu0 0
      %913 = vmatprep.subr.bf16.mxu0 0
      %914 = vmatpush2.bf16.msra.mxu0 0
      %915 = vmatprep.subr.bf16.mxu0 0
      %916 = vmatpush2.bf16.msra.mxu0 0
      %917 = vmatprep.subr.bf16.mxu0 0
      %918 = vmatpush2.bf16.msra.mxu0 0
      %919 = vmatprep.mubr.bf16.mxu0 0
      %920 = vmatmul.mubr.bf16.gmra.mxu0 %v781
      %v921 = vpop.f32.mrf.mxu0
      %v922 = vadd.f32 %v874, %v921
      %v923 = vpop.f32.mrf.mxu0
      %v924 = vpop.f32.mrf.mxu0
      %v925 = vadd.f32 %v874, %v924
      %v926 = vpop.f32.mrf.mxu0
      %927 = vmatprep.mubr.bf16.mxu0 0
      %928 = vmatmul.mubr.bf16.gmra.mxu0 %v784
      %v929 = vpop.f32.mrf.mxu0
      %v930 = vadd.f32 %v874, %v929
      %v931 = vpop.f32.mrf.mxu0
      %v932 = vpop.f32.mrf.mxu0
      %v933 = vadd.f32 %v874, %v932
      %v934 = vpop.f32.mrf.mxu0
      %935 = vmatprep.mubr.bf16.mxu0 0
      %936 = vmatmul.mubr.bf16.gmra.mxu0 %v787
      %v937 = vpop.f32.mrf.mxu0
      %v938 = vadd.f32 %v874, %v937
      %v939 = vpop.f32.mrf.mxu0
      %v940 = vpop.f32.mrf.mxu0
      %v941 = vadd.f32 %v874, %v940
      %v942 = vpop.f32.mrf.mxu0
      %943 = vmatprep.mubr.bf16.mxu0 0
      %944 = vmatmul.mubr.bf16.gmra.mxu0 %v790
      %v945 = vpop.f32.mrf.mxu0
      %v946 = vadd.f32 %v874, %v945
      %v947 = vpop.f32.mrf.mxu0
      %v948 = vpop.f32.mrf.mxu0
      %v949 = vadd.f32 %v874, %v948
      %v950 = vpop.f32.mrf.mxu0
      %951 = vdwg.mxu0
      %v952 = vmax.f32 %v922, 0.0
      %v953 = vmax.f32 %v925, 0.0
      %v954 = vmax.f32 %v930, 0.0
      %v955 = vmax.f32 %v933, 0.0
      %v956 = vmax.f32 %v938, 0.0
      %v957 = vmax.f32 %v941, 0.0
      %v958 = vmax.f32 %v946, 0.0
      %v959 = vmax.f32 %v949, 0.0
      %v960 = vpack.c.bf16 %v747, %v746
      %v961 = vpack.c.bf16 %v749, %v748
      %v962 = vpack.c.bf16 %v751, %v750
      %v963 = vpack.c.bf16 %v753, %v752
      %s964 = scalar_lea.vmem %s2, 64
      %v965 = vld [vmem:[%s964] sm:$0xf]
      %v966 = vld [vmem:[%s964 + $0x4] sm:$0xf]
      %v967 = vld [vmem:[%s964 + $0x8] sm:$0xf]
      %v968 = vld [vmem:[%s964 + $0xc] sm:$0xf]
      %v973 = vunpack.c.l.b16 %v965
      %v974 = vunpack.c.l.b16 %v966
      %v975 = vunpack.c.l.b16 %v967
      %v976 = vunpack.c.l.b16 %v968
      %v977 = vpack.c.b16 %v974, %v973
      %v978 = vpack.c.b16 %v976, %v975
      %v982 = vsel %vm573, %v960, 0
      %v985 = vsel %vm573, %v961, 0
      %v988 = vsel %vm573, %v962, 0
      %v991 = vsel %vm573, %v963, 0
      %993 = vmatprep.subr.bf16.mxu0 0
      %994 = vmatpush1.bf16.msra.mxu0 0
      %995 = vmatprep.subr.bf16.mxu0 0
      %996 = vmatpush1.bf16.msra.mxu0 0
      %997 = vmatprep.subr.bf16.mxu0 0
      %998 = vmatpush1.bf16.msra.mxu0 0
      %999 = vmatprep.subr.bf16.mxu0 0
      %1000 = vmatpush1.bf16.msra.mxu0 0
      %1001 = vmatprep.subr.bf16.mxu0 0
      %1002 = vmatpush1.bf16.msra.mxu0 0
      %1003 = vmatprep.subr.bf16.mxu0 0
      %1004 = vmatpush1.bf16.msra.mxu0 0
      %1005 = vmatprep.subr.bf16.mxu0 0
      %1006 = vmatpush1.bf16.msra.mxu0 %v978
      %1007 = vmatprep.subr.bf16.mxu0 0
      %1008 = vmatpush1.bf16.msra.mxu0 %v977
      %1009 = vmatprep.subr.bf16.mxu0 0
      %1010 = vmatpush2.bf16.msra.mxu0 0
      %1011 = vmatprep.subr.bf16.mxu0 0
      %1012 = vmatpush2.bf16.msra.mxu0 0
      %1013 = vmatprep.subr.bf16.mxu0 0
      %1014 = vmatpush2.bf16.msra.mxu0 0
      %1015 = vmatprep.subr.bf16.mxu0 0
      %1016 = vmatpush2.bf16.msra.mxu0 0
      %1017 = vmatprep.subr.bf16.mxu0 0
      %1018 = vmatpush2.bf16.msra.mxu0 0
      %1019 = vmatprep.subr.bf16.mxu0 0
      %1020 = vmatpush2.bf16.msra.mxu0 0
      %1021 = vmatprep.subr.bf16.mxu0 0
      %1022 = vmatpush2.bf16.msra.mxu0 0
      %1023 = vmatprep.subr.bf16.mxu0 0
      %1024 = vmatpush2.bf16.msra.mxu0 0
      %1025 = vmatprep.mubr.bf16.mxu0 0
      %1026 = vmatmul.mubr.bf16.gmra.mxu0 %v982
      %v1027 = vpop.f32.mrf.mxu0
      %v1028 = vadd.f32 0.0, %v1027
      %v1029 = vpop.f32.mrf.mxu0
      %v1030 = vpop.f32.mrf.mxu0
      %v1031 = vadd.f32 0.0, %v1030
      %v1032 = vpop.f32.mrf.mxu0
      %1033 = vmatprep.mubr.bf16.mxu0 0
      %1034 = vmatmul.mubr.bf16.gmra.mxu0 %v985
      %v1035 = vpop.f32.mrf.mxu0
      %v1036 = vadd.f32 0.0, %v1035
      %v1037 = vpop.f32.mrf.mxu0
      %v1038 = vpop.f32.mrf.mxu0
      %v1039 = vadd.f32 0.0, %v1038
      %v1040 = vpop.f32.mrf.mxu0
      %1041 = vmatprep.mubr.bf16.mxu0 0
      %1042 = vmatmul.mubr.bf16.gmra.mxu0 %v988
      %v1043 = vpop.f32.mrf.mxu0
      %v1044 = vadd.f32 0.0, %v1043
      %v1045 = vpop.f32.mrf.mxu0
      %v1046 = vpop.f32.mrf.mxu0
      %v1047 = vadd.f32 0.0, %v1046
      %v1048 = vpop.f32.mrf.mxu0
      %1049 = vmatprep.mubr.bf16.mxu0 0
      %1050 = vmatmul.mubr.bf16.gmra.mxu0 %v991
      %v1051 = vpop.f32.mrf.mxu0
      %v1052 = vadd.f32 0.0, %v1051
      %v1053 = vpop.f32.mrf.mxu0
      %v1054 = vpop.f32.mrf.mxu0
      %v1055 = vadd.f32 0.0, %v1054
      %v1056 = vpop.f32.mrf.mxu0
      %1057 = vdwg.mxu0
      %s1058 = scalar_lea.vmem %s2, 80
      %v1059 = vld [vmem:[%s1058] sm:$0xf]
      %v1060 = vld [vmem:[%s1058 + $0x4] sm:$0xf]
      %v1061 = vld [vmem:[%s1058 + $0x8] sm:$0xf]
      %v1062 = vld [vmem:[%s1058 + $0xc] sm:$0xf]
      %v1067 = vunpack.c.l.b16 %v1059
      %v1068 = vunpack.c.l.b16 %v1060
      %v1069 = vunpack.c.l.b16 %v1061
      %v1070 = vunpack.c.l.b16 %v1062
      %v1071 = vpack.c.b16 %v1068, %v1067
      %v1072 = vpack.c.b16 %v1070, %v1069
      %1075 = vmatprep.subr.bf16.mxu0 0
      %1076 = vmatpush1.bf16.msra.mxu0 0
      %1077 = vmatprep.subr.bf16.mxu0 0
      %1078 = vmatpush1.bf16.msra.mxu0 0
      %1079 = vmatprep.subr.bf16.mxu0 0
      %1080 = vmatpush1.bf16.msra.mxu0 0
      %1081 = vmatprep.subr.bf16.mxu0 0
      %1082 = vmatpush1.bf16.msra.mxu0 0
      %1083 = vmatprep.subr.bf16.mxu0 0
      %1084 = vmatpush1.bf16.msra.mxu0 0
      %1085 = vmatprep.subr.bf16.mxu0 0
      %1086 = vmatpush1.bf16.msra.mxu0 0
      %1087 = vmatprep.subr.bf16.mxu0 0
      %1088 = vmatpush1.bf16.msra.mxu0 %v1072
      %1089 = vmatprep.subr.bf16.mxu0 0
      %1090 = vmatpush1.bf16.msra.mxu0 %v1071
      %1091 = vmatprep.subr.bf16.mxu0 0
      %1092 = vmatpush2.bf16.msra.mxu0 0
      %1093 = vmatprep.subr.bf16.mxu0 0
      %1094 = vmatpush2.bf16.msra.mxu0 0
      %1095 = vmatprep.subr.bf16.mxu0 0
      %1096 = vmatpush2.bf16.msra.mxu0 0
      %1097 = vmatprep.subr.bf16.mxu0 0
      %1098 = vmatpush2.bf16.msra.mxu0 0
      %1099 = vmatprep.subr.bf16.mxu0 0
      %1100 = vmatpush2.bf16.msra.mxu0 0
      %1101 = vmatprep.subr.bf16.mxu0 0
      %1102 = vmatpush2.bf16.msra.mxu0 0
      %1103 = vmatprep.subr.bf16.mxu0 0
      %1104 = vmatpush2.bf16.msra.mxu0 0
      %1105 = vmatprep.subr.bf16.mxu0 0
      %1106 = vmatpush2.bf16.msra.mxu0 0
      %1107 = vmatprep.mubr.bf16.mxu0 0
      %1108 = vmatmul.mubr.bf16.gmra.mxu0 %v982
      %v1109 = vpop.f32.mrf.mxu0
      %v1110 = vadd.f32 0.0, %v1109
      %v1111 = vpop.f32.mrf.mxu0
      %v1112 = vpop.f32.mrf.mxu0
      %v1113 = vadd.f32 0.0, %v1112
      %v1114 = vpop.f32.mrf.mxu0
      %1115 = vmatprep.mubr.bf16.mxu0 0
      %1116 = vmatmul.mubr.bf16.gmra.mxu0 %v985
      %v1117 = vpop.f32.mrf.mxu0
      %v1118 = vadd.f32 0.0, %v1117
      %v1119 = vpop.f32.mrf.mxu0
      %v1120 = vpop.f32.mrf.mxu0
      %v1121 = vadd.f32 0.0, %v1120
      %v1122 = vpop.f32.mrf.mxu0
      %1123 = vmatprep.mubr.bf16.mxu0 0
      %1124 = vmatmul.mubr.bf16.gmra.mxu0 %v988
      %v1125 = vpop.f32.mrf.mxu0
      %v1126 = vadd.f32 0.0, %v1125
      %v1127 = vpop.f32.mrf.mxu0
      %v1128 = vpop.f32.mrf.mxu0
      %v1129 = vadd.f32 0.0, %v1128
      %v1130 = vpop.f32.mrf.mxu0
      %1131 = vmatprep.mubr.bf16.mxu0 0
      %1132 = vmatmul.mubr.bf16.gmra.mxu0 %v991
      %v1133 = vpop.f32.mrf.mxu0
      %v1134 = vadd.f32 0.0, %v1133
      %v1135 = vpop.f32.mrf.mxu0
      %v1136 = vpop.f32.mrf.mxu0
      %v1137 = vadd.f32 0.0, %v1136
      %v1138 = vpop.f32.mrf.mxu0
      %1139 = vdwg.mxu0
      %v1140 = vpack.c.bf16 %v953, %v952
      %v1141 = vpack.c.bf16 %v955, %v954
      %v1142 = vpack.c.bf16 %v957, %v956
      %v1143 = vpack.c.bf16 %v959, %v958
      %s1144 = scalar_lea.vmem %s2, 96
      %v1145 = vld [vmem:[%s1144] sm:$0xf]
      %v1146 = vld [vmem:[%s1144 + $0x4] sm:$0xf]
      %v1147 = vld [vmem:[%s1144 + $0x8] sm:$0xf]
      %v1148 = vld [vmem:[%s1144 + $0xc] sm:$0xf]
      %v1153 = vunpack.c.l.b16 %v1145
      %v1154 = vunpack.c.l.b16 %v1146
      %v1155 = vunpack.c.l.b16 %v1147
      %v1156 = vunpack.c.l.b16 %v1148
      %v1157 = vpack.c.b16 %v1154, %v1153
      %v1158 = vpack.c.b16 %v1156, %v1155
      %v1162 = vsel %vm573, %v1140, 0
      %v1165 = vsel %vm573, %v1141, 0
      %v1168 = vsel %vm573, %v1142, 0
      %v1171 = vsel %vm573, %v1143, 0
      %1173 = vmatprep.subr.bf16.mxu0 0
      %1174 = vmatpush1.bf16.msra.mxu0 0
      %1175 = vmatprep.subr.bf16.mxu0 0
      %1176 = vmatpush1.bf16.msra.mxu0 0
      %1177 = vmatprep.subr.bf16.mxu0 0
      %1178 = vmatpush1.bf16.msra.mxu0 0
      %1179 = vmatprep.subr.bf16.mxu0 0
      %1180 = vmatpush1.bf16.msra.mxu0 0
      %1181 = vmatprep.subr.bf16.mxu0 0
      %1182 = vmatpush1.bf16.msra.mxu0 0
      %1183 = vmatprep.subr.bf16.mxu0 0
      %1184 = vmatpush1.bf16.msra.mxu0 0
      %1185 = vmatprep.subr.bf16.mxu0 0
      %1186 = vmatpush1.bf16.msra.mxu0 %v1158
      %1187 = vmatprep.subr.bf16.mxu0 0
      %1188 = vmatpush1.bf16.msra.mxu0 %v1157
      %1189 = vmatprep.subr.bf16.mxu0 0
      %1190 = vmatpush2.bf16.msra.mxu0 0
      %1191 = vmatprep.subr.bf16.mxu0 0
      %1192 = vmatpush2.bf16.msra.mxu0 0
      %1193 = vmatprep.subr.bf16.mxu0 0
      %1194 = vmatpush2.bf16.msra.mxu0 0
      %1195 = vmatprep.subr.bf16.mxu0 0
      %1196 = vmatpush2.bf16.msra.mxu0 0
      %1197 = vmatprep.subr.bf16.mxu0 0
      %1198 = vmatpush2.bf16.msra.mxu0 0
      %1199 = vmatprep.subr.bf16.mxu0 0
      %1200 = vmatpush2.bf16.msra.mxu0 0
      %1201 = vmatprep.subr.bf16.mxu0 0
      %1202 = vmatpush2.bf16.msra.mxu0 0
      %1203 = vmatprep.subr.bf16.mxu0 0
      %1204 = vmatpush2.bf16.msra.mxu0 0
      %1205 = vmatprep.mubr.bf16.mxu0 0
      %1206 = vmatmul.mubr.bf16.gmra.mxu0 %v1162
      %v1207 = vpop.f32.mrf.mxu0
      %v1208 = vadd.f32 0.0, %v1207
      %v1209 = vpop.f32.mrf.mxu0
      %v1210 = vpop.f32.mrf.mxu0
      %v1211 = vadd.f32 0.0, %v1210
      %v1212 = vpop.f32.mrf.mxu0
      %1213 = vmatprep.mubr.bf16.mxu0 0
      %1214 = vmatmul.mubr.bf16.gmra.mxu0 %v1165
      %v1215 = vpop.f32.mrf.mxu0
      %v1216 = vadd.f32 0.0, %v1215
      %v1217 = vpop.f32.mrf.mxu0
      %v1218 = vpop.f32.mrf.mxu0
      %v1219 = vadd.f32 0.0, %v1218
      %v1220 = vpop.f32.mrf.mxu0
      %1221 = vmatprep.mubr.bf16.mxu0 0
      %1222 = vmatmul.mubr.bf16.gmra.mxu0 %v1168
      %v1223 = vpop.f32.mrf.mxu0
      %v1224 = vadd.f32 0.0, %v1223
      %v1225 = vpop.f32.mrf.mxu0
      %v1226 = vpop.f32.mrf.mxu0
      %v1227 = vadd.f32 0.0, %v1226
      %v1228 = vpop.f32.mrf.mxu0
      %1229 = vmatprep.mubr.bf16.mxu0 0
      %1230 = vmatmul.mubr.bf16.gmra.mxu0 %v1171
      %v1231 = vpop.f32.mrf.mxu0
      %v1232 = vadd.f32 0.0, %v1231
      %v1233 = vpop.f32.mrf.mxu0
      %v1234 = vpop.f32.mrf.mxu0
      %v1235 = vadd.f32 0.0, %v1234
      %v1236 = vpop.f32.mrf.mxu0
      %1237 = vdwg.mxu0
      %s1238 = scalar_lea.vmem %s2, 112
      %v1239 = vld [vmem:[%s1238] sm:$0xf]
      %v1240 = vld [vmem:[%s1238 + $0x4] sm:$0xf]
      %v1241 = vld [vmem:[%s1238 + $0x8] sm:$0xf]
      %v1242 = vld [vmem:[%s1238 + $0xc] sm:$0xf]
      %v1247 = vunpack.c.l.b16 %v1239
      %v1248 = vunpack.c.l.b16 %v1240
      %v1249 = vunpack.c.l.b16 %v1241
      %v1250 = vunpack.c.l.b16 %v1242
      %v1251 = vpack.c.b16 %v1248, %v1247
      %v1252 = vpack.c.b16 %v1250, %v1249
      %1255 = vmatprep.subr.bf16.mxu0 0
      %1256 = vmatpush1.bf16.msra.mxu0 0
      %1257 = vmatprep.subr.bf16.mxu0 0
      %1258 = vmatpush1.bf16.msra.mxu0 0
      %1259 = vmatprep.subr.bf16.mxu0 0
      %1260 = vmatpush1.bf16.msra.mxu0 0
      %1261 = vmatprep.subr.bf16.mxu0 0
      %1262 = vmatpush1.bf16.msra.mxu0 0
      %1263 = vmatprep.subr.bf16.mxu0 0
      %1264 = vmatpush1.bf16.msra.mxu0 0
      %1265 = vmatprep.subr.bf16.mxu0 0
      %1266 = vmatpush1.bf16.msra.mxu0 0
      %1267 = vmatprep.subr.bf16.mxu0 0
      %1268 = vmatpush1.bf16.msra.mxu0 %v1252
      %1269 = vmatprep.subr.bf16.mxu0 0
      %1270 = vmatpush1.bf16.msra.mxu0 %v1251
      %1271 = vmatprep.subr.bf16.mxu0 0
      %1272 = vmatpush2.bf16.msra.mxu0 0
      %1273 = vmatprep.subr.bf16.mxu0 0
      %1274 = vmatpush2.bf16.msra.mxu0 0
      %1275 = vmatprep.subr.bf16.mxu0 0
      %1276 = vmatpush2.bf16.msra.mxu0 0
      %1277 = vmatprep.subr.bf16.mxu0 0
      %1278 = vmatpush2.bf16.msra.mxu0 0
      %1279 = vmatprep.subr.bf16.mxu0 0
      %1280 = vmatpush2.bf16.msra.mxu0 0
      %1281 = vmatprep.subr.bf16.mxu0 0
      %1282 = vmatpush2.bf16.msra.mxu0 0
      %1283 = vmatprep.subr.bf16.mxu0 0
      %1284 = vmatpush2.bf16.msra.mxu0 0
      %1285 = vmatprep.subr.bf16.mxu0 0
      %1286 = vmatpush2.bf16.msra.mxu0 0
      %1287 = vmatprep.mubr.bf16.mxu0 0
      %1288 = vmatmul.mubr.bf16.gmra.mxu0 %v1162
      %v1289 = vpop.f32.mrf.mxu0
      %v1290 = vadd.f32 0.0, %v1289
      %v1291 = vpop.f32.mrf.mxu0
      %v1292 = vpop.f32.mrf.mxu0
      %v1293 = vadd.f32 0.0, %v1292
      %v1294 = vpop.f32.mrf.mxu0
      %1295 = vmatprep.mubr.bf16.mxu0 0
      %1296 = vmatmul.mubr.bf16.gmra.mxu0 %v1165
      %v1297 = vpop.f32.mrf.mxu0
      %v1298 = vadd.f32 0.0, %v1297
      %v1299 = vpop.f32.mrf.mxu0
      %v1300 = vpop.f32.mrf.mxu0
      %v1301 = vadd.f32 0.0, %v1300
      %v1302 = vpop.f32.mrf.mxu0
      %1303 = vmatprep.mubr.bf16.mxu0 0
      %1304 = vmatmul.mubr.bf16.gmra.mxu0 %v1168
      %v1305 = vpop.f32.mrf.mxu0
      %v1306 = vadd.f32 0.0, %v1305
      %v1307 = vpop.f32.mrf.mxu0
      %v1308 = vpop.f32.mrf.mxu0
      %v1309 = vadd.f32 0.0, %v1308
      %v1310 = vpop.f32.mrf.mxu0
      %1311 = vmatprep.mubr.bf16.mxu0 0
      %1312 = vmatmul.mubr.bf16.gmra.mxu0 %v1171
      %v1313 = vpop.f32.mrf.mxu0
      %v1314 = vadd.f32 0.0, %v1313
      %v1315 = vpop.f32.mrf.mxu0
      %v1316 = vpop.f32.mrf.mxu0
      %v1317 = vadd.f32 0.0, %v1316
      %v1318 = vpop.f32.mrf.mxu0
      %1319 = vdwg.mxu0
      %v1320 = vmul.f32 %v746, 0.35355338
      %v1321 = vmul.f32 %v747, 0.35355338
      %v1322 = vmul.f32 %v748, 0.35355338
      %v1323 = vmul.f32 %v749, 0.35355338
      %v1324 = vmul.f32 %v750, 0.35355338
      %v1325 = vmul.f32 %v751, 0.35355338
      %v1326 = vmul.f32 %v752, 0.35355338
      %v1327 = vmul.f32 %v753, 0.35355338
      %v1328 = vpack.c.bf16 %v1321, %v1320
      %v1329 = vpack.c.bf16 %v1323, %v1322
      %v1330 = vpack.c.bf16 %v1325, %v1324
      %v1331 = vpack.c.bf16 %v1327, %v1326
      %vm1332 = vcmp.ge.s32.totalorder %v256, 0
      %vm1333 = vcmp.lt.s32.totalorder %v256, 8
      %vm1334 = vmand %vm1332, %vm1333
      %v1335 = vsel %vm1334, 1, 0
      %v1336 = vcvt.s32.f32 %v1335
      %v1337 = vmul.f32 %v1208, %v1336
      %v1338 = vmul.f32 %v1211, %v1336
      %v1339 = vmul.f32 %v1216, %v1336
      %v1340 = vmul.f32 %v1219, %v1336
      %v1341 = vmul.f32 %v1224, %v1336
      %v1342 = vmul.f32 %v1227, %v1336
      %v1343 = vmul.f32 %v1232, %v1336
      %v1344 = vmul.f32 %v1235, %v1336
      %v1345 = vpack.c.bf16 %v1338, %v1337
      %v1346 = vpack.c.bf16 %v1340, %v1339
      %v1347 = vpack.c.bf16 %v1342, %v1341
      %v1348 = vpack.c.bf16 %v1344, %v1343
      %v1350 = vsel %vm573, %v1328, 0
      %v1353 = vsel %vm573, %v1329, 0
      %v1356 = vsel %vm573, %v1330, 0
      %v1359 = vsel %vm573, %v1331, 0
      %v1362 = vsel %vm573, %v1345, 0
      %v1365 = vsel %vm573, %v1346, 0
      %v1368 = vsel %vm573, %v1347, 0
      %v1371 = vsel %vm573, %v1348, 0
      %1373 = vmatprep.subr.bf16.mxu0 0
      %1374 = vmatpush1.bf16.xpose.msra.mxu0 0
      %1375 = vmatprep.subr.bf16.mxu0 0
      %1376 = vmatpush1.bf16.xpose.msra.mxu0 0
      %1377 = vmatprep.subr.bf16.mxu0 0
      %1378 = vmatpush1.bf16.xpose.msra.mxu0 0
      %1379 = vmatprep.subr.bf16.mxu0 0
      %1380 = vmatpush1.bf16.xpose.msra.mxu0 0
      %1381 = vmatprep.subr.bf16.mxu0 0
      %1382 = vmatpush1.bf16.xpose.msra.mxu0 %v1371
      %1383 = vmatprep.subr.bf16.mxu0 0
      %1384 = vmatpush1.bf16.xpose.msra.mxu0 %v1368
      %1385 = vmatprep.subr.bf16.mxu0 0
      %1386 = vmatpush1.bf16.xpose.msra.mxu0 %v1365
      %1387 = vmatprep.subr.bf16.mxu0 0
      %1388 = vmatpush1.bf16.xpose.msra.mxu0 %v1362
      %1389 = vmatprep.subr.bf16.mxu0 0
      %1390 = vmatpush2.bf16.xpose.msra.mxu0 0
      %1391 = vmatprep.subr.bf16.mxu0 0
      %1392 = vmatpush2.bf16.xpose.msra.mxu0 0
      %1393 = vmatprep.subr.bf16.mxu0 0
      %1394 = vmatpush2.bf16.xpose.msra.mxu0 0
      %1395 = vmatprep.subr.bf16.mxu0 0
      %1396 = vmatpush2.bf16.xpose.msra.mxu0 0
      %1397 = vmatprep.subr.bf16.mxu0 0
      %1398 = vmatpush2.bf16.xpose.msra.mxu0 0
      %1399 = vmatprep.subr.bf16.mxu0 0
      %1400 = vmatpush2.bf16.xpose.msra.mxu0 0
      %1401 = vmatprep.subr.bf16.mxu0 0
      %1402 = vmatpush2.bf16.xpose.msra.mxu0 0
      %1403 = vmatprep.subr.bf16.mxu0 0
      %1404 = vmatpush2.bf16.xpose.msra.mxu0 0
      %1405 = vmatprep.mubr.bf16.mxu0 0
      %1406 = vmatmul.mubr.bf16.gmra.mxu0 %v1350
      %v1407 = vpop.f32.mrf.mxu0
      %v1408 = vadd.f32 0.0, %v1407
      %v1409 = vpop.f32.mrf.mxu0
      %v1410 = vpop.f32.mrf.mxu0
      %v1411 = vadd.f32 0.0, %v1410
      %v1412 = vpop.f32.mrf.mxu0
      %1413 = vmatprep.mubr.bf16.mxu0 0
      %1414 = vmatmul.mubr.bf16.gmra.mxu0 %v1353
      %v1415 = vpop.f32.mrf.mxu0
      %v1416 = vadd.f32 0.0, %v1415
      %v1417 = vpop.f32.mrf.mxu0
      %v1418 = vpop.f32.mrf.mxu0
      %v1419 = vadd.f32 0.0, %v1418
      %v1420 = vpop.f32.mrf.mxu0
      %1421 = vmatprep.mubr.bf16.mxu0 0
      %1422 = vmatmul.mubr.bf16.gmra.mxu0 %v1356
      %v1423 = vpop.f32.mrf.mxu0
      %v1424 = vadd.f32 0.0, %v1423
      %v1425 = vpop.f32.mrf.mxu0
      %v1426 = vpop.f32.mrf.mxu0
      %v1427 = vadd.f32 0.0, %v1426
      %v1428 = vpop.f32.mrf.mxu0
      %1429 = vmatprep.mubr.bf16.mxu0 0
      %1430 = vmatmul.mubr.bf16.gmra.mxu0 %v1359
      %v1431 = vpop.f32.mrf.mxu0
      %v1432 = vadd.f32 0.0, %v1431
      %v1433 = vpop.f32.mrf.mxu0
      %v1434 = vpop.f32.mrf.mxu0
      %v1435 = vadd.f32 0.0, %v1434
      %v1436 = vpop.f32.mrf.mxu0
      %1437 = vdwg.mxu0
      %v1438 = vsel %vm285, %v1408, -inf
      %1439 = vmax.xlane.f32.xlu0 %v1438
      %v1440 = vpop.xlane.xlu0 %1439
      %v1441 = vsel %vm285, %v1411, -inf
      %1442 = vmax.xlane.f32.xlu0 %v1441
      %v1443 = vpop.xlane.xlu0 %1442
      %v1444 = vsel %vm285, %v1416, -inf
      %1445 = vmax.xlane.f32.xlu0 %v1444
      %v1446 = vpop.xlane.xlu0 %1445
      %v1447 = vsel %vm285, %v1419, -inf
      %1448 = vmax.xlane.f32.xlu0 %v1447
      %v1449 = vpop.xlane.xlu0 %1448
      %v1450 = vsel %vm285, %v1424, -inf
      %1451 = vmax.xlane.f32.xlu0 %v1450
      %v1452 = vpop.xlane.xlu0 %1451
      %v1453 = vsel %vm285, %v1427, -inf
      %1454 = vmax.xlane.f32.xlu0 %v1453
      %v1455 = vpop.xlane.xlu0 %1454
      %v1456 = vsel %vm285, %v1432, -inf
      %1457 = vmax.xlane.f32.xlu0 %v1456
      %v1458 = vpop.xlane.xlu0 %1457
      %v1459 = vsel %vm285, %v1435, -inf
      %1460 = vmax.xlane.f32.xlu0 %v1459
      %v1461 = vpop.xlane.xlu0 %1460
      %v1462 = vsub.f32 %v1408, %v1440
      %v1463 = vsub.f32 %v1411, %v1443
      %v1464 = vsub.f32 %v1416, %v1446
      %v1465 = vsub.f32 %v1419, %v1449
      %v1466 = vsub.f32 %v1424, %v1452
      %v1467 = vsub.f32 %v1427, %v1455
      %v1468 = vsub.f32 %v1432, %v1458
      %v1469 = vsub.f32 %v1435, %v1461
      %v1470 = vmul.f32 %v1462, 1.442695
      %v1471 = vpow.pop %v1470
      %v1472 = vmul.f32 %v1463, 1.442695
      %v1473 = vpow.pop %v1472
      %v1474 = vmul.f32 %v1464, 1.442695
      %v1475 = vpow.pop %v1474
      %v1476 = vmul.f32 %v1465, 1.442695
      %v1477 = vpow.pop %v1476
      %v1478 = vmul.f32 %v1466, 1.442695
      %v1479 = vpow.pop %v1478
      %v1480 = vmul.f32 %v1467, 1.442695
      %v1481 = vpow.pop %v1480
      %v1482 = vmul.f32 %v1468, 1.442695
      %v1483 = vpow.pop %v1482
      %v1484 = vmul.f32 %v1469, 1.442695
      %v1485 = vpow.pop %v1484
      %v1486 = vsel %vm285, %v1471, 0.0
      %1487 = vadd.xlane.f32.xlu0 %v1486
      %v1488 = vpop.xlane.xlu0 %1487
      %v1489 = vsel %vm285, %v1473, 0.0
      %1490 = vadd.xlane.f32.xlu0 %v1489
      %v1491 = vpop.xlane.xlu0 %1490
      %v1492 = vsel %vm285, %v1475, 0.0
      %1493 = vadd.xlane.f32.xlu0 %v1492
      %v1494 = vpop.xlane.xlu0 %1493
      %v1495 = vsel %vm285, %v1477, 0.0
      %1496 = vadd.xlane.f32.xlu0 %v1495
      %v1497 = vpop.xlane.xlu0 %1496
      %v1498 = vsel %vm285, %v1479, 0.0
      %1499 = vadd.xlane.f32.xlu0 %v1498
      %v1500 = vpop.xlane.xlu0 %1499
      %v1501 = vsel %vm285, %v1481, 0.0
      %1502 = vadd.xlane.f32.xlu0 %v1501
      %v1503 = vpop.xlane.xlu0 %1502
      %v1504 = vsel %vm285, %v1483, 0.0
      %1505 = vadd.xlane.f32.xlu0 %v1504
      %v1506 = vpop.xlane.xlu0 %1505
      %v1507 = vsel %vm285, %v1485, 0.0
      %1508 = vadd.xlane.f32.xlu0 %v1507
      %v1509 = vpop.xlane.xlu0 %1508
      %v1510 = vrcp.pop %v1488
      %v1511 = vrcp.pop %v1491
      %v1512 = vrcp.pop %v1494
      %v1513 = vrcp.pop %v1497
      %v1514 = vrcp.pop %v1500
      %v1515 = vrcp.pop %v1503
      %v1516 = vrcp.pop %v1506
      %v1517 = vrcp.pop %v1509
      %v1518 = vmul.f32 %v1471, %v1510
      %v1519 = vmul.f32 %v1473, %v1511
      %v1520 = vmul.f32 %v1475, %v1512
      %v1521 = vmul.f32 %v1477, %v1513
      %v1522 = vmul.f32 %v1479, %v1514
      %v1523 = vmul.f32 %v1481, %v1515
      %v1524 = vmul.f32 %v1483, %v1516
      %v1525 = vmul.f32 %v1485, %v1517
      %v1526 = vpack.c.bf16 %v1519, %v1518
      %v1527 = vpack.c.bf16 %v1521, %v1520
      %v1528 = vpack.c.bf16 %v1523, %v1522
      %v1529 = vpack.c.bf16 %v1525, %v1524
      %v1530 = vmul.f32 %v1290, %v1336
      %v1531 = vmul.f32 %v1293, %v1336
      %v1532 = vmul.f32 %v1298, %v1336
      %v1533 = vmul.f32 %v1301, %v1336
      %v1534 = vmul.f32 %v1306, %v1336
      %v1535 = vmul.f32 %v1309, %v1336
      %v1536 = vmul.f32 %v1314, %v1336
      %v1537 = vmul.f32 %v1317, %v1336
      %v1538 = vpack.c.bf16 %v1531, %v1530
      %v1539 = vpack.c.bf16 %v1533, %v1532
      %v1540 = vpack.c.bf16 %v1535, %v1534
      %v1541 = vpack.c.bf16 %v1537, %v1536
      %vm1542 = vcmp.ge.s32.totalorder %v256, 8
      %vm1543 = vcmp.lt.s32.totalorder %v256, 16
      %vm1544 = vmand %vm1542, %vm1543
      %v1545 = vsel %vm1544, 1, 0
      %v1546 = vcvt.s32.f32 %v1545
      %v1547 = vmul.f32 %v1208, %v1546
      %v1548 = vmul.f32 %v1211, %v1546
      %v1549 = vmul.f32 %v1216, %v1546
      %v1550 = vmul.f32 %v1219, %v1546
      %v1551 = vmul.f32 %v1224, %v1546
      %v1552 = vmul.f32 %v1227, %v1546
      %v1553 = vmul.f32 %v1232, %v1546
      %v1554 = vmul.f32 %v1235, %v1546
      %v1555 = vpack.c.bf16 %v1548, %v1547
      %v1556 = vpack.c.bf16 %v1550, %v1549
      %v1557 = vpack.c.bf16 %v1552, %v1551
      %v1558 = vpack.c.bf16 %v1554, %v1553
      %v1560 = vsel %vm573, %v1555, 0
      %v1563 = vsel %vm573, %v1556, 0
      %v1566 = vsel %vm573, %v1557, 0
      %v1569 = vsel %vm573, %v1558, 0
      %1571 = vmatprep.subr.bf16.mxu0 0
      %1572 = vmatpush1.bf16.xpose.msra.mxu0 0
      %1573 = vmatprep.subr.bf16.mxu0 0
      %1574 = vmatpush1.bf16.xpose.msra.mxu0 0
      %1575 = vmatprep.subr.bf16.mxu0 0
      %1576 = vmatpush1.bf16.xpose.msra.mxu0 0
      %1577 = vmatprep.subr.bf16.mxu0 0
      %1578 = vmatpush1.bf16.xpose.msra.mxu0 0
      %1579 = vmatprep.subr.bf16.mxu0 0
      %1580 = vmatpush1.bf16.xpose.msra.mxu0 %v1569
      %1581 = vmatprep.subr.bf16.mxu0 0
      %1582 = vmatpush1.bf16.xpose.msra.mxu0 %v1566
      %1583 = vmatprep.subr.bf16.mxu0 0
      %1584 = vmatpush1.bf16.xpose.msra.mxu0 %v1563
      %1585 = vmatprep.subr.bf16.mxu0 0
      %1586 = vmatpush1.bf16.xpose.msra.mxu0 %v1560
      %1587 = vmatprep.subr.bf16.mxu0 0
      %1588 = vmatpush2.bf16.xpose.msra.mxu0 0
      %1589 = vmatprep.subr.bf16.mxu0 0
      %1590 = vmatpush2.bf16.xpose.msra.mxu0 0
      %1591 = vmatprep.subr.bf16.mxu0 0
      %1592 = vmatpush2.bf16.xpose.msra.mxu0 0
      %1593 = vmatprep.subr.bf16.mxu0 0
      %1594 = vmatpush2.bf16.xpose.msra.mxu0 0
      %1595 = vmatprep.subr.bf16.mxu0 0
      %1596 = vmatpush2.bf16.xpose.msra.mxu0 0
      %1597 = vmatprep.subr.bf16.mxu0 0
      %1598 = vmatpush2.bf16.xpose.msra.mxu0 0
      %1599 = vmatprep.subr.bf16.mxu0 0
      %1600 = vmatpush2.bf16.xpose.msra.mxu0 0
      %1601 = vmatprep.subr.bf16.mxu0 0
      %1602 = vmatpush2.bf16.xpose.msra.mxu0 0
      %1603 = vmatprep.mubr.bf16.mxu0 0
      %1604 = vmatmul.mubr.bf16.gmra.mxu0 %v1350
      %v1605 = vpop.f32.mrf.mxu0
      %v1606 = vadd.f32 0.0, %v1605
      %v1607 = vpop.f32.mrf.mxu0
      %v1608 = vpop.f32.mrf.mxu0
      %v1609 = vadd.f32 0.0, %v1608
      %v1610 = vpop.f32.mrf.mxu0
      %1611 = vmatprep.mubr.bf16.mxu0 0
      %1612 = vmatmul.mubr.bf16.gmra.mxu0 %v1353
      %v1613 = vpop.f32.mrf.mxu0
      %v1614 = vadd.f32 0.0, %v1613
      %v1615 = vpop.f32.mrf.mxu0
      %v1616 = vpop.f32.mrf.mxu0
      %v1617 = vadd.f32 0.0, %v1616
      %v1618 = vpop.f32.mrf.mxu0
      %1619 = vmatprep.mubr.bf16.mxu0 0
      %1620 = vmatmul.mubr.bf16.gmra.mxu0 %v1356
      %v1621 = vpop.f32.mrf.mxu0
      %v1622 = vadd.f32 0.0, %v1621
      %v1623 = vpop.f32.mrf.mxu0
      %v1624 = vpop.f32.mrf.mxu0
      %v1625 = vadd.f32 0.0, %v1624
      %v1626 = vpop.f32.mrf.mxu0
      %1627 = vmatprep.mubr.bf16.mxu0 0
      %1628 = vmatmul.mubr.bf16.gmra.mxu0 %v1359
      %v1629 = vpop.f32.mrf.mxu0
      %v1630 = vadd.f32 0.0, %v1629
      %v1631 = vpop.f32.mrf.mxu0
      %v1632 = vpop.f32.mrf.mxu0
      %v1633 = vadd.f32 0.0, %v1632
      %v1634 = vpop.f32.mrf.mxu0
      %1635 = vdwg.mxu0
      %v1636 = vsel %vm285, %v1606, -inf
      %1637 = vmax.xlane.f32.xlu0 %v1636
      %v1638 = vpop.xlane.xlu0 %1637
      %v1639 = vsel %vm285, %v1609, -inf
      %1640 = vmax.xlane.f32.xlu0 %v1639
      %v1641 = vpop.xlane.xlu0 %1640
      %v1642 = vsel %vm285, %v1614, -inf
      %1643 = vmax.xlane.f32.xlu0 %v1642
      %v1644 = vpop.xlane.xlu0 %1643
      %v1645 = vsel %vm285, %v1617, -inf
      %1646 = vmax.xlane.f32.xlu0 %v1645
      %v1647 = vpop.xlane.xlu0 %1646
      %v1648 = vsel %vm285, %v1622, -inf
      %1649 = vmax.xlane.f32.xlu0 %v1648
      %v1650 = vpop.xlane.xlu0 %1649
      %v1651 = vsel %vm285, %v1625, -inf
      %1652 = vmax.xlane.f32.xlu0 %v1651
      %v1653 = vpop.xlane.xlu0 %1652
      %v1654 = vsel %vm285, %v1630, -inf
      %1655 = vmax.xlane.f32.xlu0 %v1654
      %v1656 = vpop.xlane.xlu0 %1655
      %v1657 = vsel %vm285, %v1633, -inf
      %1658 = vmax.xlane.f32.xlu0 %v1657
      %v1659 = vpop.xlane.xlu0 %1658
      %v1660 = vsub.f32 %v1606, %v1638
      %v1661 = vsub.f32 %v1609, %v1641
      %v1662 = vsub.f32 %v1614, %v1644
      %v1663 = vsub.f32 %v1617, %v1647
      %v1664 = vsub.f32 %v1622, %v1650
      %v1665 = vsub.f32 %v1625, %v1653
      %v1666 = vsub.f32 %v1630, %v1656
      %v1667 = vsub.f32 %v1633, %v1659
      %v1668 = vmul.f32 %v1660, 1.442695
      %v1669 = vpow.pop %v1668
      %v1670 = vmul.f32 %v1661, 1.442695
      %v1671 = vpow.pop %v1670
      %v1672 = vmul.f32 %v1662, 1.442695
      %v1673 = vpow.pop %v1672
      %v1674 = vmul.f32 %v1663, 1.442695
      %v1675 = vpow.pop %v1674
      %v1676 = vmul.f32 %v1664, 1.442695
      %v1677 = vpow.pop %v1676
      %v1678 = vmul.f32 %v1665, 1.442695
      %v1679 = vpow.pop %v1678
      %v1680 = vmul.f32 %v1666, 1.442695
      %v1681 = vpow.pop %v1680
      %v1682 = vmul.f32 %v1667, 1.442695
      %v1683 = vpow.pop %v1682
      %v1684 = vsel %vm285, %v1669, 0.0
      %1685 = vadd.xlane.f32.xlu0 %v1684
      %v1686 = vpop.xlane.xlu0 %1685
      %v1687 = vsel %vm285, %v1671, 0.0
      %1688 = vadd.xlane.f32.xlu0 %v1687
      %v1689 = vpop.xlane.xlu0 %1688
      %v1690 = vsel %vm285, %v1673, 0.0
      %1691 = vadd.xlane.f32.xlu0 %v1690
      %v1692 = vpop.xlane.xlu0 %1691
      %v1693 = vsel %vm285, %v1675, 0.0
      %1694 = vadd.xlane.f32.xlu0 %v1693
      %v1695 = vpop.xlane.xlu0 %1694
      %v1696 = vsel %vm285, %v1677, 0.0
      %1697 = vadd.xlane.f32.xlu0 %v1696
      %v1698 = vpop.xlane.xlu0 %1697
      %v1699 = vsel %vm285, %v1679, 0.0
      %1700 = vadd.xlane.f32.xlu0 %v1699
      %v1701 = vpop.xlane.xlu0 %1700
      %v1702 = vsel %vm285, %v1681, 0.0
      %1703 = vadd.xlane.f32.xlu0 %v1702
      %v1704 = vpop.xlane.xlu0 %1703
      %v1705 = vsel %vm285, %v1683, 0.0
      %1706 = vadd.xlane.f32.xlu0 %v1705
      %v1707 = vpop.xlane.xlu0 %1706
      %v1708 = vrcp.pop %v1686
      %v1709 = vrcp.pop %v1689
      %v1710 = vrcp.pop %v1692
      %v1711 = vrcp.pop %v1695
      %v1712 = vrcp.pop %v1698
      %v1713 = vrcp.pop %v1701
      %v1714 = vrcp.pop %v1704
      %v1715 = vrcp.pop %v1707
      %v1716 = vmul.f32 %v1669, %v1708
      %v1717 = vmul.f32 %v1671, %v1709
      %v1718 = vmul.f32 %v1673, %v1710
      %v1719 = vmul.f32 %v1675, %v1711
      %v1720 = vmul.f32 %v1677, %v1712
      %v1721 = vmul.f32 %v1679, %v1713
      %v1722 = vmul.f32 %v1681, %v1714
      %v1723 = vmul.f32 %v1683, %v1715
      %v1724 = vpack.c.bf16 %v1717, %v1716
      %v1725 = vpack.c.bf16 %v1719, %v1718
      %v1726 = vpack.c.bf16 %v1721, %v1720
      %v1727 = vpack.c.bf16 %v1723, %v1722
      %v1728 = vmul.f32 %v1290, %v1546
      %v1729 = vmul.f32 %v1293, %v1546
      %v1730 = vmul.f32 %v1298, %v1546
      %v1731 = vmul.f32 %v1301, %v1546
      %v1732 = vmul.f32 %v1306, %v1546
      %v1733 = vmul.f32 %v1309, %v1546
      %v1734 = vmul.f32 %v1314, %v1546
      %v1735 = vmul.f32 %v1317, %v1546
      %v1736 = vpack.c.bf16 %v1729, %v1728
      %v1737 = vpack.c.bf16 %v1731, %v1730
      %v1738 = vpack.c.bf16 %v1733, %v1732
      %v1739 = vpack.c.bf16 %v1735, %v1734
      %v1741 = vsel %vm285, %v1724, 0
      %v1744 = vsel %vm285, %v1725, 0
      %v1747 = vsel %vm285, %v1726, 0
      %v1750 = vsel %vm285, %v1727, 0
      %1752 = vmatprep.subr.bf16.mxu0 0
      %1753 = vmatpush1.bf16.msra.mxu0 0
      %1754 = vmatprep.subr.bf16.mxu0 0
      %1755 = vmatpush1.bf16.msra.mxu0 0
      %1756 = vmatprep.subr.bf16.mxu0 0
      %1757 = vmatpush1.bf16.msra.mxu0 0
      %1758 = vmatprep.subr.bf16.mxu0 0
      %1759 = vmatpush1.bf16.msra.mxu0 0
      %1760 = vmatprep.subr.bf16.mxu0 0
      %1761 = vmatpush1.bf16.msra.mxu0 %v1739
      %1762 = vmatprep.subr.bf16.mxu0 0
      %1763 = vmatpush1.bf16.msra.mxu0 %v1738
      %1764 = vmatprep.subr.bf16.mxu0 0
      %1765 = vmatpush1.bf16.msra.mxu0 %v1737
      %1766 = vmatprep.subr.bf16.mxu0 0
      %1767 = vmatpush1.bf16.msra.mxu0 %v1736
      %1768 = vmatprep.subr.bf16.mxu0 0
      %1769 = vmatpush2.bf16.msra.mxu0 0
      %1770 = vmatprep.subr.bf16.mxu0 0
      %1771 = vmatpush2.bf16.msra.mxu0 0
      %1772 = vmatprep.subr.bf16.mxu0 0
      %1773 = vmatpush2.bf16.msra.mxu0 0
      %1774 = vmatprep.subr.bf16.mxu0 0
      %1775 = vmatpush2.bf16.msra.mxu0 0
      %1776 = vmatprep.subr.bf16.mxu0 0
      %1777 = vmatpush2.bf16.msra.mxu0 0
      %1778 = vmatprep.subr.bf16.mxu0 0
      %1779 = vmatpush2.bf16.msra.mxu0 0
      %1780 = vmatprep.subr.bf16.mxu0 0
      %1781 = vmatpush2.bf16.msra.mxu0 0
      %1782 = vmatprep.subr.bf16.mxu0 0
      %1783 = vmatpush2.bf16.msra.mxu0 0
      %1784 = vmatprep.mubr.bf16.mxu0 0
      %1785 = vmatmul.mubr.bf16.gmra.mxu0 %v1741
      %v1786 = vpop.f32.mrf.mxu0
      %v1787 = vadd.f32 0.0, %v1786
      %v1788 = vpop.f32.mrf.mxu0
      %v1789 = vpop.f32.mrf.mxu0
      %v1790 = vadd.f32 0.0, %v1789
      %v1791 = vpop.f32.mrf.mxu0
      %1792 = vmatprep.mubr.bf16.mxu0 0
      %1793 = vmatmul.mubr.bf16.gmra.mxu0 %v1744
      %v1794 = vpop.f32.mrf.mxu0
      %v1795 = vadd.f32 0.0, %v1794
      %v1796 = vpop.f32.mrf.mxu0
      %v1797 = vpop.f32.mrf.mxu0
      %v1798 = vadd.f32 0.0, %v1797
      %v1799 = vpop.f32.mrf.mxu0
      %1800 = vmatprep.mubr.bf16.mxu0 0
      %1801 = vmatmul.mubr.bf16.gmra.mxu0 %v1747
      %v1802 = vpop.f32.mrf.mxu0
      %v1803 = vadd.f32 0.0, %v1802
      %v1804 = vpop.f32.mrf.mxu0
      %v1805 = vpop.f32.mrf.mxu0
      %v1806 = vadd.f32 0.0, %v1805
      %v1807 = vpop.f32.mrf.mxu0
      %1808 = vmatprep.mubr.bf16.mxu0 0
      %1809 = vmatmul.mubr.bf16.gmra.mxu0 %v1750
      %v1810 = vpop.f32.mrf.mxu0
      %v1811 = vadd.f32 0.0, %v1810
      %v1812 = vpop.f32.mrf.mxu0
      %v1813 = vpop.f32.mrf.mxu0
      %v1814 = vadd.f32 0.0, %v1813
      %v1815 = vpop.f32.mrf.mxu0
      %1816 = vdwg.mxu0
      %v1818 = vsel %vm285, %v1526, 0
      %v1821 = vsel %vm285, %v1527, 0
      %v1824 = vsel %vm285, %v1528, 0
      %v1827 = vsel %vm285, %v1529, 0
      %1829 = vmatprep.subr.bf16.mxu0 0
      %1830 = vmatpush1.bf16.msra.mxu0 0
      %1831 = vmatprep.subr.bf16.mxu0 0
      %1832 = vmatpush1.bf16.msra.mxu0 0
      %1833 = vmatprep.subr.bf16.mxu0 0
      %1834 = vmatpush1.bf16.msra.mxu0 0
      %1835 = vmatprep.subr.bf16.mxu0 0
      %1836 = vmatpush1.bf16.msra.mxu0 0
      %1837 = vmatprep.subr.bf16.mxu0 0
      %1838 = vmatpush1.bf16.msra.mxu0 %v1541
      %1839 = vmatprep.subr.bf16.mxu0 0
      %1840 = vmatpush1.bf16.msra.mxu0 %v1540
      %1841 = vmatprep.subr.bf16.mxu0 0
      %1842 = vmatpush1.bf16.msra.mxu0 %v1539
      %1843 = vmatprep.subr.bf16.mxu0 0
      %1844 = vmatpush1.bf16.msra.mxu0 %v1538
      %1845 = vmatprep.subr.bf16.mxu0 0
      %1846 = vmatpush2.bf16.msra.mxu0 0
      %1847 = vmatprep.subr.bf16.mxu0 0
      %1848 = vmatpush2.bf16.msra.mxu0 0
      %1849 = vmatprep.subr.bf16.mxu0 0
      %1850 = vmatpush2.bf16.msra.mxu0 0
      %1851 = vmatprep.subr.bf16.mxu0 0
      %1852 = vmatpush2.bf16.msra.mxu0 0
      %1853 = vmatprep.subr.bf16.mxu0 0
      %1854 = vmatpush2.bf16.msra.mxu0 0
      %1855 = vmatprep.subr.bf16.mxu0 0
      %1856 = vmatpush2.bf16.msra.mxu0 0
      %1857 = vmatprep.subr.bf16.mxu0 0
      %1858 = vmatpush2.bf16.msra.mxu0 0
      %1859 = vmatprep.subr.bf16.mxu0 0
      %1860 = vmatpush2.bf16.msra.mxu0 0
      %1861 = vmatprep.mubr.bf16.mxu0 0
      %1862 = vmatmul.mubr.bf16.gmra.mxu0 %v1818
      %v1863 = vpop.f32.mrf.mxu0
      %v1864 = vadd.f32 %v1787, %v1863
      %v1865 = vpop.f32.mrf.mxu0
      %v1866 = vpop.f32.mrf.mxu0
      %v1867 = vadd.f32 %v1790, %v1866
      %v1868 = vpop.f32.mrf.mxu0
      %1869 = vmatprep.mubr.bf16.mxu0 0
      %1870 = vmatmul.mubr.bf16.gmra.mxu0 %v1821
      %v1871 = vpop.f32.mrf.mxu0
      %v1872 = vadd.f32 %v1795, %v1871
      %v1873 = vpop.f32.mrf.mxu0
      %v1874 = vpop.f32.mrf.mxu0
      %v1875 = vadd.f32 %v1798, %v1874
      %v1876 = vpop.f32.mrf.mxu0
      %1877 = vmatprep.mubr.bf16.mxu0 0
      %1878 = vmatmul.mubr.bf16.gmra.mxu0 %v1824
      %v1879 = vpop.f32.mrf.mxu0
      %v1880 = vadd.f32 %v1803, %v1879
      %v1881 = vpop.f32.mrf.mxu0
      %v1882 = vpop.f32.mrf.mxu0
      %v1883 = vadd.f32 %v1806, %v1882
      %v1884 = vpop.f32.mrf.mxu0
      %1885 = vmatprep.mubr.bf16.mxu0 0
      %1886 = vmatmul.mubr.bf16.gmra.mxu0 %v1827
      %v1887 = vpop.f32.mrf.mxu0
      %v1888 = vadd.f32 %v1811, %v1887
      %v1889 = vpop.f32.mrf.mxu0
      %v1890 = vpop.f32.mrf.mxu0
      %v1891 = vadd.f32 %v1814, %v1890
      %v1892 = vpop.f32.mrf.mxu0
      %1893 = vdwg.mxu0
      %vm1894 = vcmp.ge.s32.totalorder %v256, 16
      %vm1895 = vcmp.lt.s32.totalorder %v256, 24
      %vm1896 = vmand %vm1894, %vm1895
      %v1897 = vsel %vm1896, 1, 0
      %v1898 = vcvt.s32.f32 %v1897
      %v1899 = vmul.f32 %v1208, %v1898
      %v1900 = vmul.f32 %v1211, %v1898
      %v1901 = vmul.f32 %v1216, %v1898
      %v1902 = vmul.f32 %v1219, %v1898
      %v1903 = vmul.f32 %v1224, %v1898
      %v1904 = vmul.f32 %v1227, %v1898
      %v1905 = vmul.f32 %v1232, %v1898
      %v1906 = vmul.f32 %v1235, %v1898
      %v1907 = vpack.c.bf16 %v1900, %v1899
      %v1908 = vpack.c.bf16 %v1902, %v1901
      %v1909 = vpack.c.bf16 %v1904, %v1903
      %v1910 = vpack.c.bf16 %v1906, %v1905
      %v1912 = vsel %vm573, %v1907, 0
      %v1915 = vsel %vm573, %v1908, 0
      %v1918 = vsel %vm573, %v1909, 0
      %v1921 = vsel %vm573, %v1910, 0
      %1923 = vmatprep.subr.bf16.mxu0 0
      %1924 = vmatpush1.bf16.xpose.msra.mxu0 0
      %1925 = vmatprep.subr.bf16.mxu0 0
      %1926 = vmatpush1.bf16.xpose.msra.mxu0 0
      %1927 = vmatprep.subr.bf16.mxu0 0
      %1928 = vmatpush1.bf16.xpose.msra.mxu0 0
      %1929 = vmatprep.subr.bf16.mxu0 0
      %1930 = vmatpush1.bf16.xpose.msra.mxu0 0
      %1931 = vmatprep.subr.bf16.mxu0 0
      %1932 = vmatpush1.bf16.xpose.msra.mxu0 %v1921
      %1933 = vmatprep.subr.bf16.mxu0 0
      %1934 = vmatpush1.bf16.xpose.msra.mxu0 %v1918
      %1935 = vmatprep.subr.bf16.mxu0 0
      %1936 = vmatpush1.bf16.xpose.msra.mxu0 %v1915
      %1937 = vmatprep.subr.bf16.mxu0 0
      %1938 = vmatpush1.bf16.xpose.msra.mxu0 %v1912
      %1939 = vmatprep.subr.bf16.mxu0 0
      %1940 = vmatpush2.bf16.xpose.msra.mxu0 0
      %1941 = vmatprep.subr.bf16.mxu0 0
      %1942 = vmatpush2.bf16.xpose.msra.mxu0 0
      %1943 = vmatprep.subr.bf16.mxu0 0
      %1944 = vmatpush2.bf16.xpose.msra.mxu0 0
      %1945 = vmatprep.subr.bf16.mxu0 0
      %1946 = vmatpush2.bf16.xpose.msra.mxu0 0
      %1947 = vmatprep.subr.bf16.mxu0 0
      %1948 = vmatpush2.bf16.xpose.msra.mxu0 0
      %1949 = vmatprep.subr.bf16.mxu0 0
      %1950 = vmatpush2.bf16.xpose.msra.mxu0 0
      %1951 = vmatprep.subr.bf16.mxu0 0
      %1952 = vmatpush2.bf16.xpose.msra.mxu0 0
      %1953 = vmatprep.subr.bf16.mxu0 0
      %1954 = vmatpush2.bf16.xpose.msra.mxu0 0
      %1955 = vmatprep.mubr.bf16.mxu0 0
      %1956 = vmatmul.mubr.bf16.gmra.mxu0 %v1350
      %v1957 = vpop.f32.mrf.mxu0
      %v1958 = vadd.f32 0.0, %v1957
      %v1959 = vpop.f32.mrf.mxu0
      %v1960 = vpop.f32.mrf.mxu0
      %v1961 = vadd.f32 0.0, %v1960
      %v1962 = vpop.f32.mrf.mxu0
      %1963 = vmatprep.mubr.bf16.mxu0 0
      %1964 = vmatmul.mubr.bf16.gmra.mxu0 %v1353
      %v1965 = vpop.f32.mrf.mxu0
      %v1966 = vadd.f32 0.0, %v1965
      %v1967 = vpop.f32.mrf.mxu0
      %v1968 = vpop.f32.mrf.mxu0
      %v1969 = vadd.f32 0.0, %v1968
      %v1970 = vpop.f32.mrf.mxu0
      %1971 = vmatprep.mubr.bf16.mxu0 0
      %1972 = vmatmul.mubr.bf16.gmra.mxu0 %v1356
      %v1973 = vpop.f32.mrf.mxu0
      %v1974 = vadd.f32 0.0, %v1973
      %v1975 = vpop.f32.mrf.mxu0
      %v1976 = vpop.f32.mrf.mxu0
      %v1977 = vadd.f32 0.0, %v1976
      %v1978 = vpop.f32.mrf.mxu0
      %1979 = vmatprep.mubr.bf16.mxu0 0
      %1980 = vmatmul.mubr.bf16.gmra.mxu0 %v1359
      %v1981 = vpop.f32.mrf.mxu0
      %v1982 = vadd.f32 0.0, %v1981
      %v1983 = vpop.f32.mrf.mxu0
      %v1984 = vpop.f32.mrf.mxu0
      %v1985 = vadd.f32 0.0, %v1984
      %v1986 = vpop.f32.mrf.mxu0
      %1987 = vdwg.mxu0
      %v1988 = vsel %vm285, %v1958, -inf
      %1989 = vmax.xlane.f32.xlu0 %v1988
      %v1990 = vpop.xlane.xlu0 %1989
      %v1991 = vsel %vm285, %v1961, -inf
      %1992 = vmax.xlane.f32.xlu0 %v1991
      %v1993 = vpop.xlane.xlu0 %1992
      %v1994 = vsel %vm285, %v1966, -inf
      %1995 = vmax.xlane.f32.xlu0 %v1994
      %v1996 = vpop.xlane.xlu0 %1995
      %v1997 = vsel %vm285, %v1969, -inf
      %1998 = vmax.xlane.f32.xlu0 %v1997
      %v1999 = vpop.xlane.xlu0 %1998
      %v2000 = vsel %vm285, %v1974, -inf
      %2001 = vmax.xlane.f32.xlu0 %v2000
      %v2002 = vpop.xlane.xlu0 %2001
      %v2003 = vsel %vm285, %v1977, -inf
      %2004 = vmax.xlane.f32.xlu0 %v2003
      %v2005 = vpop.xlane.xlu0 %2004
      %v2006 = vsel %vm285, %v1982, -inf
      %2007 = vmax.xlane.f32.xlu0 %v2006
      %v2008 = vpop.xlane.xlu0 %2007
      %v2009 = vsel %vm285, %v1985, -inf
      %2010 = vmax.xlane.f32.xlu0 %v2009
      %v2011 = vpop.xlane.xlu0 %2010
      %v2012 = vsub.f32 %v1958, %v1990
      %v2013 = vsub.f32 %v1961, %v1993
      %v2014 = vsub.f32 %v1966, %v1996
      %v2015 = vsub.f32 %v1969, %v1999
      %v2016 = vsub.f32 %v1974, %v2002
      %v2017 = vsub.f32 %v1977, %v2005
      %v2018 = vsub.f32 %v1982, %v2008
      %v2019 = vsub.f32 %v1985, %v2011
      %v2020 = vmul.f32 %v2012, 1.442695
      %v2021 = vpow.pop %v2020
      %v2022 = vmul.f32 %v2013, 1.442695
      %v2023 = vpow.pop %v2022
      %v2024 = vmul.f32 %v2014, 1.442695
      %v2025 = vpow.pop %v2024
      %v2026 = vmul.f32 %v2015, 1.442695
      %v2027 = vpow.pop %v2026
      %v2028 = vmul.f32 %v2016, 1.442695
      %v2029 = vpow.pop %v2028
      %v2030 = vmul.f32 %v2017, 1.442695
      %v2031 = vpow.pop %v2030
      %v2032 = vmul.f32 %v2018, 1.442695
      %v2033 = vpow.pop %v2032
      %v2034 = vmul.f32 %v2019, 1.442695
      %v2035 = vpow.pop %v2034
      %v2036 = vsel %vm285, %v2021, 0.0
      %2037 = vadd.xlane.f32.xlu0 %v2036
      %v2038 = vpop.xlane.xlu0 %2037
      %v2039 = vsel %vm285, %v2023, 0.0
      %2040 = vadd.xlane.f32.xlu0 %v2039
      %v2041 = vpop.xlane.xlu0 %2040
      %v2042 = vsel %vm285, %v2025, 0.0
      %2043 = vadd.xlane.f32.xlu0 %v2042
      %v2044 = vpop.xlane.xlu0 %2043
      %v2045 = vsel %vm285, %v2027, 0.0
      %2046 = vadd.xlane.f32.xlu0 %v2045
      %v2047 = vpop.xlane.xlu0 %2046
      %v2048 = vsel %vm285, %v2029, 0.0
      %2049 = vadd.xlane.f32.xlu0 %v2048
      %v2050 = vpop.xlane.xlu0 %2049
      %v2051 = vsel %vm285, %v2031, 0.0
      %2052 = vadd.xlane.f32.xlu0 %v2051
      %v2053 = vpop.xlane.xlu0 %2052
      %v2054 = vsel %vm285, %v2033, 0.0
      %2055 = vadd.xlane.f32.xlu0 %v2054
      %v2056 = vpop.xlane.xlu0 %2055
      %v2057 = vsel %vm285, %v2035, 0.0
      %2058 = vadd.xlane.f32.xlu0 %v2057
      %v2059 = vpop.xlane.xlu0 %2058
      %v2060 = vrcp.pop %v2038
      %v2061 = vrcp.pop %v2041
      %v2062 = vrcp.pop %v2044
      %v2063 = vrcp.pop %v2047
      %v2064 = vrcp.pop %v2050
      %v2065 = vrcp.pop %v2053
      %v2066 = vrcp.pop %v2056
      %v2067 = vrcp.pop %v2059
      %v2068 = vmul.f32 %v2021, %v2060
      %v2069 = vmul.f32 %v2023, %v2061
      %v2070 = vmul.f32 %v2025, %v2062
      %v2071 = vmul.f32 %v2027, %v2063
      %v2072 = vmul.f32 %v2029, %v2064
      %v2073 = vmul.f32 %v2031, %v2065
      %v2074 = vmul.f32 %v2033, %v2066
      %v2075 = vmul.f32 %v2035, %v2067
      %v2076 = vpack.c.bf16 %v2069, %v2068
      %v2077 = vpack.c.bf16 %v2071, %v2070
      %v2078 = vpack.c.bf16 %v2073, %v2072
      %v2079 = vpack.c.bf16 %v2075, %v2074
      %v2080 = vmul.f32 %v1290, %v1898
      %v2081 = vmul.f32 %v1293, %v1898
      %v2082 = vmul.f32 %v1298, %v1898
      %v2083 = vmul.f32 %v1301, %v1898
      %v2084 = vmul.f32 %v1306, %v1898
      %v2085 = vmul.f32 %v1309, %v1898
      %v2086 = vmul.f32 %v1314, %v1898
      %v2087 = vmul.f32 %v1317, %v1898
      %v2088 = vpack.c.bf16 %v2081, %v2080
      %v2089 = vpack.c.bf16 %v2083, %v2082
      %v2090 = vpack.c.bf16 %v2085, %v2084
      %v2091 = vpack.c.bf16 %v2087, %v2086
      %v2093 = vsel %vm285, %v2076, 0
      %v2096 = vsel %vm285, %v2077, 0
      %v2099 = vsel %vm285, %v2078, 0
      %v2102 = vsel %vm285, %v2079, 0
      %2104 = vmatprep.subr.bf16.mxu0 0
      %2105 = vmatpush1.bf16.msra.mxu0 0
      %2106 = vmatprep.subr.bf16.mxu0 0
      %2107 = vmatpush1.bf16.msra.mxu0 0
      %2108 = vmatprep.subr.bf16.mxu0 0
      %2109 = vmatpush1.bf16.msra.mxu0 0
      %2110 = vmatprep.subr.bf16.mxu0 0
      %2111 = vmatpush1.bf16.msra.mxu0 0
      %2112 = vmatprep.subr.bf16.mxu0 0
      %2113 = vmatpush1.bf16.msra.mxu0 %v2091
      %2114 = vmatprep.subr.bf16.mxu0 0
      %2115 = vmatpush1.bf16.msra.mxu0 %v2090
      %2116 = vmatprep.subr.bf16.mxu0 0
      %2117 = vmatpush1.bf16.msra.mxu0 %v2089
      %2118 = vmatprep.subr.bf16.mxu0 0
      %2119 = vmatpush1.bf16.msra.mxu0 %v2088
      %2120 = vmatprep.subr.bf16.mxu0 0
      %2121 = vmatpush2.bf16.msra.mxu0 0
      %2122 = vmatprep.subr.bf16.mxu0 0
      %2123 = vmatpush2.bf16.msra.mxu0 0
      %2124 = vmatprep.subr.bf16.mxu0 0
      %2125 = vmatpush2.bf16.msra.mxu0 0
      %2126 = vmatprep.subr.bf16.mxu0 0
      %2127 = vmatpush2.bf16.msra.mxu0 0
      %2128 = vmatprep.subr.bf16.mxu0 0
      %2129 = vmatpush2.bf16.msra.mxu0 0
      %2130 = vmatprep.subr.bf16.mxu0 0
      %2131 = vmatpush2.bf16.msra.mxu0 0
      %2132 = vmatprep.subr.bf16.mxu0 0
      %2133 = vmatpush2.bf16.msra.mxu0 0
      %2134 = vmatprep.subr.bf16.mxu0 0
      %2135 = vmatpush2.bf16.msra.mxu0 0
      %2136 = vmatprep.mubr.bf16.mxu0 0
      %2137 = vmatmul.mubr.bf16.gmra.mxu0 %v2093
      %v2138 = vpop.f32.mrf.mxu0
      %v2139 = vadd.f32 0.0, %v2138
      %v2140 = vpop.f32.mrf.mxu0
      %v2141 = vpop.f32.mrf.mxu0
      %v2142 = vadd.f32 0.0, %v2141
      %v2143 = vpop.f32.mrf.mxu0
      %2144 = vmatprep.mubr.bf16.mxu0 0
      %2145 = vmatmul.mubr.bf16.gmra.mxu0 %v2096
      %v2146 = vpop.f32.mrf.mxu0
      %v2147 = vadd.f32 0.0, %v2146
      %v2148 = vpop.f32.mrf.mxu0
      %v2149 = vpop.f32.mrf.mxu0
      %v2150 = vadd.f32 0.0, %v2149
      %v2151 = vpop.f32.mrf.mxu0
      %2152 = vmatprep.mubr.bf16.mxu0 0
      %2153 = vmatmul.mubr.bf16.gmra.mxu0 %v2099
      %v2154 = vpop.f32.mrf.mxu0
      %v2155 = vadd.f32 0.0, %v2154
      %v2156 = vpop.f32.mrf.mxu0
      %v2157 = vpop.f32.mrf.mxu0
      %v2158 = vadd.f32 0.0, %v2157
      %v2159 = vpop.f32.mrf.mxu0
      %2160 = vmatprep.mubr.bf16.mxu0 0
      %2161 = vmatmul.mubr.bf16.gmra.mxu0 %v2102
      %v2162 = vpop.f32.mrf.mxu0
      %v2163 = vadd.f32 0.0, %v2162
      %v2164 = vpop.f32.mrf.mxu0
      %v2165 = vpop.f32.mrf.mxu0
      %v2166 = vadd.f32 0.0, %v2165
      %v2167 = vpop.f32.mrf.mxu0
      %2168 = vdwg.mxu0
      %v2169 = vadd.f32 %v1864, %v2139
      %v2170 = vadd.f32 %v1867, %v2142
      %v2171 = vadd.f32 %v1872, %v2147
      %v2172 = vadd.f32 %v1875, %v2150
      %v2173 = vadd.f32 %v1880, %v2155
      %v2174 = vadd.f32 %v1883, %v2158
      %v2175 = vadd.f32 %v1888, %v2163
      %v2176 = vadd.f32 %v1891, %v2166
      %vm2177 = vcmp.ge.s32.totalorder %v256, 24
      %vm2178 = vcmp.lt.s32.totalorder %v256, 32
      %vm2179 = vmand %vm2177, %vm2178
      %v2180 = vsel %vm2179, 1, 0
      %v2181 = vcvt.s32.f32 %v2180
      %v2182 = vmul.f32 %v1208, %v2181
      %v2183 = vmul.f32 %v1211, %v2181
      %v2184 = vmul.f32 %v1216, %v2181
      %v2185 = vmul.f32 %v1219, %v2181
      %v2186 = vmul.f32 %v1224, %v2181
      %v2187 = vmul.f32 %v1227, %v2181
      %v2188 = vmul.f32 %v1232, %v2181
      %v2189 = vmul.f32 %v1235, %v2181
      %v2190 = vpack.c.bf16 %v2183, %v2182
      %v2191 = vpack.c.bf16 %v2185, %v2184
      %v2192 = vpack.c.bf16 %v2187, %v2186
      %v2193 = vpack.c.bf16 %v2189, %v2188
      %v2195 = vsel %vm573, %v2190, 0
      %v2198 = vsel %vm573, %v2191, 0
      %v2201 = vsel %vm573, %v2192, 0
      %v2204 = vsel %vm573, %v2193, 0
      %2206 = vmatprep.subr.bf16.mxu0 0
      %2207 = vmatpush1.bf16.xpose.msra.mxu0 0
      %2208 = vmatprep.subr.bf16.mxu0 0
      %2209 = vmatpush1.bf16.xpose.msra.mxu0 0
      %2210 = vmatprep.subr.bf16.mxu0 0
      %2211 = vmatpush1.bf16.xpose.msra.mxu0 0
      %2212 = vmatprep.subr.bf16.mxu0 0
      %2213 = vmatpush1.bf16.xpose.msra.mxu0 0
      %2214 = vmatprep.subr.bf16.mxu0 0
      %2215 = vmatpush1.bf16.xpose.msra.mxu0 %v2204
      %2216 = vmatprep.subr.bf16.mxu0 0
      %2217 = vmatpush1.bf16.xpose.msra.mxu0 %v2201
      %2218 = vmatprep.subr.bf16.mxu0 0
      %2219 = vmatpush1.bf16.xpose.msra.mxu0 %v2198
      %2220 = vmatprep.subr.bf16.mxu0 0
      %2221 = vmatpush1.bf16.xpose.msra.mxu0 %v2195
      %2222 = vmatprep.subr.bf16.mxu0 0
      %2223 = vmatpush2.bf16.xpose.msra.mxu0 0
      %2224 = vmatprep.subr.bf16.mxu0 0
      %2225 = vmatpush2.bf16.xpose.msra.mxu0 0
      %2226 = vmatprep.subr.bf16.mxu0 0
      %2227 = vmatpush2.bf16.xpose.msra.mxu0 0
      %2228 = vmatprep.subr.bf16.mxu0 0
      %2229 = vmatpush2.bf16.xpose.msra.mxu0 0
      %2230 = vmatprep.subr.bf16.mxu0 0
      %2231 = vmatpush2.bf16.xpose.msra.mxu0 0
      %2232 = vmatprep.subr.bf16.mxu0 0
      %2233 = vmatpush2.bf16.xpose.msra.mxu0 0
      %2234 = vmatprep.subr.bf16.mxu0 0
      %2235 = vmatpush2.bf16.xpose.msra.mxu0 0
      %2236 = vmatprep.subr.bf16.mxu0 0
      %2237 = vmatpush2.bf16.xpose.msra.mxu0 0
      %2238 = vmatprep.mubr.bf16.mxu0 0
      %2239 = vmatmul.mubr.bf16.gmra.mxu0 %v1350
      %v2240 = vpop.f32.mrf.mxu0
      %v2241 = vadd.f32 0.0, %v2240
      %v2242 = vpop.f32.mrf.mxu0
      %v2243 = vpop.f32.mrf.mxu0
      %v2244 = vadd.f32 0.0, %v2243
      %v2245 = vpop.f32.mrf.mxu0
      %2246 = vmatprep.mubr.bf16.mxu0 0
      %2247 = vmatmul.mubr.bf16.gmra.mxu0 %v1353
      %v2248 = vpop.f32.mrf.mxu0
      %v2249 = vadd.f32 0.0, %v2248
      %v2250 = vpop.f32.mrf.mxu0
      %v2251 = vpop.f32.mrf.mxu0
      %v2252 = vadd.f32 0.0, %v2251
      %v2253 = vpop.f32.mrf.mxu0
      %2254 = vmatprep.mubr.bf16.mxu0 0
      %2255 = vmatmul.mubr.bf16.gmra.mxu0 %v1356
      %v2256 = vpop.f32.mrf.mxu0
      %v2257 = vadd.f32 0.0, %v2256
      %v2258 = vpop.f32.mrf.mxu0
      %v2259 = vpop.f32.mrf.mxu0
      %v2260 = vadd.f32 0.0, %v2259
      %v2261 = vpop.f32.mrf.mxu0
      %2262 = vmatprep.mubr.bf16.mxu0 0
      %2263 = vmatmul.mubr.bf16.gmra.mxu0 %v1359
      %v2264 = vpop.f32.mrf.mxu0
      %v2265 = vadd.f32 0.0, %v2264
      %v2266 = vpop.f32.mrf.mxu0
      %v2267 = vpop.f32.mrf.mxu0
      %v2268 = vadd.f32 0.0, %v2267
      %v2269 = vpop.f32.mrf.mxu0
      %2270 = vdwg.mxu0
      %v2271 = vsel %vm285, %v2241, -inf
      %2272 = vmax.xlane.f32.xlu0 %v2271
      %v2273 = vpop.xlane.xlu0 %2272
      %v2274 = vsel %vm285, %v2244, -inf
      %2275 = vmax.xlane.f32.xlu0 %v2274
      %v2276 = vpop.xlane.xlu0 %2275
      %v2277 = vsel %vm285, %v2249, -inf
      %2278 = vmax.xlane.f32.xlu0 %v2277
      %v2279 = vpop.xlane.xlu0 %2278
      %v2280 = vsel %vm285, %v2252, -inf
      %2281 = vmax.xlane.f32.xlu0 %v2280
      %v2282 = vpop.xlane.xlu0 %2281
      %v2283 = vsel %vm285, %v2257, -inf
      %2284 = vmax.xlane.f32.xlu0 %v2283
      %v2285 = vpop.xlane.xlu0 %2284
      %v2286 = vsel %vm285, %v2260, -inf
      %2287 = vmax.xlane.f32.xlu0 %v2286
      %v2288 = vpop.xlane.xlu0 %2287
      %v2289 = vsel %vm285, %v2265, -inf
      %2290 = vmax.xlane.f32.xlu0 %v2289
      %v2291 = vpop.xlane.xlu0 %2290
      %v2292 = vsel %vm285, %v2268, -inf
      %2293 = vmax.xlane.f32.xlu0 %v2292
      %v2294 = vpop.xlane.xlu0 %2293
      %v2295 = vsub.f32 %v2241, %v2273
      %v2296 = vsub.f32 %v2244, %v2276
      %v2297 = vsub.f32 %v2249, %v2279
      %v2298 = vsub.f32 %v2252, %v2282
      %v2299 = vsub.f32 %v2257, %v2285
      %v2300 = vsub.f32 %v2260, %v2288
      %v2301 = vsub.f32 %v2265, %v2291
      %v2302 = vsub.f32 %v2268, %v2294
      %v2303 = vmul.f32 %v2295, 1.442695
      %v2304 = vpow.pop %v2303
      %v2305 = vmul.f32 %v2296, 1.442695
      %v2306 = vpow.pop %v2305
      %v2307 = vmul.f32 %v2297, 1.442695
      %v2308 = vpow.pop %v2307
      %v2309 = vmul.f32 %v2298, 1.442695
      %v2310 = vpow.pop %v2309
      %v2311 = vmul.f32 %v2299, 1.442695
      %v2312 = vpow.pop %v2311
      %v2313 = vmul.f32 %v2300, 1.442695
      %v2314 = vpow.pop %v2313
      %v2315 = vmul.f32 %v2301, 1.442695
      %v2316 = vpow.pop %v2315
      %v2317 = vmul.f32 %v2302, 1.442695
      %v2318 = vpow.pop %v2317
      %v2319 = vsel %vm285, %v2304, 0.0
      %2320 = vadd.xlane.f32.xlu0 %v2319
      %v2321 = vpop.xlane.xlu0 %2320
      %v2322 = vsel %vm285, %v2306, 0.0
      %2323 = vadd.xlane.f32.xlu0 %v2322
      %v2324 = vpop.xlane.xlu0 %2323
      %v2325 = vsel %vm285, %v2308, 0.0
      %2326 = vadd.xlane.f32.xlu0 %v2325
      %v2327 = vpop.xlane.xlu0 %2326
      %v2328 = vsel %vm285, %v2310, 0.0
      %2329 = vadd.xlane.f32.xlu0 %v2328
      %v2330 = vpop.xlane.xlu0 %2329
      %v2331 = vsel %vm285, %v2312, 0.0
      %2332 = vadd.xlane.f32.xlu0 %v2331
      %v2333 = vpop.xlane.xlu0 %2332
      %v2334 = vsel %vm285, %v2314, 0.0
      %2335 = vadd.xlane.f32.xlu0 %v2334
      %v2336 = vpop.xlane.xlu0 %2335
      %v2337 = vsel %vm285, %v2316, 0.0
      %2338 = vadd.xlane.f32.xlu0 %v2337
      %v2339 = vpop.xlane.xlu0 %2338
      %v2340 = vsel %vm285, %v2318, 0.0
      %2341 = vadd.xlane.f32.xlu0 %v2340
      %v2342 = vpop.xlane.xlu0 %2341
      %v2343 = vrcp.pop %v2321
      %v2344 = vrcp.pop %v2324
      %v2345 = vrcp.pop %v2327
      %v2346 = vrcp.pop %v2330
      %v2347 = vrcp.pop %v2333
      %v2348 = vrcp.pop %v2336
      %v2349 = vrcp.pop %v2339
      %v2350 = vrcp.pop %v2342
      %v2351 = vmul.f32 %v2304, %v2343
      %v2352 = vmul.f32 %v2306, %v2344
      %v2353 = vmul.f32 %v2308, %v2345
      %v2354 = vmul.f32 %v2310, %v2346
      %v2355 = vmul.f32 %v2312, %v2347
      %v2356 = vmul.f32 %v2314, %v2348
      %v2357 = vmul.f32 %v2316, %v2349
      %v2358 = vmul.f32 %v2318, %v2350
      %v2359 = vpack.c.bf16 %v2352, %v2351
      %v2360 = vpack.c.bf16 %v2354, %v2353
      %v2361 = vpack.c.bf16 %v2356, %v2355
      %v2362 = vpack.c.bf16 %v2358, %v2357
      %v2363 = vmul.f32 %v1290, %v2181
      %v2364 = vmul.f32 %v1293, %v2181
      %v2365 = vmul.f32 %v1298, %v2181
      %v2366 = vmul.f32 %v1301, %v2181
      %v2367 = vmul.f32 %v1306, %v2181
      %v2368 = vmul.f32 %v1309, %v2181
      %v2369 = vmul.f32 %v1314, %v2181
      %v2370 = vmul.f32 %v1317, %v2181
      %v2371 = vpack.c.bf16 %v2364, %v2363
      %v2372 = vpack.c.bf16 %v2366, %v2365
      %v2373 = vpack.c.bf16 %v2368, %v2367
      %v2374 = vpack.c.bf16 %v2370, %v2369
      %v2376 = vsel %vm285, %v2359, 0
      %v2379 = vsel %vm285, %v2360, 0
      %v2382 = vsel %vm285, %v2361, 0
      %v2385 = vsel %vm285, %v2362, 0
      %2387 = vmatprep.subr.bf16.mxu0 0
      %2388 = vmatpush1.bf16.msra.mxu0 0
      %2389 = vmatprep.subr.bf16.mxu0 0
      %2390 = vmatpush1.bf16.msra.mxu0 0
      %2391 = vmatprep.subr.bf16.mxu0 0
      %2392 = vmatpush1.bf16.msra.mxu0 0
      %2393 = vmatprep.subr.bf16.mxu0 0
      %2394 = vmatpush1.bf16.msra.mxu0 0
      %2395 = vmatprep.subr.bf16.mxu0 0
      %2396 = vmatpush1.bf16.msra.mxu0 %v2374
      %2397 = vmatprep.subr.bf16.mxu0 0
      %2398 = vmatpush1.bf16.msra.mxu0 %v2373
      %2399 = vmatprep.subr.bf16.mxu0 0
      %2400 = vmatpush1.bf16.msra.mxu0 %v2372
      %2401 = vmatprep.subr.bf16.mxu0 0
      %2402 = vmatpush1.bf16.msra.mxu0 %v2371
      %2403 = vmatprep.subr.bf16.mxu0 0
      %2404 = vmatpush2.bf16.msra.mxu0 0
      %2405 = vmatprep.subr.bf16.mxu0 0
      %2406 = vmatpush2.bf16.msra.mxu0 0
      %2407 = vmatprep.subr.bf16.mxu0 0
      %2408 = vmatpush2.bf16.msra.mxu0 0
      %2409 = vmatprep.subr.bf16.mxu0 0
      %2410 = vmatpush2.bf16.msra.mxu0 0
      %2411 = vmatprep.subr.bf16.mxu0 0
      %2412 = vmatpush2.bf16.msra.mxu0 0
      %2413 = vmatprep.subr.bf16.mxu0 0
      %2414 = vmatpush2.bf16.msra.mxu0 0
      %2415 = vmatprep.subr.bf16.mxu0 0
      %2416 = vmatpush2.bf16.msra.mxu0 0
      %2417 = vmatprep.subr.bf16.mxu0 0
      %2418 = vmatpush2.bf16.msra.mxu0 0
      %2419 = vmatprep.mubr.bf16.mxu0 0
      %2420 = vmatmul.mubr.bf16.gmra.mxu0 %v2376
      %v2421 = vpop.f32.mrf.mxu0
      %v2422 = vadd.f32 0.0, %v2421
      %v2423 = vpop.f32.mrf.mxu0
      %v2424 = vpop.f32.mrf.mxu0
      %v2425 = vadd.f32 0.0, %v2424
      %v2426 = vpop.f32.mrf.mxu0
      %2427 = vmatprep.mubr.bf16.mxu0 0
      %2428 = vmatmul.mubr.bf16.gmra.mxu0 %v2379
      %v2429 = vpop.f32.mrf.mxu0
      %v2430 = vadd.f32 0.0, %v2429
      %v2431 = vpop.f32.mrf.mxu0
      %v2432 = vpop.f32.mrf.mxu0
      %v2433 = vadd.f32 0.0, %v2432
      %v2434 = vpop.f32.mrf.mxu0
      %2435 = vmatprep.mubr.bf16.mxu0 0
      %2436 = vmatmul.mubr.bf16.gmra.mxu0 %v2382
      %v2437 = vpop.f32.mrf.mxu0
      %v2438 = vadd.f32 0.0, %v2437
      %v2439 = vpop.f32.mrf.mxu0
      %v2440 = vpop.f32.mrf.mxu0
      %v2441 = vadd.f32 0.0, %v2440
      %v2442 = vpop.f32.mrf.mxu0
      %2443 = vmatprep.mubr.bf16.mxu0 0
      %2444 = vmatmul.mubr.bf16.gmra.mxu0 %v2385
      %v2445 = vpop.f32.mrf.mxu0
      %v2446 = vadd.f32 0.0, %v2445
      %v2447 = vpop.f32.mrf.mxu0
      %v2448 = vpop.f32.mrf.mxu0
      %v2449 = vadd.f32 0.0, %v2448
      %v2450 = vpop.f32.mrf.mxu0
      %2451 = vdwg.mxu0
      %v2452 = vadd.f32 %v2169, %v2422
      %v2453 = vadd.f32 %v2170, %v2425
      %v2454 = vadd.f32 %v2171, %v2430
      %v2455 = vadd.f32 %v2172, %v2433
      %v2456 = vadd.f32 %v2173, %v2438
      %v2457 = vadd.f32 %v2174, %v2441
      %v2458 = vadd.f32 %v2175, %v2446
      %v2459 = vadd.f32 %v2176, %v2449
      %v2460 = vmul.f32 %v952, 0.35355338
      %v2461 = vmul.f32 %v953, 0.35355338
      %v2462 = vmul.f32 %v954, 0.35355338
      %v2463 = vmul.f32 %v955, 0.35355338
      %v2464 = vmul.f32 %v956, 0.35355338
      %v2465 = vmul.f32 %v957, 0.35355338
      %v2466 = vmul.f32 %v958, 0.35355338
      %v2467 = vmul.f32 %v959, 0.35355338
      %v2468 = vpack.c.bf16 %v2461, %v2460
      %v2469 = vpack.c.bf16 %v2463, %v2462
      %v2470 = vpack.c.bf16 %v2465, %v2464
      %v2471 = vpack.c.bf16 %v2467, %v2466
      %v2472 = vmul.f32 %v1028, %v1336
      %v2473 = vmul.f32 %v1031, %v1336
      %v2474 = vmul.f32 %v1036, %v1336
      %v2475 = vmul.f32 %v1039, %v1336
      %v2476 = vmul.f32 %v1044, %v1336
      %v2477 = vmul.f32 %v1047, %v1336
      %v2478 = vmul.f32 %v1052, %v1336
      %v2479 = vmul.f32 %v1055, %v1336
      %v2480 = vpack.c.bf16 %v2473, %v2472
      %v2481 = vpack.c.bf16 %v2475, %v2474
      %v2482 = vpack.c.bf16 %v2477, %v2476
      %v2483 = vpack.c.bf16 %v2479, %v2478
      %v2485 = vsel %vm573, %v2468, 0
      %v2488 = vsel %vm573, %v2469, 0
      %v2491 = vsel %vm573, %v2470, 0
      %v2494 = vsel %vm573, %v2471, 0
      %v2497 = vsel %vm573, %v2480, 0
      %v2500 = vsel %vm573, %v2481, 0
      %v2503 = vsel %vm573, %v2482, 0
      %v2506 = vsel %vm573, %v2483, 0
      %2508 = vmatprep.subr.bf16.mxu0 0
      %2509 = vmatpush1.bf16.xpose.msra.mxu0 0
      %2510 = vmatprep.subr.bf16.mxu0 0
      %2511 = vmatpush1.bf16.xpose.msra.mxu0 0
      %2512 = vmatprep.subr.bf16.mxu0 0
      %2513 = vmatpush1.bf16.xpose.msra.mxu0 0
      %2514 = vmatprep.subr.bf16.mxu0 0
      %2515 = vmatpush1.bf16.xpose.msra.mxu0 0
      %2516 = vmatprep.subr.bf16.mxu0 0
      %2517 = vmatpush1.bf16.xpose.msra.mxu0 %v2506
      %2518 = vmatprep.subr.bf16.mxu0 0
      %2519 = vmatpush1.bf16.xpose.msra.mxu0 %v2503
      %2520 = vmatprep.subr.bf16.mxu0 0
      %2521 = vmatpush1.bf16.xpose.msra.mxu0 %v2500
      %2522 = vmatprep.subr.bf16.mxu0 0
      %2523 = vmatpush1.bf16.xpose.msra.mxu0 %v2497
      %2524 = vmatprep.subr.bf16.mxu0 0
      %2525 = vmatpush2.bf16.xpose.msra.mxu0 0
      %2526 = vmatprep.subr.bf16.mxu0 0
      %2527 = vmatpush2.bf16.xpose.msra.mxu0 0
      %2528 = vmatprep.subr.bf16.mxu0 0
      %2529 = vmatpush2.bf16.xpose.msra.mxu0 0
      %2530 = vmatprep.subr.bf16.mxu0 0
      %2531 = vmatpush2.bf16.xpose.msra.mxu0 0
      %2532 = vmatprep.subr.bf16.mxu0 0
      %2533 = vmatpush2.bf16.xpose.msra.mxu0 0
      %2534 = vmatprep.subr.bf16.mxu0 0
      %2535 = vmatpush2.bf16.xpose.msra.mxu0 0
      %2536 = vmatprep.subr.bf16.mxu0 0
      %2537 = vmatpush2.bf16.xpose.msra.mxu0 0
      %2538 = vmatprep.subr.bf16.mxu0 0
      %2539 = vmatpush2.bf16.xpose.msra.mxu0 0
      %2540 = vmatprep.mubr.bf16.mxu0 0
      %2541 = vmatmul.mubr.bf16.gmra.mxu0 %v2485
      %v2542 = vpop.f32.mrf.mxu0
      %v2543 = vadd.f32 0.0, %v2542
      %v2544 = vpop.f32.mrf.mxu0
      %v2545 = vpop.f32.mrf.mxu0
      %v2546 = vadd.f32 0.0, %v2545
      %v2547 = vpop.f32.mrf.mxu0
      %2548 = vmatprep.mubr.bf16.mxu0 0
      %2549 = vmatmul.mubr.bf16.gmra.mxu0 %v2488
      %v2550 = vpop.f32.mrf.mxu0
      %v2551 = vadd.f32 0.0, %v2550
      %v2552 = vpop.f32.mrf.mxu0
      %v2553 = vpop.f32.mrf.mxu0
      %v2554 = vadd.f32 0.0, %v2553
      %v2555 = vpop.f32.mrf.mxu0
      %2556 = vmatprep.mubr.bf16.mxu0 0
      %2557 = vmatmul.mubr.bf16.gmra.mxu0 %v2491
      %v2558 = vpop.f32.mrf.mxu0
      %v2559 = vadd.f32 0.0, %v2558
      %v2560 = vpop.f32.mrf.mxu0
      %v2561 = vpop.f32.mrf.mxu0
      %v2562 = vadd.f32 0.0, %v2561
      %v2563 = vpop.f32.mrf.mxu0
      %2564 = vmatprep.mubr.bf16.mxu0 0
      %2565 = vmatmul.mubr.bf16.gmra.mxu0 %v2494
      %v2566 = vpop.f32.mrf.mxu0
      %v2567 = vadd.f32 0.0, %v2566
      %v2568 = vpop.f32.mrf.mxu0
      %v2569 = vpop.f32.mrf.mxu0
      %v2570 = vadd.f32 0.0, %v2569
      %v2571 = vpop.f32.mrf.mxu0
      %2572 = vdwg.mxu0
      %v2573 = vsel %vm285, %v2543, -inf
      %2574 = vmax.xlane.f32.xlu0 %v2573
      %v2575 = vpop.xlane.xlu0 %2574
      %v2576 = vsel %vm285, %v2546, -inf
      %2577 = vmax.xlane.f32.xlu0 %v2576
      %v2578 = vpop.xlane.xlu0 %2577
      %v2579 = vsel %vm285, %v2551, -inf
      %2580 = vmax.xlane.f32.xlu0 %v2579
      %v2581 = vpop.xlane.xlu0 %2580
      %v2582 = vsel %vm285, %v2554, -inf
      %2583 = vmax.xlane.f32.xlu0 %v2582
      %v2584 = vpop.xlane.xlu0 %2583
      %v2585 = vsel %vm285, %v2559, -inf
      %2586 = vmax.xlane.f32.xlu0 %v2585
      %v2587 = vpop.xlane.xlu0 %2586
      %v2588 = vsel %vm285, %v2562, -inf
      %2589 = vmax.xlane.f32.xlu0 %v2588
      %v2590 = vpop.xlane.xlu0 %2589
      %v2591 = vsel %vm285, %v2567, -inf
      %2592 = vmax.xlane.f32.xlu0 %v2591
      %v2593 = vpop.xlane.xlu0 %2592
      %v2594 = vsel %vm285, %v2570, -inf
      %2595 = vmax.xlane.f32.xlu0 %v2594
      %v2596 = vpop.xlane.xlu0 %2595
      %v2597 = vsub.f32 %v2543, %v2575
      %v2598 = vsub.f32 %v2546, %v2578
      %v2599 = vsub.f32 %v2551, %v2581
      %v2600 = vsub.f32 %v2554, %v2584
      %v2601 = vsub.f32 %v2559, %v2587
      %v2602 = vsub.f32 %v2562, %v2590
      %v2603 = vsub.f32 %v2567, %v2593
      %v2604 = vsub.f32 %v2570, %v2596
      %v2605 = vmul.f32 %v2597, 1.442695
      %v2606 = vpow.pop %v2605
      %v2607 = vmul.f32 %v2598, 1.442695
      %v2608 = vpow.pop %v2607
      %v2609 = vmul.f32 %v2599, 1.442695
      %v2610 = vpow.pop %v2609
      %v2611 = vmul.f32 %v2600, 1.442695
      %v2612 = vpow.pop %v2611
      %v2613 = vmul.f32 %v2601, 1.442695
      %v2614 = vpow.pop %v2613
      %v2615 = vmul.f32 %v2602, 1.442695
      %v2616 = vpow.pop %v2615
      %v2617 = vmul.f32 %v2603, 1.442695
      %v2618 = vpow.pop %v2617
      %v2619 = vmul.f32 %v2604, 1.442695
      %v2620 = vpow.pop %v2619
      %v2621 = vsel %vm285, %v2606, 0.0
      %2622 = vadd.xlane.f32.xlu0 %v2621
      %v2623 = vpop.xlane.xlu0 %2622
      %v2624 = vsel %vm285, %v2608, 0.0
      %2625 = vadd.xlane.f32.xlu0 %v2624
      %v2626 = vpop.xlane.xlu0 %2625
      %v2627 = vsel %vm285, %v2610, 0.0
      %2628 = vadd.xlane.f32.xlu0 %v2627
      %v2629 = vpop.xlane.xlu0 %2628
      %v2630 = vsel %vm285, %v2612, 0.0
      %2631 = vadd.xlane.f32.xlu0 %v2630
      %v2632 = vpop.xlane.xlu0 %2631
      %v2633 = vsel %vm285, %v2614, 0.0
      %2634 = vadd.xlane.f32.xlu0 %v2633
      %v2635 = vpop.xlane.xlu0 %2634
      %v2636 = vsel %vm285, %v2616, 0.0
      %2637 = vadd.xlane.f32.xlu0 %v2636
      %v2638 = vpop.xlane.xlu0 %2637
      %v2639 = vsel %vm285, %v2618, 0.0
      %2640 = vadd.xlane.f32.xlu0 %v2639
      %v2641 = vpop.xlane.xlu0 %2640
      %v2642 = vsel %vm285, %v2620, 0.0
      %2643 = vadd.xlane.f32.xlu0 %v2642
      %v2644 = vpop.xlane.xlu0 %2643
      %v2645 = vrcp.pop %v2623
      %v2646 = vrcp.pop %v2626
      %v2647 = vrcp.pop %v2629
      %v2648 = vrcp.pop %v2632
      %v2649 = vrcp.pop %v2635
      %v2650 = vrcp.pop %v2638
      %v2651 = vrcp.pop %v2641
      %v2652 = vrcp.pop %v2644
      %v2653 = vmul.f32 %v2606, %v2645
      %v2654 = vmul.f32 %v2608, %v2646
      %v2655 = vmul.f32 %v2610, %v2647
      %v2656 = vmul.f32 %v2612, %v2648
      %v2657 = vmul.f32 %v2614, %v2649
      %v2658 = vmul.f32 %v2616, %v2650
      %v2659 = vmul.f32 %v2618, %v2651
      %v2660 = vmul.f32 %v2620, %v2652
      %v2661 = vpack.c.bf16 %v2654, %v2653
      %v2662 = vpack.c.bf16 %v2656, %v2655
      %v2663 = vpack.c.bf16 %v2658, %v2657
      %v2664 = vpack.c.bf16 %v2660, %v2659
      %v2665 = vmul.f32 %v1110, %v1336
      %v2666 = vmul.f32 %v1113, %v1336
      %v2667 = vmul.f32 %v1118, %v1336
      %v2668 = vmul.f32 %v1121, %v1336
      %v2669 = vmul.f32 %v1126, %v1336
      %v2670 = vmul.f32 %v1129, %v1336
      %v2671 = vmul.f32 %v1134, %v1336
      %v2672 = vmul.f32 %v1137, %v1336
      %v2673 = vpack.c.bf16 %v2666, %v2665
      %v2674 = vpack.c.bf16 %v2668, %v2667
      %v2675 = vpack.c.bf16 %v2670, %v2669
      %v2676 = vpack.c.bf16 %v2672, %v2671
      %v2677 = vmul.f32 %v1028, %v1546
      %v2678 = vmul.f32 %v1031, %v1546
      %v2679 = vmul.f32 %v1036, %v1546
      %v2680 = vmul.f32 %v1039, %v1546
      %v2681 = vmul.f32 %v1044, %v1546
      %v2682 = vmul.f32 %v1047, %v1546
      %v2683 = vmul.f32 %v1052, %v1546
      %v2684 = vmul.f32 %v1055, %v1546
      %v2685 = vpack.c.bf16 %v2678, %v2677
      %v2686 = vpack.c.bf16 %v2680, %v2679
      %v2687 = vpack.c.bf16 %v2682, %v2681
      %v2688 = vpack.c.bf16 %v2684, %v2683
      %v2690 = vsel %vm573, %v2685, 0
      %v2693 = vsel %vm573, %v2686, 0
      %v2696 = vsel %vm573, %v2687, 0
      %v2699 = vsel %vm573, %v2688, 0
      %2701 = vmatprep.subr.bf16.mxu0 0
      %2702 = vmatpush1.bf16.xpose.msra.mxu0 0
      %2703 = vmatprep.subr.bf16.mxu0 0
      %2704 = vmatpush1.bf16.xpose.msra.mxu0 0
      %2705 = vmatprep.subr.bf16.mxu0 0
      %2706 = vmatpush1.bf16.xpose.msra.mxu0 0
      %2707 = vmatprep.subr.bf16.mxu0 0
      %2708 = vmatpush1.bf16.xpose.msra.mxu0 0
      %2709 = vmatprep.subr.bf16.mxu0 0
      %2710 = vmatpush1.bf16.xpose.msra.mxu0 %v2699
      %2711 = vmatprep.subr.bf16.mxu0 0
      %2712 = vmatpush1.bf16.xpose.msra.mxu0 %v2696
      %2713 = vmatprep.subr.bf16.mxu0 0
      %2714 = vmatpush1.bf16.xpose.msra.mxu0 %v2693
      %2715 = vmatprep.subr.bf16.mxu0 0
      %2716 = vmatpush1.bf16.xpose.msra.mxu0 %v2690
      %2717 = vmatprep.subr.bf16.mxu0 0
      %2718 = vmatpush2.bf16.xpose.msra.mxu0 0
      %2719 = vmatprep.subr.bf16.mxu0 0
      %2720 = vmatpush2.bf16.xpose.msra.mxu0 0
      %2721 = vmatprep.subr.bf16.mxu0 0
      %2722 = vmatpush2.bf16.xpose.msra.mxu0 0
      %2723 = vmatprep.subr.bf16.mxu0 0
      %2724 = vmatpush2.bf16.xpose.msra.mxu0 0
      %2725 = vmatprep.subr.bf16.mxu0 0
      %2726 = vmatpush2.bf16.xpose.msra.mxu0 0
      %2727 = vmatprep.subr.bf16.mxu0 0
      %2728 = vmatpush2.bf16.xpose.msra.mxu0 0
      %2729 = vmatprep.subr.bf16.mxu0 0
      %2730 = vmatpush2.bf16.xpose.msra.mxu0 0
      %2731 = vmatprep.subr.bf16.mxu0 0
      %2732 = vmatpush2.bf16.xpose.msra.mxu0 0
      %2733 = vmatprep.mubr.bf16.mxu0 0
      %2734 = vmatmul.mubr.bf16.gmra.mxu0 %v2485
      %v2735 = vpop.f32.mrf.mxu0
      %v2736 = vadd.f32 0.0, %v2735
      %v2737 = vpop.f32.mrf.mxu0
      %v2738 = vpop.f32.mrf.mxu0
      %v2739 = vadd.f32 0.0, %v2738
      %v2740 = vpop.f32.mrf.mxu0
      %2741 = vmatprep.mubr.bf16.mxu0 0
      %2742 = vmatmul.mubr.bf16.gmra.mxu0 %v2488
      %v2743 = vpop.f32.mrf.mxu0
      %v2744 = vadd.f32 0.0, %v2743
      %v2745 = vpop.f32.mrf.mxu0
      %v2746 = vpop.f32.mrf.mxu0
      %v2747 = vadd.f32 0.0, %v2746
      %v2748 = vpop.f32.mrf.mxu0
      %2749 = vmatprep.mubr.bf16.mxu0 0
      %2750 = vmatmul.mubr.bf16.gmra.mxu0 %v2491
      %v2751 = vpop.f32.mrf.mxu0
      %v2752 = vadd.f32 0.0, %v2751
      %v2753 = vpop.f32.mrf.mxu0
      %v2754 = vpop.f32.mrf.mxu0
      %v2755 = vadd.f32 0.0, %v2754
      %v2756 = vpop.f32.mrf.mxu0
      %2757 = vmatprep.mubr.bf16.mxu0 0
      %2758 = vmatmul.mubr.bf16.gmra.mxu0 %v2494
      %v2759 = vpop.f32.mrf.mxu0
      %v2760 = vadd.f32 0.0, %v2759
      %v2761 = vpop.f32.mrf.mxu0
      %v2762 = vpop.f32.mrf.mxu0
      %v2763 = vadd.f32 0.0, %v2762
      %v2764 = vpop.f32.mrf.mxu0
      %2765 = vdwg.mxu0
      %v2766 = vsel %vm285, %v2736, -inf
      %2767 = vmax.xlane.f32.xlu0 %v2766
      %v2768 = vpop.xlane.xlu0 %2767
      %v2769 = vsel %vm285, %v2739, -inf
      %2770 = vmax.xlane.f32.xlu0 %v2769
      %v2771 = vpop.xlane.xlu0 %2770
      %v2772 = vsel %vm285, %v2744, -inf
      %2773 = vmax.xlane.f32.xlu0 %v2772
      %v2774 = vpop.xlane.xlu0 %2773
      %v2775 = vsel %vm285, %v2747, -inf
      %2776 = vmax.xlane.f32.xlu0 %v2775
      %v2777 = vpop.xlane.xlu0 %2776
      %v2778 = vsel %vm285, %v2752, -inf
      %2779 = vmax.xlane.f32.xlu0 %v2778
      %v2780 = vpop.xlane.xlu0 %2779
      %v2781 = vsel %vm285, %v2755, -inf
      %2782 = vmax.xlane.f32.xlu0 %v2781
      %v2783 = vpop.xlane.xlu0 %2782
      %v2784 = vsel %vm285, %v2760, -inf
      %2785 = vmax.xlane.f32.xlu0 %v2784
      %v2786 = vpop.xlane.xlu0 %2785
      %v2787 = vsel %vm285, %v2763, -inf
      %2788 = vmax.xlane.f32.xlu0 %v2787
      %v2789 = vpop.xlane.xlu0 %2788
      %v2790 = vsub.f32 %v2736, %v2768
      %v2791 = vsub.f32 %v2739, %v2771
      %v2792 = vsub.f32 %v2744, %v2774
      %v2793 = vsub.f32 %v2747, %v2777
      %v2794 = vsub.f32 %v2752, %v2780
      %v2795 = vsub.f32 %v2755, %v2783
      %v2796 = vsub.f32 %v2760, %v2786
      %v2797 = vsub.f32 %v2763, %v2789
      %v2798 = vmul.f32 %v2790, 1.442695
      %v2799 = vpow.pop %v2798
      %v2800 = vmul.f32 %v2791, 1.442695
      %v2801 = vpow.pop %v2800
      %v2802 = vmul.f32 %v2792, 1.442695
      %v2803 = vpow.pop %v2802
      %v2804 = vmul.f32 %v2793, 1.442695
      %v2805 = vpow.pop %v2804
      %v2806 = vmul.f32 %v2794, 1.442695
      %v2807 = vpow.pop %v2806
      %v2808 = vmul.f32 %v2795, 1.442695
      %v2809 = vpow.pop %v2808
      %v2810 = vmul.f32 %v2796, 1.442695
      %v2811 = vpow.pop %v2810
      %v2812 = vmul.f32 %v2797, 1.442695
      %v2813 = vpow.pop %v2812
      %v2814 = vsel %vm285, %v2799, 0.0
      %2815 = vadd.xlane.f32.xlu0 %v2814
      %v2816 = vpop.xlane.xlu0 %2815
      %v2817 = vsel %vm285, %v2801, 0.0
      %2818 = vadd.xlane.f32.xlu0 %v2817
      %v2819 = vpop.xlane.xlu0 %2818
      %v2820 = vsel %vm285, %v2803, 0.0
      %2821 = vadd.xlane.f32.xlu0 %v2820
      %v2822 = vpop.xlane.xlu0 %2821
      %v2823 = vsel %vm285, %v2805, 0.0
      %2824 = vadd.xlane.f32.xlu0 %v2823
      %v2825 = vpop.xlane.xlu0 %2824
      %v2826 = vsel %vm285, %v2807, 0.0
      %2827 = vadd.xlane.f32.xlu0 %v2826
      %v2828 = vpop.xlane.xlu0 %2827
      %v2829 = vsel %vm285, %v2809, 0.0
      %2830 = vadd.xlane.f32.xlu0 %v2829
      %v2831 = vpop.xlane.xlu0 %2830
      %v2832 = vsel %vm285, %v2811, 0.0
      %2833 = vadd.xlane.f32.xlu0 %v2832
      %v2834 = vpop.xlane.xlu0 %2833
      %v2835 = vsel %vm285, %v2813, 0.0
      %2836 = vadd.xlane.f32.xlu0 %v2835
      %v2837 = vpop.xlane.xlu0 %2836
      %v2838 = vrcp.pop %v2816
      %v2839 = vrcp.pop %v2819
      %v2840 = vrcp.pop %v2822
      %v2841 = vrcp.pop %v2825
      %v2842 = vrcp.pop %v2828
      %v2843 = vrcp.pop %v2831
      %v2844 = vrcp.pop %v2834
      %v2845 = vrcp.pop %v2837
      %v2846 = vmul.f32 %v2799, %v2838
      %v2847 = vmul.f32 %v2801, %v2839
      %v2848 = vmul.f32 %v2803, %v2840
      %v2849 = vmul.f32 %v2805, %v2841
      %v2850 = vmul.f32 %v2807, %v2842
      %v2851 = vmul.f32 %v2809, %v2843
      %v2852 = vmul.f32 %v2811, %v2844
      %v2853 = vmul.f32 %v2813, %v2845
      %v2854 = vpack.c.bf16 %v2847, %v2846
      %v2855 = vpack.c.bf16 %v2849, %v2848
      %v2856 = vpack.c.bf16 %v2851, %v2850
      %v2857 = vpack.c.bf16 %v2853, %v2852
      %v2858 = vmul.f32 %v1110, %v1546
      %v2859 = vmul.f32 %v1113, %v1546
      %v2860 = vmul.f32 %v1118, %v1546
      %v2861 = vmul.f32 %v1121, %v1546
      %v2862 = vmul.f32 %v1126, %v1546
      %v2863 = vmul.f32 %v1129, %v1546
      %v2864 = vmul.f32 %v1134, %v1546
      %v2865 = vmul.f32 %v1137, %v1546
      %v2866 = vpack.c.bf16 %v2859, %v2858
      %v2867 = vpack.c.bf16 %v2861, %v2860
      %v2868 = vpack.c.bf16 %v2863, %v2862
      %v2869 = vpack.c.bf16 %v2865, %v2864
      %v2871 = vsel %vm285, %v2854, 0
      %v2874 = vsel %vm285, %v2855, 0
      %v2877 = vsel %vm285, %v2856, 0
      %v2880 = vsel %vm285, %v2857, 0
      %2882 = vmatprep.subr.bf16.mxu0 0
      %2883 = vmatpush1.bf16.msra.mxu0 0
      %2884 = vmatprep.subr.bf16.mxu0 0
      %2885 = vmatpush1.bf16.msra.mxu0 0
      %2886 = vmatprep.subr.bf16.mxu0 0
      %2887 = vmatpush1.bf16.msra.mxu0 0
      %2888 = vmatprep.subr.bf16.mxu0 0
      %2889 = vmatpush1.bf16.msra.mxu0 0
      %2890 = vmatprep.subr.bf16.mxu0 0
      %2891 = vmatpush1.bf16.msra.mxu0 %v2869
      %2892 = vmatprep.subr.bf16.mxu0 0
      %2893 = vmatpush1.bf16.msra.mxu0 %v2868
      %2894 = vmatprep.subr.bf16.mxu0 0
      %2895 = vmatpush1.bf16.msra.mxu0 %v2867
      %2896 = vmatprep.subr.bf16.mxu0 0
      %2897 = vmatpush1.bf16.msra.mxu0 %v2866
      %2898 = vmatprep.subr.bf16.mxu0 0
      %2899 = vmatpush2.bf16.msra.mxu0 0
      %2900 = vmatprep.subr.bf16.mxu0 0
      %2901 = vmatpush2.bf16.msra.mxu0 0
      %2902 = vmatprep.subr.bf16.mxu0 0
      %2903 = vmatpush2.bf16.msra.mxu0 0
      %2904 = vmatprep.subr.bf16.mxu0 0
      %2905 = vmatpush2.bf16.msra.mxu0 0
      %2906 = vmatprep.subr.bf16.mxu0 0
      %2907 = vmatpush2.bf16.msra.mxu0 0
      %2908 = vmatprep.subr.bf16.mxu0 0
      %2909 = vmatpush2.bf16.msra.mxu0 0
      %2910 = vmatprep.subr.bf16.mxu0 0
      %2911 = vmatpush2.bf16.msra.mxu0 0
      %2912 = vmatprep.subr.bf16.mxu0 0
      %2913 = vmatpush2.bf16.msra.mxu0 0
      %2914 = vmatprep.mubr.bf16.mxu0 0
      %2915 = vmatmul.mubr.bf16.gmra.mxu0 %v2871
      %v2916 = vpop.f32.mrf.mxu0
      %v2917 = vadd.f32 0.0, %v2916
      %v2918 = vpop.f32.mrf.mxu0
      %v2919 = vpop.f32.mrf.mxu0
      %v2920 = vadd.f32 0.0, %v2919
      %v2921 = vpop.f32.mrf.mxu0
      %2922 = vmatprep.mubr.bf16.mxu0 0
      %2923 = vmatmul.mubr.bf16.gmra.mxu0 %v2874
      %v2924 = vpop.f32.mrf.mxu0
      %v2925 = vadd.f32 0.0, %v2924
      %v2926 = vpop.f32.mrf.mxu0
      %v2927 = vpop.f32.mrf.mxu0
      %v2928 = vadd.f32 0.0, %v2927
      %v2929 = vpop.f32.mrf.mxu0
      %2930 = vmatprep.mubr.bf16.mxu0 0
      %2931 = vmatmul.mubr.bf16.gmra.mxu0 %v2877
      %v2932 = vpop.f32.mrf.mxu0
      %v2933 = vadd.f32 0.0, %v2932
      %v2934 = vpop.f32.mrf.mxu0
      %v2935 = vpop.f32.mrf.mxu0
      %v2936 = vadd.f32 0.0, %v2935
      %v2937 = vpop.f32.mrf.mxu0
      %2938 = vmatprep.mubr.bf16.mxu0 0
      %2939 = vmatmul.mubr.bf16.gmra.mxu0 %v2880
      %v2940 = vpop.f32.mrf.mxu0
      %v2941 = vadd.f32 0.0, %v2940
      %v2942 = vpop.f32.mrf.mxu0
      %v2943 = vpop.f32.mrf.mxu0
      %v2944 = vadd.f32 0.0, %v2943
      %v2945 = vpop.f32.mrf.mxu0
      %2946 = vdwg.mxu0
      %v2948 = vsel %vm285, %v2661, 0
      %v2951 = vsel %vm285, %v2662, 0
      %v2954 = vsel %vm285, %v2663, 0
      %v2957 = vsel %vm285, %v2664, 0
      %2959 = vmatprep.subr.bf16.mxu0 0
      %2960 = vmatpush1.bf16.msra.mxu0 0
      %2961 = vmatprep.subr.bf16.mxu0 0
      %2962 = vmatpush1.bf16.msra.mxu0 0
      %2963 = vmatprep.subr.bf16.mxu0 0
      %2964 = vmatpush1.bf16.msra.mxu0 0
      %2965 = vmatprep.subr.bf16.mxu0 0
      %2966 = vmatpush1.bf16.msra.mxu0 0
      %2967 = vmatprep.subr.bf16.mxu0 0
      %2968 = vmatpush1.bf16.msra.mxu0 %v2676
      %2969 = vmatprep.subr.bf16.mxu0 0
      %2970 = vmatpush1.bf16.msra.mxu0 %v2675
      %2971 = vmatprep.subr.bf16.mxu0 0
      %2972 = vmatpush1.bf16.msra.mxu0 %v2674
      %2973 = vmatprep.subr.bf16.mxu0 0
      %2974 = vmatpush1.bf16.msra.mxu0 %v2673
      %2975 = vmatprep.subr.bf16.mxu0 0
      %2976 = vmatpush2.bf16.msra.mxu0 0
      %2977 = vmatprep.subr.bf16.mxu0 0
      %2978 = vmatpush2.bf16.msra.mxu0 0
      %2979 = vmatprep.subr.bf16.mxu0 0
      %2980 = vmatpush2.bf16.msra.mxu0 0
      %2981 = vmatprep.subr.bf16.mxu0 0
      %2982 = vmatpush2.bf16.msra.mxu0 0
      %2983 = vmatprep.subr.bf16.mxu0 0
      %2984 = vmatpush2.bf16.msra.mxu0 0
      %2985 = vmatprep.subr.bf16.mxu0 0
      %2986 = vmatpush2.bf16.msra.mxu0 0
      %2987 = vmatprep.subr.bf16.mxu0 0
      %2988 = vmatpush2.bf16.msra.mxu0 0
      %2989 = vmatprep.subr.bf16.mxu0 0
      %2990 = vmatpush2.bf16.msra.mxu0 0
      %2991 = vmatprep.mubr.bf16.mxu0 0
      %2992 = vmatmul.mubr.bf16.gmra.mxu0 %v2948
      %v2993 = vpop.f32.mrf.mxu0
      %v2994 = vadd.f32 %v2917, %v2993
      %v2995 = vpop.f32.mrf.mxu0
      %v2996 = vpop.f32.mrf.mxu0
      %v2997 = vadd.f32 %v2920, %v2996
      %v2998 = vpop.f32.mrf.mxu0
      %2999 = vmatprep.mubr.bf16.mxu0 0
      %3000 = vmatmul.mubr.bf16.gmra.mxu0 %v2951
      %v3001 = vpop.f32.mrf.mxu0
      %v3002 = vadd.f32 %v2925, %v3001
      %v3003 = vpop.f32.mrf.mxu0
      %v3004 = vpop.f32.mrf.mxu0
      %v3005 = vadd.f32 %v2928, %v3004
      %v3006 = vpop.f32.mrf.mxu0
      %3007 = vmatprep.mubr.bf16.mxu0 0
      %3008 = vmatmul.mubr.bf16.gmra.mxu0 %v2954
      %v3009 = vpop.f32.mrf.mxu0
      %v3010 = vadd.f32 %v2933, %v3009
      %v3011 = vpop.f32.mrf.mxu0
      %v3012 = vpop.f32.mrf.mxu0
      %v3013 = vadd.f32 %v2936, %v3012
      %v3014 = vpop.f32.mrf.mxu0
      %3015 = vmatprep.mubr.bf16.mxu0 0
      %3016 = vmatmul.mubr.bf16.gmra.mxu0 %v2957
      %v3017 = vpop.f32.mrf.mxu0
      %v3018 = vadd.f32 %v2941, %v3017
      %v3019 = vpop.f32.mrf.mxu0
      %v3020 = vpop.f32.mrf.mxu0
      %v3021 = vadd.f32 %v2944, %v3020
      %v3022 = vpop.f32.mrf.mxu0
      %3023 = vdwg.mxu0
      %v3024 = vmul.f32 %v1028, %v1898
      %v3025 = vmul.f32 %v1031, %v1898
      %v3026 = vmul.f32 %v1036, %v1898
      %v3027 = vmul.f32 %v1039, %v1898
      %v3028 = vmul.f32 %v1044, %v1898
      %v3029 = vmul.f32 %v1047, %v1898
      %v3030 = vmul.f32 %v1052, %v1898
      %v3031 = vmul.f32 %v1055, %v1898
      %v3032 = vpack.c.bf16 %v3025, %v3024
      %v3033 = vpack.c.bf16 %v3027, %v3026
      %v3034 = vpack.c.bf16 %v3029, %v3028
      %v3035 = vpack.c.bf16 %v3031, %v3030
      %v3037 = vsel %vm573, %v3032, 0
      %v3040 = vsel %vm573, %v3033, 0
      %v3043 = vsel %vm573, %v3034, 0
      %v3046 = vsel %vm573, %v3035, 0
      %3048 = vmatprep.subr.bf16.mxu0 0
      %3049 = vmatpush1.bf16.xpose.msra.mxu0 0
      %3050 = vmatprep.subr.bf16.mxu0 0
      %3051 = vmatpush1.bf16.xpose.msra.mxu0 0
      %3052 = vmatprep.subr.bf16.mxu0 0
      %3053 = vmatpush1.bf16.xpose.msra.mxu0 0
      %3054 = vmatprep.subr.bf16.mxu0 0
      %3055 = vmatpush1.bf16.xpose.msra.mxu0 0
      %3056 = vmatprep.subr.bf16.mxu0 0
      %3057 = vmatpush1.bf16.xpose.msra.mxu0 %v3046
      %3058 = vmatprep.subr.bf16.mxu0 0
      %3059 = vmatpush1.bf16.xpose.msra.mxu0 %v3043
      %3060 = vmatprep.subr.bf16.mxu0 0
      %3061 = vmatpush1.bf16.xpose.msra.mxu0 %v3040
      %3062 = vmatprep.subr.bf16.mxu0 0
      %3063 = vmatpush1.bf16.xpose.msra.mxu0 %v3037
      %3064 = vmatprep.subr.bf16.mxu0 0
      %3065 = vmatpush2.bf16.xpose.msra.mxu0 0
      %3066 = vmatprep.subr.bf16.mxu0 0
      %3067 = vmatpush2.bf16.xpose.msra.mxu0 0
      %3068 = vmatprep.subr.bf16.mxu0 0
      %3069 = vmatpush2.bf16.xpose.msra.mxu0 0
      %3070 = vmatprep.subr.bf16.mxu0 0
      %3071 = vmatpush2.bf16.xpose.msra.mxu0 0
      %3072 = vmatprep.subr.bf16.mxu0 0
      %3073 = vmatpush2.bf16.xpose.msra.mxu0 0
      %3074 = vmatprep.subr.bf16.mxu0 0
      %3075 = vmatpush2.bf16.xpose.msra.mxu0 0
      %3076 = vmatprep.subr.bf16.mxu0 0
      %3077 = vmatpush2.bf16.xpose.msra.mxu0 0
      %3078 = vmatprep.subr.bf16.mxu0 0
      %3079 = vmatpush2.bf16.xpose.msra.mxu0 0
      %3080 = vmatprep.mubr.bf16.mxu0 0
      %3081 = vmatmul.mubr.bf16.gmra.mxu0 %v2485
      %v3082 = vpop.f32.mrf.mxu0
      %v3083 = vadd.f32 0.0, %v3082
      %v3084 = vpop.f32.mrf.mxu0
      %v3085 = vpop.f32.mrf.mxu0
      %v3086 = vadd.f32 0.0, %v3085
      %v3087 = vpop.f32.mrf.mxu0
      %3088 = vmatprep.mubr.bf16.mxu0 0
      %3089 = vmatmul.mubr.bf16.gmra.mxu0 %v2488
      %v3090 = vpop.f32.mrf.mxu0
      %v3091 = vadd.f32 0.0, %v3090
      %v3092 = vpop.f32.mrf.mxu0
      %v3093 = vpop.f32.mrf.mxu0
      %v3094 = vadd.f32 0.0, %v3093
      %v3095 = vpop.f32.mrf.mxu0
      %3096 = vmatprep.mubr.bf16.mxu0 0
      %3097 = vmatmul.mubr.bf16.gmra.mxu0 %v2491
      %v3098 = vpop.f32.mrf.mxu0
      %v3099 = vadd.f32 0.0, %v3098
      %v3100 = vpop.f32.mrf.mxu0
      %v3101 = vpop.f32.mrf.mxu0
      %v3102 = vadd.f32 0.0, %v3101
      %v3103 = vpop.f32.mrf.mxu0
      %3104 = vmatprep.mubr.bf16.mxu0 0
      %3105 = vmatmul.mubr.bf16.gmra.mxu0 %v2494
      %v3106 = vpop.f32.mrf.mxu0
      %v3107 = vadd.f32 0.0, %v3106
      %v3108 = vpop.f32.mrf.mxu0
      %v3109 = vpop.f32.mrf.mxu0
      %v3110 = vadd.f32 0.0, %v3109
      %v3111 = vpop.f32.mrf.mxu0
      %3112 = vdwg.mxu0
      %v3113 = vsel %vm285, %v3083, -inf
      %3114 = vmax.xlane.f32.xlu0 %v3113
      %v3115 = vpop.xlane.xlu0 %3114
      %v3116 = vsel %vm285, %v3086, -inf
      %3117 = vmax.xlane.f32.xlu0 %v3116
      %v3118 = vpop.xlane.xlu0 %3117
      %v3119 = vsel %vm285, %v3091, -inf
      %3120 = vmax.xlane.f32.xlu0 %v3119
      %v3121 = vpop.xlane.xlu0 %3120
      %v3122 = vsel %vm285, %v3094, -inf
      %3123 = vmax.xlane.f32.xlu0 %v3122
      %v3124 = vpop.xlane.xlu0 %3123
      %v3125 = vsel %vm285, %v3099, -inf
      %3126 = vmax.xlane.f32.xlu0 %v3125
      %v3127 = vpop.xlane.xlu0 %3126
      %v3128 = vsel %vm285, %v3102, -inf
      %3129 = vmax.xlane.f32.xlu0 %v3128
      %v3130 = vpop.xlane.xlu0 %3129
      %v3131 = vsel %vm285, %v3107, -inf
      %3132 = vmax.xlane.f32.xlu0 %v3131
      %v3133 = vpop.xlane.xlu0 %3132
      %v3134 = vsel %vm285, %v3110, -inf
      %3135 = vmax.xlane.f32.xlu0 %v3134
      %v3136 = vpop.xlane.xlu0 %3135
      %v3137 = vsub.f32 %v3083, %v3115
      %v3138 = vsub.f32 %v3086, %v3118
      %v3139 = vsub.f32 %v3091, %v3121
      %v3140 = vsub.f32 %v3094, %v3124
      %v3141 = vsub.f32 %v3099, %v3127
      %v3142 = vsub.f32 %v3102, %v3130
      %v3143 = vsub.f32 %v3107, %v3133
      %v3144 = vsub.f32 %v3110, %v3136
      %v3145 = vmul.f32 %v3137, 1.442695
      %v3146 = vpow.pop %v3145
      %v3147 = vmul.f32 %v3138, 1.442695
      %v3148 = vpow.pop %v3147
      %v3149 = vmul.f32 %v3139, 1.442695
      %v3150 = vpow.pop %v3149
      %v3151 = vmul.f32 %v3140, 1.442695
      %v3152 = vpow.pop %v3151
      %v3153 = vmul.f32 %v3141, 1.442695
      %v3154 = vpow.pop %v3153
      %v3155 = vmul.f32 %v3142, 1.442695
      %v3156 = vpow.pop %v3155
      %v3157 = vmul.f32 %v3143, 1.442695
      %v3158 = vpow.pop %v3157
      %v3159 = vmul.f32 %v3144, 1.442695
      %v3160 = vpow.pop %v3159
      %v3161 = vsel %vm285, %v3146, 0.0
      %3162 = vadd.xlane.f32.xlu0 %v3161
      %v3163 = vpop.xlane.xlu0 %3162
      %v3164 = vsel %vm285, %v3148, 0.0
      %3165 = vadd.xlane.f32.xlu0 %v3164
      %v3166 = vpop.xlane.xlu0 %3165
      %v3167 = vsel %vm285, %v3150, 0.0
      %3168 = vadd.xlane.f32.xlu0 %v3167
      %v3169 = vpop.xlane.xlu0 %3168
      %v3170 = vsel %vm285, %v3152, 0.0
      %3171 = vadd.xlane.f32.xlu0 %v3170
      %v3172 = vpop.xlane.xlu0 %3171
      %v3173 = vsel %vm285, %v3154, 0.0
      %3174 = vadd.xlane.f32.xlu0 %v3173
      %v3175 = vpop.xlane.xlu0 %3174
      %v3176 = vsel %vm285, %v3156, 0.0
      %3177 = vadd.xlane.f32.xlu0 %v3176
      %v3178 = vpop.xlane.xlu0 %3177
      %v3179 = vsel %vm285, %v3158, 0.0
      %3180 = vadd.xlane.f32.xlu0 %v3179
      %v3181 = vpop.xlane.xlu0 %3180
      %v3182 = vsel %vm285, %v3160, 0.0
      %3183 = vadd.xlane.f32.xlu0 %v3182
      %v3184 = vpop.xlane.xlu0 %3183
      %v3185 = vrcp.pop %v3163
      %v3186 = vrcp.pop %v3166
      %v3187 = vrcp.pop %v3169
      %v3188 = vrcp.pop %v3172
      %v3189 = vrcp.pop %v3175
      %v3190 = vrcp.pop %v3178
      %v3191 = vrcp.pop %v3181
      %v3192 = vrcp.pop %v3184
      %v3193 = vmul.f32 %v3146, %v3185
      %v3194 = vmul.f32 %v3148, %v3186
      %v3195 = vmul.f32 %v3150, %v3187
      %v3196 = vmul.f32 %v3152, %v3188
      %v3197 = vmul.f32 %v3154, %v3189
      %v3198 = vmul.f32 %v3156, %v3190
      %v3199 = vmul.f32 %v3158, %v3191
      %v3200 = vmul.f32 %v3160, %v3192
      %v3201 = vpack.c.bf16 %v3194, %v3193
      %v3202 = vpack.c.bf16 %v3196, %v3195
      %v3203 = vpack.c.bf16 %v3198, %v3197
      %v3204 = vpack.c.bf16 %v3200, %v3199
      %v3205 = vmul.f32 %v1110, %v1898
      %v3206 = vmul.f32 %v1113, %v1898
      %v3207 = vmul.f32 %v1118, %v1898
      %v3208 = vmul.f32 %v1121, %v1898
      %v3209 = vmul.f32 %v1126, %v1898
      %v3210 = vmul.f32 %v1129, %v1898
      %v3211 = vmul.f32 %v1134, %v1898
      %v3212 = vmul.f32 %v1137, %v1898
      %v3213 = vpack.c.bf16 %v3206, %v3205
      %v3214 = vpack.c.bf16 %v3208, %v3207
      %v3215 = vpack.c.bf16 %v3210, %v3209
      %v3216 = vpack.c.bf16 %v3212, %v3211
      %v3218 = vsel %vm285, %v3201, 0
      %v3221 = vsel %vm285, %v3202, 0
      %v3224 = vsel %vm285, %v3203, 0
      %v3227 = vsel %vm285, %v3204, 0
      %3229 = vmatprep.subr.bf16.mxu0 0
      %3230 = vmatpush1.bf16.msra.mxu0 0
      %3231 = vmatprep.subr.bf16.mxu0 0
      %3232 = vmatpush1.bf16.msra.mxu0 0
      %3233 = vmatprep.subr.bf16.mxu0 0
      %3234 = vmatpush1.bf16.msra.mxu0 0
      %3235 = vmatprep.subr.bf16.mxu0 0
      %3236 = vmatpush1.bf16.msra.mxu0 0
      %3237 = vmatprep.subr.bf16.mxu0 0
      %3238 = vmatpush1.bf16.msra.mxu0 %v3216
      %3239 = vmatprep.subr.bf16.mxu0 0
      %3240 = vmatpush1.bf16.msra.mxu0 %v3215
      %3241 = vmatprep.subr.bf16.mxu0 0
      %3242 = vmatpush1.bf16.msra.mxu0 %v3214
      %3243 = vmatprep.subr.bf16.mxu0 0
      %3244 = vmatpush1.bf16.msra.mxu0 %v3213
      %3245 = vmatprep.subr.bf16.mxu0 0
      %3246 = vmatpush2.bf16.msra.mxu0 0
      %3247 = vmatprep.subr.bf16.mxu0 0
      %3248 = vmatpush2.bf16.msra.mxu0 0
      %3249 = vmatprep.subr.bf16.mxu0 0
      %3250 = vmatpush2.bf16.msra.mxu0 0
      %3251 = vmatprep.subr.bf16.mxu0 0
      %3252 = vmatpush2.bf16.msra.mxu0 0
      %3253 = vmatprep.subr.bf16.mxu0 0
      %3254 = vmatpush2.bf16.msra.mxu0 0
      %3255 = vmatprep.subr.bf16.mxu0 0
      %3256 = vmatpush2.bf16.msra.mxu0 0
      %3257 = vmatprep.subr.bf16.mxu0 0
      %3258 = vmatpush2.bf16.msra.mxu0 0
      %3259 = vmatprep.subr.bf16.mxu0 0
      %3260 = vmatpush2.bf16.msra.mxu0 0
      %3261 = vmatprep.mubr.bf16.mxu0 0
      %3262 = vmatmul.mubr.bf16.gmra.mxu0 %v3218
      %v3263 = vpop.f32.mrf.mxu0
      %v3264 = vadd.f32 0.0, %v3263
      %v3265 = vpop.f32.mrf.mxu0
      %v3266 = vpop.f32.mrf.mxu0
      %v3267 = vadd.f32 0.0, %v3266
      %v3268 = vpop.f32.mrf.mxu0
      %3269 = vmatprep.mubr.bf16.mxu0 0
      %3270 = vmatmul.mubr.bf16.gmra.mxu0 %v3221
      %v3271 = vpop.f32.mrf.mxu0
      %v3272 = vadd.f32 0.0, %v3271
      %v3273 = vpop.f32.mrf.mxu0
      %v3274 = vpop.f32.mrf.mxu0
      %v3275 = vadd.f32 0.0, %v3274
      %v3276 = vpop.f32.mrf.mxu0
      %3277 = vmatprep.mubr.bf16.mxu0 0
      %3278 = vmatmul.mubr.bf16.gmra.mxu0 %v3224
      %v3279 = vpop.f32.mrf.mxu0
      %v3280 = vadd.f32 0.0, %v3279
      %v3281 = vpop.f32.mrf.mxu0
      %v3282 = vpop.f32.mrf.mxu0
      %v3283 = vadd.f32 0.0, %v3282
      %v3284 = vpop.f32.mrf.mxu0
      %3285 = vmatprep.mubr.bf16.mxu0 0
      %3286 = vmatmul.mubr.bf16.gmra.mxu0 %v3227
      %v3287 = vpop.f32.mrf.mxu0
      %v3288 = vadd.f32 0.0, %v3287
      %v3289 = vpop.f32.mrf.mxu0
      %v3290 = vpop.f32.mrf.mxu0
      %v3291 = vadd.f32 0.0, %v3290
      %v3292 = vpop.f32.mrf.mxu0
      %3293 = vdwg.mxu0
      %v3294 = vadd.f32 %v2994, %v3264
      %v3295 = vadd.f32 %v2997, %v3267
      %v3296 = vadd.f32 %v3002, %v3272
      %v3297 = vadd.f32 %v3005, %v3275
      %v3298 = vadd.f32 %v3010, %v3280
      %v3299 = vadd.f32 %v3013, %v3283
      %v3300 = vadd.f32 %v3018, %v3288
      %v3301 = vadd.f32 %v3021, %v3291
      %v3302 = vmul.f32 %v1028, %v2181
      %v3303 = vmul.f32 %v1031, %v2181
      %v3304 = vmul.f32 %v1036, %v2181
      %v3305 = vmul.f32 %v1039, %v2181
      %v3306 = vmul.f32 %v1044, %v2181
      %v3307 = vmul.f32 %v1047, %v2181
      %v3308 = vmul.f32 %v1052, %v2181
      %v3309 = vmul.f32 %v1055, %v2181
      %v3310 = vpack.c.bf16 %v3303, %v3302
      %v3311 = vpack.c.bf16 %v3305, %v3304
      %v3312 = vpack.c.bf16 %v3307, %v3306
      %v3313 = vpack.c.bf16 %v3309, %v3308
      %v3315 = vsel %vm573, %v3310, 0
      %v3318 = vsel %vm573, %v3311, 0
      %v3321 = vsel %vm573, %v3312, 0
      %v3324 = vsel %vm573, %v3313, 0
      %3326 = vmatprep.subr.bf16.mxu0 0
      %3327 = vmatpush1.bf16.xpose.msra.mxu0 0
      %3328 = vmatprep.subr.bf16.mxu0 0
      %3329 = vmatpush1.bf16.xpose.msra.mxu0 0
      %3330 = vmatprep.subr.bf16.mxu0 0
      %3331 = vmatpush1.bf16.xpose.msra.mxu0 0
      %3332 = vmatprep.subr.bf16.mxu0 0
      %3333 = vmatpush1.bf16.xpose.msra.mxu0 0
      %3334 = vmatprep.subr.bf16.mxu0 0
      %3335 = vmatpush1.bf16.xpose.msra.mxu0 %v3324
      %3336 = vmatprep.subr.bf16.mxu0 0
      %3337 = vmatpush1.bf16.xpose.msra.mxu0 %v3321
      %3338 = vmatprep.subr.bf16.mxu0 0
      %3339 = vmatpush1.bf16.xpose.msra.mxu0 %v3318
      %3340 = vmatprep.subr.bf16.mxu0 0
      %3341 = vmatpush1.bf16.xpose.msra.mxu0 %v3315
      %3342 = vmatprep.subr.bf16.mxu0 0
      %3343 = vmatpush2.bf16.xpose.msra.mxu0 0
      %3344 = vmatprep.subr.bf16.mxu0 0
      %3345 = vmatpush2.bf16.xpose.msra.mxu0 0
      %3346 = vmatprep.subr.bf16.mxu0 0
      %3347 = vmatpush2.bf16.xpose.msra.mxu0 0
      %3348 = vmatprep.subr.bf16.mxu0 0
      %3349 = vmatpush2.bf16.xpose.msra.mxu0 0
      %3350 = vmatprep.subr.bf16.mxu0 0
      %3351 = vmatpush2.bf16.xpose.msra.mxu0 0
      %3352 = vmatprep.subr.bf16.mxu0 0
      %3353 = vmatpush2.bf16.xpose.msra.mxu0 0
      %3354 = vmatprep.subr.bf16.mxu0 0
      %3355 = vmatpush2.bf16.xpose.msra.mxu0 0
      %3356 = vmatprep.subr.bf16.mxu0 0
      %3357 = vmatpush2.bf16.xpose.msra.mxu0 0
      %3358 = vmatprep.mubr.bf16.mxu0 0
      %3359 = vmatmul.mubr.bf16.gmra.mxu0 %v2485
      %v3360 = vpop.f32.mrf.mxu0
      %v3361 = vadd.f32 0.0, %v3360
      %v3362 = vpop.f32.mrf.mxu0
      %v3363 = vpop.f32.mrf.mxu0
      %v3364 = vadd.f32 0.0, %v3363
      %v3365 = vpop.f32.mrf.mxu0
      %3366 = vmatprep.mubr.bf16.mxu0 0
      %3367 = vmatmul.mubr.bf16.gmra.mxu0 %v2488
      %v3368 = vpop.f32.mrf.mxu0
      %v3369 = vadd.f32 0.0, %v3368
      %v3370 = vpop.f32.mrf.mxu0
      %v3371 = vpop.f32.mrf.mxu0
      %v3372 = vadd.f32 0.0, %v3371
      %v3373 = vpop.f32.mrf.mxu0
      %3374 = vmatprep.mubr.bf16.mxu0 0
      %3375 = vmatmul.mubr.bf16.gmra.mxu0 %v2491
      %v3376 = vpop.f32.mrf.mxu0
      %v3377 = vadd.f32 0.0, %v3376
      %v3378 = vpop.f32.mrf.mxu0
      %v3379 = vpop.f32.mrf.mxu0
      %v3380 = vadd.f32 0.0, %v3379
      %v3381 = vpop.f32.mrf.mxu0
      %3382 = vmatprep.mubr.bf16.mxu0 0
      %3383 = vmatmul.mubr.bf16.gmra.mxu0 %v2494
      %v3384 = vpop.f32.mrf.mxu0
      %v3385 = vadd.f32 0.0, %v3384
      %v3386 = vpop.f32.mrf.mxu0
      %v3387 = vpop.f32.mrf.mxu0
      %v3388 = vadd.f32 0.0, %v3387
      %v3389 = vpop.f32.mrf.mxu0
      %3390 = vdwg.mxu0
      %v3391 = vsel %vm285, %v3361, -inf
      %3392 = vmax.xlane.f32.xlu0 %v3391
      %v3393 = vpop.xlane.xlu0 %3392
      %v3394 = vsel %vm285, %v3364, -inf
      %3395 = vmax.xlane.f32.xlu0 %v3394
      %v3396 = vpop.xlane.xlu0 %3395
      %v3397 = vsel %vm285, %v3369, -inf
      %3398 = vmax.xlane.f32.xlu0 %v3397
      %v3399 = vpop.xlane.xlu0 %3398
      %v3400 = vsel %vm285, %v3372, -inf
      %3401 = vmax.xlane.f32.xlu0 %v3400
      %v3402 = vpop.xlane.xlu0 %3401
      %v3403 = vsel %vm285, %v3377, -inf
      %3404 = vmax.xlane.f32.xlu0 %v3403
      %v3405 = vpop.xlane.xlu0 %3404
      %v3406 = vsel %vm285, %v3380, -inf
      %3407 = vmax.xlane.f32.xlu0 %v3406
      %v3408 = vpop.xlane.xlu0 %3407
      %v3409 = vsel %vm285, %v3385, -inf
      %3410 = vmax.xlane.f32.xlu0 %v3409
      %v3411 = vpop.xlane.xlu0 %3410
      %v3412 = vsel %vm285, %v3388, -inf
      %3413 = vmax.xlane.f32.xlu0 %v3412
      %v3414 = vpop.xlane.xlu0 %3413
      %v3415 = vsub.f32 %v3361, %v3393
      %v3416 = vsub.f32 %v3364, %v3396
      %v3417 = vsub.f32 %v3369, %v3399
      %v3418 = vsub.f32 %v3372, %v3402
      %v3419 = vsub.f32 %v3377, %v3405
      %v3420 = vsub.f32 %v3380, %v3408
      %v3421 = vsub.f32 %v3385, %v3411
      %v3422 = vsub.f32 %v3388, %v3414
      %v3423 = vmul.f32 %v3415, 1.442695
      %v3424 = vpow.pop %v3423
      %v3425 = vmul.f32 %v3416, 1.442695
      %v3426 = vpow.pop %v3425
      %v3427 = vmul.f32 %v3417, 1.442695
      %v3428 = vpow.pop %v3427
      %v3429 = vmul.f32 %v3418, 1.442695
      %v3430 = vpow.pop %v3429
      %v3431 = vmul.f32 %v3419, 1.442695
      %v3432 = vpow.pop %v3431
      %v3433 = vmul.f32 %v3420, 1.442695
      %v3434 = vpow.pop %v3433
      %v3435 = vmul.f32 %v3421, 1.442695
      %v3436 = vpow.pop %v3435
      %v3437 = vmul.f32 %v3422, 1.442695
      %v3438 = vpow.pop %v3437
      %v3439 = vsel %vm285, %v3424, 0.0
      %3440 = vadd.xlane.f32.xlu0 %v3439
      %v3441 = vpop.xlane.xlu0 %3440
      %v3442 = vsel %vm285, %v3426, 0.0
      %3443 = vadd.xlane.f32.xlu0 %v3442
      %v3444 = vpop.xlane.xlu0 %3443
      %v3445 = vsel %vm285, %v3428, 0.0
      %3446 = vadd.xlane.f32.xlu0 %v3445
      %v3447 = vpop.xlane.xlu0 %3446
      %v3448 = vsel %vm285, %v3430, 0.0
      %3449 = vadd.xlane.f32.xlu0 %v3448
      %v3450 = vpop.xlane.xlu0 %3449
      %v3451 = vsel %vm285, %v3432, 0.0
      %3452 = vadd.xlane.f32.xlu0 %v3451
      %v3453 = vpop.xlane.xlu0 %3452
      %v3454 = vsel %vm285, %v3434, 0.0
      %3455 = vadd.xlane.f32.xlu0 %v3454
      %v3456 = vpop.xlane.xlu0 %3455
      %v3457 = vsel %vm285, %v3436, 0.0
      %3458 = vadd.xlane.f32.xlu0 %v3457
      %v3459 = vpop.xlane.xlu0 %3458
      %v3460 = vsel %vm285, %v3438, 0.0
      %3461 = vadd.xlane.f32.xlu0 %v3460
      %v3462 = vpop.xlane.xlu0 %3461
      %v3463 = vrcp.pop %v3441
      %v3464 = vrcp.pop %v3444
      %v3465 = vrcp.pop %v3447
      %v3466 = vrcp.pop %v3450
      %v3467 = vrcp.pop %v3453
      %v3468 = vrcp.pop %v3456
      %v3469 = vrcp.pop %v3459
      %v3470 = vrcp.pop %v3462
      %v3471 = vmul.f32 %v3424, %v3463
      %v3472 = vmul.f32 %v3426, %v3464
      %v3473 = vmul.f32 %v3428, %v3465
      %v3474 = vmul.f32 %v3430, %v3466
      %v3475 = vmul.f32 %v3432, %v3467
      %v3476 = vmul.f32 %v3434, %v3468
      %v3477 = vmul.f32 %v3436, %v3469
      %v3478 = vmul.f32 %v3438, %v3470
      %v3479 = vpack.c.bf16 %v3472, %v3471
      %v3480 = vpack.c.bf16 %v3474, %v3473
      %v3481 = vpack.c.bf16 %v3476, %v3475
      %v3482 = vpack.c.bf16 %v3478, %v3477
      %v3483 = vmul.f32 %v1110, %v2181
      %v3484 = vmul.f32 %v1113, %v2181
      %v3485 = vmul.f32 %v1118, %v2181
      %v3486 = vmul.f32 %v1121, %v2181
      %v3487 = vmul.f32 %v1126, %v2181
      %v3488 = vmul.f32 %v1129, %v2181
      %v3489 = vmul.f32 %v1134, %v2181
      %v3490 = vmul.f32 %v1137, %v2181
      %v3491 = vpack.c.bf16 %v3484, %v3483
      %v3492 = vpack.c.bf16 %v3486, %v3485
      %v3493 = vpack.c.bf16 %v3488, %v3487
      %v3494 = vpack.c.bf16 %v3490, %v3489
      %v3496 = vsel %vm285, %v3479, 0
      %v3499 = vsel %vm285, %v3480, 0
      %v3502 = vsel %vm285, %v3481, 0
      %v3505 = vsel %vm285, %v3482, 0
      %3507 = vmatprep.subr.bf16.mxu0 0
      %3508 = vmatpush1.bf16.msra.mxu0 0
      %3509 = vmatprep.subr.bf16.mxu0 0
      %3510 = vmatpush1.bf16.msra.mxu0 0
      %3511 = vmatprep.subr.bf16.mxu0 0
      %3512 = vmatpush1.bf16.msra.mxu0 0
      %3513 = vmatprep.subr.bf16.mxu0 0
      %3514 = vmatpush1.bf16.msra.mxu0 0
      %3515 = vmatprep.subr.bf16.mxu0 0
      %3516 = vmatpush1.bf16.msra.mxu0 %v3494
      %3517 = vmatprep.subr.bf16.mxu0 0
      %3518 = vmatpush1.bf16.msra.mxu0 %v3493
      %3519 = vmatprep.subr.bf16.mxu0 0
      %3520 = vmatpush1.bf16.msra.mxu0 %v3492
      %3521 = vmatprep.subr.bf16.mxu0 0
      %3522 = vmatpush1.bf16.msra.mxu0 %v3491
      %3523 = vmatprep.subr.bf16.mxu0 0
      %3524 = vmatpush2.bf16.msra.mxu0 0
      %3525 = vmatprep.subr.bf16.mxu0 0
      %3526 = vmatpush2.bf16.msra.mxu0 0
      %3527 = vmatprep.subr.bf16.mxu0 0
      %3528 = vmatpush2.bf16.msra.mxu0 0
      %3529 = vmatprep.subr.bf16.mxu0 0
      %3530 = vmatpush2.bf16.msra.mxu0 0
      %3531 = vmatprep.subr.bf16.mxu0 0
      %3532 = vmatpush2.bf16.msra.mxu0 0
      %3533 = vmatprep.subr.bf16.mxu0 0
      %3534 = vmatpush2.bf16.msra.mxu0 0
      %3535 = vmatprep.subr.bf16.mxu0 0
      %3536 = vmatpush2.bf16.msra.mxu0 0
      %3537 = vmatprep.subr.bf16.mxu0 0
      %3538 = vmatpush2.bf16.msra.mxu0 0
      %3539 = vmatprep.mubr.bf16.mxu0 0
      %3540 = vmatmul.mubr.bf16.gmra.mxu0 %v3496
      %v3541 = vpop.f32.mrf.mxu0
      %v3542 = vadd.f32 0.0, %v3541
      %v3543 = vpop.f32.mrf.mxu0
      %v3544 = vpop.f32.mrf.mxu0
      %v3545 = vadd.f32 0.0, %v3544
      %v3546 = vpop.f32.mrf.mxu0
      %3547 = vmatprep.mubr.bf16.mxu0 0
      %3548 = vmatmul.mubr.bf16.gmra.mxu0 %v3499
      %v3549 = vpop.f32.mrf.mxu0
      %v3550 = vadd.f32 0.0, %v3549
      %v3551 = vpop.f32.mrf.mxu0
      %v3552 = vpop.f32.mrf.mxu0
      %v3553 = vadd.f32 0.0, %v3552
      %v3554 = vpop.f32.mrf.mxu0
      %3555 = vmatprep.mubr.bf16.mxu0 0
      %3556 = vmatmul.mubr.bf16.gmra.mxu0 %v3502
      %v3557 = vpop.f32.mrf.mxu0
      %v3558 = vadd.f32 0.0, %v3557
      %v3559 = vpop.f32.mrf.mxu0
      %v3560 = vpop.f32.mrf.mxu0
      %v3561 = vadd.f32 0.0, %v3560
      %v3562 = vpop.f32.mrf.mxu0
      %3563 = vmatprep.mubr.bf16.mxu0 0
      %3564 = vmatmul.mubr.bf16.gmra.mxu0 %v3505
      %v3565 = vpop.f32.mrf.mxu0
      %v3566 = vadd.f32 0.0, %v3565
      %v3567 = vpop.f32.mrf.mxu0
      %v3568 = vpop.f32.mrf.mxu0
      %v3569 = vadd.f32 0.0, %v3568
      %v3570 = vpop.f32.mrf.mxu0
      %3571 = vdwg.mxu0
      %v3572 = vadd.f32 %v3294, %v3542
      %v3573 = vadd.f32 %v3295, %v3545
      %v3574 = vadd.f32 %v3296, %v3550
      %v3575 = vadd.f32 %v3297, %v3553
      %v3576 = vadd.f32 %v3298, %v3558
      %v3577 = vadd.f32 %v3299, %v3561
      %v3578 = vadd.f32 %v3300, %v3566
      %v3579 = vadd.f32 %v3301, %v3569
      %v3580 = vadd.f32 %v651, %v2452
      %v3581 = vadd.f32 %v652, %v2453
      %v3582 = vadd.f32 %v653, %v2454
      %v3583 = vadd.f32 %v654, %v2455
      %v3584 = vadd.f32 %v655, %v2456
      %v3585 = vadd.f32 %v656, %v2457
      %v3586 = vadd.f32 %v657, %v2458
      %v3587 = vadd.f32 %v658, %v2459
      %v3588 = vpack.c.bf16 %v3581, %v3580
      %v3589 = vpack.c.bf16 %v3583, %v3582
      %v3590 = vpack.c.bf16 %v3585, %v3584
      %v3591 = vpack.c.bf16 %v3587, %v3586
      %s3592 = scalar_lea.vmem %s2, 128
      %v3593 = vld [vmem:[%s3592] sm:$0xf]
      %v3594 = vld [vmem:[%s3592 + $0x4] sm:$0xf]
      %v3595 = vld [vmem:[%s3592 + $0x8] sm:$0xf]
      %v3596 = vld [vmem:[%s3592 + $0xc] sm:$0xf]
      %v3597 = vld [vmem:[%s3 + $0x4] sm:$0x1]
      %v3598 = vlaneseq
      %v3599 = vshrl.u32 %v3598, 7
      %v3600 = vsub.s32 0, %v3599
      %v3601 = vrot.slane %v3597, %v3600
      %v3606 = vunpack.c.l.b16 %v3593
      %v3607 = vunpack.c.l.b16 %v3594
      %v3608 = vunpack.c.l.b16 %v3595
      %v3609 = vunpack.c.l.b16 %v3596
      %v3610 = vpack.c.b16 %v3607, %v3606
      %v3611 = vpack.c.b16 %v3609, %v3608
      %v3615 = vsel %vm573, %v3588, 0
      %v3618 = vsel %vm573, %v3589, 0
      %v3621 = vsel %vm573, %v3590, 0
      %v3624 = vsel %vm573, %v3591, 0
      %3626 = vmatprep.subr.bf16.mxu0 0
      %3627 = vmatpush1.bf16.msra.mxu0 0
      %3628 = vmatprep.subr.bf16.mxu0 0
      %3629 = vmatpush1.bf16.msra.mxu0 0
      %3630 = vmatprep.subr.bf16.mxu0 0
      %3631 = vmatpush1.bf16.msra.mxu0 0
      %3632 = vmatprep.subr.bf16.mxu0 0
      %3633 = vmatpush1.bf16.msra.mxu0 0
      %3634 = vmatprep.subr.bf16.mxu0 0
      %3635 = vmatpush1.bf16.msra.mxu0 0
      %3636 = vmatprep.subr.bf16.mxu0 0
      %3637 = vmatpush1.bf16.msra.mxu0 0
      %3638 = vmatprep.subr.bf16.mxu0 0
      %3639 = vmatpush1.bf16.msra.mxu0 %v3611
      %3640 = vmatprep.subr.bf16.mxu0 0
      %3641 = vmatpush1.bf16.msra.mxu0 %v3610
      %3642 = vmatprep.subr.bf16.mxu0 0
      %3643 = vmatpush2.bf16.msra.mxu0 0
      %3644 = vmatprep.subr.bf16.mxu0 0
      %3645 = vmatpush2.bf16.msra.mxu0 0
      %3646 = vmatprep.subr.bf16.mxu0 0
      %3647 = vmatpush2.bf16.msra.mxu0 0
      %3648 = vmatprep.subr.bf16.mxu0 0
      %3649 = vmatpush2.bf16.msra.mxu0 0
      %3650 = vmatprep.subr.bf16.mxu0 0
      %3651 = vmatpush2.bf16.msra.mxu0 0
      %3652 = vmatprep.subr.bf16.mxu0 0
      %3653 = vmatpush2.bf16.msra.mxu0 0
      %3654 = vmatprep.subr.bf16.mxu0 0
      %3655 = vmatpush2.bf16.msra.mxu0 0
      %3656 = vmatprep.subr.bf16.mxu0 0
      %3657 = vmatpush2.bf16.msra.mxu0 0
      %3658 = vmatprep.mubr.bf16.mxu0 0
      %3659 = vmatmul.mubr.bf16.gmra.mxu0 %v3615
      %v3660 = vpop.f32.mrf.mxu0
      %v3661 = vadd.f32 %v3601, %v3660
      %v3662 = vpop.f32.mrf.mxu0
      %v3663 = vpop.f32.mrf.mxu0
      %v3664 = vadd.f32 %v3601, %v3663
      %v3665 = vpop.f32.mrf.mxu0
      %3666 = vmatprep.mubr.bf16.mxu0 0
      %3667 = vmatmul.mubr.bf16.gmra.mxu0 %v3618
      %v3668 = vpop.f32.mrf.mxu0
      %v3669 = vadd.f32 %v3601, %v3668
      %v3670 = vpop.f32.mrf.mxu0
      %v3671 = vpop.f32.mrf.mxu0
      %v3672 = vadd.f32 %v3601, %v3671
      %v3673 = vpop.f32.mrf.mxu0
      %3674 = vmatprep.mubr.bf16.mxu0 0
      %3675 = vmatmul.mubr.bf16.gmra.mxu0 %v3621
      %v3676 = vpop.f32.mrf.mxu0
      %v3677 = vadd.f32 %v3601, %v3676
      %v3678 = vpop.f32.mrf.mxu0
      %v3679 = vpop.f32.mrf.mxu0
      %v3680 = vadd.f32 %v3601, %v3679
      %v3681 = vpop.f32.mrf.mxu0
      %3682 = vmatprep.mubr.bf16.mxu0 0
      %3683 = vmatmul.mubr.bf16.gmra.mxu0 %v3624
      %v3684 = vpop.f32.mrf.mxu0
      %v3685 = vadd.f32 %v3601, %v3684
      %v3686 = vpop.f32.mrf.mxu0
      %v3687 = vpop.f32.mrf.mxu0
      %v3688 = vadd.f32 %v3601, %v3687
      %v3689 = vpop.f32.mrf.mxu0
      %3690 = vdwg.mxu0
      %v3691 = vadd.f32 %v857, %v3572
      %v3692 = vadd.f32 %v858, %v3573
      %v3693 = vadd.f32 %v859, %v3574
      %v3694 = vadd.f32 %v860, %v3575
      %v3695 = vadd.f32 %v861, %v3576
      %v3696 = vadd.f32 %v862, %v3577
      %v3697 = vadd.f32 %v863, %v3578
      %v3698 = vadd.f32 %v864, %v3579
      %v3699 = vpack.c.bf16 %v3692, %v3691
      %v3700 = vpack.c.bf16 %v3694, %v3693
      %v3701 = vpack.c.bf16 %v3696, %v3695
      %v3702 = vpack.c.bf16 %v3698, %v3697
      %s3703 = scalar_lea.vmem %s2, 144
      %v3704 = vld [vmem:[%s3703] sm:$0xf]
      %v3705 = vld [vmem:[%s3703 + $0x4] sm:$0xf]
      %v3706 = vld [vmem:[%s3703 + $0x8] sm:$0xf]
      %v3707 = vld [vmem:[%s3703 + $0xc] sm:$0xf]
      %v3708 = vld [vmem:[%s3 + $0x5] sm:$0x1]
      %v3709 = vlaneseq
      %v3710 = vshrl.u32 %v3709, 7
      %v3711 = vsub.s32 0, %v3710
      %v3712 = vrot.slane %v3708, %v3711
      %v3717 = vunpack.c.l.b16 %v3704
      %v3718 = vunpack.c.l.b16 %v3705
      %v3719 = vunpack.c.l.b16 %v3706
      %v3720 = vunpack.c.l.b16 %v3707
      %v3721 = vpack.c.b16 %v3718, %v3717
      %v3722 = vpack.c.b16 %v3720, %v3719
      %v3726 = vsel %vm573, %v3699, 0
      %v3729 = vsel %vm573, %v3700, 0
      %v3732 = vsel %vm573, %v3701, 0
      %v3735 = vsel %vm573, %v3702, 0
      %3737 = vmatprep.subr.bf16.mxu0 0
      %3738 = vmatpush1.bf16.msra.mxu0 0
      %3739 = vmatprep.subr.bf16.mxu0 0
      %3740 = vmatpush1.bf16.msra.mxu0 0
      %3741 = vmatprep.subr.bf16.mxu0 0
      %3742 = vmatpush1.bf16.msra.mxu0 0
      %3743 = vmatprep.subr.bf16.mxu0 0
      %3744 = vmatpush1.bf16.msra.mxu0 0
      %3745 = vmatprep.subr.bf16.mxu0 0
      %3746 = vmatpush1.bf16.msra.mxu0 0
      %3747 = vmatprep.subr.bf16.mxu0 0
      %3748 = vmatpush1.bf16.msra.mxu0 0
      %3749 = vmatprep.subr.bf16.mxu0 0
      %3750 = vmatpush1.bf16.msra.mxu0 %v3722
      %3751 = vmatprep.subr.bf16.mxu0 0
      %3752 = vmatpush1.bf16.msra.mxu0 %v3721
      %3753 = vmatprep.subr.bf16.mxu0 0
      %3754 = vmatpush2.bf16.msra.mxu0 0
      %3755 = vmatprep.subr.bf16.mxu0 0
      %3756 = vmatpush2.bf16.msra.mxu0 0
      %3757 = vmatprep.subr.bf16.mxu0 0
      %3758 = vmatpush2.bf16.msra.mxu0 0
      %3759 = vmatprep.subr.bf16.mxu0 0
      %3760 = vmatpush2.bf16.msra.mxu0 0
      %3761 = vmatprep.subr.bf16.mxu0 0
      %3762 = vmatpush2.bf16.msra.mxu0 0
      %3763 = vmatprep.subr.bf16.mxu0 0
      %3764 = vmatpush2.bf16.msra.mxu0 0
      %3765 = vmatprep.subr.bf16.mxu0 0
      %3766 = vmatpush2.bf16.msra.mxu0 0
      %3767 = vmatprep.subr.bf16.mxu0 0
      %3768 = vmatpush2.bf16.msra.mxu0 0
      %3769 = vmatprep.mubr.bf16.mxu0 0
      %3770 = vmatmul.mubr.bf16.gmra.mxu0 %v3726
      %v3771 = vpop.f32.mrf.mxu0
      %v3772 = vadd.f32 %v3712, %v3771
      %v3773 = vpop.f32.mrf.mxu0
      %v3774 = vpop.f32.mrf.mxu0
      %v3775 = vadd.f32 %v3712, %v3774
      %v3776 = vpop.f32.mrf.mxu0
      %3777 = vmatprep.mubr.bf16.mxu0 0
      %3778 = vmatmul.mubr.bf16.gmra.mxu0 %v3729
      %v3779 = vpop.f32.mrf.mxu0
      %v3780 = vadd.f32 %v3712, %v3779
      %v3781 = vpop.f32.mrf.mxu0
      %v3782 = vpop.f32.mrf.mxu0
      %v3783 = vadd.f32 %v3712, %v3782
      %v3784 = vpop.f32.mrf.mxu0
      %3785 = vmatprep.mubr.bf16.mxu0 0
      %3786 = vmatmul.mubr.bf16.gmra.mxu0 %v3732
      %v3787 = vpop.f32.mrf.mxu0
      %v3788 = vadd.f32 %v3712, %v3787
      %v3789 = vpop.f32.mrf.mxu0
      %v3790 = vpop.f32.mrf.mxu0
      %v3791 = vadd.f32 %v3712, %v3790
      %v3792 = vpop.f32.mrf.mxu0
      %3793 = vmatprep.mubr.bf16.mxu0 0
      %3794 = vmatmul.mubr.bf16.gmra.mxu0 %v3735
      %v3795 = vpop.f32.mrf.mxu0
      %v3796 = vadd.f32 %v3712, %v3795
      %v3797 = vpop.f32.mrf.mxu0
      %v3798 = vpop.f32.mrf.mxu0
      %v3799 = vadd.f32 %v3712, %v3798
      %v3800 = vpop.f32.mrf.mxu0
      %3801 = vdwg.mxu0
      %v3802 = vld [vmem:[%s3 + $0x6] sm:$0x1]
      %v3803 = vld [vmem:[%s3 + $0x7] sm:$0x1]
      %v3804 = vadd.f32 %v389, %v3661
      %v3805 = vadd.f32 %v394, %v3664
      %v3806 = vadd.f32 %v399, %v3669
      %v3807 = vadd.f32 %v404, %v3672
      %v3808 = vadd.f32 %v409, %v3677
      %v3809 = vadd.f32 %v414, %v3680
      %v3810 = vadd.f32 %v419, %v3685
      %v3811 = vadd.f32 %v424, %v3688
      %v3812 = vsel %vm573, %v3804, 0.0
      %3813 = vadd.xlane.f32.xlu0 %v3812
      %v3814 = vpop.xlane.xlu0 %3813
      %v3815 = vsel %vm573, %v3805, 0.0
      %3816 = vadd.xlane.f32.xlu0 %v3815
      %v3817 = vpop.xlane.xlu0 %3816
      %v3818 = vsel %vm573, %v3806, 0.0
      %3819 = vadd.xlane.f32.xlu0 %v3818
      %v3820 = vpop.xlane.xlu0 %3819
      %v3821 = vsel %vm573, %v3807, 0.0
      %3822 = vadd.xlane.f32.xlu0 %v3821
      %v3823 = vpop.xlane.xlu0 %3822
      %v3824 = vsel %vm573, %v3808, 0.0
      %3825 = vadd.xlane.f32.xlu0 %v3824
      %v3826 = vpop.xlane.xlu0 %3825
      %v3827 = vsel %vm573, %v3809, 0.0
      %3828 = vadd.xlane.f32.xlu0 %v3827
      %v3829 = vpop.xlane.xlu0 %3828
      %v3830 = vsel %vm573, %v3810, 0.0
      %3831 = vadd.xlane.f32.xlu0 %v3830
      %v3832 = vpop.xlane.xlu0 %3831
      %v3833 = vsel %vm573, %v3811, 0.0
      %3834 = vadd.xlane.f32.xlu0 %v3833
      %v3835 = vpop.xlane.xlu0 %3834
      %v3836 = vrcp.pop 32.0
      %v3837 = vmul.f32 %v3814, %v3836
      %v3838 = vmul.f32 %v3817, %v3836
      %v3839 = vmul.f32 %v3820, %v3836
      %v3840 = vmul.f32 %v3823, %v3836
      %v3841 = vmul.f32 %v3826, %v3836
      %v3842 = vmul.f32 %v3829, %v3836
      %v3843 = vmul.f32 %v3832, %v3836
      %v3844 = vmul.f32 %v3835, %v3836
      %v3845 = vsub.f32 %v3804, %v3837
      %v3846 = vsub.f32 %v3805, %v3838
      %v3847 = vsub.f32 %v3806, %v3839
      %v3848 = vsub.f32 %v3807, %v3840
      %v3849 = vsub.f32 %v3808, %v3841
      %v3850 = vsub.f32 %v3809, %v3842
      %v3851 = vsub.f32 %v3810, %v3843
      %v3852 = vsub.f32 %v3811, %v3844
      %v3853 = vmul.f32 %v3845, %v3845
      %v3854 = vmul.f32 %v3846, %v3846
      %v3855 = vmul.f32 %v3847, %v3847
      %v3856 = vmul.f32 %v3848, %v3848
      %v3857 = vmul.f32 %v3849, %v3849
      %v3858 = vmul.f32 %v3850, %v3850
      %v3859 = vmul.f32 %v3851, %v3851
      %v3860 = vmul.f32 %v3852, %v3852
      %v3861 = vsel %vm573, %v3853, 0.0
      %3862 = vadd.xlane.f32.xlu0 %v3861
      %v3863 = vpop.xlane.xlu0 %3862
      %v3864 = vsel %vm573, %v3854, 0.0
      %3865 = vadd.xlane.f32.xlu0 %v3864
      %v3866 = vpop.xlane.xlu0 %3865
      %v3867 = vsel %vm573, %v3855, 0.0
      %3868 = vadd.xlane.f32.xlu0 %v3867
      %v3869 = vpop.xlane.xlu0 %3868
      %v3870 = vsel %vm573, %v3856, 0.0
      %3871 = vadd.xlane.f32.xlu0 %v3870
      %v3872 = vpop.xlane.xlu0 %3871
      %v3873 = vsel %vm573, %v3857, 0.0
      %3874 = vadd.xlane.f32.xlu0 %v3873
      %v3875 = vpop.xlane.xlu0 %3874
      %v3876 = vsel %vm573, %v3858, 0.0
      %3877 = vadd.xlane.f32.xlu0 %v3876
      %v3878 = vpop.xlane.xlu0 %3877
      %v3879 = vsel %vm573, %v3859, 0.0
      %3880 = vadd.xlane.f32.xlu0 %v3879
      %v3881 = vpop.xlane.xlu0 %3880
      %v3882 = vsel %vm573, %v3860, 0.0
      %3883 = vadd.xlane.f32.xlu0 %v3882
      %v3884 = vpop.xlane.xlu0 %3883
      %v3885 = vmul.f32 %v3863, %v3836
      %v3886 = vmul.f32 %v3866, %v3836
      %v3887 = vmul.f32 %v3869, %v3836
      %v3888 = vmul.f32 %v3872, %v3836
      %v3889 = vmul.f32 %v3875, %v3836
      %v3890 = vmul.f32 %v3878, %v3836
      %v3891 = vmul.f32 %v3881, %v3836
      %v3892 = vmul.f32 %v3884, %v3836
      %v3893 = vadd.f32 %v3885, 1e-05
      %v3894 = vadd.f32 %v3886, 1e-05
      %v3895 = vadd.f32 %v3887, 1e-05
      %v3896 = vadd.f32 %v3888, 1e-05
      %v3897 = vadd.f32 %v3889, 1e-05
      %v3898 = vadd.f32 %v3890, 1e-05
      %v3899 = vadd.f32 %v3891, 1e-05
      %v3900 = vadd.f32 %v3892, 1e-05
      %v3901 = vrsqrt.pop %v3893
      %v3902 = vrsqrt.pop %v3894
      %v3903 = vrsqrt.pop %v3895
      %v3904 = vrsqrt.pop %v3896
      %v3905 = vrsqrt.pop %v3897
      %v3906 = vrsqrt.pop %v3898
      %v3907 = vrsqrt.pop %v3899
      %v3908 = vrsqrt.pop %v3900
      %v3909 = vmul.f32 %v3845, %v3901
      %v3910 = vmul.f32 %v3846, %v3902
      %v3911 = vmul.f32 %v3847, %v3903
      %v3912 = vmul.f32 %v3848, %v3904
      %v3913 = vmul.f32 %v3849, %v3905
      %v3914 = vmul.f32 %v3850, %v3906
      %v3915 = vmul.f32 %v3851, %v3907
      %v3916 = vmul.f32 %v3852, %v3908
      %v3917 = vlaneseq
      %v3918 = vshrl.u32 %v3917, 7
      %v3919 = vsub.s32 0, %v3918
      %v3920 = vrot.slane %v3802, %v3919
      %v3921 = vmul.f32 %v3909, %v3920
      %v3922 = vmul.f32 %v3910, %v3920
      %v3923 = vmul.f32 %v3911, %v3920
      %v3924 = vmul.f32 %v3912, %v3920
      %v3925 = vmul.f32 %v3913, %v3920
      %v3926 = vmul.f32 %v3914, %v3920
      %v3927 = vmul.f32 %v3915, %v3920
      %v3928 = vmul.f32 %v3916, %v3920
      %v3929 = vlaneseq
      %v3930 = vshrl.u32 %v3929, 7
      %v3931 = vsub.s32 0, %v3930
      %v3932 = vrot.slane %v3803, %v3931
      %v3933 = vadd.f32 %v3921, %v3932
      %v3934 = vadd.f32 %v3922, %v3932
      %v3935 = vadd.f32 %v3923, %v3932
      %v3936 = vadd.f32 %v3924, %v3932
      %v3937 = vadd.f32 %v3925, %v3932
      %v3938 = vadd.f32 %v3926, %v3932
      %v3939 = vadd.f32 %v3927, %v3932
      %v3940 = vadd.f32 %v3928, %v3932
      %v3941 = vld [vmem:[%s3 + $0x8] sm:$0x1]
      %v3942 = vld [vmem:[%s3 + $0x9] sm:$0x1]
      %v3943 = vadd.f32 %v510, %v3772
      %v3944 = vadd.f32 %v515, %v3775
      %v3945 = vadd.f32 %v520, %v3780
      %v3946 = vadd.f32 %v525, %v3783
      %v3947 = vadd.f32 %v530, %v3788
      %v3948 = vadd.f32 %v535, %v3791
      %v3949 = vadd.f32 %v540, %v3796
      %v3950 = vadd.f32 %v545, %v3799
      %v3951 = vsel %vm573, %v3943, 0.0
      %3952 = vadd.xlane.f32.xlu0 %v3951
      %v3953 = vpop.xlane.xlu0 %3952
      %v3954 = vsel %vm573, %v3944, 0.0
      %3955 = vadd.xlane.f32.xlu0 %v3954
      %v3956 = vpop.xlane.xlu0 %3955
      %v3957 = vsel %vm573, %v3945, 0.0
      %3958 = vadd.xlane.f32.xlu0 %v3957
      %v3959 = vpop.xlane.xlu0 %3958
      %v3960 = vsel %vm573, %v3946, 0.0
      %3961 = vadd.xlane.f32.xlu0 %v3960
      %v3962 = vpop.xlane.xlu0 %3961
      %v3963 = vsel %vm573, %v3947, 0.0
      %3964 = vadd.xlane.f32.xlu0 %v3963
      %v3965 = vpop.xlane.xlu0 %3964
      %v3966 = vsel %vm573, %v3948, 0.0
      %3967 = vadd.xlane.f32.xlu0 %v3966
      %v3968 = vpop.xlane.xlu0 %3967
      %v3969 = vsel %vm573, %v3949, 0.0
      %3970 = vadd.xlane.f32.xlu0 %v3969
      %v3971 = vpop.xlane.xlu0 %3970
      %v3972 = vsel %vm573, %v3950, 0.0
      %3973 = vadd.xlane.f32.xlu0 %v3972
      %v3974 = vpop.xlane.xlu0 %3973
      %v3975 = vmul.f32 %v3953, %v3836
      %v3976 = vmul.f32 %v3956, %v3836
      %v3977 = vmul.f32 %v3959, %v3836
      %v3978 = vmul.f32 %v3962, %v3836
      %v3979 = vmul.f32 %v3965, %v3836
      %v3980 = vmul.f32 %v3968, %v3836
      %v3981 = vmul.f32 %v3971, %v3836
      %v3982 = vmul.f32 %v3974, %v3836
      %v3983 = vsub.f32 %v3943, %v3975
      %v3984 = vsub.f32 %v3944, %v3976
      %v3985 = vsub.f32 %v3945, %v3977
      %v3986 = vsub.f32 %v3946, %v3978
      %v3987 = vsub.f32 %v3947, %v3979
      %v3988 = vsub.f32 %v3948, %v3980
      %v3989 = vsub.f32 %v3949, %v3981
      %v3990 = vsub.f32 %v3950, %v3982
      %v3991 = vmul.f32 %v3983, %v3983
      %v3992 = vmul.f32 %v3984, %v3984
      %v3993 = vmul.f32 %v3985, %v3985
      %v3994 = vmul.f32 %v3986, %v3986
      %v3995 = vmul.f32 %v3987, %v3987
      %v3996 = vmul.f32 %v3988, %v3988
      %v3997 = vmul.f32 %v3989, %v3989
      %v3998 = vmul.f32 %v3990, %v3990
      %v3999 = vsel %vm573, %v3991, 0.0
      %4000 = vadd.xlane.f32.xlu0 %v3999
      %v4001 = vpop.xlane.xlu0 %4000
      %v4002 = vsel %vm573, %v3992, 0.0
      %4003 = vadd.xlane.f32.xlu0 %v4002
      %v4004 = vpop.xlane.xlu0 %4003
      %v4005 = vsel %vm573, %v3993, 0.0
      %4006 = vadd.xlane.f32.xlu0 %v4005
      %v4007 = vpop.xlane.xlu0 %4006
      %v4008 = vsel %vm573, %v3994, 0.0
      %4009 = vadd.xlane.f32.xlu0 %v4008
      %v4010 = vpop.xlane.xlu0 %4009
      %v4011 = vsel %vm573, %v3995, 0.0
      %4012 = vadd.xlane.f32.xlu0 %v4011
      %v4013 = vpop.xlane.xlu0 %4012
      %v4014 = vsel %vm573, %v3996, 0.0
      %4015 = vadd.xlane.f32.xlu0 %v4014
      %v4016 = vpop.xlane.xlu0 %4015
      %v4017 = vsel %vm573, %v3997, 0.0
      %4018 = vadd.xlane.f32.xlu0 %v4017
      %v4019 = vpop.xlane.xlu0 %4018
      %v4020 = vsel %vm573, %v3998, 0.0
      %4021 = vadd.xlane.f32.xlu0 %v4020
      %v4022 = vpop.xlane.xlu0 %4021
      %v4023 = vmul.f32 %v4001, %v3836
      %v4024 = vmul.f32 %v4004, %v3836
      %v4025 = vmul.f32 %v4007, %v3836
      %v4026 = vmul.f32 %v4010, %v3836
      %v4027 = vmul.f32 %v4013, %v3836
      %v4028 = vmul.f32 %v4016, %v3836
      %v4029 = vmul.f32 %v4019, %v3836
      %v4030 = vmul.f32 %v4022, %v3836
      %v4031 = vadd.f32 %v4023, 1e-05
      %v4032 = vadd.f32 %v4024, 1e-05
      %v4033 = vadd.f32 %v4025, 1e-05
      %v4034 = vadd.f32 %v4026, 1e-05
      %v4035 = vadd.f32 %v4027, 1e-05
      %v4036 = vadd.f32 %v4028, 1e-05
      %v4037 = vadd.f32 %v4029, 1e-05
      %v4038 = vadd.f32 %v4030, 1e-05
      %v4039 = vrsqrt.pop %v4031
      %v4040 = vrsqrt.pop %v4032
      %v4041 = vrsqrt.pop %v4033
      %v4042 = vrsqrt.pop %v4034
      %v4043 = vrsqrt.pop %v4035
      %v4044 = vrsqrt.pop %v4036
      %v4045 = vrsqrt.pop %v4037
      %v4046 = vrsqrt.pop %v4038
      %v4047 = vmul.f32 %v3983, %v4039
      %v4048 = vmul.f32 %v3984, %v4040
      %v4049 = vmul.f32 %v3985, %v4041
      %v4050 = vmul.f32 %v3986, %v4042
      %v4051 = vmul.f32 %v3987, %v4043
      %v4052 = vmul.f32 %v3988, %v4044
      %v4053 = vmul.f32 %v3989, %v4045
      %v4054 = vmul.f32 %v3990, %v4046
      %v4055 = vlaneseq
      %v4056 = vshrl.u32 %v4055, 7
      %v4057 = vsub.s32 0, %v4056
      %v4058 = vrot.slane %v3941, %v4057
      %v4059 = vmul.f32 %v4047, %v4058
      %v4060 = vmul.f32 %v4048, %v4058
      %v4061 = vmul.f32 %v4049, %v4058
      %v4062 = vmul.f32 %v4050, %v4058
      %v4063 = vmul.f32 %v4051, %v4058
      %v4064 = vmul.f32 %v4052, %v4058
      %v4065 = vmul.f32 %v4053, %v4058
      %v4066 = vmul.f32 %v4054, %v4058
      %v4067 = vlaneseq
      %v4068 = vshrl.u32 %v4067, 7
      %v4069 = vsub.s32 0, %v4068
      %v4070 = vrot.slane %v3942, %v4069
      %v4071 = vadd.f32 %v4059, %v4070
      %v4072 = vadd.f32 %v4060, %v4070
      %v4073 = vadd.f32 %v4061, %v4070
      %v4074 = vadd.f32 %v4062, %v4070
      %v4075 = vadd.f32 %v4063, %v4070
      %v4076 = vadd.f32 %v4064, %v4070
      %v4077 = vadd.f32 %v4065, %v4070
      %v4078 = vadd.f32 %v4066, %v4070
      %v4079 = vpack.c.bf16 %v3934, %v3933
      %v4080 = vpack.c.bf16 %v3936, %v3935
      %v4081 = vpack.c.bf16 %v3938, %v3937
      %v4082 = vpack.c.bf16 %v3940, %v3939
      %s4083 = scalar_lea.vmem %s2, 160
      %v4084 = vld [vmem:[%s4083] sm:$0xf]
      %v4085 = vld [vmem:[%s4083 + $0x4] sm:$0xf]
      %v4086 = vld [vmem:[%s4083 + $0x8] sm:$0xf]
      %v4087 = vld [vmem:[%s4083 + $0xc] sm:$0xf]
      %v4088 = vpack.c.bf16 %v4072, %v4071
      %v4089 = vpack.c.bf16 %v4074, %v4073
      %v4090 = vpack.c.bf16 %v4076, %v4075
      %v4091 = vpack.c.bf16 %v4078, %v4077
      %s4092 = scalar_lea.vmem %s2, 176
      %v4093 = vld [vmem:[%s4092] sm:$0xf]
      %v4094 = vld [vmem:[%s4092 + $0x4] sm:$0xf]
      %v4095 = vld [vmem:[%s4092 + $0x8] sm:$0xf]
      %v4096 = vld [vmem:[%s4092 + $0xc] sm:$0xf]
      %v4101 = vunpack.c.l.b16 %v4093
      %v4102 = vunpack.c.l.b16 %v4094
      %v4103 = vunpack.c.l.b16 %v4095
      %v4104 = vunpack.c.l.b16 %v4096
      %v4105 = vpack.c.b16 %v4102, %v4101
      %v4106 = vpack.c.b16 %v4104, %v4103
      %v4110 = vsel %vm573, %v4088, 0
      %v4113 = vsel %vm573, %v4089, 0
      %v4116 = vsel %vm573, %v4090, 0
      %v4119 = vsel %vm573, %v4091, 0
      %4121 = vmatprep.subr.bf16.mxu0 0
      %4122 = vmatpush1.bf16.msra.mxu0 0
      %4123 = vmatprep.subr.bf16.mxu0 0
      %4124 = vmatpush1.bf16.msra.mxu0 0
      %4125 = vmatprep.subr.bf16.mxu0 0
      %4126 = vmatpush1.bf16.msra.mxu0 0
      %4127 = vmatprep.subr.bf16.mxu0 0
      %4128 = vmatpush1.bf16.msra.mxu0 0
      %4129 = vmatprep.subr.bf16.mxu0 0
      %4130 = vmatpush1.bf16.msra.mxu0 0
      %4131 = vmatprep.subr.bf16.mxu0 0
      %4132 = vmatpush1.bf16.msra.mxu0 0
      %4133 = vmatprep.subr.bf16.mxu0 0
      %4134 = vmatpush1.bf16.msra.mxu0 %v4106
      %4135 = vmatprep.subr.bf16.mxu0 0
      %4136 = vmatpush1.bf16.msra.mxu0 %v4105
      %4137 = vmatprep.subr.bf16.mxu0 0
      %4138 = vmatpush2.bf16.msra.mxu0 0
      %4139 = vmatprep.subr.bf16.mxu0 0
      %4140 = vmatpush2.bf16.msra.mxu0 0
      %4141 = vmatprep.subr.bf16.mxu0 0
      %4142 = vmatpush2.bf16.msra.mxu0 0
      %4143 = vmatprep.subr.bf16.mxu0 0
      %4144 = vmatpush2.bf16.msra.mxu0 0
      %4145 = vmatprep.subr.bf16.mxu0 0
      %4146 = vmatpush2.bf16.msra.mxu0 0
      %4147 = vmatprep.subr.bf16.mxu0 0
      %4148 = vmatpush2.bf16.msra.mxu0 0
      %4149 = vmatprep.subr.bf16.mxu0 0
      %4150 = vmatpush2.bf16.msra.mxu0 0
      %4151 = vmatprep.subr.bf16.mxu0 0
      %4152 = vmatpush2.bf16.msra.mxu0 0
      %4153 = vmatprep.mubr.bf16.mxu0 0
      %4154 = vmatmul.mubr.bf16.gmra.mxu0 %v4110
      %v4155 = vpop.f32.mrf.mxu0
      %v4156 = vadd.f32 0.0, %v4155
      %v4157 = vpop.f32.mrf.mxu0
      %v4158 = vpop.f32.mrf.mxu0
      %v4159 = vadd.f32 0.0, %v4158
      %v4160 = vpop.f32.mrf.mxu0
      %4161 = vmatprep.mubr.bf16.mxu0 0
      %4162 = vmatmul.mubr.bf16.gmra.mxu0 %v4113
      %v4163 = vpop.f32.mrf.mxu0
      %v4164 = vadd.f32 0.0, %v4163
      %v4165 = vpop.f32.mrf.mxu0
      %v4166 = vpop.f32.mrf.mxu0
      %v4167 = vadd.f32 0.0, %v4166
      %v4168 = vpop.f32.mrf.mxu0
      %4169 = vmatprep.mubr.bf16.mxu0 0
      %4170 = vmatmul.mubr.bf16.gmra.mxu0 %v4116
      %v4171 = vpop.f32.mrf.mxu0
      %v4172 = vadd.f32 0.0, %v4171
      %v4173 = vpop.f32.mrf.mxu0
      %v4174 = vpop.f32.mrf.mxu0
      %v4175 = vadd.f32 0.0, %v4174
      %v4176 = vpop.f32.mrf.mxu0
      %4177 = vmatprep.mubr.bf16.mxu0 0
      %4178 = vmatmul.mubr.bf16.gmra.mxu0 %v4119
      %v4179 = vpop.f32.mrf.mxu0
      %v4180 = vadd.f32 0.0, %v4179
      %v4181 = vpop.f32.mrf.mxu0
      %v4182 = vpop.f32.mrf.mxu0
      %v4183 = vadd.f32 0.0, %v4182
      %v4184 = vpop.f32.mrf.mxu0
      %4185 = vdwg.mxu0
      %v4190 = vunpack.c.l.b16 %v4084
      %v4191 = vunpack.c.l.b16 %v4085
      %v4192 = vunpack.c.l.b16 %v4086
      %v4193 = vunpack.c.l.b16 %v4087
      %v4194 = vpack.c.b16 %v4191, %v4190
      %v4195 = vpack.c.b16 %v4193, %v4192
      %v4199 = vsel %vm573, %v4079, 0
      %v4202 = vsel %vm573, %v4080, 0
      %v4205 = vsel %vm573, %v4081, 0
      %v4208 = vsel %vm573, %v4082, 0
      %4210 = vmatprep.subr.bf16.mxu0 0
      %4211 = vmatpush1.bf16.msra.mxu0 0
      %4212 = vmatprep.subr.bf16.mxu0 0
      %4213 = vmatpush1.bf16.msra.mxu0 0
      %4214 = vmatprep.subr.bf16.mxu0 0
      %4215 = vmatpush1.bf16.msra.mxu0 0
      %4216 = vmatprep.subr.bf16.mxu0 0
      %4217 = vmatpush1.bf16.msra.mxu0 0
      %4218 = vmatprep.subr.bf16.mxu0 0
      %4219 = vmatpush1.bf16.msra.mxu0 0
      %4220 = vmatprep.subr.bf16.mxu0 0
      %4221 = vmatpush1.bf16.msra.mxu0 0
      %4222 = vmatprep.subr.bf16.mxu0 0
      %4223 = vmatpush1.bf16.msra.mxu0 %v4195
      %4224 = vmatprep.subr.bf16.mxu0 0
      %4225 = vmatpush1.bf16.msra.mxu0 %v4194
      %4226 = vmatprep.subr.bf16.mxu0 0
      %4227 = vmatpush2.bf16.msra.mxu0 0
      %4228 = vmatprep.subr.bf16.mxu0 0
      %4229 = vmatpush2.bf16.msra.mxu0 0
      %4230 = vmatprep.subr.bf16.mxu0 0
      %4231 = vmatpush2.bf16.msra.mxu0 0
      %4232 = vmatprep.subr.bf16.mxu0 0
      %4233 = vmatpush2.bf16.msra.mxu0 0
      %4234 = vmatprep.subr.bf16.mxu0 0
      %4235 = vmatpush2.bf16.msra.mxu0 0
      %4236 = vmatprep.subr.bf16.mxu0 0
      %4237 = vmatpush2.bf16.msra.mxu0 0
      %4238 = vmatprep.subr.bf16.mxu0 0
      %4239 = vmatpush2.bf16.msra.mxu0 0
      %4240 = vmatprep.subr.bf16.mxu0 0
      %4241 = vmatpush2.bf16.msra.mxu0 0
      %4242 = vmatprep.mubr.bf16.mxu0 0
      %4243 = vmatmul.mubr.bf16.gmra.mxu0 %v4199
      %v4244 = vpop.f32.mrf.mxu0
      %v4245 = vadd.f32 %v4156, %v4244
      %v4246 = vpop.f32.mrf.mxu0
      %v4247 = vpop.f32.mrf.mxu0
      %v4248 = vadd.f32 %v4159, %v4247
      %v4249 = vpop.f32.mrf.mxu0
      %4250 = vmatprep.mubr.bf16.mxu0 0
      %4251 = vmatmul.mubr.bf16.gmra.mxu0 %v4202
      %v4252 = vpop.f32.mrf.mxu0
      %v4253 = vadd.f32 %v4164, %v4252
      %v4254 = vpop.f32.mrf.mxu0
      %v4255 = vpop.f32.mrf.mxu0
      %v4256 = vadd.f32 %v4167, %v4255
      %v4257 = vpop.f32.mrf.mxu0
      %4258 = vmatprep.mubr.bf16.mxu0 0
      %4259 = vmatmul.mubr.bf16.gmra.mxu0 %v4205
      %v4260 = vpop.f32.mrf.mxu0
      %v4261 = vadd.f32 %v4172, %v4260
      %v4262 = vpop.f32.mrf.mxu0
      %v4263 = vpop.f32.mrf.mxu0
      %v4264 = vadd.f32 %v4175, %v4263
      %v4265 = vpop.f32.mrf.mxu0
      %4266 = vmatprep.mubr.bf16.mxu0 0
      %4267 = vmatmul.mubr.bf16.gmra.mxu0 %v4208
      %v4268 = vpop.f32.mrf.mxu0
      %v4269 = vadd.f32 %v4180, %v4268
      %v4270 = vpop.f32.mrf.mxu0
      %v4271 = vpop.f32.mrf.mxu0
      %v4272 = vadd.f32 %v4183, %v4271
      %v4273 = vpop.f32.mrf.mxu0
      %4274 = vdwg.mxu0
      %s4275 = scalar_lea.vmem %s2, 192
      %v4276 = vld [vmem:[%s4275] sm:$0xf]
      %v4277 = vld [vmem:[%s4275 + $0x4] sm:$0xf]
      %v4278 = vld [vmem:[%s4275 + $0x8] sm:$0xf]
      %v4279 = vld [vmem:[%s4275 + $0xc] sm:$0xf]
      %s4280 = scalar_lea.vmem %s2, 208
      %v4281 = vld [vmem:[%s4280] sm:$0xf]
      %v4282 = vld [vmem:[%s4280 + $0x4] sm:$0xf]
      %v4283 = vld [vmem:[%s4280 + $0x8] sm:$0xf]
      %v4284 = vld [vmem:[%s4280 + $0xc] sm:$0xf]
      %v4289 = vunpack.c.l.b16 %v4281
      %v4290 = vunpack.c.l.b16 %v4282
      %v4291 = vunpack.c.l.b16 %v4283
      %v4292 = vunpack.c.l.b16 %v4284
      %v4293 = vpack.c.b16 %v4290, %v4289
      %v4294 = vpack.c.b16 %v4292, %v4291
      %4297 = vmatprep.subr.bf16.mxu0 0
      %4298 = vmatpush1.bf16.msra.mxu0 0
      %4299 = vmatprep.subr.bf16.mxu0 0
      %4300 = vmatpush1.bf16.msra.mxu0 0
      %4301 = vmatprep.subr.bf16.mxu0 0
      %4302 = vmatpush1.bf16.msra.mxu0 0
      %4303 = vmatprep.subr.bf16.mxu0 0
      %4304 = vmatpush1.bf16.msra.mxu0 0
      %4305 = vmatprep.subr.bf16.mxu0 0
      %4306 = vmatpush1.bf16.msra.mxu0 0
      %4307 = vmatprep.subr.bf16.mxu0 0
      %4308 = vmatpush1.bf16.msra.mxu0 0
      %4309 = vmatprep.subr.bf16.mxu0 0
      %4310 = vmatpush1.bf16.msra.mxu0 %v4294
      %4311 = vmatprep.subr.bf16.mxu0 0
      %4312 = vmatpush1.bf16.msra.mxu0 %v4293
      %4313 = vmatprep.subr.bf16.mxu0 0
      %4314 = vmatpush2.bf16.msra.mxu0 0
      %4315 = vmatprep.subr.bf16.mxu0 0
      %4316 = vmatpush2.bf16.msra.mxu0 0
      %4317 = vmatprep.subr.bf16.mxu0 0
      %4318 = vmatpush2.bf16.msra.mxu0 0
      %4319 = vmatprep.subr.bf16.mxu0 0
      %4320 = vmatpush2.bf16.msra.mxu0 0
      %4321 = vmatprep.subr.bf16.mxu0 0
      %4322 = vmatpush2.bf16.msra.mxu0 0
      %4323 = vmatprep.subr.bf16.mxu0 0
      %4324 = vmatpush2.bf16.msra.mxu0 0
      %4325 = vmatprep.subr.bf16.mxu0 0
      %4326 = vmatpush2.bf16.msra.mxu0 0
      %4327 = vmatprep.subr.bf16.mxu0 0
      %4328 = vmatpush2.bf16.msra.mxu0 0
      %4329 = vmatprep.mubr.bf16.mxu0 0
      %4330 = vmatmul.mubr.bf16.gmra.mxu0 %v4110
      %v4331 = vpop.f32.mrf.mxu0
      %v4332 = vadd.f32 0.0, %v4331
      %v4333 = vpop.f32.mrf.mxu0
      %v4334 = vpop.f32.mrf.mxu0
      %v4335 = vadd.f32 0.0, %v4334
      %v4336 = vpop.f32.mrf.mxu0
      %4337 = vmatprep.mubr.bf16.mxu0 0
      %4338 = vmatmul.mubr.bf16.gmra.mxu0 %v4113
      %v4339 = vpop.f32.mrf.mxu0
      %v4340 = vadd.f32 0.0, %v4339
      %v4341 = vpop.f32.mrf.mxu0
      %v4342 = vpop.f32.mrf.mxu0
      %v4343 = vadd.f32 0.0, %v4342
      %v4344 = vpop.f32.mrf.mxu0
      %4345 = vmatprep.mubr.bf16.mxu0 0
      %4346 = vmatmul.mubr.bf16.gmra.mxu0 %v4116
      %v4347 = vpop.f32.mrf.mxu0
      %v4348 = vadd.f32 0.0, %v4347
      %v4349 = vpop.f32.mrf.mxu0
      %v4350 = vpop.f32.mrf.mxu0
      %v4351 = vadd.f32 0.0, %v4350
      %v4352 = vpop.f32.mrf.mxu0
      %4353 = vmatprep.mubr.bf16.mxu0 0
      %4354 = vmatmul.mubr.bf16.gmra.mxu0 %v4119
      %v4355 = vpop.f32.mrf.mxu0
      %v4356 = vadd.f32 0.0, %v4355
      %v4357 = vpop.f32.mrf.mxu0
      %v4358 = vpop.f32.mrf.mxu0
      %v4359 = vadd.f32 0.0, %v4358
      %v4360 = vpop.f32.mrf.mxu0
      %4361 = vdwg.mxu0
      %v4366 = vunpack.c.l.b16 %v4276
      %v4367 = vunpack.c.l.b16 %v4277
      %v4368 = vunpack.c.l.b16 %v4278
      %v4369 = vunpack.c.l.b16 %v4279
      %v4370 = vpack.c.b16 %v4367, %v4366
      %v4371 = vpack.c.b16 %v4369, %v4368
      %4374 = vmatprep.subr.bf16.mxu0 0
      %4375 = vmatpush1.bf16.msra.mxu0 0
      %4376 = vmatprep.subr.bf16.mxu0 0
      %4377 = vmatpush1.bf16.msra.mxu0 0
      %4378 = vmatprep.subr.bf16.mxu0 0
      %4379 = vmatpush1.bf16.msra.mxu0 0
      %4380 = vmatprep.subr.bf16.mxu0 0
      %4381 = vmatpush1.bf16.msra.mxu0 0
      %4382 = vmatprep.subr.bf16.mxu0 0
      %4383 = vmatpush1.bf16.msra.mxu0 0
      %4384 = vmatprep.subr.bf16.mxu0 0
      %4385 = vmatpush1.bf16.msra.mxu0 0
      %4386 = vmatprep.subr.bf16.mxu0 0
      %4387 = vmatpush1.bf16.msra.mxu0 %v4371
      %4388 = vmatprep.subr.bf16.mxu0 0
      %4389 = vmatpush1.bf16.msra.mxu0 %v4370
      %4390 = vmatprep.subr.bf16.mxu0 0
      %4391 = vmatpush2.bf16.msra.mxu0 0
      %4392 = vmatprep.subr.bf16.mxu0 0
      %4393 = vmatpush2.bf16.msra.mxu0 0
      %4394 = vmatprep.subr.bf16.mxu0 0
      %4395 = vmatpush2.bf16.msra.mxu0 0
      %4396 = vmatprep.subr.bf16.mxu0 0
      %4397 = vmatpush2.bf16.msra.mxu0 0
      %4398 = vmatprep.subr.bf16.mxu0 0
      %4399 = vmatpush2.bf16.msra.mxu0 0
      %4400 = vmatprep.subr.bf16.mxu0 0
      %4401 = vmatpush2.bf16.msra.mxu0 0
      %4402 = vmatprep.subr.bf16.mxu0 0
      %4403 = vmatpush2.bf16.msra.mxu0 0
      %4404 = vmatprep.subr.bf16.mxu0 0
      %4405 = vmatpush2.bf16.msra.mxu0 0
      %4406 = vmatprep.mubr.bf16.mxu0 0
      %4407 = vmatmul.mubr.bf16.gmra.mxu0 %v4199
      %v4408 = vpop.f32.mrf.mxu0
      %v4409 = vadd.f32 %v4332, %v4408
      %v4410 = vpop.f32.mrf.mxu0
      %v4411 = vpop.f32.mrf.mxu0
      %v4412 = vadd.f32 %v4335, %v4411
      %v4413 = vpop.f32.mrf.mxu0
      %4414 = vmatprep.mubr.bf16.mxu0 0
      %4415 = vmatmul.mubr.bf16.gmra.mxu0 %v4202
      %v4416 = vpop.f32.mrf.mxu0
      %v4417 = vadd.f32 %v4340, %v4416
      %v4418 = vpop.f32.mrf.mxu0
      %v4419 = vpop.f32.mrf.mxu0
      %v4420 = vadd.f32 %v4343, %v4419
      %v4421 = vpop.f32.mrf.mxu0
      %4422 = vmatprep.mubr.bf16.mxu0 0
      %4423 = vmatmul.mubr.bf16.gmra.mxu0 %v4205
      %v4424 = vpop.f32.mrf.mxu0
      %v4425 = vadd.f32 %v4348, %v4424
      %v4426 = vpop.f32.mrf.mxu0
      %v4427 = vpop.f32.mrf.mxu0
      %v4428 = vadd.f32 %v4351, %v4427
      %v4429 = vpop.f32.mrf.mxu0
      %4430 = vmatprep.mubr.bf16.mxu0 0
      %4431 = vmatmul.mubr.bf16.gmra.mxu0 %v4208
      %v4432 = vpop.f32.mrf.mxu0
      %v4433 = vadd.f32 %v4356, %v4432
      %v4434 = vpop.f32.mrf.mxu0
      %v4435 = vpop.f32.mrf.mxu0
      %v4436 = vadd.f32 %v4359, %v4435
      %v4437 = vpop.f32.mrf.mxu0
      %4438 = vdwg.mxu0
      %v4439 = vld [vmem:[%s3 + $0xa] sm:$0x1]
      %v4440 = vlaneseq
      %v4441 = vshrl.u32 %v4440, 7
      %v4442 = vsub.s32 0, %v4441
      %v4443 = vrot.slane %v4439, %v4442
      %v4444 = vadd.f32 %v4409, %v4443
      %v4445 = vadd.f32 %v4412, %v4443
      %v4446 = vadd.f32 %v4417, %v4443
      %v4447 = vadd.f32 %v4420, %v4443
      %v4448 = vadd.f32 %v4425, %v4443
      %v4449 = vadd.f32 %v4428, %v4443
      %v4450 = vadd.f32 %v4433, %v4443
      %v4451 = vadd.f32 %v4436, %v4443
      %4452 = vst.msk [vmem:[#allocation2] sm:$0xff] %vm573, 0.0
      %4453 = vst.msk [vmem:[#allocation2 + $0x8] sm:$0xff] %vm573, 0.0
      %4454 = vst.msk [vmem:[#allocation2 + $0x10] sm:$0xff] %vm573, 0.0
      %4455 = vst.msk [vmem:[#allocation2 + $0x18] sm:$0xff] %vm573, 0.0
      %4456 = vst.msk [vmem:[#allocation2 + $0x60] sm:$0xff] %vm573, 0.0
      %4457 = vst.msk [vmem:[#allocation2 + $0x68] sm:$0xff] %vm573, 0.0
      %4458 = vst.msk [vmem:[#allocation2 + $0x70] sm:$0xff] %vm573, 0.0
      %4459 = vst.msk [vmem:[#allocation2 + $0x78] sm:$0xff] %vm573, 0.0
      %4460 = vst.msk [vmem:[#allocation2 + $0x20] sm:$0xff] %vm573, %v4444
      %4461 = vst.msk [vmem:[#allocation2 + $0x28] sm:$0xff] %vm573, %v4445
      %4462 = vst.msk [vmem:[#allocation2 + $0x30] sm:$0xff] %vm573, %v4446
      %4463 = vst.msk [vmem:[#allocation2 + $0x38] sm:$0xff] %vm573, %v4447
      %4464 = vst.msk [vmem:[#allocation2 + $0x40] sm:$0xff] %vm573, %v4448
      %4465 = vst.msk [vmem:[#allocation2 + $0x48] sm:$0xff] %vm573, %v4449
      %4466 = vst.msk [vmem:[#allocation2 + $0x50] sm:$0xff] %vm573, %v4450
      %4467 = vst.msk [vmem:[#allocation2 + $0x58] sm:$0xff] %vm573, %v4451
      %v4468 = vld [vmem:[#allocation2] sm:$0xff]
      %v4469 = vld [vmem:[#allocation2 + $0x8] sm:$0xff]
      %v4470 = vld [vmem:[#allocation2 + $0x10] sm:$0xff]
      %v4471 = vld [vmem:[#allocation2 + $0x18] sm:$0xff]
      %v4472 = vld [vmem:[#allocation2 + $0x20] sm:$0xff]
      %v4473 = vld [vmem:[#allocation2 + $0x28] sm:$0xff]
      %v4474 = vld [vmem:[#allocation2 + $0x30] sm:$0xff]
      %v4475 = vld [vmem:[#allocation2 + $0x38] sm:$0xff]
      %v4476 = vld [vmem:[#allocation2 + $0x40] sm:$0xff]
      %v4477 = vld [vmem:[#allocation2 + $0x48] sm:$0xff]
      %v4478 = vld [vmem:[#allocation2 + $0x50] sm:$0xff]
      %v4479 = vld [vmem:[#allocation2 + $0x58] sm:$0xff]
      %v4480 = vld [vmem:[#allocation2 + $0x60] sm:$0xff]
      %v4481 = vld [vmem:[#allocation2 + $0x68] sm:$0xff]
      %v4482 = vld [vmem:[#allocation2 + $0x70] sm:$0xff]
      %v4483 = vld [vmem:[#allocation2 + $0x78] sm:$0xff]
      %v4484 = vand.u32 %v247, 7
      %v4485 = vand.u32 %v248, 7
      %v4486 = vand.u32 %v249, 7
      %v4487 = vand.u32 %v250, 7
      %v4488 = vand.u32 %v251, 7
      %v4489 = vand.u32 %v252, 7
      %v4490 = vand.u32 %v253, 7
      %v4491 = vand.u32 %v254, 7
      %v4492 = vcvt.s32.f32 %v4484
      %v4493 = vcvt.s32.f32 %v4485
      %v4494 = vcvt.s32.f32 %v4486
      %v4495 = vcvt.s32.f32 %v4487
      %v4496 = vcvt.s32.f32 %v4488
      %v4497 = vcvt.s32.f32 %v4489
      %v4498 = vcvt.s32.f32 %v4490
      %v4499 = vcvt.s32.f32 %v4491
      %v4500 = vld [vmem:[%s4] sm:$0x1]
      %v4501 = vlaneseq
      %v4502 = vshrl.u32 %v4501, 7
      %v4503 = vsub.s32 0, %v4502
      %v4504 = vrot.slane %v4500, %v4503
      %v4505 = vmul.f32 %v4468, %v4504
      %v4506 = vmul.f32 %v4469, %v4504
      %v4507 = vmul.f32 %v4470, %v4504
      %v4508 = vmul.f32 %v4471, %v4504
      %v4509 = vmul.f32 %v4472, %v4504
      %v4510 = vmul.f32 %v4473, %v4504
      %v4511 = vmul.f32 %v4474, %v4504
      %v4512 = vmul.f32 %v4475, %v4504
      %v4513 = vmul.f32 %v4476, %v4504
      %v4514 = vadd.f32 %v4505, 0.0
      %v4515 = vadd.f32 %v4506, 0.0
      %v4516 = vadd.f32 %v4507, 0.0
      %v4517 = vadd.f32 %v4508, 0.0
      %v4518 = vadd.f32 %v4509, 0.0
      %v4519 = vadd.f32 %v4510, 0.0
      %v4520 = vadd.f32 %v4511, 0.0
      %v4521 = vadd.f32 %v4512, 0.0
      %v4522 = vadd.f32 %v4513, 0.0
      %v4523 = vld [vmem:[%s4 + $0x7] sm:$0x1]
      %v4524 = vlaneseq
      %v4525 = vshrl.u32 %v4524, 7
      %v4526 = vsub.s32 0, %v4525
      %v4527 = vrot.slane %v4523, %v4526
      %v4528 = vmul.f32 %v4469, %v4527
      %v4529 = vmul.f32 %v4470, %v4527
      %v4530 = vmul.f32 %v4471, %v4527
      %v4531 = vmul.f32 %v4472, %v4527
      %v4532 = vmul.f32 %v4473, %v4527
      %v4533 = vmul.f32 %v4474, %v4527
      %v4534 = vmul.f32 %v4475, %v4527
      %v4535 = vmul.f32 %v4476, %v4527
      %v4536 = vmul.f32 %v4477, %v4527
      %v4537 = vadd.f32 %v4514, %v4528
      %v4538 = vadd.f32 %v4515, %v4529
      %v4539 = vadd.f32 %v4516, %v4530
      %v4540 = vadd.f32 %v4517, %v4531
      %v4541 = vadd.f32 %v4518, %v4532
      %v4542 = vadd.f32 %v4519, %v4533
      %v4543 = vadd.f32 %v4520, %v4534
      %v4544 = vadd.f32 %v4521, %v4535
      %v4545 = vadd.f32 %v4522, %v4536
      %v4546 = vld [vmem:[%s4 + $0xe] sm:$0x1]
      %v4547 = vlaneseq
      %v4548 = vshrl.u32 %v4547, 7
      %v4549 = vsub.s32 0, %v4548
      %v4550 = vrot.slane %v4546, %v4549
      %v4551 = vmul.f32 %v4470, %v4550
      %v4552 = vmul.f32 %v4471, %v4550
      %v4553 = vmul.f32 %v4472, %v4550
      %v4554 = vmul.f32 %v4473, %v4550
      %v4555 = vmul.f32 %v4474, %v4550
      %v4556 = vmul.f32 %v4475, %v4550
      %v4557 = vmul.f32 %v4476, %v4550
      %v4558 = vmul.f32 %v4477, %v4550
      %v4559 = vmul.f32 %v4478, %v4550
      %v4560 = vadd.f32 %v4537, %v4551
      %v4561 = vadd.f32 %v4538, %v4552
      %v4562 = vadd.f32 %v4539, %v4553
      %v4563 = vadd.f32 %v4540, %v4554
      %v4564 = vadd.f32 %v4541, %v4555
      %v4565 = vadd.f32 %v4542, %v4556
      %v4566 = vadd.f32 %v4543, %v4557
      %v4567 = vadd.f32 %v4544, %v4558
      %v4568 = vadd.f32 %v4545, %v4559
      %v4569 = vld [vmem:[%s4 + $0x15] sm:$0x1]
      %v4570 = vlaneseq
      %v4571 = vshrl.u32 %v4570, 7
      %v4572 = vsub.s32 0, %v4571
      %v4573 = vrot.slane %v4569, %v4572
      %v4574 = vmul.f32 %v4471, %v4573
      %v4575 = vmul.f32 %v4472, %v4573
      %v4576 = vmul.f32 %v4473, %v4573
      %v4577 = vmul.f32 %v4474, %v4573
      %v4578 = vmul.f32 %v4475, %v4573
      %v4579 = vmul.f32 %v4476, %v4573
      %v4580 = vmul.f32 %v4477, %v4573
      %v4581 = vmul.f32 %v4478, %v4573
      %v4582 = vmul.f32 %v4479, %v4573
      %v4583 = vadd.f32 %v4560, %v4574
      %v4584 = vadd.f32 %v4561, %v4575
      %v4585 = vadd.f32 %v4562, %v4576
      %v4586 = vadd.f32 %v4563, %v4577
      %v4587 = vadd.f32 %v4564, %v4578
      %v4588 = vadd.f32 %v4565, %v4579
      %v4589 = vadd.f32 %v4566, %v4580
      %v4590 = vadd.f32 %v4567, %v4581
      %v4591 = vadd.f32 %v4568, %v4582
      %v4592 = vld [vmem:[%s4 + $0x1c] sm:$0x1]
      %v4593 = vlaneseq
      %v4594 = vshrl.u32 %v4593, 7
      %v4595 = vsub.s32 0, %v4594
      %v4596 = vrot.slane %v4592, %v4595
      %v4597 = vmul.f32 %v4472, %v4596
      %v4598 = vmul.f32 %v4473, %v4596
      %v4599 = vmul.f32 %v4474, %v4596
      %v4600 = vmul.f32 %v4475, %v4596
      %v4601 = vmul.f32 %v4476, %v4596
      %v4602 = vmul.f32 %v4477, %v4596
      %v4603 = vmul.f32 %v4478, %v4596
      %v4604 = vmul.f32 %v4479, %v4596
      %v4605 = vmul.f32 %v4480, %v4596
      %v4606 = vadd.f32 %v4583, %v4597
      %v4607 = vadd.f32 %v4584, %v4598
      %v4608 = vadd.f32 %v4585, %v4599
      %v4609 = vadd.f32 %v4586, %v4600
      %v4610 = vadd.f32 %v4587, %v4601
      %v4611 = vadd.f32 %v4588, %v4602
      %v4612 = vadd.f32 %v4589, %v4603
      %v4613 = vadd.f32 %v4590, %v4604
      %v4614 = vadd.f32 %v4591, %v4605
      %v4615 = vld [vmem:[%s4 + $0x23] sm:$0x1]
      %v4616 = vlaneseq
      %v4617 = vshrl.u32 %v4616, 7
      %v4618 = vsub.s32 0, %v4617
      %v4619 = vrot.slane %v4615, %v4618
      %v4620 = vmul.f32 %v4473, %v4619
      %v4621 = vmul.f32 %v4474, %v4619
      %v4622 = vmul.f32 %v4475, %v4619
      %v4623 = vmul.f32 %v4476, %v4619
      %v4624 = vmul.f32 %v4477, %v4619
      %v4625 = vmul.f32 %v4478, %v4619
      %v4626 = vmul.f32 %v4479, %v4619
      %v4627 = vmul.f32 %v4480, %v4619
      %v4628 = vmul.f32 %v4481, %v4619
      %v4629 = vadd.f32 %v4606, %v4620
      %v4630 = vadd.f32 %v4607, %v4621
      %v4631 = vadd.f32 %v4608, %v4622
      %v4632 = vadd.f32 %v4609, %v4623
      %v4633 = vadd.f32 %v4610, %v4624
      %v4634 = vadd.f32 %v4611, %v4625
      %v4635 = vadd.f32 %v4612, %v4626
      %v4636 = vadd.f32 %v4613, %v4627
      %v4637 = vadd.f32 %v4614, %v4628
      %v4638 = vld [vmem:[%s4 + $0x2a] sm:$0x1]
      %v4639 = vlaneseq
      %v4640 = vshrl.u32 %v4639, 7
      %v4641 = vsub.s32 0, %v4640
      %v4642 = vrot.slane %v4638, %v4641
      %v4643 = vmul.f32 %v4474, %v4642
      %v4644 = vmul.f32 %v4475, %v4642
      %v4645 = vmul.f32 %v4476, %v4642
      %v4646 = vmul.f32 %v4477, %v4642
      %v4647 = vmul.f32 %v4478, %v4642
      %v4648 = vmul.f32 %v4479, %v4642
      %v4649 = vmul.f32 %v4480, %v4642
      %v4650 = vmul.f32 %v4481, %v4642
      %v4651 = vmul.f32 %v4482, %v4642
      %v4652 = vadd.f32 %v4629, %v4643
      %v4653 = vadd.f32 %v4630, %v4644
      %v4654 = vadd.f32 %v4631, %v4645
      %v4655 = vadd.f32 %v4632, %v4646
      %v4656 = vadd.f32 %v4633, %v4647
      %v4657 = vadd.f32 %v4634, %v4648
      %v4658 = vadd.f32 %v4635, %v4649
      %v4659 = vadd.f32 %v4636, %v4650
      %v4660 = vadd.f32 %v4637, %v4651
      %vm4661 = vcmp.ge.f32.partialorder %v4492, 3.0
      %vm4662 = vcmp.ge.f32.partialorder %v4493, 3.0
      %vm4663 = vcmp.ge.f32.partialorder %v4494, 3.0
      %vm4664 = vcmp.ge.f32.partialorder %v4495, 3.0
      %vm4665 = vcmp.ge.f32.partialorder %v4496, 3.0
      %vm4666 = vcmp.ge.f32.partialorder %v4497, 3.0
      %vm4667 = vcmp.ge.f32.partialorder %v4498, 3.0
      %vm4668 = vcmp.ge.f32.partialorder %v4499, 3.0
      %vm4669 = vcmp.lt.f32.partialorder %v4492, 11.0
      %vm4670 = vcmp.lt.f32.partialorder %v4493, 11.0
      %vm4671 = vcmp.lt.f32.partialorder %v4494, 11.0
      %vm4672 = vcmp.lt.f32.partialorder %v4495, 11.0
      %vm4673 = vcmp.lt.f32.partialorder %v4496, 11.0
      %vm4674 = vcmp.lt.f32.partialorder %v4497, 11.0
      %vm4675 = vcmp.lt.f32.partialorder %v4498, 11.0
      %vm4676 = vcmp.lt.f32.partialorder %v4499, 11.0
      %vm4677 = vmand %vm4661, %vm4669
      %vm4678 = vmand %vm4662, %vm4670
      %vm4679 = vmand %vm4663, %vm4671
      %vm4680 = vmand %vm4664, %vm4672
      %vm4681 = vmand %vm4665, %vm4673
      %vm4682 = vmand %vm4666, %vm4674
      %vm4683 = vmand %vm4667, %vm4675
      %vm4684 = vmand %vm4668, %vm4676
      %v4685 = vsel %vm4677, 1, 0
      %v4686 = vsel %vm4678, 1, 0
      %v4687 = vsel %vm4679, 1, 0
      %v4688 = vsel %vm4680, 1, 0
      %v4689 = vsel %vm4681, 1, 0
      %v4690 = vsel %vm4682, 1, 0
      %v4691 = vsel %vm4683, 1, 0
      %v4692 = vsel %vm4684, 1, 0
      %v4693 = vcvt.s32.f32 %v4685
      %v4694 = vcvt.s32.f32 %v4686
      %v4695 = vcvt.s32.f32 %v4687
      %v4696 = vcvt.s32.f32 %v4688
      %v4697 = vcvt.s32.f32 %v4689
      %v4698 = vcvt.s32.f32 %v4690
      %v4699 = vcvt.s32.f32 %v4691
      %v4700 = vcvt.s32.f32 %v4692
      %vm4709 = vcmask 1044480
      %v4710 = vrot.slane %v4693, 3
      %v4711 = vrot.slane %v4694, 3
      %v4712 = vsel %vm4709, %v4710, %v4711
      %v4713 = vrot.slane %v4695, 3
      %v4714 = vsel %vm4709, %v4711, %v4713
      %v4715 = vrot.slane %v4696, 3
      %v4716 = vsel %vm4709, %v4713, %v4715
      %v4717 = vrot.slane %v4697, 3
      %v4718 = vsel %vm4709, %v4715, %v4717
      %v4719 = vrot.slane %v4698, 3
      %v4720 = vsel %vm4709, %v4717, %v4719
      %v4721 = vrot.slane %v4699, 3
      %v4722 = vsel %vm4709, %v4719, %v4721
      %v4723 = vrot.slane %v4700, 3
      %v4724 = vsel %vm4709, %v4721, %v4723
      %v4734 = vmul.f32 %v4652, %v4710
      %v4735 = vmul.f32 %v4653, %v4712
      %v4736 = vmul.f32 %v4654, %v4714
      %v4737 = vmul.f32 %v4655, %v4716
      %v4738 = vmul.f32 %v4656, %v4718
      %v4739 = vmul.f32 %v4657, %v4720
      %v4740 = vmul.f32 %v4658, %v4722
      %v4741 = vmul.f32 %v4659, %v4724
      %v4742 = vmul.f32 %v4660, %v4723
      %v4743 = vadd.f32 %v4734, 0.0
      %v4744 = vadd.f32 %v4735, 0.0
      %v4745 = vadd.f32 %v4736, 0.0
      %v4746 = vadd.f32 %v4737, 0.0
      %v4747 = vadd.f32 %v4738, 0.0
      %v4748 = vadd.f32 %v4739, 0.0
      %v4749 = vadd.f32 %v4740, 0.0
      %v4750 = vadd.f32 %v4741, 0.0
      %v4751 = vadd.f32 %v4742, 0.0
      %v4752 = vld [vmem:[%s4 + $0x1] sm:$0x1]
      %v4753 = vlaneseq
      %v4754 = vshrl.u32 %v4753, 7
      %v4755 = vsub.s32 0, %v4754
      %v4756 = vrot.slane %v4752, %v4755
      %v4757 = vmul.f32 %v4468, %v4756
      %v4758 = vmul.f32 %v4469, %v4756
      %v4759 = vmul.f32 %v4470, %v4756
      %v4760 = vmul.f32 %v4471, %v4756
      %v4761 = vmul.f32 %v4472, %v4756
      %v4762 = vmul.f32 %v4473, %v4756
      %v4763 = vmul.f32 %v4474, %v4756
      %v4764 = vmul.f32 %v4475, %v4756
      %v4765 = vmul.f32 %v4476, %v4756
      %v4766 = vadd.f32 %v4757, 0.0
      %v4767 = vadd.f32 %v4758, 0.0
      %v4768 = vadd.f32 %v4759, 0.0
      %v4769 = vadd.f32 %v4760, 0.0
      %v4770 = vadd.f32 %v4761, 0.0
      %v4771 = vadd.f32 %v4762, 0.0
      %v4772 = vadd.f32 %v4763, 0.0
      %v4773 = vadd.f32 %v4764, 0.0
      %v4774 = vadd.f32 %v4765, 0.0
      %v4775 = vld [vmem:[%s4 + $0x8] sm:$0x1]
      %v4776 = vlaneseq
      %v4777 = vshrl.u32 %v4776, 7
      %v4778 = vsub.s32 0, %v4777
      %v4779 = vrot.slane %v4775, %v4778
      %v4780 = vmul.f32 %v4469, %v4779
      %v4781 = vmul.f32 %v4470, %v4779
      %v4782 = vmul.f32 %v4471, %v4779
      %v4783 = vmul.f32 %v4472, %v4779
      %v4784 = vmul.f32 %v4473, %v4779
      %v4785 = vmul.f32 %v4474, %v4779
      %v4786 = vmul.f32 %v4475, %v4779
      %v4787 = vmul.f32 %v4476, %v4779
      %v4788 = vmul.f32 %v4477, %v4779
      %v4789 = vadd.f32 %v4766, %v4780
      %v4790 = vadd.f32 %v4767, %v4781
      %v4791 = vadd.f32 %v4768, %v4782
      %v4792 = vadd.f32 %v4769, %v4783
      %v4793 = vadd.f32 %v4770, %v4784
      %v4794 = vadd.f32 %v4771, %v4785
      %v4795 = vadd.f32 %v4772, %v4786
      %v4796 = vadd.f32 %v4773, %v4787
      %v4797 = vadd.f32 %v4774, %v4788
      %v4798 = vld [vmem:[%s4 + $0xf] sm:$0x1]
      %v4799 = vlaneseq
      %v4800 = vshrl.u32 %v4799, 7
      %v4801 = vsub.s32 0, %v4800
      %v4802 = vrot.slane %v4798, %v4801
      %v4803 = vmul.f32 %v4470, %v4802
      %v4804 = vmul.f32 %v4471, %v4802
      %v4805 = vmul.f32 %v4472, %v4802
      %v4806 = vmul.f32 %v4473, %v4802
      %v4807 = vmul.f32 %v4474, %v4802
      %v4808 = vmul.f32 %v4475, %v4802
      %v4809 = vmul.f32 %v4476, %v4802
      %v4810 = vmul.f32 %v4477, %v4802
      %v4811 = vmul.f32 %v4478, %v4802
      %v4812 = vadd.f32 %v4789, %v4803
      %v4813 = vadd.f32 %v4790, %v4804
      %v4814 = vadd.f32 %v4791, %v4805
      %v4815 = vadd.f32 %v4792, %v4806
      %v4816 = vadd.f32 %v4793, %v4807
      %v4817 = vadd.f32 %v4794, %v4808
      %v4818 = vadd.f32 %v4795, %v4809
      %v4819 = vadd.f32 %v4796, %v4810
      %v4820 = vadd.f32 %v4797, %v4811
      %v4821 = vld [vmem:[%s4 + $0x16] sm:$0x1]
      %v4822 = vlaneseq
      %v4823 = vshrl.u32 %v4822, 7
      %v4824 = vsub.s32 0, %v4823
      %v4825 = vrot.slane %v4821, %v4824
      %v4826 = vmul.f32 %v4471, %v4825
      %v4827 = vmul.f32 %v4472, %v4825
      %v4828 = vmul.f32 %v4473, %v4825
      %v4829 = vmul.f32 %v4474, %v4825
      %v4830 = vmul.f32 %v4475, %v4825
      %v4831 = vmul.f32 %v4476, %v4825
      %v4832 = vmul.f32 %v4477, %v4825
      %v4833 = vmul.f32 %v4478, %v4825
      %v4834 = vmul.f32 %v4479, %v4825
      %v4835 = vadd.f32 %v4812, %v4826
      %v4836 = vadd.f32 %v4813, %v4827
      %v4837 = vadd.f32 %v4814, %v4828
      %v4838 = vadd.f32 %v4815, %v4829
      %v4839 = vadd.f32 %v4816, %v4830
      %v4840 = vadd.f32 %v4817, %v4831
      %v4841 = vadd.f32 %v4818, %v4832
      %v4842 = vadd.f32 %v4819, %v4833
      %v4843 = vadd.f32 %v4820, %v4834
      %v4844 = vld [vmem:[%s4 + $0x1d] sm:$0x1]
      %v4845 = vlaneseq
      %v4846 = vshrl.u32 %v4845, 7
      %v4847 = vsub.s32 0, %v4846
      %v4848 = vrot.slane %v4844, %v4847
      %v4849 = vmul.f32 %v4472, %v4848
      %v4850 = vmul.f32 %v4473, %v4848
      %v4851 = vmul.f32 %v4474, %v4848
      %v4852 = vmul.f32 %v4475, %v4848
      %v4853 = vmul.f32 %v4476, %v4848
      %v4854 = vmul.f32 %v4477, %v4848
      %v4855 = vmul.f32 %v4478, %v4848
      %v4856 = vmul.f32 %v4479, %v4848
      %v4857 = vmul.f32 %v4480, %v4848
      %v4858 = vadd.f32 %v4835, %v4849
      %v4859 = vadd.f32 %v4836, %v4850
      %v4860 = vadd.f32 %v4837, %v4851
      %v4861 = vadd.f32 %v4838, %v4852
      %v4862 = vadd.f32 %v4839, %v4853
      %v4863 = vadd.f32 %v4840, %v4854
      %v4864 = vadd.f32 %v4841, %v4855
      %v4865 = vadd.f32 %v4842, %v4856
      %v4866 = vadd.f32 %v4843, %v4857
      %v4867 = vld [vmem:[%s4 + $0x24] sm:$0x1]
      %v4868 = vlaneseq
      %v4869 = vshrl.u32 %v4868, 7
      %v4870 = vsub.s32 0, %v4869
      %v4871 = vrot.slane %v4867, %v4870
      %v4872 = vmul.f32 %v4473, %v4871
      %v4873 = vmul.f32 %v4474, %v4871
      %v4874 = vmul.f32 %v4475, %v4871
      %v4875 = vmul.f32 %v4476, %v4871
      %v4876 = vmul.f32 %v4477, %v4871
      %v4877 = vmul.f32 %v4478, %v4871
      %v4878 = vmul.f32 %v4479, %v4871
      %v4879 = vmul.f32 %v4480, %v4871
      %v4880 = vmul.f32 %v4481, %v4871
      %v4881 = vadd.f32 %v4858, %v4872
      %v4882 = vadd.f32 %v4859, %v4873
      %v4883 = vadd.f32 %v4860, %v4874
      %v4884 = vadd.f32 %v4861, %v4875
      %v4885 = vadd.f32 %v4862, %v4876
      %v4886 = vadd.f32 %v4863, %v4877
      %v4887 = vadd.f32 %v4864, %v4878
      %v4888 = vadd.f32 %v4865, %v4879
      %v4889 = vadd.f32 %v4866, %v4880
      %v4890 = vld [vmem:[%s4 + $0x2b] sm:$0x1]
      %v4891 = vlaneseq
      %v4892 = vshrl.u32 %v4891, 7
      %v4893 = vsub.s32 0, %v4892
      %v4894 = vrot.slane %v4890, %v4893
      %v4895 = vmul.f32 %v4474, %v4894
      %v4896 = vmul.f32 %v4475, %v4894
      %v4897 = vmul.f32 %v4476, %v4894
      %v4898 = vmul.f32 %v4477, %v4894
      %v4899 = vmul.f32 %v4478, %v4894
      %v4900 = vmul.f32 %v4479, %v4894
      %v4901 = vmul.f32 %v4480, %v4894
      %v4902 = vmul.f32 %v4481, %v4894
      %v4903 = vmul.f32 %v4482, %v4894
      %v4904 = vadd.f32 %v4881, %v4895
      %v4905 = vadd.f32 %v4882, %v4896
      %v4906 = vadd.f32 %v4883, %v4897
      %v4907 = vadd.f32 %v4884, %v4898
      %v4908 = vadd.f32 %v4885, %v4899
      %v4909 = vadd.f32 %v4886, %v4900
      %v4910 = vadd.f32 %v4887, %v4901
      %v4911 = vadd.f32 %v4888, %v4902
      %v4912 = vadd.f32 %v4889, %v4903
      %vm4913 = vcmp.ge.f32.partialorder %v4492, 2.0
      %vm4914 = vcmp.ge.f32.partialorder %v4493, 2.0
      %vm4915 = vcmp.ge.f32.partialorder %v4494, 2.0
      %vm4916 = vcmp.ge.f32.partialorder %v4495, 2.0
      %vm4917 = vcmp.ge.f32.partialorder %v4496, 2.0
      %vm4918 = vcmp.ge.f32.partialorder %v4497, 2.0
      %vm4919 = vcmp.ge.f32.partialorder %v4498, 2.0
      %vm4920 = vcmp.ge.f32.partialorder %v4499, 2.0
      %vm4921 = vcmp.lt.f32.partialorder %v4492, 10.0
      %vm4922 = vcmp.lt.f32.partialorder %v4493, 10.0
      %vm4923 = vcmp.lt.f32.partialorder %v4494, 10.0
      %vm4924 = vcmp.lt.f32.partialorder %v4495, 10.0
      %vm4925 = vcmp.lt.f32.partialorder %v4496, 10.0
      %vm4926 = vcmp.lt.f32.partialorder %v4497, 10.0
      %vm4927 = vcmp.lt.f32.partialorder %v4498, 10.0
      %vm4928 = vcmp.lt.f32.partialorder %v4499, 10.0
      %vm4929 = vmand %vm4913, %vm4921
      %vm4930 = vmand %vm4914, %vm4922
      %vm4931 = vmand %vm4915, %vm4923
      %vm4932 = vmand %vm4916, %vm4924
      %vm4933 = vmand %vm4917, %vm4925
      %vm4934 = vmand %vm4918, %vm4926
      %vm4935 = vmand %vm4919, %vm4927
      %vm4936 = vmand %vm4920, %vm4928
      %v4937 = vsel %vm4929, 1, 0
      %v4938 = vsel %vm4930, 1, 0
      %v4939 = vsel %vm4931, 1, 0
      %v4940 = vsel %vm4932, 1, 0
      %v4941 = vsel %vm4933, 1, 0
      %v4942 = vsel %vm4934, 1, 0
      %v4943 = vsel %vm4935, 1, 0
      %v4944 = vsel %vm4936, 1, 0
      %v4945 = vcvt.s32.f32 %v4937
      %v4946 = vcvt.s32.f32 %v4938
      %v4947 = vcvt.s32.f32 %v4939
      %v4948 = vcvt.s32.f32 %v4940
      %v4949 = vcvt.s32.f32 %v4941
      %v4950 = vcvt.s32.f32 %v4942
      %v4951 = vcvt.s32.f32 %v4943
      %v4952 = vcvt.s32.f32 %v4944
      %vm4961 = vcmask 1045504
      %v4962 = vrot.slane %v4945, 2
      %v4963 = vrot.slane %v4946, 2
      %v4964 = vsel %vm4961, %v4962, %v4963
      %v4965 = vrot.slane %v4947, 2
      %v4966 = vsel %vm4961, %v4963, %v4965
      %v4967 = vrot.slane %v4948, 2
      %v4968 = vsel %vm4961, %v4965, %v4967
      %v4969 = vrot.slane %v4949, 2
      %v4970 = vsel %vm4961, %v4967, %v4969
      %v4971 = vrot.slane %v4950, 2
      %v4972 = vsel %vm4961, %v4969, %v4971
      %v4973 = vrot.slane %v4951, 2
      %v4974 = vsel %vm4961, %v4971, %v4973
      %v4975 = vrot.slane %v4952, 2
      %v4976 = vsel %vm4961, %v4973, %v4975
      %v4986 = vmul.f32 %v4904, %v4962
      %v4987 = vmul.f32 %v4905, %v4964
      %v4988 = vmul.f32 %v4906, %v4966
      %v4989 = vmul.f32 %v4907, %v4968
      %v4990 = vmul.f32 %v4908, %v4970
      %v4991 = vmul.f32 %v4909, %v4972
      %v4992 = vmul.f32 %v4910, %v4974
      %v4993 = vmul.f32 %v4911, %v4976
      %v4994 = vmul.f32 %v4912, %v4975
      %vm5004 = vcmask 1046528
      %v5005 = vrot.slane %v4986, 1
      %v5006 = vrot.slane %v4987, 1
      %v5007 = vsel %vm5004, %v5005, %v5006
      %v5008 = vrot.slane %v4988, 1
      %v5009 = vsel %vm5004, %v5006, %v5008
      %v5010 = vrot.slane %v4989, 1
      %v5011 = vsel %vm5004, %v5008, %v5010
      %v5012 = vrot.slane %v4990, 1
      %v5013 = vsel %vm5004, %v5010, %v5012
      %v5014 = vrot.slane %v4991, 1
      %v5015 = vsel %vm5004, %v5012, %v5014
      %v5016 = vrot.slane %v4992, 1
      %v5017 = vsel %vm5004, %v5014, %v5016
      %v5018 = vrot.slane %v4993, 1
      %v5019 = vsel %vm5004, %v5016, %v5018
      %v5020 = vrot.slane %v4994, 1
      %v5021 = vsel %vm5004, %v5018, %v5020
      %v5031 = vadd.f32 %v4743, %v5007
      %v5032 = vadd.f32 %v4744, %v5009
      %v5033 = vadd.f32 %v4745, %v5011
      %v5034 = vadd.f32 %v4746, %v5013
      %v5035 = vadd.f32 %v4747, %v5015
      %v5036 = vadd.f32 %v4748, %v5017
      %v5037 = vadd.f32 %v4749, %v5019
      %v5038 = vadd.f32 %v4750, %v5021
      %v5039 = vadd.f32 %v4751, %v5020
      %v5040 = vld [vmem:[%s4 + $0x2] sm:$0x1]
      %v5041 = vlaneseq
      %v5042 = vshrl.u32 %v5041, 7
      %v5043 = vsub.s32 0, %v5042
      %v5044 = vrot.slane %v5040, %v5043
      %v5045 = vmul.f32 %v4468, %v5044
      %v5046 = vmul.f32 %v4469, %v5044
      %v5047 = vmul.f32 %v4470, %v5044
      %v5048 = vmul.f32 %v4471, %v5044
      %v5049 = vmul.f32 %v4472, %v5044
      %v5050 = vmul.f32 %v4473, %v5044
      %v5051 = vmul.f32 %v4474, %v5044
      %v5052 = vmul.f32 %v4475, %v5044
      %v5053 = vmul.f32 %v4476, %v5044
      %v5054 = vadd.f32 %v5045, 0.0
      %v5055 = vadd.f32 %v5046, 0.0
      %v5056 = vadd.f32 %v5047, 0.0
      %v5057 = vadd.f32 %v5048, 0.0
      %v5058 = vadd.f32 %v5049, 0.0
      %v5059 = vadd.f32 %v5050, 0.0
      %v5060 = vadd.f32 %v5051, 0.0
      %v5061 = vadd.f32 %v5052, 0.0
      %v5062 = vadd.f32 %v5053, 0.0
      %v5063 = vld [vmem:[%s4 + $0x9] sm:$0x1]
      %v5064 = vlaneseq
      %v5065 = vshrl.u32 %v5064, 7
      %v5066 = vsub.s32 0, %v5065
      %v5067 = vrot.slane %v5063, %v5066
      %v5068 = vmul.f32 %v4469, %v5067
      %v5069 = vmul.f32 %v4470, %v5067
      %v5070 = vmul.f32 %v4471, %v5067
      %v5071 = vmul.f32 %v4472, %v5067
      %v5072 = vmul.f32 %v4473, %v5067
      %v5073 = vmul.f32 %v4474, %v5067
      %v5074 = vmul.f32 %v4475, %v5067
      %v5075 = vmul.f32 %v4476, %v5067
      %v5076 = vmul.f32 %v4477, %v5067
      %v5077 = vadd.f32 %v5054, %v5068
      %v5078 = vadd.f32 %v5055, %v5069
      %v5079 = vadd.f32 %v5056, %v5070
      %v5080 = vadd.f32 %v5057, %v5071
      %v5081 = vadd.f32 %v5058, %v5072
      %v5082 = vadd.f32 %v5059, %v5073
      %v5083 = vadd.f32 %v5060, %v5074
      %v5084 = vadd.f32 %v5061, %v5075
      %v5085 = vadd.f32 %v5062, %v5076
      %v5086 = vld [vmem:[%s4 + $0x10] sm:$0x1]
      %v5087 = vlaneseq
      %v5088 = vshrl.u32 %v5087, 7
      %v5089 = vsub.s32 0, %v5088
      %v5090 = vrot.slane %v5086, %v5089
      %v5091 = vmul.f32 %v4470, %v5090
      %v5092 = vmul.f32 %v4471, %v5090
      %v5093 = vmul.f32 %v4472, %v5090
      %v5094 = vmul.f32 %v4473, %v5090
      %v5095 = vmul.f32 %v4474, %v5090
      %v5096 = vmul.f32 %v4475, %v5090
      %v5097 = vmul.f32 %v4476, %v5090
      %v5098 = vmul.f32 %v4477, %v5090
      %v5099 = vmul.f32 %v4478, %v5090
      %v5100 = vadd.f32 %v5077, %v5091
      %v5101 = vadd.f32 %v5078, %v5092
      %v5102 = vadd.f32 %v5079, %v5093
      %v5103 = vadd.f32 %v5080, %v5094
      %v5104 = vadd.f32 %v5081, %v5095
      %v5105 = vadd.f32 %v5082, %v5096
      %v5106 = vadd.f32 %v5083, %v5097
      %v5107 = vadd.f32 %v5084, %v5098
      %v5108 = vadd.f32 %v5085, %v5099
      %v5109 = vld [vmem:[%s4 + $0x17] sm:$0x1]
      %v5110 = vlaneseq
      %v5111 = vshrl.u32 %v5110, 7
      %v5112 = vsub.s32 0, %v5111
      %v5113 = vrot.slane %v5109, %v5112
      %v5114 = vmul.f32 %v4471, %v5113
      %v5115 = vmul.f32 %v4472, %v5113
      %v5116 = vmul.f32 %v4473, %v5113
      %v5117 = vmul.f32 %v4474, %v5113
      %v5118 = vmul.f32 %v4475, %v5113
      %v5119 = vmul.f32 %v4476, %v5113
      %v5120 = vmul.f32 %v4477, %v5113
      %v5121 = vmul.f32 %v4478, %v5113
      %v5122 = vmul.f32 %v4479, %v5113
      %v5123 = vadd.f32 %v5100, %v5114
      %v5124 = vadd.f32 %v5101, %v5115
      %v5125 = vadd.f32 %v5102, %v5116
      %v5126 = vadd.f32 %v5103, %v5117
      %v5127 = vadd.f32 %v5104, %v5118
      %v5128 = vadd.f32 %v5105, %v5119
      %v5129 = vadd.f32 %v5106, %v5120
      %v5130 = vadd.f32 %v5107, %v5121
      %v5131 = vadd.f32 %v5108, %v5122
      %v5132 = vld [vmem:[%s4 + $0x1e] sm:$0x1]
      %v5133 = vlaneseq
      %v5134 = vshrl.u32 %v5133, 7
      %v5135 = vsub.s32 0, %v5134
      %v5136 = vrot.slane %v5132, %v5135
      %v5137 = vmul.f32 %v4472, %v5136
      %v5138 = vmul.f32 %v4473, %v5136
      %v5139 = vmul.f32 %v4474, %v5136
      %v5140 = vmul.f32 %v4475, %v5136
      %v5141 = vmul.f32 %v4476, %v5136
      %v5142 = vmul.f32 %v4477, %v5136
      %v5143 = vmul.f32 %v4478, %v5136
      %v5144 = vmul.f32 %v4479, %v5136
      %v5145 = vmul.f32 %v4480, %v5136
      %v5146 = vadd.f32 %v5123, %v5137
      %v5147 = vadd.f32 %v5124, %v5138
      %v5148 = vadd.f32 %v5125, %v5139
      %v5149 = vadd.f32 %v5126, %v5140
      %v5150 = vadd.f32 %v5127, %v5141
      %v5151 = vadd.f32 %v5128, %v5142
      %v5152 = vadd.f32 %v5129, %v5143
      %v5153 = vadd.f32 %v5130, %v5144
      %v5154 = vadd.f32 %v5131, %v5145
      %v5155 = vld [vmem:[%s4 + $0x25] sm:$0x1]
      %v5156 = vlaneseq
      %v5157 = vshrl.u32 %v5156, 7
      %v5158 = vsub.s32 0, %v5157
      %v5159 = vrot.slane %v5155, %v5158
      %v5160 = vmul.f32 %v4473, %v5159
      %v5161 = vmul.f32 %v4474, %v5159
      %v5162 = vmul.f32 %v4475, %v5159
      %v5163 = vmul.f32 %v4476, %v5159
      %v5164 = vmul.f32 %v4477, %v5159
      %v5165 = vmul.f32 %v4478, %v5159
      %v5166 = vmul.f32 %v4479, %v5159
      %v5167 = vmul.f32 %v4480, %v5159
      %v5168 = vmul.f32 %v4481, %v5159
      %v5169 = vadd.f32 %v5146, %v5160
      %v5170 = vadd.f32 %v5147, %v5161
      %v5171 = vadd.f32 %v5148, %v5162
      %v5172 = vadd.f32 %v5149, %v5163
      %v5173 = vadd.f32 %v5150, %v5164
      %v5174 = vadd.f32 %v5151, %v5165
      %v5175 = vadd.f32 %v5152, %v5166
      %v5176 = vadd.f32 %v5153, %v5167
      %v5177 = vadd.f32 %v5154, %v5168
      %v5178 = vld [vmem:[%s4 + $0x2c] sm:$0x1]
      %v5179 = vlaneseq
      %v5180 = vshrl.u32 %v5179, 7
      %v5181 = vsub.s32 0, %v5180
      %v5182 = vrot.slane %v5178, %v5181
      %v5183 = vmul.f32 %v4474, %v5182
      %v5184 = vmul.f32 %v4475, %v5182
      %v5185 = vmul.f32 %v4476, %v5182
      %v5186 = vmul.f32 %v4477, %v5182
      %v5187 = vmul.f32 %v4478, %v5182
      %v5188 = vmul.f32 %v4479, %v5182
      %v5189 = vmul.f32 %v4480, %v5182
      %v5190 = vmul.f32 %v4481, %v5182
      %v5191 = vmul.f32 %v4482, %v5182
      %v5192 = vadd.f32 %v5169, %v5183
      %v5193 = vadd.f32 %v5170, %v5184
      %v5194 = vadd.f32 %v5171, %v5185
      %v5195 = vadd.f32 %v5172, %v5186
      %v5196 = vadd.f32 %v5173, %v5187
      %v5197 = vadd.f32 %v5174, %v5188
      %v5198 = vadd.f32 %v5175, %v5189
      %v5199 = vadd.f32 %v5176, %v5190
      %v5200 = vadd.f32 %v5177, %v5191
      %vm5201 = vcmp.ge.f32.partialorder %v4492, 1.0
      %vm5202 = vcmp.ge.f32.partialorder %v4493, 1.0
      %vm5203 = vcmp.ge.f32.partialorder %v4494, 1.0
      %vm5204 = vcmp.ge.f32.partialorder %v4495, 1.0
      %vm5205 = vcmp.ge.f32.partialorder %v4496, 1.0
      %vm5206 = vcmp.ge.f32.partialorder %v4497, 1.0
      %vm5207 = vcmp.ge.f32.partialorder %v4498, 1.0
      %vm5208 = vcmp.ge.f32.partialorder %v4499, 1.0
      %vm5209 = vcmp.lt.f32.partialorder %v4492, 9.0
      %vm5210 = vcmp.lt.f32.partialorder %v4493, 9.0
      %vm5211 = vcmp.lt.f32.partialorder %v4494, 9.0
      %vm5212 = vcmp.lt.f32.partialorder %v4495, 9.0
      %vm5213 = vcmp.lt.f32.partialorder %v4496, 9.0
      %vm5214 = vcmp.lt.f32.partialorder %v4497, 9.0
      %vm5215 = vcmp.lt.f32.partialorder %v4498, 9.0
      %vm5216 = vcmp.lt.f32.partialorder %v4499, 9.0
      %vm5217 = vmand %vm5201, %vm5209
      %vm5218 = vmand %vm5202, %vm5210
      %vm5219 = vmand %vm5203, %vm5211
      %vm5220 = vmand %vm5204, %vm5212
      %vm5221 = vmand %vm5205, %vm5213
      %vm5222 = vmand %vm5206, %vm5214
      %vm5223 = vmand %vm5207, %vm5215
      %vm5224 = vmand %vm5208, %vm5216
      %v5225 = vsel %vm5217, 1, 0
      %v5226 = vsel %vm5218, 1, 0
      %v5227 = vsel %vm5219, 1, 0
      %v5228 = vsel %vm5220, 1, 0
      %v5229 = vsel %vm5221, 1, 0
      %v5230 = vsel %vm5222, 1, 0
      %v5231 = vsel %vm5223, 1, 0
      %v5232 = vsel %vm5224, 1, 0
      %v5233 = vcvt.s32.f32 %v5225
      %v5234 = vcvt.s32.f32 %v5226
      %v5235 = vcvt.s32.f32 %v5227
      %v5236 = vcvt.s32.f32 %v5228
      %v5237 = vcvt.s32.f32 %v5229
      %v5238 = vcvt.s32.f32 %v5230
      %v5239 = vcvt.s32.f32 %v5231
      %v5240 = vcvt.s32.f32 %v5232
      %v5249 = vrot.slane %v5233, 1
      %v5250 = vrot.slane %v5234, 1
      %v5251 = vsel %vm5004, %v5249, %v5250
      %v5252 = vrot.slane %v5235, 1
      %v5253 = vsel %vm5004, %v5250, %v5252
      %v5254 = vrot.slane %v5236, 1
      %v5255 = vsel %vm5004, %v5252, %v5254
      %v5256 = vrot.slane %v5237, 1
      %v5257 = vsel %vm5004, %v5254, %v5256
      %v5258 = vrot.slane %v5238, 1
      %v5259 = vsel %vm5004, %v5256, %v5258
      %v5260 = vrot.slane %v5239, 1
      %v5261 = vsel %vm5004, %v5258, %v5260
      %v5262 = vrot.slane %v5240, 1
      %v5263 = vsel %vm5004, %v5260, %v5262
      %v5273 = vmul.f32 %v5192, %v5249
      %v5274 = vmul.f32 %v5193, %v5251
      %v5275 = vmul.f32 %v5194, %v5253
      %v5276 = vmul.f32 %v5195, %v5255
      %v5277 = vmul.f32 %v5196, %v5257
      %v5278 = vmul.f32 %v5197, %v5259
      %v5279 = vmul.f32 %v5198, %v5261
      %v5280 = vmul.f32 %v5199, %v5263
      %v5281 = vmul.f32 %v5200, %v5262
      %v5291 = vrot.slane %v5273, 2
      %v5292 = vrot.slane %v5274, 2
      %v5293 = vsel %vm4961, %v5291, %v5292
      %v5294 = vrot.slane %v5275, 2
      %v5295 = vsel %vm4961, %v5292, %v5294
      %v5296 = vrot.slane %v5276, 2
      %v5297 = vsel %vm4961, %v5294, %v5296
      %v5298 = vrot.slane %v5277, 2
      %v5299 = vsel %vm4961, %v5296, %v5298
      %v5300 = vrot.slane %v5278, 2
      %v5301 = vsel %vm4961, %v5298, %v5300
      %v5302 = vrot.slane %v5279, 2
      %v5303 = vsel %vm4961, %v5300, %v5302
      %v5304 = vrot.slane %v5280, 2
      %v5305 = vsel %vm4961, %v5302, %v5304
      %v5306 = vrot.slane %v5281, 2
      %v5307 = vsel %vm4961, %v5304, %v5306
      %v5317 = vadd.f32 %v5031, %v5293
      %v5318 = vadd.f32 %v5032, %v5295
      %v5319 = vadd.f32 %v5033, %v5297
      %v5320 = vadd.f32 %v5034, %v5299
      %v5321 = vadd.f32 %v5035, %v5301
      %v5322 = vadd.f32 %v5036, %v5303
      %v5323 = vadd.f32 %v5037, %v5305
      %v5324 = vadd.f32 %v5038, %v5307
      %v5325 = vadd.f32 %v5039, %v5306
      %v5326 = vld [vmem:[%s4 + $0x3] sm:$0x1]
      %v5327 = vlaneseq
      %v5328 = vshrl.u32 %v5327, 7
      %v5329 = vsub.s32 0, %v5328
      %v5330 = vrot.slane %v5326, %v5329
      %v5331 = vmul.f32 %v4469, %v5330
      %v5332 = vmul.f32 %v4470, %v5330
      %v5333 = vmul.f32 %v4471, %v5330
      %v5334 = vmul.f32 %v4472, %v5330
      %v5335 = vmul.f32 %v4473, %v5330
      %v5336 = vmul.f32 %v4474, %v5330
      %v5337 = vmul.f32 %v4475, %v5330
      %v5338 = vmul.f32 %v4476, %v5330
      %v5339 = vadd.f32 %v5331, 0.0
      %v5340 = vadd.f32 %v5332, 0.0
      %v5341 = vadd.f32 %v5333, 0.0
      %v5342 = vadd.f32 %v5334, 0.0
      %v5343 = vadd.f32 %v5335, 0.0
      %v5344 = vadd.f32 %v5336, 0.0
      %v5345 = vadd.f32 %v5337, 0.0
      %v5346 = vadd.f32 %v5338, 0.0
      %v5347 = vld [vmem:[%s4 + $0xa] sm:$0x1]
      %v5348 = vlaneseq
      %v5349 = vshrl.u32 %v5348, 7
      %v5350 = vsub.s32 0, %v5349
      %v5351 = vrot.slane %v5347, %v5350
      %v5352 = vmul.f32 %v4470, %v5351
      %v5353 = vmul.f32 %v4471, %v5351
      %v5354 = vmul.f32 %v4472, %v5351
      %v5355 = vmul.f32 %v4473, %v5351
      %v5356 = vmul.f32 %v4474, %v5351
      %v5357 = vmul.f32 %v4475, %v5351
      %v5358 = vmul.f32 %v4476, %v5351
      %v5359 = vmul.f32 %v4477, %v5351
      %v5360 = vadd.f32 %v5339, %v5352
      %v5361 = vadd.f32 %v5340, %v5353
      %v5362 = vadd.f32 %v5341, %v5354
      %v5363 = vadd.f32 %v5342, %v5355
      %v5364 = vadd.f32 %v5343, %v5356
      %v5365 = vadd.f32 %v5344, %v5357
      %v5366 = vadd.f32 %v5345, %v5358
      %v5367 = vadd.f32 %v5346, %v5359
      %v5368 = vld [vmem:[%s4 + $0x11] sm:$0x1]
      %v5369 = vlaneseq
      %v5370 = vshrl.u32 %v5369, 7
      %v5371 = vsub.s32 0, %v5370
      %v5372 = vrot.slane %v5368, %v5371
      %v5373 = vmul.f32 %v4471, %v5372
      %v5374 = vmul.f32 %v4472, %v5372
      %v5375 = vmul.f32 %v4473, %v5372
      %v5376 = vmul.f32 %v4474, %v5372
      %v5377 = vmul.f32 %v4475, %v5372
      %v5378 = vmul.f32 %v4476, %v5372
      %v5379 = vmul.f32 %v4477, %v5372
      %v5380 = vmul.f32 %v4478, %v5372
      %v5381 = vadd.f32 %v5360, %v5373
      %v5382 = vadd.f32 %v5361, %v5374
      %v5383 = vadd.f32 %v5362, %v5375
      %v5384 = vadd.f32 %v5363, %v5376
      %v5385 = vadd.f32 %v5364, %v5377
      %v5386 = vadd.f32 %v5365, %v5378
      %v5387 = vadd.f32 %v5366, %v5379
      %v5388 = vadd.f32 %v5367, %v5380
      %v5389 = vld [vmem:[%s4 + $0x18] sm:$0x1]
      %v5390 = vlaneseq
      %v5391 = vshrl.u32 %v5390, 7
      %v5392 = vsub.s32 0, %v5391
      %v5393 = vrot.slane %v5389, %v5392
      %v5394 = vmul.f32 %v4472, %v5393
      %v5395 = vmul.f32 %v4473, %v5393
      %v5396 = vmul.f32 %v4474, %v5393
      %v5397 = vmul.f32 %v4475, %v5393
      %v5398 = vmul.f32 %v4476, %v5393
      %v5399 = vmul.f32 %v4477, %v5393
      %v5400 = vmul.f32 %v4478, %v5393
      %v5401 = vmul.f32 %v4479, %v5393
      %v5402 = vadd.f32 %v5381, %v5394
      %v5403 = vadd.f32 %v5382, %v5395
      %v5404 = vadd.f32 %v5383, %v5396
      %v5405 = vadd.f32 %v5384, %v5397
      %v5406 = vadd.f32 %v5385, %v5398
      %v5407 = vadd.f32 %v5386, %v5399
      %v5408 = vadd.f32 %v5387, %v5400
      %v5409 = vadd.f32 %v5388, %v5401
      %v5410 = vld [vmem:[%s4 + $0x1f] sm:$0x1]
      %v5411 = vlaneseq
      %v5412 = vshrl.u32 %v5411, 7
      %v5413 = vsub.s32 0, %v5412
      %v5414 = vrot.slane %v5410, %v5413
      %v5415 = vmul.f32 %v4473, %v5414
      %v5416 = vmul.f32 %v4474, %v5414
      %v5417 = vmul.f32 %v4475, %v5414
      %v5418 = vmul.f32 %v4476, %v5414
      %v5419 = vmul.f32 %v4477, %v5414
      %v5420 = vmul.f32 %v4478, %v5414
      %v5421 = vmul.f32 %v4479, %v5414
      %v5422 = vmul.f32 %v4480, %v5414
      %v5423 = vadd.f32 %v5402, %v5415
      %v5424 = vadd.f32 %v5403, %v5416
      %v5425 = vadd.f32 %v5404, %v5417
      %v5426 = vadd.f32 %v5405, %v5418
      %v5427 = vadd.f32 %v5406, %v5419
      %v5428 = vadd.f32 %v5407, %v5420
      %v5429 = vadd.f32 %v5408, %v5421
      %v5430 = vadd.f32 %v5409, %v5422
      %v5431 = vld [vmem:[%s4 + $0x26] sm:$0x1]
      %v5432 = vlaneseq
      %v5433 = vshrl.u32 %v5432, 7
      %v5434 = vsub.s32 0, %v5433
      %v5435 = vrot.slane %v5431, %v5434
      %v5436 = vmul.f32 %v4474, %v5435
      %v5437 = vmul.f32 %v4475, %v5435
      %v5438 = vmul.f32 %v4476, %v5435
      %v5439 = vmul.f32 %v4477, %v5435
      %v5440 = vmul.f32 %v4478, %v5435
      %v5441 = vmul.f32 %v4479, %v5435
      %v5442 = vmul.f32 %v4480, %v5435
      %v5443 = vmul.f32 %v4481, %v5435
      %v5444 = vadd.f32 %v5423, %v5436
      %v5445 = vadd.f32 %v5424, %v5437
      %v5446 = vadd.f32 %v5425, %v5438
      %v5447 = vadd.f32 %v5426, %v5439
      %v5448 = vadd.f32 %v5427, %v5440
      %v5449 = vadd.f32 %v5428, %v5441
      %v5450 = vadd.f32 %v5429, %v5442
      %v5451 = vadd.f32 %v5430, %v5443
      %v5452 = vld [vmem:[%s4 + $0x2d] sm:$0x1]
      %v5453 = vlaneseq
      %v5454 = vshrl.u32 %v5453, 7
      %v5455 = vsub.s32 0, %v5454
      %v5456 = vrot.slane %v5452, %v5455
      %v5457 = vmul.f32 %v4475, %v5456
      %v5458 = vmul.f32 %v4476, %v5456
      %v5459 = vmul.f32 %v4477, %v5456
      %v5460 = vmul.f32 %v4478, %v5456
      %v5461 = vmul.f32 %v4479, %v5456
      %v5462 = vmul.f32 %v4480, %v5456
      %v5463 = vmul.f32 %v4481, %v5456
      %v5464 = vmul.f32 %v4482, %v5456
      %v5465 = vadd.f32 %v5444, %v5457
      %v5466 = vadd.f32 %v5445, %v5458
      %v5467 = vadd.f32 %v5446, %v5459
      %v5468 = vadd.f32 %v5447, %v5460
      %v5469 = vadd.f32 %v5448, %v5461
      %v5470 = vadd.f32 %v5449, %v5462
      %v5471 = vadd.f32 %v5450, %v5463
      %v5472 = vadd.f32 %v5451, %v5464
      %vm5473 = vcmp.ge.f32.partialorder %v4492, 0.0
      %vm5474 = vcmp.ge.f32.partialorder %v4493, 0.0
      %vm5475 = vcmp.ge.f32.partialorder %v4494, 0.0
      %vm5476 = vcmp.ge.f32.partialorder %v4495, 0.0
      %vm5477 = vcmp.ge.f32.partialorder %v4496, 0.0
      %vm5478 = vcmp.ge.f32.partialorder %v4497, 0.0
      %vm5479 = vcmp.ge.f32.partialorder %v4498, 0.0
      %vm5480 = vcmp.ge.f32.partialorder %v4499, 0.0
      %vm5481 = vcmp.lt.f32.partialorder %v4492, 8.0
      %vm5482 = vcmp.lt.f32.partialorder %v4493, 8.0
      %vm5483 = vcmp.lt.f32.partialorder %v4494, 8.0
      %vm5484 = vcmp.lt.f32.partialorder %v4495, 8.0
      %vm5485 = vcmp.lt.f32.partialorder %v4496, 8.0
      %vm5486 = vcmp.lt.f32.partialorder %v4497, 8.0
      %vm5487 = vcmp.lt.f32.partialorder %v4498, 8.0
      %vm5488 = vcmp.lt.f32.partialorder %v4499, 8.0
      %vm5489 = vmand %vm5473, %vm5481
      %vm5490 = vmand %vm5474, %vm5482
      %vm5491 = vmand %vm5475, %vm5483
      %vm5492 = vmand %vm5476, %vm5484
      %vm5493 = vmand %vm5477, %vm5485
      %vm5494 = vmand %vm5478, %vm5486
      %vm5495 = vmand %vm5479, %vm5487
      %vm5496 = vmand %vm5480, %vm5488
      %v5497 = vsel %vm5489, 1, 0
      %v5498 = vsel %vm5490, 1, 0
      %v5499 = vsel %vm5491, 1, 0
      %v5500 = vsel %vm5492, 1, 0
      %v5501 = vsel %vm5493, 1, 0
      %v5502 = vsel %vm5494, 1, 0
      %v5503 = vsel %vm5495, 1, 0
      %v5504 = vsel %vm5496, 1, 0
      %v5505 = vcvt.s32.f32 %v5497
      %v5506 = vcvt.s32.f32 %v5498
      %v5507 = vcvt.s32.f32 %v5499
      %v5508 = vcvt.s32.f32 %v5500
      %v5509 = vcvt.s32.f32 %v5501
      %v5510 = vcvt.s32.f32 %v5502
      %v5511 = vcvt.s32.f32 %v5503
      %v5512 = vcvt.s32.f32 %v5504
      %v5513 = vmul.f32 %v5465, %v5505
      %v5514 = vmul.f32 %v5466, %v5506
      %v5515 = vmul.f32 %v5467, %v5507
      %v5516 = vmul.f32 %v5468, %v5508
      %v5517 = vmul.f32 %v5469, %v5509
      %v5518 = vmul.f32 %v5470, %v5510
      %v5519 = vmul.f32 %v5471, %v5511
      %v5520 = vmul.f32 %v5472, %v5512
      %v5529 = vrot.slane %v5513, 3
      %v5530 = vrot.slane %v5514, 3
      %v5531 = vsel %vm4709, %v5529, %v5530
      %v5532 = vrot.slane %v5515, 3
      %v5533 = vsel %vm4709, %v5530, %v5532
      %v5534 = vrot.slane %v5516, 3
      %v5535 = vsel %vm4709, %v5532, %v5534
      %v5536 = vrot.slane %v5517, 3
      %v5537 = vsel %vm4709, %v5534, %v5536
      %v5538 = vrot.slane %v5518, 3
      %v5539 = vsel %vm4709, %v5536, %v5538
      %v5540 = vrot.slane %v5519, 3
      %v5541 = vsel %vm4709, %v5538, %v5540
      %v5542 = vrot.slane %v5520, 3
      %v5543 = vsel %vm4709, %v5540, %v5542
      %v5553 = vadd.f32 %v5317, %v5529
      %v5554 = vadd.f32 %v5318, %v5531
      %v5555 = vadd.f32 %v5319, %v5533
      %v5556 = vadd.f32 %v5320, %v5535
      %v5557 = vadd.f32 %v5321, %v5537
      %v5558 = vadd.f32 %v5322, %v5539
      %v5559 = vadd.f32 %v5323, %v5541
      %v5560 = vadd.f32 %v5324, %v5543
      %v5561 = vadd.f32 %v5325, %v5542
      %v5562 = vld [vmem:[%s4 + $0x4] sm:$0x1]
      %v5563 = vlaneseq
      %v5564 = vshrl.u32 %v5563, 7
      %v5565 = vsub.s32 0, %v5564
      %v5566 = vrot.slane %v5562, %v5565
      %v5567 = vmul.f32 %v4469, %v5566
      %v5568 = vmul.f32 %v4470, %v5566
      %v5569 = vmul.f32 %v4471, %v5566
      %v5570 = vmul.f32 %v4472, %v5566
      %v5571 = vmul.f32 %v4473, %v5566
      %v5572 = vmul.f32 %v4474, %v5566
      %v5573 = vmul.f32 %v4475, %v5566
      %v5574 = vmul.f32 %v4476, %v5566
      %v5575 = vmul.f32 %v4477, %v5566
      %v5576 = vadd.f32 %v5567, 0.0
      %v5577 = vadd.f32 %v5568, 0.0
      %v5578 = vadd.f32 %v5569, 0.0
      %v5579 = vadd.f32 %v5570, 0.0
      %v5580 = vadd.f32 %v5571, 0.0
      %v5581 = vadd.f32 %v5572, 0.0
      %v5582 = vadd.f32 %v5573, 0.0
      %v5583 = vadd.f32 %v5574, 0.0
      %v5584 = vadd.f32 %v5575, 0.0
      %v5585 = vld [vmem:[%s4 + $0xb] sm:$0x1]
      %v5586 = vlaneseq
      %v5587 = vshrl.u32 %v5586, 7
      %v5588 = vsub.s32 0, %v5587
      %v5589 = vrot.slane %v5585, %v5588
      %v5590 = vmul.f32 %v4470, %v5589
      %v5591 = vmul.f32 %v4471, %v5589
      %v5592 = vmul.f32 %v4472, %v5589
      %v5593 = vmul.f32 %v4473, %v5589
      %v5594 = vmul.f32 %v4474, %v5589
      %v5595 = vmul.f32 %v4475, %v5589
      %v5596 = vmul.f32 %v4476, %v5589
      %v5597 = vmul.f32 %v4477, %v5589
      %v5598 = vmul.f32 %v4478, %v5589
      %v5599 = vadd.f32 %v5576, %v5590
      %v5600 = vadd.f32 %v5577, %v5591
      %v5601 = vadd.f32 %v5578, %v5592
      %v5602 = vadd.f32 %v5579, %v5593
      %v5603 = vadd.f32 %v5580, %v5594
      %v5604 = vadd.f32 %v5581, %v5595
      %v5605 = vadd.f32 %v5582, %v5596
      %v5606 = vadd.f32 %v5583, %v5597
      %v5607 = vadd.f32 %v5584, %v5598
      %v5608 = vld [vmem:[%s4 + $0x12] sm:$0x1]
      %v5609 = vlaneseq
      %v5610 = vshrl.u32 %v5609, 7
      %v5611 = vsub.s32 0, %v5610
      %v5612 = vrot.slane %v5608, %v5611
      %v5613 = vmul.f32 %v4471, %v5612
      %v5614 = vmul.f32 %v4472, %v5612
      %v5615 = vmul.f32 %v4473, %v5612
      %v5616 = vmul.f32 %v4474, %v5612
      %v5617 = vmul.f32 %v4475, %v5612
      %v5618 = vmul.f32 %v4476, %v5612
      %v5619 = vmul.f32 %v4477, %v5612
      %v5620 = vmul.f32 %v4478, %v5612
      %v5621 = vmul.f32 %v4479, %v5612
      %v5622 = vadd.f32 %v5599, %v5613
      %v5623 = vadd.f32 %v5600, %v5614
      %v5624 = vadd.f32 %v5601, %v5615
      %v5625 = vadd.f32 %v5602, %v5616
      %v5626 = vadd.f32 %v5603, %v5617
      %v5627 = vadd.f32 %v5604, %v5618
      %v5628 = vadd.f32 %v5605, %v5619
      %v5629 = vadd.f32 %v5606, %v5620
      %v5630 = vadd.f32 %v5607, %v5621
      %v5631 = vld [vmem:[%s4 + $0x19] sm:$0x1]
      %v5632 = vlaneseq
      %v5633 = vshrl.u32 %v5632, 7
      %v5634 = vsub.s32 0, %v5633
      %v5635 = vrot.slane %v5631, %v5634
      %v5636 = vmul.f32 %v4472, %v5635
      %v5637 = vmul.f32 %v4473, %v5635
      %v5638 = vmul.f32 %v4474, %v5635
      %v5639 = vmul.f32 %v4475, %v5635
      %v5640 = vmul.f32 %v4476, %v5635
      %v5641 = vmul.f32 %v4477, %v5635
      %v5642 = vmul.f32 %v4478, %v5635
      %v5643 = vmul.f32 %v4479, %v5635
      %v5644 = vmul.f32 %v4480, %v5635
      %v5645 = vadd.f32 %v5622, %v5636
      %v5646 = vadd.f32 %v5623, %v5637
      %v5647 = vadd.f32 %v5624, %v5638
      %v5648 = vadd.f32 %v5625, %v5639
      %v5649 = vadd.f32 %v5626, %v5640
      %v5650 = vadd.f32 %v5627, %v5641
      %v5651 = vadd.f32 %v5628, %v5642
      %v5652 = vadd.f32 %v5629, %v5643
      %v5653 = vadd.f32 %v5630, %v5644
      %v5654 = vld [vmem:[%s4 + $0x20] sm:$0x1]
      %v5655 = vlaneseq
      %v5656 = vshrl.u32 %v5655, 7
      %v5657 = vsub.s32 0, %v5656
      %v5658 = vrot.slane %v5654, %v5657
      %v5659 = vmul.f32 %v4473, %v5658
      %v5660 = vmul.f32 %v4474, %v5658
      %v5661 = vmul.f32 %v4475, %v5658
      %v5662 = vmul.f32 %v4476, %v5658
      %v5663 = vmul.f32 %v4477, %v5658
      %v5664 = vmul.f32 %v4478, %v5658
      %v5665 = vmul.f32 %v4479, %v5658
      %v5666 = vmul.f32 %v4480, %v5658
      %v5667 = vmul.f32 %v4481, %v5658
      %v5668 = vadd.f32 %v5645, %v5659
      %v5669 = vadd.f32 %v5646, %v5660
      %v5670 = vadd.f32 %v5647, %v5661
      %v5671 = vadd.f32 %v5648, %v5662
      %v5672 = vadd.f32 %v5649, %v5663
      %v5673 = vadd.f32 %v5650, %v5664
      %v5674 = vadd.f32 %v5651, %v5665
      %v5675 = vadd.f32 %v5652, %v5666
      %v5676 = vadd.f32 %v5653, %v5667
      %v5677 = vld [vmem:[%s4 + $0x27] sm:$0x1]
      %v5678 = vlaneseq
      %v5679 = vshrl.u32 %v5678, 7
      %v5680 = vsub.s32 0, %v5679
      %v5681 = vrot.slane %v5677, %v5680
      %v5682 = vmul.f32 %v4474, %v5681
      %v5683 = vmul.f32 %v4475, %v5681
      %v5684 = vmul.f32 %v4476, %v5681
      %v5685 = vmul.f32 %v4477, %v5681
      %v5686 = vmul.f32 %v4478, %v5681
      %v5687 = vmul.f32 %v4479, %v5681
      %v5688 = vmul.f32 %v4480, %v5681
      %v5689 = vmul.f32 %v4481, %v5681
      %v5690 = vmul.f32 %v4482, %v5681
      %v5691 = vadd.f32 %v5668, %v5682
      %v5692 = vadd.f32 %v5669, %v5683
      %v5693 = vadd.f32 %v5670, %v5684
      %v5694 = vadd.f32 %v5671, %v5685
      %v5695 = vadd.f32 %v5672, %v5686
      %v5696 = vadd.f32 %v5673, %v5687
      %v5697 = vadd.f32 %v5674, %v5688
      %v5698 = vadd.f32 %v5675, %v5689
      %v5699 = vadd.f32 %v5676, %v5690
      %v5700 = vld [vmem:[%s4 + $0x2e] sm:$0x1]
      %v5701 = vlaneseq
      %v5702 = vshrl.u32 %v5701, 7
      %v5703 = vsub.s32 0, %v5702
      %v5704 = vrot.slane %v5700, %v5703
      %v5705 = vmul.f32 %v4475, %v5704
      %v5706 = vmul.f32 %v4476, %v5704
      %v5707 = vmul.f32 %v4477, %v5704
      %v5708 = vmul.f32 %v4478, %v5704
      %v5709 = vmul.f32 %v4479, %v5704
      %v5710 = vmul.f32 %v4480, %v5704
      %v5711 = vmul.f32 %v4481, %v5704
      %v5712 = vmul.f32 %v4482, %v5704
      %v5713 = vmul.f32 %v4483, %v5704
      %v5714 = vadd.f32 %v5691, %v5705
      %v5715 = vadd.f32 %v5692, %v5706
      %v5716 = vadd.f32 %v5693, %v5707
      %v5717 = vadd.f32 %v5694, %v5708
      %v5718 = vadd.f32 %v5695, %v5709
      %v5719 = vadd.f32 %v5696, %v5710
      %v5720 = vadd.f32 %v5697, %v5711
      %v5721 = vadd.f32 %v5698, %v5712
      %v5722 = vadd.f32 %v5699, %v5713
      %vm5723 = vcmp.ge.f32.partialorder %v4492, -1.0
      %vm5724 = vcmp.ge.f32.partialorder %v4493, -1.0
      %vm5725 = vcmp.ge.f32.partialorder %v4494, -1.0
      %vm5726 = vcmp.ge.f32.partialorder %v4495, -1.0
      %vm5727 = vcmp.ge.f32.partialorder %v4496, -1.0
      %vm5728 = vcmp.ge.f32.partialorder %v4497, -1.0
      %vm5729 = vcmp.ge.f32.partialorder %v4498, -1.0
      %vm5730 = vcmp.ge.f32.partialorder %v4499, -1.0
      %vm5731 = vcmp.lt.f32.partialorder %v4492, 7.0
      %vm5732 = vcmp.lt.f32.partialorder %v4493, 7.0
      %vm5733 = vcmp.lt.f32.partialorder %v4494, 7.0
      %vm5734 = vcmp.lt.f32.partialorder %v4495, 7.0
      %vm5735 = vcmp.lt.f32.partialorder %v4496, 7.0
      %vm5736 = vcmp.lt.f32.partialorder %v4497, 7.0
      %vm5737 = vcmp.lt.f32.partialorder %v4498, 7.0
      %vm5738 = vcmp.lt.f32.partialorder %v4499, 7.0
      %vm5739 = vmand %vm5723, %vm5731
      %vm5740 = vmand %vm5724, %vm5732
      %vm5741 = vmand %vm5725, %vm5733
      %vm5742 = vmand %vm5726, %vm5734
      %vm5743 = vmand %vm5727, %vm5735
      %vm5744 = vmand %vm5728, %vm5736
      %vm5745 = vmand %vm5729, %vm5737
      %vm5746 = vmand %vm5730, %vm5738
      %v5747 = vsel %vm5739, 1, 0
      %v5748 = vsel %vm5740, 1, 0
      %v5749 = vsel %vm5741, 1, 0
      %v5750 = vsel %vm5742, 1, 0
      %v5751 = vsel %vm5743, 1, 0
      %v5752 = vsel %vm5744, 1, 0
      %v5753 = vsel %vm5745, 1, 0
      %v5754 = vsel %vm5746, 1, 0
      %v5755 = vcvt.s32.f32 %v5747
      %v5756 = vcvt.s32.f32 %v5748
      %v5757 = vcvt.s32.f32 %v5749
      %v5758 = vcvt.s32.f32 %v5750
      %v5759 = vcvt.s32.f32 %v5751
      %v5760 = vcvt.s32.f32 %v5752
      %v5761 = vcvt.s32.f32 %v5753
      %v5762 = vcvt.s32.f32 %v5754
      %vm5771 = vcmask 1040384
      %v5772 = vrot.slane %v5755, 7
      %v5773 = vrot.slane %v5756, 7
      %v5774 = vsel %vm5771, %v5772, %v5773
      %v5775 = vrot.slane %v5757, 7
      %v5776 = vsel %vm5771, %v5773, %v5775
      %v5777 = vrot.slane %v5758, 7
      %v5778 = vsel %vm5771, %v5775, %v5777
      %v5779 = vrot.slane %v5759, 7
      %v5780 = vsel %vm5771, %v5777, %v5779
      %v5781 = vrot.slane %v5760, 7
      %v5782 = vsel %vm5771, %v5779, %v5781
      %v5783 = vrot.slane %v5761, 7
      %v5784 = vsel %vm5771, %v5781, %v5783
      %v5785 = vrot.slane %v5762, 7
      %v5786 = vsel %vm5771, %v5783, %v5785
      %v5796 = vmul.f32 %v5714, %v5772
      %v5797 = vmul.f32 %v5715, %v5774
      %v5798 = vmul.f32 %v5716, %v5776
      %v5799 = vmul.f32 %v5717, %v5778
      %v5800 = vmul.f32 %v5718, %v5780
      %v5801 = vmul.f32 %v5719, %v5782
      %v5802 = vmul.f32 %v5720, %v5784
      %v5803 = vmul.f32 %v5721, %v5786
      %v5804 = vmul.f32 %v5722, %v5785
      %vm5814 = vcmask 1043456
      %v5815 = vrot.slane %v5796, 4
      %v5816 = vrot.slane %v5797, 4
      %v5817 = vsel %vm5814, %v5815, %v5816
      %v5818 = vrot.slane %v5798, 4
      %v5819 = vsel %vm5814, %v5816, %v5818
      %v5820 = vrot.slane %v5799, 4
      %v5821 = vsel %vm5814, %v5818, %v5820
      %v5822 = vrot.slane %v5800, 4
      %v5823 = vsel %vm5814, %v5820, %v5822
      %v5824 = vrot.slane %v5801, 4
      %v5825 = vsel %vm5814, %v5822, %v5824
      %v5826 = vrot.slane %v5802, 4
      %v5827 = vsel %vm5814, %v5824, %v5826
      %v5828 = vrot.slane %v5803, 4
      %v5829 = vsel %vm5814, %v5826, %v5828
      %v5830 = vrot.slane %v5804, 4
      %v5831 = vsel %vm5814, %v5828, %v5830
      %v5841 = vadd.f32 %v5553, %v5815
      %v5842 = vadd.f32 %v5554, %v5817
      %v5843 = vadd.f32 %v5555, %v5819
      %v5844 = vadd.f32 %v5556, %v5821
      %v5845 = vadd.f32 %v5557, %v5823
      %v5846 = vadd.f32 %v5558, %v5825
      %v5847 = vadd.f32 %v5559, %v5827
      %v5848 = vadd.f32 %v5560, %v5829
      %v5849 = vadd.f32 %v5561, %v5831
      %v5850 = vld [vmem:[%s4 + $0x5] sm:$0x1]
      %v5851 = vlaneseq
      %v5852 = vshrl.u32 %v5851, 7
      %v5853 = vsub.s32 0, %v5852
      %v5854 = vrot.slane %v5850, %v5853
      %v5855 = vmul.f32 %v4469, %v5854
      %v5856 = vmul.f32 %v4470, %v5854
      %v5857 = vmul.f32 %v4471, %v5854
      %v5858 = vmul.f32 %v4472, %v5854
      %v5859 = vmul.f32 %v4473, %v5854
      %v5860 = vmul.f32 %v4474, %v5854
      %v5861 = vmul.f32 %v4475, %v5854
      %v5862 = vmul.f32 %v4476, %v5854
      %v5863 = vmul.f32 %v4477, %v5854
      %v5864 = vadd.f32 %v5855, 0.0
      %v5865 = vadd.f32 %v5856, 0.0
      %v5866 = vadd.f32 %v5857, 0.0
      %v5867 = vadd.f32 %v5858, 0.0
      %v5868 = vadd.f32 %v5859, 0.0
      %v5869 = vadd.f32 %v5860, 0.0
      %v5870 = vadd.f32 %v5861, 0.0
      %v5871 = vadd.f32 %v5862, 0.0
      %v5872 = vadd.f32 %v5863, 0.0
      %v5873 = vld [vmem:[%s4 + $0xc] sm:$0x1]
      %v5874 = vlaneseq
      %v5875 = vshrl.u32 %v5874, 7
      %v5876 = vsub.s32 0, %v5875
      %v5877 = vrot.slane %v5873, %v5876
      %v5878 = vmul.f32 %v4470, %v5877
      %v5879 = vmul.f32 %v4471, %v5877
      %v5880 = vmul.f32 %v4472, %v5877
      %v5881 = vmul.f32 %v4473, %v5877
      %v5882 = vmul.f32 %v4474, %v5877
      %v5883 = vmul.f32 %v4475, %v5877
      %v5884 = vmul.f32 %v4476, %v5877
      %v5885 = vmul.f32 %v4477, %v5877
      %v5886 = vmul.f32 %v4478, %v5877
      %v5887 = vadd.f32 %v5864, %v5878
      %v5888 = vadd.f32 %v5865, %v5879
      %v5889 = vadd.f32 %v5866, %v5880
      %v5890 = vadd.f32 %v5867, %v5881
      %v5891 = vadd.f32 %v5868, %v5882
      %v5892 = vadd.f32 %v5869, %v5883
      %v5893 = vadd.f32 %v5870, %v5884
      %v5894 = vadd.f32 %v5871, %v5885
      %v5895 = vadd.f32 %v5872, %v5886
      %v5896 = vld [vmem:[%s4 + $0x13] sm:$0x1]
      %v5897 = vlaneseq
      %v5898 = vshrl.u32 %v5897, 7
      %v5899 = vsub.s32 0, %v5898
      %v5900 = vrot.slane %v5896, %v5899
      %v5901 = vmul.f32 %v4471, %v5900
      %v5902 = vmul.f32 %v4472, %v5900
      %v5903 = vmul.f32 %v4473, %v5900
      %v5904 = vmul.f32 %v4474, %v5900
      %v5905 = vmul.f32 %v4475, %v5900
      %v5906 = vmul.f32 %v4476, %v5900
      %v5907 = vmul.f32 %v4477, %v5900
      %v5908 = vmul.f32 %v4478, %v5900
      %v5909 = vmul.f32 %v4479, %v5900
      %v5910 = vadd.f32 %v5887, %v5901
      %v5911 = vadd.f32 %v5888, %v5902
      %v5912 = vadd.f32 %v5889, %v5903
      %v5913 = vadd.f32 %v5890, %v5904
      %v5914 = vadd.f32 %v5891, %v5905
      %v5915 = vadd.f32 %v5892, %v5906
      %v5916 = vadd.f32 %v5893, %v5907
      %v5917 = vadd.f32 %v5894, %v5908
      %v5918 = vadd.f32 %v5895, %v5909
      %v5919 = vld [vmem:[%s4 + $0x1a] sm:$0x1]
      %v5920 = vlaneseq
      %v5921 = vshrl.u32 %v5920, 7
      %v5922 = vsub.s32 0, %v5921
      %v5923 = vrot.slane %v5919, %v5922
      %v5924 = vmul.f32 %v4472, %v5923
      %v5925 = vmul.f32 %v4473, %v5923
      %v5926 = vmul.f32 %v4474, %v5923
      %v5927 = vmul.f32 %v4475, %v5923
      %v5928 = vmul.f32 %v4476, %v5923
      %v5929 = vmul.f32 %v4477, %v5923
      %v5930 = vmul.f32 %v4478, %v5923
      %v5931 = vmul.f32 %v4479, %v5923
      %v5932 = vmul.f32 %v4480, %v5923
      %v5933 = vadd.f32 %v5910, %v5924
      %v5934 = vadd.f32 %v5911, %v5925
      %v5935 = vadd.f32 %v5912, %v5926
      %v5936 = vadd.f32 %v5913, %v5927
      %v5937 = vadd.f32 %v5914, %v5928
      %v5938 = vadd.f32 %v5915, %v5929
      %v5939 = vadd.f32 %v5916, %v5930
      %v5940 = vadd.f32 %v5917, %v5931
      %v5941 = vadd.f32 %v5918, %v5932
      %v5942 = vld [vmem:[%s4 + $0x21] sm:$0x1]
      %v5943 = vlaneseq
      %v5944 = vshrl.u32 %v5943, 7
      %v5945 = vsub.s32 0, %v5944
      %v5946 = vrot.slane %v5942, %v5945
      %v5947 = vmul.f32 %v4473, %v5946
      %v5948 = vmul.f32 %v4474, %v5946
      %v5949 = vmul.f32 %v4475, %v5946
      %v5950 = vmul.f32 %v4476, %v5946
      %v5951 = vmul.f32 %v4477, %v5946
      %v5952 = vmul.f32 %v4478, %v5946
      %v5953 = vmul.f32 %v4479, %v5946
      %v5954 = vmul.f32 %v4480, %v5946
      %v5955 = vmul.f32 %v4481, %v5946
      %v5956 = vadd.f32 %v5933, %v5947
      %v5957 = vadd.f32 %v5934, %v5948
      %v5958 = vadd.f32 %v5935, %v5949
      %v5959 = vadd.f32 %v5936, %v5950
      %v5960 = vadd.f32 %v5937, %v5951
      %v5961 = vadd.f32 %v5938, %v5952
      %v5962 = vadd.f32 %v5939, %v5953
      %v5963 = vadd.f32 %v5940, %v5954
      %v5964 = vadd.f32 %v5941, %v5955
      %v5965 = vld [vmem:[%s4 + $0x28] sm:$0x1]
      %v5966 = vlaneseq
      %v5967 = vshrl.u32 %v5966, 7
      %v5968 = vsub.s32 0, %v5967
      %v5969 = vrot.slane %v5965, %v5968
      %v5970 = vmul.f32 %v4474, %v5969
      %v5971 = vmul.f32 %v4475, %v5969
      %v5972 = vmul.f32 %v4476, %v5969
      %v5973 = vmul.f32 %v4477, %v5969
      %v5974 = vmul.f32 %v4478, %v5969
      %v5975 = vmul.f32 %v4479, %v5969
      %v5976 = vmul.f32 %v4480, %v5969
      %v5977 = vmul.f32 %v4481, %v5969
      %v5978 = vmul.f32 %v4482, %v5969
      %v5979 = vadd.f32 %v5956, %v5970
      %v5980 = vadd.f32 %v5957, %v5971
      %v5981 = vadd.f32 %v5958, %v5972
      %v5982 = vadd.f32 %v5959, %v5973
      %v5983 = vadd.f32 %v5960, %v5974
      %v5984 = vadd.f32 %v5961, %v5975
      %v5985 = vadd.f32 %v5962, %v5976
      %v5986 = vadd.f32 %v5963, %v5977
      %v5987 = vadd.f32 %v5964, %v5978
      %v5988 = vld [vmem:[%s4 + $0x2f] sm:$0x1]
      %v5989 = vlaneseq
      %v5990 = vshrl.u32 %v5989, 7
      %v5991 = vsub.s32 0, %v5990
      %v5992 = vrot.slane %v5988, %v5991
      %v5993 = vmul.f32 %v4475, %v5992
      %v5994 = vmul.f32 %v4476, %v5992
      %v5995 = vmul.f32 %v4477, %v5992
      %v5996 = vmul.f32 %v4478, %v5992
      %v5997 = vmul.f32 %v4479, %v5992
      %v5998 = vmul.f32 %v4480, %v5992
      %v5999 = vmul.f32 %v4481, %v5992
      %v6000 = vmul.f32 %v4482, %v5992
      %v6001 = vmul.f32 %v4483, %v5992
      %v6002 = vadd.f32 %v5979, %v5993
      %v6003 = vadd.f32 %v5980, %v5994
      %v6004 = vadd.f32 %v5981, %v5995
      %v6005 = vadd.f32 %v5982, %v5996
      %v6006 = vadd.f32 %v5983, %v5997
      %v6007 = vadd.f32 %v5984, %v5998
      %v6008 = vadd.f32 %v5985, %v5999
      %v6009 = vadd.f32 %v5986, %v6000
      %v6010 = vadd.f32 %v5987, %v6001
      %vm6011 = vcmp.ge.f32.partialorder %v4492, -2.0
      %vm6012 = vcmp.ge.f32.partialorder %v4493, -2.0
      %vm6013 = vcmp.ge.f32.partialorder %v4494, -2.0
      %vm6014 = vcmp.ge.f32.partialorder %v4495, -2.0
      %vm6015 = vcmp.ge.f32.partialorder %v4496, -2.0
      %vm6016 = vcmp.ge.f32.partialorder %v4497, -2.0
      %vm6017 = vcmp.ge.f32.partialorder %v4498, -2.0
      %vm6018 = vcmp.ge.f32.partialorder %v4499, -2.0
      %vm6019 = vcmp.lt.f32.partialorder %v4492, 6.0
      %vm6020 = vcmp.lt.f32.partialorder %v4493, 6.0
      %vm6021 = vcmp.lt.f32.partialorder %v4494, 6.0
      %vm6022 = vcmp.lt.f32.partialorder %v4495, 6.0
      %vm6023 = vcmp.lt.f32.partialorder %v4496, 6.0
      %vm6024 = vcmp.lt.f32.partialorder %v4497, 6.0
      %vm6025 = vcmp.lt.f32.partialorder %v4498, 6.0
      %vm6026 = vcmp.lt.f32.partialorder %v4499, 6.0
      %vm6027 = vmand %vm6011, %vm6019
      %vm6028 = vmand %vm6012, %vm6020
      %vm6029 = vmand %vm6013, %vm6021
      %vm6030 = vmand %vm6014, %vm6022
      %vm6031 = vmand %vm6015, %vm6023
      %vm6032 = vmand %vm6016, %vm6024
      %vm6033 = vmand %vm6017, %vm6025
      %vm6034 = vmand %vm6018, %vm6026
      %v6035 = vsel %vm6027, 1, 0
      %v6036 = vsel %vm6028, 1, 0
      %v6037 = vsel %vm6029, 1, 0
      %v6038 = vsel %vm6030, 1, 0
      %v6039 = vsel %vm6031, 1, 0
      %v6040 = vsel %vm6032, 1, 0
      %v6041 = vsel %vm6033, 1, 0
      %v6042 = vsel %vm6034, 1, 0
      %v6043 = vcvt.s32.f32 %v6035
      %v6044 = vcvt.s32.f32 %v6036
      %v6045 = vcvt.s32.f32 %v6037
      %v6046 = vcvt.s32.f32 %v6038
      %v6047 = vcvt.s32.f32 %v6039
      %v6048 = vcvt.s32.f32 %v6040
      %v6049 = vcvt.s32.f32 %v6041
      %v6050 = vcvt.s32.f32 %v6042
      %vm6059 = vcmask 1041408
      %v6060 = vrot.slane %v6043, 6
      %v6061 = vrot.slane %v6044, 6
      %v6062 = vsel %vm6059, %v6060, %v6061
      %v6063 = vrot.slane %v6045, 6
      %v6064 = vsel %vm6059, %v6061, %v6063
      %v6065 = vrot.slane %v6046, 6
      %v6066 = vsel %vm6059, %v6063, %v6065
      %v6067 = vrot.slane %v6047, 6
      %v6068 = vsel %vm6059, %v6065, %v6067
      %v6069 = vrot.slane %v6048, 6
      %v6070 = vsel %vm6059, %v6067, %v6069
      %v6071 = vrot.slane %v6049, 6
      %v6072 = vsel %vm6059, %v6069, %v6071
      %v6073 = vrot.slane %v6050, 6
      %v6074 = vsel %vm6059, %v6071, %v6073
      %v6084 = vmul.f32 %v6002, %v6060
      %v6085 = vmul.f32 %v6003, %v6062
      %v6086 = vmul.f32 %v6004, %v6064
      %v6087 = vmul.f32 %v6005, %v6066
      %v6088 = vmul.f32 %v6006, %v6068
      %v6089 = vmul.f32 %v6007, %v6070
      %v6090 = vmul.f32 %v6008, %v6072
      %v6091 = vmul.f32 %v6009, %v6074
      %v6092 = vmul.f32 %v6010, %v6073
      %vm6102 = vcmask 1042432
      %v6103 = vrot.slane %v6084, 5
      %v6104 = vrot.slane %v6085, 5
      %v6105 = vsel %vm6102, %v6103, %v6104
      %v6106 = vrot.slane %v6086, 5
      %v6107 = vsel %vm6102, %v6104, %v6106
      %v6108 = vrot.slane %v6087, 5
      %v6109 = vsel %vm6102, %v6106, %v6108
      %v6110 = vrot.slane %v6088, 5
      %v6111 = vsel %vm6102, %v6108, %v6110
      %v6112 = vrot.slane %v6089, 5
      %v6113 = vsel %vm6102, %v6110, %v6112
      %v6114 = vrot.slane %v6090, 5
      %v6115 = vsel %vm6102, %v6112, %v6114
      %v6116 = vrot.slane %v6091, 5
      %v6117 = vsel %vm6102, %v6114, %v6116
      %v6118 = vrot.slane %v6092, 5
      %v6119 = vsel %vm6102, %v6116, %v6118
      %v6129 = vadd.f32 %v5841, %v6103
      %v6130 = vadd.f32 %v5842, %v6105
      %v6131 = vadd.f32 %v5843, %v6107
      %v6132 = vadd.f32 %v5844, %v6109
      %v6133 = vadd.f32 %v5845, %v6111
      %v6134 = vadd.f32 %v5846, %v6113
      %v6135 = vadd.f32 %v5847, %v6115
      %v6136 = vadd.f32 %v5848, %v6117
      %v6137 = vadd.f32 %v5849, %v6119
      %v6138 = vld [vmem:[%s4 + $0x6] sm:$0x1]
      %v6139 = vlaneseq
      %v6140 = vshrl.u32 %v6139, 7
      %v6141 = vsub.s32 0, %v6140
      %v6142 = vrot.slane %v6138, %v6141
      %v6143 = vmul.f32 %v4469, %v6142
      %v6144 = vmul.f32 %v4470, %v6142
      %v6145 = vmul.f32 %v4471, %v6142
      %v6146 = vmul.f32 %v4472, %v6142
      %v6147 = vmul.f32 %v4473, %v6142
      %v6148 = vmul.f32 %v4474, %v6142
      %v6149 = vmul.f32 %v4475, %v6142
      %v6150 = vmul.f32 %v4476, %v6142
      %v6151 = vmul.f32 %v4477, %v6142
      %v6152 = vadd.f32 %v6143, 0.0
      %v6153 = vadd.f32 %v6144, 0.0
      %v6154 = vadd.f32 %v6145, 0.0
      %v6155 = vadd.f32 %v6146, 0.0
      %v6156 = vadd.f32 %v6147, 0.0
      %v6157 = vadd.f32 %v6148, 0.0
      %v6158 = vadd.f32 %v6149, 0.0
      %v6159 = vadd.f32 %v6150, 0.0
      %v6160 = vadd.f32 %v6151, 0.0
      %v6161 = vld [vmem:[%s4 + $0xd] sm:$0x1]
      %v6162 = vlaneseq
      %v6163 = vshrl.u32 %v6162, 7
      %v6164 = vsub.s32 0, %v6163
      %v6165 = vrot.slane %v6161, %v6164
      %v6166 = vmul.f32 %v4470, %v6165
      %v6167 = vmul.f32 %v4471, %v6165
      %v6168 = vmul.f32 %v4472, %v6165
      %v6169 = vmul.f32 %v4473, %v6165
      %v6170 = vmul.f32 %v4474, %v6165
      %v6171 = vmul.f32 %v4475, %v6165
      %v6172 = vmul.f32 %v4476, %v6165
      %v6173 = vmul.f32 %v4477, %v6165
      %v6174 = vmul.f32 %v4478, %v6165
      %v6175 = vadd.f32 %v6152, %v6166
      %v6176 = vadd.f32 %v6153, %v6167
      %v6177 = vadd.f32 %v6154, %v6168
      %v6178 = vadd.f32 %v6155, %v6169
      %v6179 = vadd.f32 %v6156, %v6170
      %v6180 = vadd.f32 %v6157, %v6171
      %v6181 = vadd.f32 %v6158, %v6172
      %v6182 = vadd.f32 %v6159, %v6173
      %v6183 = vadd.f32 %v6160, %v6174
      %v6184 = vld [vmem:[%s4 + $0x14] sm:$0x1]
      %v6185 = vlaneseq
      %v6186 = vshrl.u32 %v6185, 7
      %v6187 = vsub.s32 0, %v6186
      %v6188 = vrot.slane %v6184, %v6187
      %v6189 = vmul.f32 %v4471, %v6188
      %v6190 = vmul.f32 %v4472, %v6188
      %v6191 = vmul.f32 %v4473, %v6188
      %v6192 = vmul.f32 %v4474, %v6188
      %v6193 = vmul.f32 %v4475, %v6188
      %v6194 = vmul.f32 %v4476, %v6188
      %v6195 = vmul.f32 %v4477, %v6188
      %v6196 = vmul.f32 %v4478, %v6188
      %v6197 = vmul.f32 %v4479, %v6188
      %v6198 = vadd.f32 %v6175, %v6189
      %v6199 = vadd.f32 %v6176, %v6190
      %v6200 = vadd.f32 %v6177, %v6191
      %v6201 = vadd.f32 %v6178, %v6192
      %v6202 = vadd.f32 %v6179, %v6193
      %v6203 = vadd.f32 %v6180, %v6194
      %v6204 = vadd.f32 %v6181, %v6195
      %v6205 = vadd.f32 %v6182, %v6196
      %v6206 = vadd.f32 %v6183, %v6197
      %v6207 = vld [vmem:[%s4 + $0x1b] sm:$0x1]
      %v6208 = vlaneseq
      %v6209 = vshrl.u32 %v6208, 7
      %v6210 = vsub.s32 0, %v6209
      %v6211 = vrot.slane %v6207, %v6210
      %v6212 = vmul.f32 %v4472, %v6211
      %v6213 = vmul.f32 %v4473, %v6211
      %v6214 = vmul.f32 %v4474, %v6211
      %v6215 = vmul.f32 %v4475, %v6211
      %v6216 = vmul.f32 %v4476, %v6211
      %v6217 = vmul.f32 %v4477, %v6211
      %v6218 = vmul.f32 %v4478, %v6211
      %v6219 = vmul.f32 %v4479, %v6211
      %v6220 = vmul.f32 %v4480, %v6211
      %v6221 = vadd.f32 %v6198, %v6212
      %v6222 = vadd.f32 %v6199, %v6213
      %v6223 = vadd.f32 %v6200, %v6214
      %v6224 = vadd.f32 %v6201, %v6215
      %v6225 = vadd.f32 %v6202, %v6216
      %v6226 = vadd.f32 %v6203, %v6217
      %v6227 = vadd.f32 %v6204, %v6218
      %v6228 = vadd.f32 %v6205, %v6219
      %v6229 = vadd.f32 %v6206, %v6220
      %v6230 = vld [vmem:[%s4 + $0x22] sm:$0x1]
      %v6231 = vlaneseq
      %v6232 = vshrl.u32 %v6231, 7
      %v6233 = vsub.s32 0, %v6232
      %v6234 = vrot.slane %v6230, %v6233
      %v6235 = vmul.f32 %v4473, %v6234
      %v6236 = vmul.f32 %v4474, %v6234
      %v6237 = vmul.f32 %v4475, %v6234
      %v6238 = vmul.f32 %v4476, %v6234
      %v6239 = vmul.f32 %v4477, %v6234
      %v6240 = vmul.f32 %v4478, %v6234
      %v6241 = vmul.f32 %v4479, %v6234
      %v6242 = vmul.f32 %v4480, %v6234
      %v6243 = vmul.f32 %v4481, %v6234
      %v6244 = vadd.f32 %v6221, %v6235
      %v6245 = vadd.f32 %v6222, %v6236
      %v6246 = vadd.f32 %v6223, %v6237
      %v6247 = vadd.f32 %v6224, %v6238
      %v6248 = vadd.f32 %v6225, %v6239
      %v6249 = vadd.f32 %v6226, %v6240
      %v6250 = vadd.f32 %v6227, %v6241
      %v6251 = vadd.f32 %v6228, %v6242
      %v6252 = vadd.f32 %v6229, %v6243
      %v6253 = vld [vmem:[%s4 + $0x29] sm:$0x1]
      %v6254 = vlaneseq
      %v6255 = vshrl.u32 %v6254, 7
      %v6256 = vsub.s32 0, %v6255
      %v6257 = vrot.slane %v6253, %v6256
      %v6258 = vmul.f32 %v4474, %v6257
      %v6259 = vmul.f32 %v4475, %v6257
      %v6260 = vmul.f32 %v4476, %v6257
      %v6261 = vmul.f32 %v4477, %v6257
      %v6262 = vmul.f32 %v4478, %v6257
      %v6263 = vmul.f32 %v4479, %v6257
      %v6264 = vmul.f32 %v4480, %v6257
      %v6265 = vmul.f32 %v4481, %v6257
      %v6266 = vmul.f32 %v4482, %v6257
      %v6267 = vadd.f32 %v6244, %v6258
      %v6268 = vadd.f32 %v6245, %v6259
      %v6269 = vadd.f32 %v6246, %v6260
      %v6270 = vadd.f32 %v6247, %v6261
      %v6271 = vadd.f32 %v6248, %v6262
      %v6272 = vadd.f32 %v6249, %v6263
      %v6273 = vadd.f32 %v6250, %v6264
      %v6274 = vadd.f32 %v6251, %v6265
      %v6275 = vadd.f32 %v6252, %v6266
      %v6276 = vld [vmem:[%s4 + $0x30] sm:$0x1]
      %v6277 = vlaneseq
      %v6278 = vshrl.u32 %v6277, 7
      %v6279 = vsub.s32 0, %v6278
      %v6280 = vrot.slane %v6276, %v6279
      %v6281 = vmul.f32 %v4475, %v6280
      %v6282 = vmul.f32 %v4476, %v6280
      %v6283 = vmul.f32 %v4477, %v6280
      %v6284 = vmul.f32 %v4478, %v6280
      %v6285 = vmul.f32 %v4479, %v6280
      %v6286 = vmul.f32 %v4480, %v6280
      %v6287 = vmul.f32 %v4481, %v6280
      %v6288 = vmul.f32 %v4482, %v6280
      %v6289 = vmul.f32 %v4483, %v6280
      %v6290 = vadd.f32 %v6267, %v6281
      %v6291 = vadd.f32 %v6268, %v6282
      %v6292 = vadd.f32 %v6269, %v6283
      %v6293 = vadd.f32 %v6270, %v6284
      %v6294 = vadd.f32 %v6271, %v6285
      %v6295 = vadd.f32 %v6272, %v6286
      %v6296 = vadd.f32 %v6273, %v6287
      %v6297 = vadd.f32 %v6274, %v6288
      %v6298 = vadd.f32 %v6275, %v6289
      %vm6299 = vcmp.ge.f32.partialorder %v4492, -3.0
      %vm6300 = vcmp.ge.f32.partialorder %v4493, -3.0
      %vm6301 = vcmp.ge.f32.partialorder %v4494, -3.0
      %vm6302 = vcmp.ge.f32.partialorder %v4495, -3.0
      %vm6303 = vcmp.ge.f32.partialorder %v4496, -3.0
      %vm6304 = vcmp.ge.f32.partialorder %v4497, -3.0
      %vm6305 = vcmp.ge.f32.partialorder %v4498, -3.0
      %vm6306 = vcmp.ge.f32.partialorder %v4499, -3.0
      %vm6307 = vcmp.lt.f32.partialorder %v4492, 5.0
      %vm6308 = vcmp.lt.f32.partialorder %v4493, 5.0
      %vm6309 = vcmp.lt.f32.partialorder %v4494, 5.0
      %vm6310 = vcmp.lt.f32.partialorder %v4495, 5.0
      %vm6311 = vcmp.lt.f32.partialorder %v4496, 5.0
      %vm6312 = vcmp.lt.f32.partialorder %v4497, 5.0
      %vm6313 = vcmp.lt.f32.partialorder %v4498, 5.0
      %vm6314 = vcmp.lt.f32.partialorder %v4499, 5.0
      %vm6315 = vmand %vm6299, %vm6307
      %vm6316 = vmand %vm6300, %vm6308
      %vm6317 = vmand %vm6301, %vm6309
      %vm6318 = vmand %vm6302, %vm6310
      %vm6319 = vmand %vm6303, %vm6311
      %vm6320 = vmand %vm6304, %vm6312
      %vm6321 = vmand %vm6305, %vm6313
      %vm6322 = vmand %vm6306, %vm6314
      %v6323 = vsel %vm6315, 1, 0
      %v6324 = vsel %vm6316, 1, 0
      %v6325 = vsel %vm6317, 1, 0
      %v6326 = vsel %vm6318, 1, 0
      %v6327 = vsel %vm6319, 1, 0
      %v6328 = vsel %vm6320, 1, 0
      %v6329 = vsel %vm6321, 1, 0
      %v6330 = vsel %vm6322, 1, 0
      %v6331 = vcvt.s32.f32 %v6323
      %v6332 = vcvt.s32.f32 %v6324
      %v6333 = vcvt.s32.f32 %v6325
      %v6334 = vcvt.s32.f32 %v6326
      %v6335 = vcvt.s32.f32 %v6327
      %v6336 = vcvt.s32.f32 %v6328
      %v6337 = vcvt.s32.f32 %v6329
      %v6338 = vcvt.s32.f32 %v6330
      %v6347 = vrot.slane %v6331, 5
      %v6348 = vrot.slane %v6332, 5
      %v6349 = vsel %vm6102, %v6347, %v6348
      %v6350 = vrot.slane %v6333, 5
      %v6351 = vsel %vm6102, %v6348, %v6350
      %v6352 = vrot.slane %v6334, 5
      %v6353 = vsel %vm6102, %v6350, %v6352
      %v6354 = vrot.slane %v6335, 5
      %v6355 = vsel %vm6102, %v6352, %v6354
      %v6356 = vrot.slane %v6336, 5
      %v6357 = vsel %vm6102, %v6354, %v6356
      %v6358 = vrot.slane %v6337, 5
      %v6359 = vsel %vm6102, %v6356, %v6358
      %v6360 = vrot.slane %v6338, 5
      %v6361 = vsel %vm6102, %v6358, %v6360
      %v6371 = vmul.f32 %v6290, %v6347
      %v6372 = vmul.f32 %v6291, %v6349
      %v6373 = vmul.f32 %v6292, %v6351
      %v6374 = vmul.f32 %v6293, %v6353
      %v6375 = vmul.f32 %v6294, %v6355
      %v6376 = vmul.f32 %v6295, %v6357
      %v6377 = vmul.f32 %v6296, %v6359
      %v6378 = vmul.f32 %v6297, %v6361
      %v6379 = vmul.f32 %v6298, %v6360
      %v6389 = vrot.slane %v6371, 6
      %v6390 = vrot.slane %v6372, 6
      %v6391 = vsel %vm6059, %v6389, %v6390
      %v6392 = vrot.slane %v6373, 6
      %v6393 = vsel %vm6059, %v6390, %v6392
      %v6394 = vrot.slane %v6374, 6
      %v6395 = vsel %vm6059, %v6392, %v6394
      %v6396 = vrot.slane %v6375, 6
      %v6397 = vsel %vm6059, %v6394, %v6396
      %v6398 = vrot.slane %v6376, 6
      %v6399 = vsel %vm6059, %v6396, %v6398
      %v6400 = vrot.slane %v6377, 6
      %v6401 = vsel %vm6059, %v6398, %v6400
      %v6402 = vrot.slane %v6378, 6
      %v6403 = vsel %vm6059, %v6400, %v6402
      %v6404 = vrot.slane %v6379, 6
      %v6405 = vsel %vm6059, %v6402, %v6404
      %v6415 = vadd.f32 %v6129, %v6389
      %v6416 = vadd.f32 %v6130, %v6391
      %v6417 = vadd.f32 %v6131, %v6393
      %v6418 = vadd.f32 %v6132, %v6395
      %v6419 = vadd.f32 %v6133, %v6397
      %v6420 = vadd.f32 %v6134, %v6399
      %v6421 = vadd.f32 %v6135, %v6401
      %v6422 = vadd.f32 %v6136, %v6403
      %v6423 = vadd.f32 %v6137, %v6405
      %v6424 = vld [vmem:[%s3 + $0xb] sm:$0x1]
      %v6425 = vlaneseq
      %v6426 = vshrl.u32 %v6425, 7
      %v6427 = vsub.s32 0, %v6426
      %v6428 = vrot.slane %v6424, %v6427
      %v6429 = vadd.f32 %v6415, %v6428
      %v6430 = vadd.f32 %v6416, %v6428
      %v6431 = vadd.f32 %v6417, %v6428
      %v6432 = vadd.f32 %v6418, %v6428
      %v6433 = vadd.f32 %v6419, %v6428
      %v6434 = vadd.f32 %v6420, %v6428
      %v6435 = vadd.f32 %v6421, %v6428
      %v6436 = vadd.f32 %v6422, %v6428
      %v6437 = vadd.f32 %v6423, %v6428
      %v6438 = vmax.f32 %v6429, 0.0
      %v6439 = vmax.f32 %v6430, 0.0
      %v6440 = vmax.f32 %v6431, 0.0
      %v6441 = vmax.f32 %v6432, 0.0
      %v6442 = vmax.f32 %v6433, 0.0
      %v6443 = vmax.f32 %v6434, 0.0
      %v6444 = vmax.f32 %v6435, 0.0
      %v6445 = vmax.f32 %v6436, 0.0
      %v6446 = vmax.f32 %v6437, 0.0
      %v6447 = vpack.c.bf16 %v6439, %v6438
      %v6448 = vpack.c.bf16 %v6441, %v6440
      %v6449 = vpack.c.bf16 %v6443, %v6442
      %v6450 = vpack.c.bf16 %v6445, %v6444
      %v6451 = vpack.c.bf16 %v6446, %v6446
      %s6452 = scalar_lea.vmem %s2, 224
      %v6453 = vld [vmem:[%s6452] sm:$0xf]
      %v6454 = vld [vmem:[%s6452 + $0x4] sm:$0xf]
      %v6455 = vld [vmem:[%s6452 + $0x8] sm:$0xf]
      %v6456 = vld [vmem:[%s6452 + $0xc] sm:$0xf]
      %v6457 = vld [vmem:[%s3 + $0xc] sm:$0x1]
      %v6458 = vlaneseq
      %v6459 = vshrl.u32 %v6458, 7
      %v6460 = vsub.s32 0, %v6459
      %v6461 = vrot.slane %v6457, %v6460
      %vm6462 = vsmask.f32 5376
      %v6464 = vshrl.u32 %v6447, 16
      %v6466 = vrot.slane %v6464, 2
      %v6467 = vshll.u32 %v6447, 16
      %v6469 = vrot.slane %v6467, 3
      %v6470 = vor.u32 %v6466, %v6469
      %v6472 = vshrl.u32 %v6448, 16
      %v6474 = vrot.slane %v6472, 2
      %v6475 = vshll.u32 %v6448, 16
      %v6477 = vrot.slane %v6475, 3
      %v6478 = vor.u32 %v6474, %v6477
      %v6479 = vsel %vm6462, %v6470, %v6478
      %v6481 = vshrl.u32 %v6449, 16
      %v6483 = vrot.slane %v6481, 2
      %v6484 = vshll.u32 %v6449, 16
      %v6486 = vrot.slane %v6484, 3
      %v6487 = vor.u32 %v6483, %v6486
      %v6488 = vsel %vm6462, %v6478, %v6487
      %v6490 = vshrl.u32 %v6450, 16
      %v6492 = vrot.slane %v6490, 2
      %v6493 = vshll.u32 %v6450, 16
      %v6495 = vrot.slane %v6493, 3
      %v6496 = vor.u32 %v6492, %v6495
      %v6497 = vsel %vm6462, %v6487, %v6496
      %v6499 = vshrl.u32 %v6451, 16
      %v6501 = vrot.slane %v6499, 2
      %v6502 = vshll.u32 %v6451, 16
      %v6504 = vrot.slane %v6502, 3
      %v6505 = vor.u32 %v6501, %v6504
      %v6506 = vsel %vm6462, %v6496, %v6505
      %v6511 = vunpack.c.l.b16 %v6453
      %v6512 = vunpack.c.l.b16 %v6454
      %v6513 = vunpack.c.l.b16 %v6455
      %v6514 = vunpack.c.l.b16 %v6456
      %v6515 = vpack.c.b16 %v6512, %v6511
      %v6516 = vpack.c.b16 %v6514, %v6513
      %v6520 = vsel %vm573, %v6479, 0
      %v6523 = vsel %vm573, %v6488, 0
      %v6526 = vsel %vm573, %v6497, 0
      %v6529 = vsel %vm573, %v6506, 0
      %6531 = vmatprep.subr.bf16.mxu0 0
      %6532 = vmatpush1.bf16.msra.mxu0 0
      %6533 = vmatprep.subr.bf16.mxu0 0
      %6534 = vmatpush1.bf16.msra.mxu0 0
      %6535 = vmatprep.subr.bf16.mxu0 0
      %6536 = vmatpush1.bf16.msra.mxu0 0
      %6537 = vmatprep.subr.bf16.mxu0 0
      %6538 = vmatpush1.bf16.msra.mxu0 0
      %6539 = vmatprep.subr.bf16.mxu0 0
      %6540 = vmatpush1.bf16.msra.mxu0 0
      %6541 = vmatprep.subr.bf16.mxu0 0
      %6542 = vmatpush1.bf16.msra.mxu0 0
      %6543 = vmatprep.subr.bf16.mxu0 0
      %6544 = vmatpush1.bf16.msra.mxu0 %v6516
      %6545 = vmatprep.subr.bf16.mxu0 0
      %6546 = vmatpush1.bf16.msra.mxu0 %v6515
      %6547 = vmatprep.subr.bf16.mxu0 0
      %6548 = vmatpush2.bf16.msra.mxu0 0
      %6549 = vmatprep.subr.bf16.mxu0 0
      %6550 = vmatpush2.bf16.msra.mxu0 0
      %6551 = vmatprep.subr.bf16.mxu0 0
      %6552 = vmatpush2.bf16.msra.mxu0 0
      %6553 = vmatprep.subr.bf16.mxu0 0
      %6554 = vmatpush2.bf16.msra.mxu0 0
      %6555 = vmatprep.subr.bf16.mxu0 0
      %6556 = vmatpush2.bf16.msra.mxu0 0
      %6557 = vmatprep.subr.bf16.mxu0 0
      %6558 = vmatpush2.bf16.msra.mxu0 0
      %6559 = vmatprep.subr.bf16.mxu0 0
      %6560 = vmatpush2.bf16.msra.mxu0 0
      %6561 = vmatprep.subr.bf16.mxu0 0
      %6562 = vmatpush2.bf16.msra.mxu0 0
      %6563 = vmatprep.mubr.bf16.mxu0 0
      %6564 = vmatmul.mubr.bf16.gmra.mxu0 %v6520
      %v6565 = vpop.f32.mrf.mxu0
      %v6566 = vadd.f32 %v6461, %v6565
      %v6567 = vpop.f32.mrf.mxu0
      %v6568 = vpop.f32.mrf.mxu0
      %v6569 = vadd.f32 %v6461, %v6568
      %v6570 = vpop.f32.mrf.mxu0
      %6571 = vmatprep.mubr.bf16.mxu0 0
      %6572 = vmatmul.mubr.bf16.gmra.mxu0 %v6523
      %v6573 = vpop.f32.mrf.mxu0
      %v6574 = vadd.f32 %v6461, %v6573
      %v6575 = vpop.f32.mrf.mxu0
      %v6576 = vpop.f32.mrf.mxu0
      %v6577 = vadd.f32 %v6461, %v6576
      %v6578 = vpop.f32.mrf.mxu0
      %6579 = vmatprep.mubr.bf16.mxu0 0
      %6580 = vmatmul.mubr.bf16.gmra.mxu0 %v6526
      %v6581 = vpop.f32.mrf.mxu0
      %v6582 = vadd.f32 %v6461, %v6581
      %v6583 = vpop.f32.mrf.mxu0
      %v6584 = vpop.f32.mrf.mxu0
      %v6585 = vadd.f32 %v6461, %v6584
      %v6586 = vpop.f32.mrf.mxu0
      %6587 = vmatprep.mubr.bf16.mxu0 0
      %6588 = vmatmul.mubr.bf16.gmra.mxu0 %v6529
      %v6589 = vpop.f32.mrf.mxu0
      %v6590 = vadd.f32 %v6461, %v6589
      %v6591 = vpop.f32.mrf.mxu0
      %v6592 = vpop.f32.mrf.mxu0
      %v6593 = vadd.f32 %v6461, %v6592
      %v6594 = vpop.f32.mrf.mxu0
      %6595 = vdwg.mxu0
      %v6596 = vld [vmem:[%s3 + $0xd] sm:$0x1]
      %v6597 = vlaneseq
      %v6598 = vshrl.u32 %v6597, 7
      %v6599 = vsub.s32 0, %v6598
      %v6600 = vrot.slane %v6596, %v6599
      %v6601 = vmul.f32 %v6566, %v6600
      %v6602 = vmul.f32 %v6569, %v6600
      %v6603 = vmul.f32 %v6574, %v6600
      %v6604 = vmul.f32 %v6577, %v6600
      %v6605 = vmul.f32 %v6582, %v6600
      %v6606 = vmul.f32 %v6585, %v6600
      %v6607 = vmul.f32 %v6590, %v6600
      %v6608 = vmul.f32 %v6593, %v6600
      %v6609 = vld [vmem:[%s3 + $0xe] sm:$0x1]
      %v6610 = vlaneseq
      %v6611 = vshrl.u32 %v6610, 7
      %v6612 = vsub.s32 0, %v6611
      %v6613 = vrot.slane %v6609, %v6612
      %v6614 = vadd.f32 %v6601, %v6613
      %v6615 = vadd.f32 %v6602, %v6613
      %v6616 = vadd.f32 %v6603, %v6613
      %v6617 = vadd.f32 %v6604, %v6613
      %v6618 = vadd.f32 %v6605, %v6613
      %v6619 = vadd.f32 %v6606, %v6613
      %v6620 = vadd.f32 %v6607, %v6613
      %v6621 = vadd.f32 %v6608, %v6613
      %v6622 = vadd.f32 %v4245, %v6614
      %v6623 = vadd.f32 %v4248, %v6615
      %v6624 = vadd.f32 %v4253, %v6616
      %v6625 = vadd.f32 %v4256, %v6617
      %v6626 = vadd.f32 %v4261, %v6618
      %v6627 = vadd.f32 %v4264, %v6619
      %v6628 = vadd.f32 %v4269, %v6620
      %v6629 = vadd.f32 %v4272, %v6621
      %v6630 = vld [vmem:[%s3 + $0xf] sm:$0x1]
      %v6631 = vlaneseq
      %v6632 = vshrl.u32 %v6631, 7
      %v6633 = vsub.s32 0, %v6632
      %v6634 = vrot.slane %v6630, %v6633
      %v6635 = vmul.f32 %v6622, %v6634
      %v6636 = vmul.f32 %v6623, %v6634
      %v6637 = vmul.f32 %v6624, %v6634
      %v6638 = vmul.f32 %v6625, %v6634
      %v6639 = vmul.f32 %v6626, %v6634
      %v6640 = vmul.f32 %v6627, %v6634
      %v6641 = vmul.f32 %v6628, %v6634
      %v6642 = vmul.f32 %v6629, %v6634
      %v6643 = vld [vmem:[%s3 + $0x10] sm:$0x1]
      %v6644 = vlaneseq
      %v6645 = vshrl.u32 %v6644, 7
      %v6646 = vsub.s32 0, %v6645
      %v6647 = vrot.slane %v6643, %v6646
      %v6648 = vadd.f32 %v6635, %v6647
      %v6649 = vadd.f32 %v6636, %v6647
      %v6650 = vadd.f32 %v6637, %v6647
      %v6651 = vadd.f32 %v6638, %v6647
      %v6652 = vadd.f32 %v6639, %v6647
      %v6653 = vadd.f32 %v6640, %v6647
      %v6654 = vadd.f32 %v6641, %v6647
      %v6655 = vadd.f32 %v6642, %v6647
      %v6656 = vsel %vm573, %v273, 0
      %v6658 = vsel %vm573, %v274, 0
      %v6660 = vsel %vm573, %v275, 0
      %v6662 = vsel %vm573, %v276, 0
      %v6665 = vsel %vm573, %v6648, 0
      %v6668 = vsel %vm573, %v6649, 0
      %v6671 = vsel %vm573, %v6650, 0
      %v6674 = vsel %vm573, %v6651, 0
      %v6677 = vsel %vm573, %v6652, 0
      %v6680 = vsel %vm573, %v6653, 0
      %v6683 = vsel %vm573, %v6654, 0
      %v6686 = vsel %vm573, %v6655, 0
      %6688 = vmatprep.subr.mxu0 0.0
      %6689 = vmatpush1.xpose.msra.mxu0 0.0
      %6690 = vmatprep.subr.mxu0 0.0
      %6691 = vmatpush1.xpose.msra.mxu0 0.0
      %6692 = vmatprep.subr.mxu0 0.0
      %6693 = vmatpush1.xpose.msra.mxu0 0.0
      %6694 = vmatprep.subr.mxu0 0.0
      %6695 = vmatpush1.xpose.msra.mxu0 0.0
      %6696 = vmatprep.subr.mxu0 0.0
      %6697 = vmatpush1.xpose.msra.mxu0 0.0
      %6698 = vmatprep.subr.mxu0 0.0
      %6699 = vmatpush1.xpose.msra.mxu0 0.0
      %6700 = vmatprep.subr.mxu0 0.0
      %6701 = vmatpush1.xpose.msra.mxu0 0.0
      %6702 = vmatprep.subr.mxu0 0.0
      %6703 = vmatpush1.xpose.msra.mxu0 0.0
      %6704 = vmatprep.subr.mxu0 0.0
      %6705 = vmatpush1.xpose.msra.mxu0 %v6686
      %6706 = vmatprep.subr.mxu0 0.0
      %6707 = vmatpush1.xpose.msra.mxu0 %v6683
      %6708 = vmatprep.subr.mxu0 0.0
      %6709 = vmatpush1.xpose.msra.mxu0 %v6680
      %6710 = vmatprep.subr.mxu0 0.0
      %6711 = vmatpush1.xpose.msra.mxu0 %v6677
      %6712 = vmatprep.subr.mxu0 0.0
      %6713 = vmatpush1.xpose.msra.mxu0 %v6674
      %6714 = vmatprep.subr.mxu0 0.0
      %6715 = vmatpush1.xpose.msra.mxu0 %v6671
      %6716 = vmatprep.subr.mxu0 0.0
      %6717 = vmatpush1.xpose.msra.mxu0 %v6668
      %6718 = vmatprep.subr.mxu0 0.0
      %6719 = vmatpush1.xpose.msra.mxu0 %v6665
      %6720 = vmatprep.subr.mxu0 0.0
      %6721 = vmatpush2.xpose.msra.mxu0 0.0
      %6722 = vmatprep.subr.mxu0 0.0
      %6723 = vmatpush2.xpose.msra.mxu0 0.0
      %6724 = vmatprep.subr.mxu0 0.0
      %6725 = vmatpush2.xpose.msra.mxu0 0.0
      %6726 = vmatprep.subr.mxu0 0.0
      %6727 = vmatpush2.xpose.msra.mxu0 0.0
      %6728 = vmatprep.subr.mxu0 0.0
      %6729 = vmatpush2.xpose.msra.mxu0 0.0
      %6730 = vmatprep.subr.mxu0 0.0
      %6731 = vmatpush2.xpose.msra.mxu0 0.0
      %6732 = vmatprep.subr.mxu0 0.0
      %6733 = vmatpush2.xpose.msra.mxu0 0.0
      %6734 = vmatprep.subr.mxu0 0.0
      %6735 = vmatpush2.xpose.msra.mxu0 0.0
      %6736 = vmatprep.subr.mxu0 0.0
      %6737 = vmatpush2.xpose.msra.mxu0 0.0
      %6738 = vmatprep.subr.mxu0 0.0
      %6739 = vmatpush2.xpose.msra.mxu0 0.0
      %6740 = vmatprep.subr.mxu0 0.0
      %6741 = vmatpush2.xpose.msra.mxu0 0.0
      %6742 = vmatprep.subr.mxu0 0.0
      %6743 = vmatpush2.xpose.msra.mxu0 0.0
      %6744 = vmatprep.subr.mxu0 0.0
      %6745 = vmatpush2.xpose.msra.mxu0 0.0
      %6746 = vmatprep.subr.mxu0 0.0
      %6747 = vmatpush2.xpose.msra.mxu0 0.0
      %6748 = vmatprep.subr.mxu0 0.0
      %6749 = vmatpush2.xpose.msra.mxu0 0.0
      %6750 = vmatprep.subr.mxu0 0.0
      %6751 = vmatpush2.xpose.msra.mxu0 0.0
      %6752 = vmatprep.mubr.f32.mxu0 0.0
      %6753 = vmatmul.mubr.f32.gmra.mxu0 %v6656
      %v6754 = vpop.f32.mrf.mxu0
      %v6755 = vadd.f32 0.0, %v6754
      %v6756 = vpop.f32.mrf.mxu0
      %6757 = vmatprep.mubr.f32.mxu0 0.0
      %6758 = vmatmul.mubr.f32.gmra.mxu0 %v6658
      %v6759 = vpop.f32.mrf.mxu0
      %v6760 = vadd.f32 0.0, %v6759
      %v6761 = vpop.f32.mrf.mxu0
      %6762 = vmatprep.mubr.f32.mxu0 0.0
      %6763 = vmatmul.mubr.f32.gmra.mxu0 %v6660
      %v6764 = vpop.f32.mrf.mxu0
      %v6765 = vadd.f32 0.0, %v6764
      %v6766 = vpop.f32.mrf.mxu0
      %6767 = vmatprep.mubr.f32.mxu0 0.0
      %6768 = vmatmul.mubr.f32.gmra.mxu0 %v6662
      %v6769 = vpop.f32.mrf.mxu0
      %v6770 = vadd.f32 0.0, %v6769
      %v6771 = vpop.f32.mrf.mxu0
      %6772 = vdwg.mxu0
      %6773 = vst.msk [vmem:[%s244] sm:$0xff] %vm285, %v6755
      %6774 = vst.msk [vmem:[%s244 + $0x8] sm:$0xff] %vm285, %v6760
      %6775 = vst.msk [vmem:[%s244 + $0x10] sm:$0xff] %vm285, %v6765
      %6776 = vst.msk [vmem:[%s244 + $0x18] sm:$0xff] %vm285, %v6770
      %p6777 = scmp.lt.s32.totalorder %s16, 1
      %s6778 = scalar_select %p6777, %s16, 1
      %s6779 = smul.addr %s6778, 4
      %s6780 = smul.addr %s6779, 8
      %s6781 = scalar_lea.vmem %s5, %s6780
      // Predicated region
      $region41: #{ffm_forward.1} parent=39 // pred_check
        %p6782 = pneg %p149
      $region42: #{ffm_forward.1} parent=39 // pred_check_branch
        %6784 = sbr.rel (%p6782) target = $region44
      $region43: #{ffm_forward.1} parent=39 // pred_region
        _
      $region44: #{ffm_forward.1} parent=39 // pred_fallthru
        _
    $region40: #{ffm_forward.1} parent=5 // pred_fallthru
      _
    %p6785 = scmp.le.s32.totalorder 2, %s11
    // Predicated region
    $region45: #{ffm_forward.1} parent=5 // pred_check
      %p6786 = pneg %p6785
    $region46: #{ffm_forward.1} parent=5 // pred_check_branch
      %6788 = sbr.rel (%p6786) target = $region48
    $region47: #{ffm_forward.1} parent=5 // pred_region
      %s6789 = ssub.s32 %s11, 2
      // Predicated region
      $region49: #{ffm_forward.1} parent=47 // pred_check
        %p6790 = pneg %p155
      $region50: #{ffm_forward.1} parent=47 // pred_check_branch
        %6792 = sbr.rel (%p6790) target = $region52
      $region51: #{ffm_forward.1} parent=47 // pred_region
        %p6793 = scmp.lt.s32.totalorder %s17, 1
        %s6794 = scalar_select %p6793, %s17, 1
        %s6795 = smul.addr %s6794, 4
        %s6796 = smul.addr %s6795, 8
        %s6797 = scalar_lea.vmem %s5, %s6796
      $region52: #{ffm_forward.1} parent=47 // pred_fallthru
        _
    $region48: #{ffm_forward.1} parent=5 // pred_fallthru
      _
  $region6: #{ffm_forward.1} parent=0 // loop_footer
    %s15 = sadd.s32 1, %s11
  $region7: #{ffm_forward.1} parent=0 // loop_footer_branch
    %10 = sbr.rel target = $region3
  $region8: #{ffm_forward.1} parent=0 // loop_exit
    _

</llo_original>
